<compile_context>
chip_gen: v7x
topology: tpu7x:2x2x1
jax: 0.10.0
libtpu: 0.0.40
codegen_flags: <defaults>
</compile_context>

<pallas_src>
import math

import jax
import jax.numpy as jnp
from jax.experimental import pallas as pl
from jax.experimental.pallas import tpu as pltpu

_EPS = 1e-6  # GroupNorm eps in the reference module


def _resblock_kernel(x_ref, m_ref, mt_ref,
                     g1_ref, b1_ref, w1_ref, c1b_ref,
                     g2_ref, b2_ref, w2_ref, c2b_ref,
                     o_ref, pad_ref, col_ref):
    # x_ref  : (1, H, W, C) input tile (one batch element)
    # m_ref  : (C, G) 0/1 channel->group membership, mt_ref: (G, C) its transpose
    # gN/bN  : (1, C) GroupNorm affine params (f32)
    # wN     : (9*C, C) bf16 conv weights, row index = (dy*3+dx)*C + c_in
    # cNb    : (1, C) conv bias (f32)
    # pad_ref: VMEM scratch (H+2, W+2, C) f32  -- zero-bordered conv input
    # col_ref: VMEM scratch (H*W, 9*C) bf16    -- im2col slab (matmul LHS)
    _, H, W, C = x_ref.shape
    G = m_ref.shape[1]
    cpg = C // G
    HW = H * W
    inv_n = 1.0 / float(HW * cpg)
    hp = jax.lax.Precision.HIGHEST

    # Zero ONLY the 1-pixel border of the pad scratch; the interior is fully
    # overwritten before each conv.  Done every grid step on purpose: scratch is
    # per-core and the batch axis is 'parallel', so a program_id==0 guard would be
    # wrong on multi-TensorCore parts.
    zr = jnp.zeros((1, W + 2, C), pad_ref.dtype)
    zc = jnp.zeros((H, 1, C), pad_ref.dtype)
    pad_ref[0:1, :, :] = zr
    pad_ref[H + 1:H + 2, :, :] = zr
    pad_ref[1:H + 1, 0:1, :] = zc
    pad_ref[1:H + 1, W + 1:W + 2, :] = zc

    def group_norm(h, gamma, beta):
        # Stats stay in f32 (per-channel spatial sums, folded to groups).
        s = jnp.sum(h, axis=0, keepdims=True)        # (1, C)
        ss = jnp.sum(h * h, axis=0, keepdims=True)   # (1, C)
        if cpg == 1:
            # channels == groups (e.g. C == 32): membership is identity, skip fold.
            mean_c = s * inv_n
            var_c = ss * inv_n - mean_c * mean_c
            rstd_c = jax.lax.rsqrt(var_c + _EPS)
        else:
            # Fold channel sums into group sums with the 0/1 membership matrix.
            # Exact in f32; two 2-row matmuls per GN, negligible next to the convs.
            st = jnp.concatenate([s, ss], axis=0)                        # (2, C)
            stg = jnp.dot(st, m_ref[...], precision=hp,
                          preferred_element_type=jnp.float32) * inv_n    # (2, G)
            mean_g = stg[0:1]
            var_g = stg[1:2] - mean_g * mean_g
            rstd_g = jax.lax.rsqrt(var_g + _EPS)
            mr = jnp.concatenate([mean_g, rstd_g], axis=0)               # (2, G)
            mrc = jnp.dot(mr, mt_ref[...], precision=hp,
                          preferred_element_type=jnp.float32)            # (2, C)
            mean_c = mrc[0:1]
            rstd_c = mrc[1:2]
        return (h - mean_c) * rstd_c * gamma + beta

    def silu(h):
        return h * jax.nn.sigmoid(h)

    def conv3x3(h, w_ref, bias):
        # Zero-padded 3x3 "same" conv as ONE im2col matmul:
        #   (HW, 9C) bf16 @ (9C, C) bf16 -> f32 accumulation.
        pad_ref[1:H + 1, 1:W + 1, :] = h.reshape(H, W, C)
        for t in range(9):                      # static unroll: 9 tap copies
            dy, dx = t // 3, t % 3
            col_ref[:, t * C:(t + 1) * C] = (
                pad_ref[dy:dy + H, dx:dx + W, :]
                .reshape(HW, C).astype(col_ref.dtype))
        acc = jnp.dot(col_ref[...], w_ref[...],
                      preferred_element_type=jnp.float32)     # (HW, C) f32
        return acc + bias

    h = x_ref[0].astype(jnp.float32).reshape(HW, C)
    h = conv3x3(silu(group_norm(h, g1_ref[...], b1_ref[...])), w1_ref, c1b_ref[...])
    h = conv3x3(silu(group_norm(h, g2_ref[...], b2_ref[...])), w2_ref, c2b_ref[...])
    # Residual: re-read the (already VMEM-resident) input block at the end instead
    # of keeping an f32 copy live across both convs / GroupNorms.
    o_ref[0] = (h.reshape(H, W, C) + x_ref[0].astype(jnp.float32)).astype(o_ref.dtype)


def resblock_pallas(x_nchw, params, num_groups=32):
    """x_nchw: (N, C, H, W) float32 — matches the PyTorch module's input layout."""
    N, C, H, W = x_nchw.shape
    G = num_groups
    assert C % G == 0, "GroupNorm(32, C) requires C % 32 == 0"

    x = jnp.transpose(x_nchw, (0, 2, 3, 1))  # -> NHWC (channels on lanes)

    # 0/1 channel->group membership matrix (+ transpose) for the GN group fold.
    M = (jnp.arange(C)[:, None] // (C // G) ==
         jnp.arange(G)[None, :]).astype(jnp.float32)            # (C, G)
    MT = M.T                                                     # (G, C)

    # PyTorch Conv2d weight (C_out, C_in, 3, 3) -> im2col matrix (9*C_in, C_out),
    # row index = (dy*3 + dx)*C_in + c_in, pre-cast to bf16 for the MXU.
    def pack_w(w):
        return jnp.transpose(w, (2, 3, 1, 0)).reshape(9 * C, C).astype(jnp.bfloat16)

    w1 = pack_w(params["w1"])
    w2 = pack_w(params["w2"])
    g1 = params["g1"].reshape(1, C).astype(jnp.float32)
    b1 = params["b1"].reshape(1, C).astype(jnp.float32)
    c1b = params["c1b"].reshape(1, C).astype(jnp.float32)
    g2 = params["g2"].reshape(1, C).astype(jnp.float32)
    b2 = params["b2"].reshape(1, C).astype(jnp.float32)
    c2b = params["c2b"].reshape(1, C).astype(jnp.float32)

    full = lambda shape: pl.BlockSpec(shape, lambda n: (0,) * len(shape))

    out = pl.pallas_call(
        _resblock_kernel,
        out_shape=jax.ShapeDtypeStruct((N, H, W, C), x.dtype),
        grid_spec=pltpu.PrefetchScalarGridSpec(
            num_scalar_prefetch=0,
            grid=(N,),
            in_specs=[
                pl.BlockSpec((1, H, W, C), lambda n: (n, 0, 0, 0)),  # x
                full((C, G)),          # group membership
                full((G, C)),          # membership transpose
                full((1, C)),          # gn1 gamma
                full((1, C)),          # gn1 beta
                full((9 * C, C)),      # conv1 weight (bf16 im2col matrix)
                full((1, C)),          # conv1 bias
                full((1, C)),          # gn2 gamma
                full((1, C)),          # gn2 beta
                full((9 * C, C)),      # conv2 weight
                full((1, C)),          # conv2 bias
            ],
            out_specs=pl.BlockSpec((1, H, W, C), lambda n: (n, 0, 0, 0)),
            scratch_shapes=[
                pltpu.VMEM((H + 2, W + 2, C), jnp.float32),   # padded conv input
                pltpu.VMEM((H * W, 9 * C), jnp.bfloat16),     # im2col slab
            ],
        ),
        compiler_params=pltpu.CompilerParams(
            dimension_semantics=("parallel",),      # batch across TensorCores
            vmem_limit_bytes=64 * 1024 * 1024,      # explicit scoped-VMEM budget
        ),
    )(x, M, MT, g1, b1, w1, c1b, g2, b2, w2, c2b)

    return jnp.transpose(out, (0, 3, 1, 2))  # back to NCHW


def resblock_reference(x, params, num_groups=32):
    """Pure-JAX NCHW reference mirroring the PyTorch module."""
    def gn(h, gamma, beta):
        N, C, H, W = h.shape
        hg = h.reshape(N, num_groups, C // num_groups, H, W)
        mean = jnp.mean(hg, axis=(2, 3, 4), keepdims=True)
        var = jnp.var(hg, axis=(2, 3, 4), keepdims=True)
        hn = ((hg - mean) / jnp.sqrt(var + _EPS)).reshape(N, C, H, W)
        return hn * gamma[None, :, None, None] + beta[None, :, None, None]

    def conv(h, w, b):
        y = jax.lax.conv_general_dilated(
            h, w, window_strides=(1, 1), padding="SAME",
            dimension_numbers=("NCHW", "OIHW", "NCHW"),
            precision=jax.lax.Precision.HIGHEST)
        return y + b[None, :, None, None]

    h = gn(x, params["g1"], params["b1"])
    h = h * jax.nn.sigmoid(h)
    h = conv(h, params["w1"], params["c1b"])
    h = gn(h, params["g2"], params["b2"])
    h = h * jax.nn.sigmoid(h)
    h = conv(h, params["w2"], params["c2b"])
    return h + x


if __name__ == "__main__":
    # Small but lane-dense shapes: C=128 fills the 128-lane vregs / MXU columns
    # (GroupNorm(32, C) needs C % 32 == 0) and exercises the group-fold path.
    N, C, H, W = 2, 128, 16, 16
    keys = jax.random.split(jax.random.PRNGKey(0), 9)
    wstd = 1.0 / math.sqrt(9 * C)   # ~PyTorch Conv2d default (kaiming) scale
    x = jax.random.normal(keys[0], (N, C, H, W), jnp.float32)
    params = {
        "g1": 1.0 + 0.1 * jax.random.normal(keys[1], (C,), jnp.float32),
        "b1": 0.1 * jax.random.normal(keys[2], (C,), jnp.float32),
        "w1": wstd * jax.random.normal(keys[3], (C, C, 3, 3), jnp.float32),
        "c1b": wstd * jax.random.normal(keys[4], (C,), jnp.float32),
        "g2": 1.0 + 0.1 * jax.random.normal(keys[5], (C,), jnp.float32),
        "b2": 0.1 * jax.random.normal(keys[6], (C,), jnp.float32),
        "w2": wstd * jax.random.normal(keys[7], (C, C, 3, 3), jnp.float32),
        "c2b": wstd * jax.random.normal(keys[8], (C,), jnp.float32),
    }

    out = jax.block_until_ready(resblock_pallas(x, params))
    ref = resblock_reference(x, params)

    assert out.shape == x.shape and out.dtype == x.dtype
    max_err = float(jnp.max(jnp.abs(out - ref)))
    # Conv operands are bf16 (f32 accumulation) per the perf review; GN stats stay f32.
    if not bool(jnp.allclose(out, ref, atol=2e-2, rtol=1e-2)):
        raise AssertionError(
            f"Pallas ResBlock mismatch vs reference, max abs err = {max_err}")
    print("KERNEL_OK")
</pallas_src>

<mosaic_0001>
module attributes {stable_mosaic.version = 11 : i64} {
  func.func @_resblock_kernel(%arg0: i32, %arg1: memref<1x16x16x128xf32, #tpu.memory_space<vmem>>, %arg2: memref<128x32xf32, #tpu.memory_space<vmem>>, %arg3: memref<32x128xf32, #tpu.memory_space<vmem>>, %arg4: memref<1x128xf32, #tpu.memory_space<vmem>>, %arg5: memref<1x128xf32, #tpu.memory_space<vmem>>, %arg6: memref<1152x128xbf16, #tpu.memory_space<vmem>>, %arg7: memref<1x128xf32, #tpu.memory_space<vmem>>, %arg8: memref<1x128xf32, #tpu.memory_space<vmem>>, %arg9: memref<1x128xf32, #tpu.memory_space<vmem>>, %arg10: memref<1152x128xbf16, #tpu.memory_space<vmem>>, %arg11: memref<1x128xf32, #tpu.memory_space<vmem>>, %arg12: memref<1x16x16x128xf32, #tpu.memory_space<vmem>>, %arg13: memref<18x18x128xf32, #tpu.memory_space<vmem>>, %arg14: memref<256x1152xbf16, #tpu.memory_space<vmem>>) attributes {dimension_semantics = [#tpu.dimension_semantics<parallel>], iteration_bounds = array<i64: 2>, scalar_prefetch = 0 : i64, scratch_operands = 2 : i64, tpu.core_type = #tpu.core_type<tc>, window_params = [{transform_indices = @transform_0, window_bounds = array<i64: 1, 16, 16, 128>}, {pipeline_mode = #tpu.pipeline_mode<synchronous>, transform_indices = @transform_1, window_bounds = array<i64: 128, 32>}, {pipeline_mode = #tpu.pipeline_mode<synchronous>, transform_indices = @transform_2, window_bounds = array<i64: 32, 128>}, {pipeline_mode = #tpu.pipeline_mode<synchronous>, transform_indices = @transform_3, window_bounds = array<i64: 1, 128>}, {pipeline_mode = #tpu.pipeline_mode<synchronous>, transform_indices = @transform_4, window_bounds = array<i64: 1, 128>}, {pipeline_mode = #tpu.pipeline_mode<synchronous>, transform_indices = @transform_5, window_bounds = array<i64: 1152, 128>}, {pipeline_mode = #tpu.pipeline_mode<synchronous>, transform_indices = @transform_6, window_bounds = array<i64: 1, 128>}, {pipeline_mode = #tpu.pipeline_mode<synchronous>, transform_indices = @transform_7, window_bounds = array<i64: 1, 128>}, {pipeline_mode = #tpu.pipeline_mode<synchronous>, transform_indices = @transform_8, window_bounds = array<i64: 1, 128>}, {pipeline_mode = #tpu.pipeline_mode<synchronous>, transform_indices = @transform_9, window_bounds = array<i64: 1152, 128>}, {pipeline_mode = #tpu.pipeline_mode<synchronous>, transform_indices = @transform_10, window_bounds = array<i64: 1, 128>}, {transform_indices = @transform_11, window_bounds = array<i64: 1, 16, 16, 128>}]} {
    %cst = arith.constant 0.000000e+00 : f32
    %0 = vector.broadcast %cst : f32 to vector<1x18x128xf32>
    %cst_0 = arith.constant 0.000000e+00 : f32
    %1 = vector.broadcast %cst_0 : f32 to vector<16x1x128xf32>
    %c0 = arith.constant 0 : index
    %c0_1 = arith.constant 0 : index
    %c0_2 = arith.constant 0 : index
    %2 = vector.load %arg13[%c0, %c0_1, %c0_2] : memref<18x18x128xf32, #tpu.memory_space<vmem>>, vector<1x18x128xf32>
    tpu.vector_store %arg13[%c0, %c0_1, %c0_2], %0 {strides = array<i32>} : memref<18x18x128xf32, #tpu.memory_space<vmem>>, vector<1x18x128xf32>,
    %c17 = arith.constant 17 : index
    %c0_3 = arith.constant 0 : index
    %c0_4 = arith.constant 0 : index
    %3 = vector.load %arg13[%c17, %c0_3, %c0_4] : memref<18x18x128xf32, #tpu.memory_space<vmem>>, vector<1x18x128xf32>
    tpu.vector_store %arg13[%c17, %c0_3, %c0_4], %0 {strides = array<i32>} : memref<18x18x128xf32, #tpu.memory_space<vmem>>, vector<1x18x128xf32>,
    %c1 = arith.constant 1 : index
    %c0_5 = arith.constant 0 : index
    %c0_6 = arith.constant 0 : index
    %4 = vector.load %arg13[%c1, %c0_5, %c0_6] : memref<18x18x128xf32, #tpu.memory_space<vmem>>, vector<16x1x128xf32>
    tpu.vector_store %arg13[%c1, %c0_5, %c0_6], %1 {strides = array<i32>} : memref<18x18x128xf32, #tpu.memory_space<vmem>>, vector<16x1x128xf32>,
    %c1_7 = arith.constant 1 : index
    %c17_8 = arith.constant 17 : index
    %c0_9 = arith.constant 0 : index
    %5 = vector.load %arg13[%c1_7, %c17_8, %c0_9] : memref<18x18x128xf32, #tpu.memory_space<vmem>>, vector<16x1x128xf32>
    tpu.vector_store %arg13[%c1_7, %c17_8, %c0_9], %1 {strides = array<i32>} : memref<18x18x128xf32, #tpu.memory_space<vmem>>, vector<16x1x128xf32>,
    %c0_10 = arith.constant 0 : index
    %c0_11 = arith.constant 0 : index
    %c0_12 = arith.constant 0 : index
    %c0_13 = arith.constant 0 : index
    %6 = vector.load %arg1[%c0_10, %c0_11, %c0_12, %c0_13] : memref<1x16x16x128xf32, #tpu.memory_space<vmem>>, vector<1x16x16x128xf32>
    %7 = vector.shape_cast %6 : vector<1x16x16x128xf32> to vector<16x16x128xf32>
    %8 = vector.shape_cast %7 : vector<16x16x128xf32> to vector<256x128xf32>
    %c0_14 = arith.constant 0 : index
    %c0_15 = arith.constant 0 : index
    %9 = vector.load %arg4[%c0_14, %c0_15] : memref<1x128xf32, #tpu.memory_space<vmem>>, vector<1x128xf32>
    %c0_16 = arith.constant 0 : index
    %c0_17 = arith.constant 0 : index
    %10 = vector.load %arg5[%c0_16, %c0_17] : memref<1x128xf32, #tpu.memory_space<vmem>>, vector<1x128xf32>
    %cst_18 = arith.constant dense<0.000000e+00> : vector<128xf32>
    %11 = vector.multi_reduction <add>, %8, %cst_18 [0] : vector<256x128xf32> to vector<128xf32>
    %12 = vector.shape_cast %11 : vector<128xf32> to vector<1x128xf32>
    %13 = arith.mulf %8, %8 : vector<256x128xf32>
    %cst_19 = arith.constant dense<0.000000e+00> : vector<128xf32>
    %14 = vector.multi_reduction <add>, %13, %cst_19 [0] : vector<256x128xf32> to vector<128xf32>
    %15 = vector.shape_cast %14 : vector<128xf32> to vector<1x128xf32>
    %16 = tpu.concatenate %12, %15 in 0 : vector<1x128xf32>, vector<1x128xf32> -> vector<2x128xf32>
    %c0_20 = arith.constant 0 : index
    %c0_21 = arith.constant 0 : index
    %17 = vector.load %arg2[%c0_20, %c0_21] : memref<128x32xf32, #tpu.memory_space<vmem>>, vector<128x32xf32>
    %cst_22 = arith.constant dense<0.000000e+00> : vector<2x32xf32>
    %18 = tpu.matmul %16, %17, %cst_22 {dimension_numbers = #tpu.dot_dimension_numbers<[1], [0], [0], [1], [0, 0, 1, 1], [], []>, precision = #tpu.contract_precision<fp32>} : vector<2x128xf32>, vector<128x32xf32>, vector<2x32xf32> -> vector<2x32xf32>
    %cst_23 = arith.constant 9.765625E-4 : f32
    %19 = vector.broadcast %cst_23 : f32 to vector<2x32xf32>
    %20 = arith.mulf %18, %19 : vector<2x32xf32>
    %21 = vector.extract_strided_slice %20 {offsets = [0, 0], sizes = [1, 32], strides = [1, 1]} : vector<2x32xf32> to vector<1x32xf32>
    %22 = vector.extract_strided_slice %20 {offsets = [1, 0], sizes = [1, 32], strides = [1, 1]} : vector<2x32xf32> to vector<1x32xf32>
    %23 = arith.mulf %21, %21 : vector<1x32xf32>
    %24 = arith.subf %22, %23 : vector<1x32xf32>
    %cst_24 = arith.constant 9.99999997E-7 : f32
    %25 = vector.broadcast %cst_24 : f32 to vector<1x32xf32>
    %26 = arith.addf %24, %25 : vector<1x32xf32>
    %27 = math.rsqrt %26 : vector<1x32xf32>
    %28 = tpu.concatenate %21, %27 in 0 : vector<1x32xf32>, vector<1x32xf32> -> vector<2x32xf32>
    %c0_25 = arith.constant 0 : index
    %c0_26 = arith.constant 0 : index
    %29 = vector.load %arg3[%c0_25, %c0_26] : memref<32x128xf32, #tpu.memory_space<vmem>>, vector<32x128xf32>
    %cst_27 = arith.constant dense<0.000000e+00> : vector<2x128xf32>
    %30 = tpu.matmul %28, %29, %cst_27 {dimension_numbers = #tpu.dot_dimension_numbers<[1], [0], [0], [1], [0, 0, 1, 1], [], []>, precision = #tpu.contract_precision<fp32>} : vector<2x32xf32>, vector<32x128xf32>, vector<2x128xf32> -> vector<2x128xf32>
    %31 = vector.extract_strided_slice %30 {offsets = [0, 0], sizes = [1, 128], strides = [1, 1]} : vector<2x128xf32> to vector<1x128xf32>
    %32 = vector.extract_strided_slice %30 {offsets = [1, 0], sizes = [1, 128], strides = [1, 1]} : vector<2x128xf32> to vector<1x128xf32>
    %33 = vector.broadcast %31 : vector<1x128xf32> to vector<256x128xf32>
    %34 = arith.subf %8, %33 : vector<256x128xf32>
    %35 = vector.broadcast %32 : vector<1x128xf32> to vector<256x128xf32>
    %36 = arith.mulf %34, %35 : vector<256x128xf32>
    %37 = vector.broadcast %9 : vector<1x128xf32> to vector<256x128xf32>
    %38 = arith.mulf %36, %37 : vector<256x128xf32>
    %39 = vector.broadcast %10 : vector<1x128xf32> to vector<256x128xf32>
    %40 = arith.addf %38, %39 : vector<256x128xf32>
    %41 = arith.negf %40 : vector<256x128xf32>
    %42 = math.exp %41 : vector<256x128xf32>
    %cst_28 = arith.constant 1.000000e+00 : f32
    %43 = vector.broadcast %cst_28 : f32 to vector<256x128xf32>
    %44 = arith.addf %43, %42 : vector<256x128xf32>
    %45 = arith.divf %43, %44 : vector<256x128xf32>
    %46 = arith.mulf %40, %45 : vector<256x128xf32>
    %c0_29 = arith.constant 0 : index
    %c0_30 = arith.constant 0 : index
    %47 = vector.load %arg7[%c0_29, %c0_30] : memref<1x128xf32, #tpu.memory_space<vmem>>, vector<1x128xf32>
    %48 = vector.shape_cast %46 : vector<256x128xf32> to vector<16x16x128xf32>
    %c1_31 = arith.constant 1 : index
    %c1_32 = arith.constant 1 : index
    %c0_33 = arith.constant 0 : index
    %49 = vector.load %arg13[%c1_31, %c1_32, %c0_33] : memref<18x18x128xf32, #tpu.memory_space<vmem>>, vector<16x16x128xf32>
    tpu.vector_store %arg13[%c1_31, %c1_32, %c0_33], %48 {strides = array<i32>} : memref<18x18x128xf32, #tpu.memory_space<vmem>>, vector<16x16x128xf32>,
    %c0_34 = arith.constant 0 : index
    %c0_35 = arith.constant 0 : index
    %c0_36 = arith.constant 0 : index
    %50 = vector.load %arg13[%c0_34, %c0_35, %c0_36] : memref<18x18x128xf32, #tpu.memory_space<vmem>>, vector<16x16x128xf32>
    %51 = vector.shape_cast %50 : vector<16x16x128xf32> to vector<256x128xf32>
    %52 = arith.truncf %51 : vector<256x128xf32> to vector<256x128xbf16>
    %c0_37 = arith.constant 0 : index
    %c0_38 = arith.constant 0 : index
    %53 = vector.load %arg14[%c0_37, %c0_38] : memref<256x1152xbf16, #tpu.memory_space<vmem>>, vector<256x128xbf16>
    tpu.vector_store %arg14[%c0_37, %c0_38], %52 {strides = array<i32>} : memref<256x1152xbf16, #tpu.memory_space<vmem>>, vector<256x128xbf16>,
    %c0_39 = arith.constant 0 : index
    %c1_40 = arith.constant 1 : index
    %c0_41 = arith.constant 0 : index
    %54 = vector.load %arg13[%c0_39, %c1_40, %c0_41] : memref<18x18x128xf32, #tpu.memory_space<vmem>>, vector<16x16x128xf32>
    %55 = vector.shape_cast %54 : vector<16x16x128xf32> to vector<256x128xf32>
    %56 = arith.truncf %55 : vector<256x128xf32> to vector<256x128xbf16>
    %c0_42 = arith.constant 0 : index
    %c128 = arith.constant 128 : index
    %57 = vector.load %arg14[%c0_42, %c128] : memref<256x1152xbf16, #tpu.memory_space<vmem>>, vector<256x128xbf16>
    tpu.vector_store %arg14[%c0_42, %c128], %56 {strides = array<i32>} : memref<256x1152xbf16, #tpu.memory_space<vmem>>, vector<256x128xbf16>,
    %c0_43 = arith.constant 0 : index
    %c2 = arith.constant 2 : index
    %c0_44 = arith.constant 0 : index
    %58 = vector.load %arg13[%c0_43, %c2, %c0_44] : memref<18x18x128xf32, #tpu.memory_space<vmem>>, vector<16x16x128xf32>
    %59 = vector.shape_cast %58 : vector<16x16x128xf32> to vector<256x128xf32>
    %60 = arith.truncf %59 : vector<256x128xf32> to vector<256x128xbf16>
    %c0_45 = arith.constant 0 : index
    %c256 = arith.constant 256 : index
    %61 = vector.load %arg14[%c0_45, %c256] : memref<256x1152xbf16, #tpu.memory_space<vmem>>, vector<256x128xbf16>
    tpu.vector_store %arg14[%c0_45, %c256], %60 {strides = array<i32>} : memref<256x1152xbf16, #tpu.memory_space<vmem>>, vector<256x128xbf16>,
    %c1_46 = arith.constant 1 : index
    %c0_47 = arith.constant 0 : index
    %c0_48 = arith.constant 0 : index
    %62 = vector.load %arg13[%c1_46, %c0_47, %c0_48] : memref<18x18x128xf32, #tpu.memory_space<vmem>>, vector<16x16x128xf32>
    %63 = vector.shape_cast %62 : vector<16x16x128xf32> to vector<256x128xf32>
    %64 = arith.truncf %63 : vector<256x128xf32> to vector<256x128xbf16>
    %c0_49 = arith.constant 0 : index
    %c384 = arith.constant 384 : index
    %65 = vector.load %arg14[%c0_49, %c384] : memref<256x1152xbf16, #tpu.memory_space<vmem>>, vector<256x128xbf16>
    tpu.vector_store %arg14[%c0_49, %c384], %64 {strides = array<i32>} : memref<256x1152xbf16, #tpu.memory_space<vmem>>, vector<256x128xbf16>,
    %c1_50 = arith.constant 1 : index
    %c1_51 = arith.constant 1 : index
    %c0_52 = arith.constant 0 : index
    %66 = vector.load %arg13[%c1_50, %c1_51, %c0_52] : memref<18x18x128xf32, #tpu.memory_space<vmem>>, vector<16x16x128xf32>
    %67 = vector.shape_cast %66 : vector<16x16x128xf32> to vector<256x128xf32>
    %68 = arith.truncf %67 : vector<256x128xf32> to vector<256x128xbf16>
    %c0_53 = arith.constant 0 : index
    %c512 = arith.constant 512 : index
    %69 = vector.load %arg14[%c0_53, %c512] : memref<256x1152xbf16, #tpu.memory_space<vmem>>, vector<256x128xbf16>
    tpu.vector_store %arg14[%c0_53, %c512], %68 {strides = array<i32>} : memref<256x1152xbf16, #tpu.memory_space<vmem>>, vector<256x128xbf16>,
    %c1_54 = arith.constant 1 : index
    %c2_55 = arith.constant 2 : index
    %c0_56 = arith.constant 0 : index
    %70 = vector.load %arg13[%c1_54, %c2_55, %c0_56] : memref<18x18x128xf32, #tpu.memory_space<vmem>>, vector<16x16x128xf32>
    %71 = vector.shape_cast %70 : vector<16x16x128xf32> to vector<256x128xf32>
    %72 = arith.truncf %71 : vector<256x128xf32> to vector<256x128xbf16>
    %c0_57 = arith.constant 0 : index
    %c640 = arith.constant 640 : index
    %73 = vector.load %arg14[%c0_57, %c640] : memref<256x1152xbf16, #tpu.memory_space<vmem>>, vector<256x128xbf16>
    tpu.vector_store %arg14[%c0_57, %c640], %72 {strides = array<i32>} : memref<256x1152xbf16, #tpu.memory_space<vmem>>, vector<256x128xbf16>,
    %c2_58 = arith.constant 2 : index
    %c0_59 = arith.constant 0 : index
    %c0_60 = arith.constant 0 : index
    %74 = vector.load %arg13[%c2_58, %c0_59, %c0_60] : memref<18x18x128xf32, #tpu.memory_space<vmem>>, vector<16x16x128xf32>
    %75 = vector.shape_cast %74 : vector<16x16x128xf32> to vector<256x128xf32>
    %76 = arith.truncf %75 : vector<256x128xf32> to vector<256x128xbf16>
    %c0_61 = arith.constant 0 : index
    %c768 = arith.constant 768 : index
    %77 = vector.load %arg14[%c0_61, %c768] : memref<256x1152xbf16, #tpu.memory_space<vmem>>, vector<256x128xbf16>
    tpu.vector_store %arg14[%c0_61, %c768], %76 {strides = array<i32>} : memref<256x1152xbf16, #tpu.memory_space<vmem>>, vector<256x128xbf16>,
    %c2_62 = arith.constant 2 : index
    %c1_63 = arith.constant 1 : index
    %c0_64 = arith.constant 0 : index
    %78 = vector.load %arg13[%c2_62, %c1_63, %c0_64] : memref<18x18x128xf32, #tpu.memory_space<vmem>>, vector<16x16x128xf32>
    %79 = vector.shape_cast %78 : vector<16x16x128xf32> to vector<256x128xf32>
    %80 = arith.truncf %79 : vector<256x128xf32> to vector<256x128xbf16>
    %c0_65 = arith.constant 0 : index
    %c896 = arith.constant 896 : index
    %81 = vector.load %arg14[%c0_65, %c896] : memref<256x1152xbf16, #tpu.memory_space<vmem>>, vector<256x128xbf16>
    tpu.vector_store %arg14[%c0_65, %c896], %80 {strides = array<i32>} : memref<256x1152xbf16, #tpu.memory_space<vmem>>, vector<256x128xbf16>,
    %c2_66 = arith.constant 2 : index
    %c2_67 = arith.constant 2 : index
    %c0_68 = arith.constant 0 : index
    %82 = vector.load %arg13[%c2_66, %c2_67, %c0_68] : memref<18x18x128xf32, #tpu.memory_space<vmem>>, vector<16x16x128xf32>
    %83 = vector.shape_cast %82 : vector<16x16x128xf32> to vector<256x128xf32>
    %84 = arith.truncf %83 : vector<256x128xf32> to vector<256x128xbf16>
    %c0_69 = arith.constant 0 : index
    %c1024 = arith.constant 1024 : index
    %85 = vector.load %arg14[%c0_69, %c1024] : memref<256x1152xbf16, #tpu.memory_space<vmem>>, vector<256x128xbf16>
    tpu.vector_store %arg14[%c0_69, %c1024], %84 {strides = array<i32>} : memref<256x1152xbf16, #tpu.memory_space<vmem>>, vector<256x128xbf16>,
    %c0_70 = arith.constant 0 : index
    %c0_71 = arith.constant 0 : index
    %86 = vector.load %arg14[%c0_70, %c0_71] : memref<256x1152xbf16, #tpu.memory_space<vmem>>, vector<256x1152xbf16>
    %c0_72 = arith.constant 0 : index
    %c0_73 = arith.constant 0 : index
    %87 = vector.load %arg6[%c0_72, %c0_73] : memref<1152x128xbf16, #tpu.memory_space<vmem>>, vector<1152x128xbf16>
    %cst_74 = arith.constant dense<0.000000e+00> : vector<256x128xf32>
    %88 = tpu.matmul %86, %87, %cst_74 {dimension_numbers = #tpu.dot_dimension_numbers<[1], [0], [0], [1], [0, 0, 1, 1], [], []>} : vector<256x1152xbf16>, vector<1152x128xbf16>, vector<256x128xf32> -> vector<256x128xf32>
    %89 = vector.broadcast %47 : vector<1x128xf32> to vector<256x128xf32>
    %90 = arith.addf %88, %89 : vector<256x128xf32>
    %c0_75 = arith.constant 0 : index
    %c0_76 = arith.constant 0 : index
    %91 = vector.load %arg8[%c0_75, %c0_76] : memref<1x128xf32, #tpu.memory_space<vmem>>, vector<1x128xf32>
    %c0_77 = arith.constant 0 : index
    %c0_78 = arith.constant 0 : index
    %92 = vector.load %arg9[%c0_77, %c0_78] : memref<1x128xf32, #tpu.memory_space<vmem>>, vector<1x128xf32>
    %cst_79 = arith.constant dense<0.000000e+00> : vector<128xf32>
    %93 = vector.multi_reduction <add>, %90, %cst_79 [0] : vector<256x128xf32> to vector<128xf32>
    %94 = vector.shape_cast %93 : vector<128xf32> to vector<1x128xf32>
    %95 = arith.mulf %90, %90 : vector<256x128xf32>
    %cst_80 = arith.constant dense<0.000000e+00> : vector<128xf32>
    %96 = vector.multi_reduction <add>, %95, %cst_80 [0] : vector<256x128xf32> to vector<128xf32>
    %97 = vector.shape_cast %96 : vector<128xf32> to vector<1x128xf32>
    %98 = tpu.concatenate %94, %97 in 0 : vector<1x128xf32>, vector<1x128xf32> -> vector<2x128xf32>
    %c0_81 = arith.constant 0 : index
    %c0_82 = arith.constant 0 : index
    %99 = vector.load %arg2[%c0_81, %c0_82] : memref<128x32xf32, #tpu.memory_space<vmem>>, vector<128x32xf32>
    %cst_83 = arith.constant dense<0.000000e+00> : vector<2x32xf32>
    %100 = tpu.matmul %98, %99, %cst_83 {dimension_numbers = #tpu.dot_dimension_numbers<[1], [0], [0], [1], [0, 0, 1, 1], [], []>, precision = #tpu.contract_precision<fp32>} : vector<2x128xf32>, vector<128x32xf32>, vector<2x32xf32> -> vector<2x32xf32>
    %cst_84 = arith.constant 9.765625E-4 : f32
    %101 = vector.broadcast %cst_84 : f32 to vector<2x32xf32>
    %102 = arith.mulf %100, %101 : vector<2x32xf32>
    %103 = vector.extract_strided_slice %102 {offsets = [0, 0], sizes = [1, 32], strides = [1, 1]} : vector<2x32xf32> to vector<1x32xf32>
    %104 = vector.extract_strided_slice %102 {offsets = [1, 0], sizes = [1, 32], strides = [1, 1]} : vector<2x32xf32> to vector<1x32xf32>
    %105 = arith.mulf %103, %103 : vector<1x32xf32>
    %106 = arith.subf %104, %105 : vector<1x32xf32>
    %cst_85 = arith.constant 9.99999997E-7 : f32
    %107 = vector.broadcast %cst_85 : f32 to vector<1x32xf32>
    %108 = arith.addf %106, %107 : vector<1x32xf32>
    %109 = math.rsqrt %108 : vector<1x32xf32>
    %110 = tpu.concatenate %103, %109 in 0 : vector<1x32xf32>, vector<1x32xf32> -> vector<2x32xf32>
    %c0_86 = arith.constant 0 : index
    %c0_87 = arith.constant 0 : index
    %111 = vector.load %arg3[%c0_86, %c0_87] : memref<32x128xf32, #tpu.memory_space<vmem>>, vector<32x128xf32>
    %cst_88 = arith.constant dense<0.000000e+00> : vector<2x128xf32>
    %112 = tpu.matmul %110, %111, %cst_88 {dimension_numbers = #tpu.dot_dimension_numbers<[1], [0], [0], [1], [0, 0, 1, 1], [], []>, precision = #tpu.contract_precision<fp32>} : vector<2x32xf32>, vector<32x128xf32>, vector<2x128xf32> -> vector<2x128xf32>
    %113 = vector.extract_strided_slice %112 {offsets = [0, 0], sizes = [1, 128], strides = [1, 1]} : vector<2x128xf32> to vector<1x128xf32>
    %114 = vector.extract_strided_slice %112 {offsets = [1, 0], sizes = [1, 128], strides = [1, 1]} : vector<2x128xf32> to vector<1x128xf32>
    %115 = vector.broadcast %113 : vector<1x128xf32> to vector<256x128xf32>
    %116 = arith.subf %90, %115 : vector<256x128xf32>
    %117 = vector.broadcast %114 : vector<1x128xf32> to vector<256x128xf32>
    %118 = arith.mulf %116, %117 : vector<256x128xf32>
    %119 = vector.broadcast %91 : vector<1x128xf32> to vector<256x128xf32>
    %120 = arith.mulf %118, %119 : vector<256x128xf32>
    %121 = vector.broadcast %92 : vector<1x128xf32> to vector<256x128xf32>
    %122 = arith.addf %120, %121 : vector<256x128xf32>
    %123 = arith.negf %122 : vector<256x128xf32>
    %124 = math.exp %123 : vector<256x128xf32>
    %cst_89 = arith.constant 1.000000e+00 : f32
    %125 = vector.broadcast %cst_89 : f32 to vector<256x128xf32>
    %126 = arith.addf %125, %124 : vector<256x128xf32>
    %127 = arith.divf %125, %126 : vector<256x128xf32>
    %128 = arith.mulf %122, %127 : vector<256x128xf32>
    %c0_90 = arith.constant 0 : index
    %c0_91 = arith.constant 0 : index
    %129 = vector.load %arg11[%c0_90, %c0_91] : memref<1x128xf32, #tpu.memory_space<vmem>>, vector<1x128xf32>
    %130 = vector.shape_cast %128 : vector<256x128xf32> to vector<16x16x128xf32>
    %c1_92 = arith.constant 1 : index
    %c1_93 = arith.constant 1 : index
    %c0_94 = arith.constant 0 : index
    %131 = vector.load %arg13[%c1_92, %c1_93, %c0_94] : memref<18x18x128xf32, #tpu.memory_space<vmem>>, vector<16x16x128xf32>
    tpu.vector_store %arg13[%c1_92, %c1_93, %c0_94], %130 {strides = array<i32>} : memref<18x18x128xf32, #tpu.memory_space<vmem>>, vector<16x16x128xf32>,
    %c0_95 = arith.constant 0 : index
    %c0_96 = arith.constant 0 : index
    %c0_97 = arith.constant 0 : index
    %132 = vector.load %arg13[%c0_95, %c0_96, %c0_97] : memref<18x18x128xf32, #tpu.memory_space<vmem>>, vector<16x16x128xf32>
    %133 = vector.shape_cast %132 : vector<16x16x128xf32> to vector<256x128xf32>
    %134 = arith.truncf %133 : vector<256x128xf32> to vector<256x128xbf16>
    %c0_98 = arith.constant 0 : index
    %c0_99 = arith.constant 0 : index
    %135 = vector.load %arg14[%c0_98, %c0_99] : memref<256x1152xbf16, #tpu.memory_space<vmem>>, vector<256x128xbf16>
    tpu.vector_store %arg14[%c0_98, %c0_99], %134 {strides = array<i32>} : memref<256x1152xbf16, #tpu.memory_space<vmem>>, vector<256x128xbf16>,
    %c0_100 = arith.constant 0 : index
    %c1_101 = arith.constant 1 : index
    %c0_102 = arith.constant 0 : index
    %136 = vector.load %arg13[%c0_100, %c1_101, %c0_102] : memref<18x18x128xf32, #tpu.memory_space<vmem>>, vector<16x16x128xf32>
    %137 = vector.shape_cast %136 : vector<16x16x128xf32> to vector<256x128xf32>
    %138 = arith.truncf %137 : vector<256x128xf32> to vector<256x128xbf16>
    %c0_103 = arith.constant 0 : index
    %c128_104 = arith.constant 128 : index
    %139 = vector.load %arg14[%c0_103, %c128_104] : memref<256x1152xbf16, #tpu.memory_space<vmem>>, vector<256x128xbf16>
    tpu.vector_store %arg14[%c0_103, %c128_104], %138 {strides = array<i32>} : memref<256x1152xbf16, #tpu.memory_space<vmem>>, vector<256x128xbf16>,
    %c0_105 = arith.constant 0 : index
    %c2_106 = arith.constant 2 : index
    %c0_107 = arith.constant 0 : index
    %140 = vector.load %arg13[%c0_105, %c2_106, %c0_107] : memref<18x18x128xf32, #tpu.memory_space<vmem>>, vector<16x16x128xf32>
    %141 = vector.shape_cast %140 : vector<16x16x128xf32> to vector<256x128xf32>
    %142 = arith.truncf %141 : vector<256x128xf32> to vector<256x128xbf16>
    %c0_108 = arith.constant 0 : index
    %c256_109 = arith.constant 256 : index
    %143 = vector.load %arg14[%c0_108, %c256_109] : memref<256x1152xbf16, #tpu.memory_space<vmem>>, vector<256x128xbf16>
    tpu.vector_store %arg14[%c0_108, %c256_109], %142 {strides = array<i32>} : memref<256x1152xbf16, #tpu.memory_space<vmem>>, vector<256x128xbf16>,
    %c1_110 = arith.constant 1 : index
    %c0_111 = arith.constant 0 : index
    %c0_112 = arith.constant 0 : index
    %144 = vector.load %arg13[%c1_110, %c0_111, %c0_112] : memref<18x18x128xf32, #tpu.memory_space<vmem>>, vector<16x16x128xf32>
    %145 = vector.shape_cast %144 : vector<16x16x128xf32> to vector<256x128xf32>
    %146 = arith.truncf %145 : vector<256x128xf32> to vector<256x128xbf16>
    %c0_113 = arith.constant 0 : index
    %c384_114 = arith.constant 384 : index
    %147 = vector.load %arg14[%c0_113, %c384_114] : memref<256x1152xbf16, #tpu.memory_space<vmem>>, vector<256x128xbf16>
    tpu.vector_store %arg14[%c0_113, %c384_114], %146 {strides = array<i32>} : memref<256x1152xbf16, #tpu.memory_space<vmem>>, vector<256x128xbf16>,
    %c1_115 = arith.constant 1 : index
    %c1_116 = arith.constant 1 : index
    %c0_117 = arith.constant 0 : index
    %148 = vector.load %arg13[%c1_115, %c1_116, %c0_117] : memref<18x18x128xf32, #tpu.memory_space<vmem>>, vector<16x16x128xf32>
    %149 = vector.shape_cast %148 : vector<16x16x128xf32> to vector<256x128xf32>
    %150 = arith.truncf %149 : vector<256x128xf32> to vector<256x128xbf16>
    %c0_118 = arith.constant 0 : index
    %c512_119 = arith.constant 512 : index
    %151 = vector.load %arg14[%c0_118, %c512_119] : memref<256x1152xbf16, #tpu.memory_space<vmem>>, vector<256x128xbf16>
    tpu.vector_store %arg14[%c0_118, %c512_119], %150 {strides = array<i32>} : memref<256x1152xbf16, #tpu.memory_space<vmem>>, vector<256x128xbf16>,
    %c1_120 = arith.constant 1 : index
    %c2_121 = arith.constant 2 : index
    %c0_122 = arith.constant 0 : index
    %152 = vector.load %arg13[%c1_120, %c2_121, %c0_122] : memref<18x18x128xf32, #tpu.memory_space<vmem>>, vector<16x16x128xf32>
    %153 = vector.shape_cast %152 : vector<16x16x128xf32> to vector<256x128xf32>
    %154 = arith.truncf %153 : vector<256x128xf32> to vector<256x128xbf16>
    %c0_123 = arith.constant 0 : index
    %c640_124 = arith.constant 640 : index
    %155 = vector.load %arg14[%c0_123, %c640_124] : memref<256x1152xbf16, #tpu.memory_space<vmem>>, vector<256x128xbf16>
    tpu.vector_store %arg14[%c0_123, %c640_124], %154 {strides = array<i32>} : memref<256x1152xbf16, #tpu.memory_space<vmem>>, vector<256x128xbf16>,
    %c2_125 = arith.constant 2 : index
    %c0_126 = arith.constant 0 : index
    %c0_127 = arith.constant 0 : index
    %156 = vector.load %arg13[%c2_125, %c0_126, %c0_127] : memref<18x18x128xf32, #tpu.memory_space<vmem>>, vector<16x16x128xf32>
    %157 = vector.shape_cast %156 : vector<16x16x128xf32> to vector<256x128xf32>
    %158 = arith.truncf %157 : vector<256x128xf32> to vector<256x128xbf16>
    %c0_128 = arith.constant 0 : index
    %c768_129 = arith.constant 768 : index
    %159 = vector.load %arg14[%c0_128, %c768_129] : memref<256x1152xbf16, #tpu.memory_space<vmem>>, vector<256x128xbf16>
    tpu.vector_store %arg14[%c0_128, %c768_129], %158 {strides = array<i32>} : memref<256x1152xbf16, #tpu.memory_space<vmem>>, vector<256x128xbf16>,
    %c2_130 = arith.constant 2 : index
    %c1_131 = arith.constant 1 : index
    %c0_132 = arith.constant 0 : index
    %160 = vector.load %arg13[%c2_130, %c1_131, %c0_132] : memref<18x18x128xf32, #tpu.memory_space<vmem>>, vector<16x16x128xf32>
    %161 = vector.shape_cast %160 : vector<16x16x128xf32> to vector<256x128xf32>
    %162 = arith.truncf %161 : vector<256x128xf32> to vector<256x128xbf16>
    %c0_133 = arith.constant 0 : index
    %c896_134 = arith.constant 896 : index
    %163 = vector.load %arg14[%c0_133, %c896_134] : memref<256x1152xbf16, #tpu.memory_space<vmem>>, vector<256x128xbf16>
    tpu.vector_store %arg14[%c0_133, %c896_134], %162 {strides = array<i32>} : memref<256x1152xbf16, #tpu.memory_space<vmem>>, vector<256x128xbf16>,
    %c2_135 = arith.constant 2 : index
    %c2_136 = arith.constant 2 : index
    %c0_137 = arith.constant 0 : index
    %164 = vector.load %arg13[%c2_135, %c2_136, %c0_137] : memref<18x18x128xf32, #tpu.memory_space<vmem>>, vector<16x16x128xf32>
    %165 = vector.shape_cast %164 : vector<16x16x128xf32> to vector<256x128xf32>
    %166 = arith.truncf %165 : vector<256x128xf32> to vector<256x128xbf16>
    %c0_138 = arith.constant 0 : index
    %c1024_139 = arith.constant 1024 : index
    %167 = vector.load %arg14[%c0_138, %c1024_139] : memref<256x1152xbf16, #tpu.memory_space<vmem>>, vector<256x128xbf16>
    tpu.vector_store %arg14[%c0_138, %c1024_139], %166 {strides = array<i32>} : memref<256x1152xbf16, #tpu.memory_space<vmem>>, vector<256x128xbf16>,
    %c0_140 = arith.constant 0 : index
    %c0_141 = arith.constant 0 : index
    %168 = vector.load %arg14[%c0_140, %c0_141] : memref<256x1152xbf16, #tpu.memory_space<vmem>>, vector<256x1152xbf16>
    %c0_142 = arith.constant 0 : index
    %c0_143 = arith.constant 0 : index
    %169 = vector.load %arg10[%c0_142, %c0_143] : memref<1152x128xbf16, #tpu.memory_space<vmem>>, vector<1152x128xbf16>
    %cst_144 = arith.constant dense<0.000000e+00> : vector<256x128xf32>
    %170 = tpu.matmul %168, %169, %cst_144 {dimension_numbers = #tpu.dot_dimension_numbers<[1], [0], [0], [1], [0, 0, 1, 1], [], []>} : vector<256x1152xbf16>, vector<1152x128xbf16>, vector<256x128xf32> -> vector<256x128xf32>
    %171 = vector.broadcast %129 : vector<1x128xf32> to vector<256x128xf32>
    %172 = arith.addf %170, %171 : vector<256x128xf32>
    %173 = vector.shape_cast %172 : vector<256x128xf32> to vector<16x16x128xf32>
    %c0_145 = arith.constant 0 : index
    %c0_146 = arith.constant 0 : index
    %c0_147 = arith.constant 0 : index
    %c0_148 = arith.constant 0 : index
    %174 = vector.load %arg1[%c0_145, %c0_146, %c0_147, %c0_148] : memref<1x16x16x128xf32, #tpu.memory_space<vmem>>, vector<1x16x16x128xf32>
    %175 = vector.shape_cast %174 : vector<1x16x16x128xf32> to vector<16x16x128xf32>
    %176 = arith.addf %173, %175 : vector<16x16x128xf32>
    %c0_149 = arith.constant 0 : index
    %c0_150 = arith.constant 0 : index
    %c0_151 = arith.constant 0 : index
    %c0_152 = arith.constant 0 : index
    %177 = vector.load %arg12[%c0_149, %c0_150, %c0_151, %c0_152] : memref<1x16x16x128xf32, #tpu.memory_space<vmem>>, vector<1x16x16x128xf32>
    %178 = vector.shape_cast %177 : vector<1x16x16x128xf32> to vector<16x16x128xf32>
    %179 = vector.shape_cast %176 : vector<16x16x128xf32> to vector<1x16x16x128xf32>
    tpu.vector_store %arg12[%c0_149, %c0_150, %c0_151, %c0_152], %179 {strides = array<i32>} : memref<1x16x16x128xf32, #tpu.memory_space<vmem>>, vector<1x16x16x128xf32>,
    return
  }
  func.func @transform_0(%arg0: i32) -> (i32, i32, i32, i32) {
    %c0_i32 = arith.constant 0 : i32
    %c0_i32_0 = arith.constant 0 : i32
    %c0_i32_1 = arith.constant 0 : i32
    %c0_i32_2 = arith.constant 0 : i32
    return %arg0, %c0_i32, %c0_i32_0, %c0_i32_1 : i32, i32, i32, i32
  }
  func.func @transform_1(%arg0: i32) -> (i32, i32) {
    %c0_i32 = arith.constant 0 : i32
    %c0_i32_0 = arith.constant 0 : i32
    %c0_i32_1 = arith.constant 0 : i32
    return %c0_i32, %c0_i32_0 : i32, i32
  }
  func.func @transform_2(%arg0: i32) -> (i32, i32) {
    %c0_i32 = arith.constant 0 : i32
    %c0_i32_0 = arith.constant 0 : i32
    %c0_i32_1 = arith.constant 0 : i32
    return %c0_i32, %c0_i32_0 : i32, i32
  }
  func.func @transform_3(%arg0: i32) -> (i32, i32) {
    %c0_i32 = arith.constant 0 : i32
    %c0_i32_0 = arith.constant 0 : i32
    %c0_i32_1 = arith.constant 0 : i32
    return %c0_i32, %c0_i32_0 : i32, i32
  }
  func.func @transform_4(%arg0: i32) -> (i32, i32) {
    %c0_i32 = arith.constant 0 : i32
    %c0_i32_0 = arith.constant 0 : i32
    %c0_i32_1 = arith.constant 0 : i32
    return %c0_i32, %c0_i32_0 : i32, i32
  }
  func.func @transform_5(%arg0: i32) -> (i32, i32) {
    %c0_i32 = arith.constant 0 : i32
    %c0_i32_0 = arith.constant 0 : i32
    %c0_i32_1 = arith.constant 0 : i32
    return %c0_i32, %c0_i32_0 : i32, i32
  }
  func.func @transform_6(%arg0: i32) -> (i32, i32) {
    %c0_i32 = arith.constant 0 : i32
    %c0_i32_0 = arith.constant 0 : i32
    %c0_i32_1 = arith.constant 0 : i32
    return %c0_i32, %c0_i32_0 : i32, i32
  }
  func.func @transform_7(%arg0: i32) -> (i32, i32) {
    %c0_i32 = arith.constant 0 : i32
    %c0_i32_0 = arith.constant 0 : i32
    %c0_i32_1 = arith.constant 0 : i32
    return %c0_i32, %c0_i32_0 : i32, i32
  }
  func.func @transform_8(%arg0: i32) -> (i32, i32) {
    %c0_i32 = arith.constant 0 : i32
    %c0_i32_0 = arith.constant 0 : i32
    %c0_i32_1 = arith.constant 0 : i32
    return %c0_i32, %c0_i32_0 : i32, i32
  }
  func.func @transform_9(%arg0: i32) -> (i32, i32) {
    %c0_i32 = arith.constant 0 : i32
    %c0_i32_0 = arith.constant 0 : i32
    %c0_i32_1 = arith.constant 0 : i32
    return %c0_i32, %c0_i32_0 : i32, i32
  }
  func.func @transform_10(%arg0: i32) -> (i32, i32) {
    %c0_i32 = arith.constant 0 : i32
    %c0_i32_0 = arith.constant 0 : i32
    %c0_i32_1 = arith.constant 0 : i32
    return %c0_i32, %c0_i32_0 : i32, i32
  }
  func.func @transform_11(%arg0: i32) -> (i32, i32, i32, i32) {
    %c0_i32 = arith.constant 0 : i32
    %c0_i32_0 = arith.constant 0 : i32
    %c0_i32_1 = arith.constant 0 : i32
    %c0_i32_2 = arith.constant 0 : i32
    return %arg0, %c0_i32, %c0_i32_0, %c0_i32_1 : i32, i32, i32, i32
  }
}

</mosaic_0001>

<llo_original>
// kernel: tpu_custom_call.1
$region0: #{tpu_custom_call.1}
  #allocation0 [shape = 'u32[]', space=smem, size = 0x4, offset = 0x4, fixed_abs, tag = 'smem constant byte address 0x4 - core index']
  #allocation1 [shape = 'u32[144,128]{1,0:T(1,128)}', space=vmem, size = 0x12000, scoped, tag = 'internal scratch']
  #allocation2 [shape = 'f32[18,18,128]{2,1,0:T(8,128)}', space=vmem, size = 0x36000, scoped, tag = 'scratch operand']
  #allocation3 [shape = 'bf16[256,1152]{1,0:T(16,128)(2,1)}', space=vmem, size = 0x90000, scoped, tag = 'scratch operand']
  %s0 = inlined_call_operand.hbm [shape: f32[2,16,16,128], index: 0, kind: input, shape index: {}]
  %s1 = inlined_call_operand.hbm [shape: f32[128,32], index: 1, kind: input, shape index: {}]
  %s2 = inlined_call_operand.hbm [shape: f32[32,128], index: 2, kind: input, shape index: {}]
  %s3 = inlined_call_operand.hbm [shape: f32[1,128], index: 3, kind: input, shape index: {}]
  %s4 = inlined_call_operand.hbm [shape: f32[1,128], index: 4, kind: input, shape index: {}]
  %s5 = inlined_call_operand.hbm [shape: bf16[1152,128], index: 5, kind: input, shape index: {}]
  %s6 = inlined_call_operand.hbm [shape: f32[1,128], index: 6, kind: input, shape index: {}]
  %s7 = inlined_call_operand.hbm [shape: f32[1,128], index: 7, kind: input, shape index: {}]
  %s8 = inlined_call_operand.hbm [shape: f32[1,128], index: 8, kind: input, shape index: {}]
  %s9 = inlined_call_operand.hbm [shape: bf16[1152,128], index: 9, kind: input, shape index: {}]
  %s10 = inlined_call_operand.hbm [shape: f32[1,128], index: 10, kind: input, shape index: {}]
  %s11 = inlined_call_operand.hbm [shape: f32[2,16,16,128], index: 11, kind: output, shape index: {}]
  %s12 = sld [smem:[#allocation0]]
  $region121: #{tpu_custom_call.1} parent=0
    _
  %s14 = ssub.s32 1, %s12
  %s15 = scalar_select 0, %s14, %s12
  $region1: #{tpu_custom_call.1} parent=0
    #allocation4 [shape = 'u8[262144]{0}', space=vmem, size = 0x40000, scoped, tag = 'input window, operand 0']
    #allocation5 [shape = 's32[2]{0}', space=sflag, size = 0x8, scoped, tag = 'scoped memory for tpu_custom_call.1']
    #allocation6 [shape = 's32[2]{0}', space=sflag, size = 0x8, scoped, tag = 'scoped memory for tpu_custom_call.1']
    #allocation7 [shape = 'u8[65536]{0}', space=vmem, size = 0x10000, scoped, tag = 'input window, operand 1, single buffered']
    #allocation8 [shape = 's32[1]{0}', space=sflag, size = 0x4, scoped, tag = 'scoped memory for tpu_custom_call.1']
    #allocation9 [shape = 'u8[16384]{0}', space=vmem, size = 0x4000, scoped, tag = 'input window, operand 2, single buffered']
    #allocation10 [shape = 'u8[512]{0}', space=vmem, size = 0x400, scoped, tag = 'input window, operand 3, single buffered']
    #allocation11 [shape = 's32[1]{0}', space=sflag, size = 0x4, scoped, tag = 'scoped memory for tpu_custom_call.1']
    #allocation12 [shape = 'u8[512]{0}', space=vmem, size = 0x400, scoped, tag = 'input window, operand 4, single buffered']
    #allocation13 [shape = 'u8[294912]{0}', space=vmem, size = 0x48000, scoped, tag = 'input window, operand 5, single buffered']
    #allocation14 [shape = 's32[1]{0}', space=sflag, size = 0x4, scoped, tag = 'scoped memory for tpu_custom_call.1']
    #allocation15 [shape = 'u8[512]{0}', space=vmem, size = 0x400, scoped, tag = 'input window, operand 6, single buffered']
    #allocation16 [shape = 'u8[512]{0}', space=vmem, size = 0x400, scoped, tag = 'input window, operand 7, single buffered']
    #allocation17 [shape = 's32[1]{0}', space=sflag, size = 0x4, scoped, tag = 'scoped memory for tpu_custom_call.1']
    #allocation18 [shape = 'u8[512]{0}', space=vmem, size = 0x400, scoped, tag = 'input window, operand 8, single buffered']
    #allocation19 [shape = 'u8[294912]{0}', space=vmem, size = 0x48000, scoped, tag = 'input window, operand 9, single buffered']
    #allocation20 [shape = 's32[1]{0}', space=sflag, size = 0x4, scoped, tag = 'scoped memory for tpu_custom_call.1']
    #allocation21 [shape = 'u8[512]{0}', space=vmem, size = 0x400, scoped, tag = 'input window, operand 10, single buffered']
    #allocation22 [shape = 'u8[262144]{0}', space=vmem, size = 0x40000, scoped, tag = 'output window, operand 0']
    %16 = vsyncpa [#allocation5], 0
    %s17 = scalar_lea.sflag [#allocation5], 1
    %18 = vsyncpa %s17, 0
    %19 = vsyncpa [#allocation8], 0
    %20 = vsyncpa [#allocation11], 0
    %21 = vsyncpa [#allocation14], 0
    %22 = vsyncpa [#allocation17], 0
    %23 = vsyncpa [#allocation20], 0
    %24 = vsyncpa [#allocation6], 0
    %s25 = scalar_lea.sflag [#allocation6], 1
    %26 = vsyncpa %s25, 0
    loop: start=0, step=1, limit=4
    $region2: #{tpu_custom_call.1} parent=1 // loop_pre_header
      _
    $region3: #{tpu_custom_call.1} parent=1 // loop_header
      %s28 = sphi 0, %s32
      %p29 = scmp.ge.s32.totalorder %s28, 4
      %s38 = sphi 0, %s40
      %s41 = sphi 0, %s38
      %s42 = sphi 0, %s41
      %s58 = sphi 0, %s42
      %s62 = sphi 0, %s62
      %s64 = sphi 0, %s62
      %s65 = sphi 0, %s64
      %s79 = sphi 0, %s65
      %s83 = sphi 0, %s83
      %s85 = sphi 0, %s83
      %s86 = sphi 0, %s85
      %s100 = sphi 0, %s86
      %s104 = sphi 0, %s104
      %s106 = sphi 0, %s104
      %s107 = sphi 0, %s106
      %s121 = sphi 0, %s107
      %s125 = sphi 0, %s125
      %s127 = sphi 0, %s125
      %s128 = sphi 0, %s127
      %s142 = sphi 0, %s128
      %s146 = sphi 0, %s146
      %s148 = sphi 0, %s146
      %s149 = sphi 0, %s148
      %s163 = sphi 0, %s149
      %s167 = sphi 0, %s167
      %s169 = sphi 0, %s167
      %s170 = sphi 0, %s169
      %s184 = sphi 0, %s170
      %s188 = sphi 0, %s188
      %s190 = sphi 0, %s188
      %s191 = sphi 0, %s190
      %s205 = sphi 0, %s191
      %s209 = sphi 0, %s209
      %s211 = sphi 0, %s209
      %s212 = sphi 0, %s211
      %s226 = sphi 0, %s212
      %s230 = sphi 0, %s230
      %s232 = sphi 0, %s230
      %s233 = sphi 0, %s232
      %s247 = sphi 0, %s233
      %s251 = sphi 0, %s251
      %s253 = sphi 0, %s251
      %s254 = sphi 0, %s253
      %s268 = sphi 0, %s254
      %s274 = sphi 0, %s276
      %s277 = sphi 0, %s274
      %s278 = sphi 0, %s277
      %s294 = sphi 0, %s278
    $region4: #{tpu_custom_call.1} parent=1 // loop_header_branch
      %31 = sbr.rel (%p29) target = $region8
    $region5: #{tpu_custom_call.1} parent=1 // loop_body
      %s33 = ssub.s32 %s28, 1
      %s34 = ssub.s32 %s28, 2
      %s35 = sadd.s32 %s28, 1
      %s36 = ssub.s32 %s28, %s35
      %p37 = scmp.eq.s32.totalorder %s36, 0
      %s39 = sadd.s32 %s38, 1
      %s40 = scalar_select %p37, %s38, %s39
      %p43 = pneg %p37
      %p44 = scmp.eq.s32.totalorder %s28, 1
      %p45 = por %p43, %p44
      %p46 = scmp.ne.s32.totalorder %s38, %s41
      %p47 = scmp.eq.s32.totalorder %s28, 0
      %p48 = por %p46, %p47
      %p49 = scmp.ne.s32.totalorder %s38, %s41
      %p50 = scmp.eq.s32.totalorder %s33, 1
      %p51 = por %p49, %p50
      %p52 = scmp.ne.s32.totalorder %s41, %s42
      %p53 = scmp.eq.s32.totalorder %s33, 0
      %p54 = por %p52, %p53
      %p55 = scmp.ne.s32.totalorder %s41, %s42
      %p56 = scmp.eq.s32.totalorder %s34, 1
      %p57 = por %p55, %p56
      %p59 = scmp.ne.s32.totalorder %s42, %s58
      %p60 = scmp.eq.s32.totalorder %s34, 0
      %p61 = por %p59, %p60
      %s63 = sadd.s32 %s62, 1
      %p66 = scmp.eq.s32.totalorder %s28, 1
      %p67 = scmp.ne.s32.totalorder %s62, %s64
      %p68 = scmp.eq.s32.totalorder %s28, 0
      %p69 = por %p67, %p68
      %p70 = scmp.ne.s32.totalorder %s62, %s64
      %p71 = scmp.eq.s32.totalorder %s33, 1
      %p72 = por %p70, %p71
      %p73 = scmp.ne.s32.totalorder %s64, %s65
      %p74 = scmp.eq.s32.totalorder %s33, 0
      %p75 = por %p73, %p74
      %p76 = scmp.ne.s32.totalorder %s64, %s65
      %p77 = scmp.eq.s32.totalorder %s34, 1
      %p78 = por %p76, %p77
      %p80 = scmp.ne.s32.totalorder %s65, %s79
      %p81 = scmp.eq.s32.totalorder %s34, 0
      %p82 = por %p80, %p81
      %s84 = sadd.s32 %s83, 1
      %p87 = scmp.eq.s32.totalorder %s28, 1
      %p88 = scmp.ne.s32.totalorder %s83, %s85
      %p89 = scmp.eq.s32.totalorder %s28, 0
      %p90 = por %p88, %p89
      %p91 = scmp.ne.s32.totalorder %s83, %s85
      %p92 = scmp.eq.s32.totalorder %s33, 1
      %p93 = por %p91, %p92
      %p94 = scmp.ne.s32.totalorder %s85, %s86
      %p95 = scmp.eq.s32.totalorder %s33, 0
      %p96 = por %p94, %p95
      %p97 = scmp.ne.s32.totalorder %s85, %s86
      %p98 = scmp.eq.s32.totalorder %s34, 1
      %p99 = por %p97, %p98
      %p101 = scmp.ne.s32.totalorder %s86, %s100
      %p102 = scmp.eq.s32.totalorder %s34, 0
      %p103 = por %p101, %p102
      %s105 = sadd.s32 %s104, 1
      %p108 = scmp.eq.s32.totalorder %s28, 1
      %p109 = scmp.ne.s32.totalorder %s104, %s106
      %p110 = scmp.eq.s32.totalorder %s28, 0
      %p111 = por %p109, %p110
      %p112 = scmp.ne.s32.totalorder %s104, %s106
      %p113 = scmp.eq.s32.totalorder %s33, 1
      %p114 = por %p112, %p113
      %p115 = scmp.ne.s32.totalorder %s106, %s107
      %p116 = scmp.eq.s32.totalorder %s33, 0
      %p117 = por %p115, %p116
      %p118 = scmp.ne.s32.totalorder %s106, %s107
      %p119 = scmp.eq.s32.totalorder %s34, 1
      %p120 = por %p118, %p119
      %p122 = scmp.ne.s32.totalorder %s107, %s121
      %p123 = scmp.eq.s32.totalorder %s34, 0
      %p124 = por %p122, %p123
      %s126 = sadd.s32 %s125, 1
      %p129 = scmp.eq.s32.totalorder %s28, 1
      %p130 = scmp.ne.s32.totalorder %s125, %s127
      %p131 = scmp.eq.s32.totalorder %s28, 0
      %p132 = por %p130, %p131
      %p133 = scmp.ne.s32.totalorder %s125, %s127
      %p134 = scmp.eq.s32.totalorder %s33, 1
      %p135 = por %p133, %p134
      %p136 = scmp.ne.s32.totalorder %s127, %s128
      %p137 = scmp.eq.s32.totalorder %s33, 0
      %p138 = por %p136, %p137
      %p139 = scmp.ne.s32.totalorder %s127, %s128
      %p140 = scmp.eq.s32.totalorder %s34, 1
      %p141 = por %p139, %p140
      %p143 = scmp.ne.s32.totalorder %s128, %s142
      %p144 = scmp.eq.s32.totalorder %s34, 0
      %p145 = por %p143, %p144
      %s147 = sadd.s32 %s146, 1
      %p150 = scmp.eq.s32.totalorder %s28, 1
      %p151 = scmp.ne.s32.totalorder %s146, %s148
      %p152 = scmp.eq.s32.totalorder %s28, 0
      %p153 = por %p151, %p152
      %p154 = scmp.ne.s32.totalorder %s146, %s148
      %p155 = scmp.eq.s32.totalorder %s33, 1
      %p156 = por %p154, %p155
      %p157 = scmp.ne.s32.totalorder %s148, %s149
      %p158 = scmp.eq.s32.totalorder %s33, 0
      %p159 = por %p157, %p158
      %p160 = scmp.ne.s32.totalorder %s148, %s149
      %p161 = scmp.eq.s32.totalorder %s34, 1
      %p162 = por %p160, %p161
      %p164 = scmp.ne.s32.totalorder %s149, %s163
      %p165 = scmp.eq.s32.totalorder %s34, 0
      %p166 = por %p164, %p165
      %s168 = sadd.s32 %s167, 1
      %p171 = scmp.eq.s32.totalorder %s28, 1
      %p172 = scmp.ne.s32.totalorder %s167, %s169
      %p173 = scmp.eq.s32.totalorder %s28, 0
      %p174 = por %p172, %p173
      %p175 = scmp.ne.s32.totalorder %s167, %s169
      %p176 = scmp.eq.s32.totalorder %s33, 1
      %p177 = por %p175, %p176
      %p178 = scmp.ne.s32.totalorder %s169, %s170
      %p179 = scmp.eq.s32.totalorder %s33, 0
      %p180 = por %p178, %p179
      %p181 = scmp.ne.s32.totalorder %s169, %s170
      %p182 = scmp.eq.s32.totalorder %s34, 1
      %p183 = por %p181, %p182
      %p185 = scmp.ne.s32.totalorder %s170, %s184
      %p186 = scmp.eq.s32.totalorder %s34, 0
      %p187 = por %p185, %p186
      %s189 = sadd.s32 %s188, 1
      %p192 = scmp.eq.s32.totalorder %s28, 1
      %p193 = scmp.ne.s32.totalorder %s188, %s190
      %p194 = scmp.eq.s32.totalorder %s28, 0
      %p195 = por %p193, %p194
      %p196 = scmp.ne.s32.totalorder %s188, %s190
      %p197 = scmp.eq.s32.totalorder %s33, 1
      %p198 = por %p196, %p197
      %p199 = scmp.ne.s32.totalorder %s190, %s191
      %p200 = scmp.eq.s32.totalorder %s33, 0
      %p201 = por %p199, %p200
      %p202 = scmp.ne.s32.totalorder %s190, %s191
      %p203 = scmp.eq.s32.totalorder %s34, 1
      %p204 = por %p202, %p203
      %p206 = scmp.ne.s32.totalorder %s191, %s205
      %p207 = scmp.eq.s32.totalorder %s34, 0
      %p208 = por %p206, %p207
      %s210 = sadd.s32 %s209, 1
      %p213 = scmp.eq.s32.totalorder %s28, 1
      %p214 = scmp.ne.s32.totalorder %s209, %s211
      %p215 = scmp.eq.s32.totalorder %s28, 0
      %p216 = por %p214, %p215
      %p217 = scmp.ne.s32.totalorder %s209, %s211
      %p218 = scmp.eq.s32.totalorder %s33, 1
      %p219 = por %p217, %p218
      %p220 = scmp.ne.s32.totalorder %s211, %s212
      %p221 = scmp.eq.s32.totalorder %s33, 0
      %p222 = por %p220, %p221
      %p223 = scmp.ne.s32.totalorder %s211, %s212
      %p224 = scmp.eq.s32.totalorder %s34, 1
      %p225 = por %p223, %p224
      %p227 = scmp.ne.s32.totalorder %s212, %s226
      %p228 = scmp.eq.s32.totalorder %s34, 0
      %p229 = por %p227, %p228
      %s231 = sadd.s32 %s230, 1
      %p234 = scmp.eq.s32.totalorder %s28, 1
      %p235 = scmp.ne.s32.totalorder %s230, %s232
      %p236 = scmp.eq.s32.totalorder %s28, 0
      %p237 = por %p235, %p236
      %p238 = scmp.ne.s32.totalorder %s230, %s232
      %p239 = scmp.eq.s32.totalorder %s33, 1
      %p240 = por %p238, %p239
      %p241 = scmp.ne.s32.totalorder %s232, %s233
      %p242 = scmp.eq.s32.totalorder %s33, 0
      %p243 = por %p241, %p242
      %p244 = scmp.ne.s32.totalorder %s232, %s233
      %p245 = scmp.eq.s32.totalorder %s34, 1
      %p246 = por %p244, %p245
      %p248 = scmp.ne.s32.totalorder %s233, %s247
      %p249 = scmp.eq.s32.totalorder %s34, 0
      %p250 = por %p248, %p249
      %s252 = sadd.s32 %s251, 1
      %p255 = scmp.eq.s32.totalorder %s28, 1
      %p256 = scmp.ne.s32.totalorder %s251, %s253
      %p257 = scmp.eq.s32.totalorder %s28, 0
      %p258 = por %p256, %p257
      %p259 = scmp.ne.s32.totalorder %s251, %s253
      %p260 = scmp.eq.s32.totalorder %s33, 1
      %p261 = por %p259, %p260
      %p262 = scmp.ne.s32.totalorder %s253, %s254
      %p263 = scmp.eq.s32.totalorder %s33, 0
      %p264 = por %p262, %p263
      %p265 = scmp.ne.s32.totalorder %s253, %s254
      %p266 = scmp.eq.s32.totalorder %s34, 1
      %p267 = por %p265, %p266
      %p269 = scmp.ne.s32.totalorder %s254, %s268
      %p270 = scmp.eq.s32.totalorder %s34, 0
      %p271 = por %p269, %p270
      %s272 = ssub.s32 %s28, %s35
      %p273 = scmp.eq.s32.totalorder %s272, 0
      %s275 = sadd.s32 %s274, 1
      %s276 = scalar_select %p273, %s274, %s275
      %p279 = pneg %p273
      %p280 = scmp.eq.s32.totalorder %s28, 1
      %p281 = por %p279, %p280
      %p282 = scmp.ne.s32.totalorder %s274, %s277
      %p283 = scmp.eq.s32.totalorder %s28, 0
      %p284 = por %p282, %p283
      %p285 = scmp.ne.s32.totalorder %s274, %s277
      %p286 = scmp.eq.s32.totalorder %s33, 1
      %p287 = por %p285, %p286
      %p288 = scmp.ne.s32.totalorder %s277, %s278
      %p289 = scmp.eq.s32.totalorder %s33, 0
      %p290 = por %p288, %p289
      %p291 = scmp.ne.s32.totalorder %s277, %s278
      %p292 = scmp.eq.s32.totalorder %s34, 1
      %p293 = por %p291, %p292
      %p295 = scmp.ne.s32.totalorder %s278, %s294
      %p296 = scmp.eq.s32.totalorder %s34, 0
      %p297 = por %p295, %p296
      %p298 = scmp.le.s32.totalorder 1, %s28
      %p299 = scmp.lt.s32.totalorder %s28, 3
      %p300 = pnand %p298, %p299
      %p301 = pneg %p300
      // Predicated region
      $region9: #{tpu_custom_call.1} parent=5 // pred_check
        _
      $region10: #{tpu_custom_call.1} parent=5 // pred_check_branch
        %303 = sbr.rel (%p300) target = $region12
      $region11: #{tpu_custom_call.1} parent=5 // pred_region
        %s304 = ssub.s32 %s28, 1
        // Predicated region
        $region13: #{tpu_custom_call.1} parent=11 // pred_check
          %p305 = pneg %p75
        $region14: #{tpu_custom_call.1} parent=11 // pred_check_branch
          %307 = sbr.rel (%p305) target = $region16
        $region15: #{tpu_custom_call.1} parent=11 // pred_region
          %s309 = ssub.s32 2048, 2048
          %310 = vsyncadd [#allocation8], %s309
          %s311 = sshll.u32 [#allocation7], 4
          %s312 = int_to_ptr.vmem [resolvable:$true] %s311
          %317 = dma.hbm_to_vmem [thread:$0]  %s1, 2048, %s312, [#allocation8], 128, 128, 8
        $region16: #{tpu_custom_call.1} parent=11 // pred_fallthru
          _
        // Predicated region
        $region17: #{tpu_custom_call.1} parent=11 // pred_check
          %p318 = pneg %p96
        $region18: #{tpu_custom_call.1} parent=11 // pred_check_branch
          %320 = sbr.rel (%p318) target = $region20
        $region19: #{tpu_custom_call.1} parent=11 // pred_region
          %s322 = ssub.s32 512, 512
          %323 = vsyncadd [#allocation8], %s322
          %s324 = sshll.u32 [#allocation9], 4
          %s325 = int_to_ptr.vmem [resolvable:$true] %s324
          %330 = dma.hbm_to_vmem [thread:$0]  %s2, 512, %s325, [#allocation8], 128, 128, 8
        $region20: #{tpu_custom_call.1} parent=11 // pred_fallthru
          _
        // Predicated region
        $region21: #{tpu_custom_call.1} parent=11 // pred_check
          %p331 = pneg %p117
        $region22: #{tpu_custom_call.1} parent=11 // pred_check_branch
          %333 = sbr.rel (%p331) target = $region24
        $region23: #{tpu_custom_call.1} parent=11 // pred_region
          %s335 = ssub.s32 16, 16
          %336 = vsyncadd [#allocation11], %s335
          %s338 = sshll.u32 [#allocation10], 4
          %s339 = int_to_ptr.vmem [resolvable:$true] %s338
          %341 = dma.hbm_to_vmem [thread:$0]  %s3, 16, %s339, [#allocation11]
        $region24: #{tpu_custom_call.1} parent=11 // pred_fallthru
          _
        // Predicated region
        $region25: #{tpu_custom_call.1} parent=11 // pred_check
          %p342 = pneg %p138
        $region26: #{tpu_custom_call.1} parent=11 // pred_check_branch
          %344 = sbr.rel (%p342) target = $region28
        $region27: #{tpu_custom_call.1} parent=11 // pred_region
          %s346 = ssub.s32 16, 16
          %347 = vsyncadd [#allocation11], %s346
          %s349 = sshll.u32 [#allocation12], 4
          %s350 = int_to_ptr.vmem [resolvable:$true] %s349
          %352 = dma.hbm_to_vmem [thread:$0]  %s4, 16, %s350, [#allocation11]
        $region28: #{tpu_custom_call.1} parent=11 // pred_fallthru
          _
        // Predicated region
        $region29: #{tpu_custom_call.1} parent=11 // pred_check
          %p353 = pneg %p159
        $region30: #{tpu_custom_call.1} parent=11 // pred_check_branch
          %355 = sbr.rel (%p353) target = $region32
        $region31: #{tpu_custom_call.1} parent=11 // pred_region
          %s357 = ssub.s32 9216, 9216
          %358 = vsyncadd [#allocation14], %s357
          %s359 = sshll.u32 [#allocation13], 4
          %s360 = int_to_ptr.vmem [resolvable:$true] %s359
          %365 = dma.hbm_to_vmem [thread:$0]  %s5, 9216, %s360, [#allocation14], 64, 64, 4
        $region32: #{tpu_custom_call.1} parent=11 // pred_fallthru
          _
        // Predicated region
        $region33: #{tpu_custom_call.1} parent=11 // pred_check
          %p366 = pneg %p180
        $region34: #{tpu_custom_call.1} parent=11 // pred_check_branch
          %368 = sbr.rel (%p366) target = $region36
        $region35: #{tpu_custom_call.1} parent=11 // pred_region
          %s370 = ssub.s32 16, 16
          %371 = vsyncadd [#allocation14], %s370
          %s373 = sshll.u32 [#allocation15], 4
          %s374 = int_to_ptr.vmem [resolvable:$true] %s373
          %376 = dma.hbm_to_vmem [thread:$0]  %s6, 16, %s374, [#allocation14]
        $region36: #{tpu_custom_call.1} parent=11 // pred_fallthru
          _
        // Predicated region
        $region37: #{tpu_custom_call.1} parent=11 // pred_check
          %p377 = pneg %p201
        $region38: #{tpu_custom_call.1} parent=11 // pred_check_branch
          %379 = sbr.rel (%p377) target = $region40
        $region39: #{tpu_custom_call.1} parent=11 // pred_region
          %s381 = ssub.s32 16, 16
          %382 = vsyncadd [#allocation17], %s381
          %s384 = sshll.u32 [#allocation16], 4
          %s385 = int_to_ptr.vmem [resolvable:$true] %s384
          %387 = dma.hbm_to_vmem [thread:$0]  %s7, 16, %s385, [#allocation17]
        $region40: #{tpu_custom_call.1} parent=11 // pred_fallthru
          _
        // Predicated region
        $region41: #{tpu_custom_call.1} parent=11 // pred_check
          %p388 = pneg %p222
        $region42: #{tpu_custom_call.1} parent=11 // pred_check_branch
          %390 = sbr.rel (%p388) target = $region44
        $region43: #{tpu_custom_call.1} parent=11 // pred_region
          %s392 = ssub.s32 16, 16
          %393 = vsyncadd [#allocation17], %s392
          %s395 = sshll.u32 [#allocation18], 4
          %s396 = int_to_ptr.vmem [resolvable:$true] %s395
          %398 = dma.hbm_to_vmem [thread:$0]  %s8, 16, %s396, [#allocation17]
        $region44: #{tpu_custom_call.1} parent=11 // pred_fallthru
          _
        // Predicated region
        $region45: #{tpu_custom_call.1} parent=11 // pred_check
          %p399 = pneg %p243
        $region46: #{tpu_custom_call.1} parent=11 // pred_check_branch
          %401 = sbr.rel (%p399) target = $region48
        $region47: #{tpu_custom_call.1} parent=11 // pred_region
          %s403 = ssub.s32 9216, 9216
          %404 = vsyncadd [#allocation20], %s403
          %s405 = sshll.u32 [#allocation19], 4
          %s406 = int_to_ptr.vmem [resolvable:$true] %s405
          %411 = dma.hbm_to_vmem [thread:$0]  %s9, 9216, %s406, [#allocation20], 64, 64, 4
        $region48: #{tpu_custom_call.1} parent=11 // pred_fallthru
          _
        // Predicated region
        $region49: #{tpu_custom_call.1} parent=11 // pred_check
          %p412 = pneg %p264
        $region50: #{tpu_custom_call.1} parent=11 // pred_check_branch
          %414 = sbr.rel (%p412) target = $region52
        $region51: #{tpu_custom_call.1} parent=11 // pred_region
          %s416 = ssub.s32 16, 16
          %417 = vsyncadd [#allocation20], %s416
          %s419 = sshll.u32 [#allocation21], 4
          %s420 = int_to_ptr.vmem [resolvable:$true] %s419
          %422 = dma.hbm_to_vmem [thread:$0]  %s10, 16, %s420, [#allocation20]
        $region52: #{tpu_custom_call.1} parent=11 // pred_fallthru
          _
      $region12: #{tpu_custom_call.1} parent=5 // pred_fallthru
        _
      %p423 = scmp.lt.s32.totalorder %s28, 2
      // Predicated region
      $region53: #{tpu_custom_call.1} parent=5 // pred_check
        %p424 = pneg %p423
      $region54: #{tpu_custom_call.1} parent=5 // pred_check_branch
        %426 = sbr.rel (%p424) target = $region56
      $region55: #{tpu_custom_call.1} parent=5 // pred_region
        // Predicated region
        $region57: #{tpu_custom_call.1} parent=55 // pred_check
          %p427 = pneg %p48
        $region58: #{tpu_custom_call.1} parent=55 // pred_check_branch
          %429 = sbr.rel (%p427) target = $region60
        $region59: #{tpu_custom_call.1} parent=55 // pred_region
          %s430 = sand.u32 %s38, 1
          %s431 = scalar_lea.sflag [#allocation5], %s430
          %s432 = sand.u32 %s38, 1
          %s433 = smul.addr %s432, 256
          %s434 = scalar_lea.vmem [#allocation4], %s433
          %s436 = ssub.s32 4096, 4096
          %437 = vsyncadd %s431, %s436
          %s438 = smul.addr %s28, 32
          %s439 = smul.addr %s438, 128
          %s440 = scalar_lea.hbm %s0, %s439
          %s441 = sshll.u32 %s434, 4
          %s442 = int_to_ptr.vmem [resolvable:$true] %s441
          %447 = dma.hbm_to_vmem [thread:$0]  %s440, 4096, %s442, %s431, 128, 128, 8
        $region60: #{tpu_custom_call.1} parent=55 // pred_fallthru
          _
      $region56: #{tpu_custom_call.1} parent=5 // pred_fallthru
        _
      %p448 = scmp.le.s32.totalorder 1, %s28
      %p449 = scmp.lt.s32.totalorder %s28, 3
      %p450 = pnand %p448, %p449
      %p451 = pneg %p450
      // Predicated region
      $region61: #{tpu_custom_call.1} parent=5 // pred_check
        _
      $region62: #{tpu_custom_call.1} parent=5 // pred_check_branch
        %453 = sbr.rel (%p450) target = $region64
      $region63: #{tpu_custom_call.1} parent=5 // pred_region
        %s454 = ssub.s32 %s28, 1
        %s455 = sand.u32 %s41, 1
        %s456 = scalar_lea.sflag [#allocation5], %s455
        %s457 = sand.u32 %s41, 1
        %s458 = smul.addr %s457, 256
        %s459 = scalar_lea.vmem [#allocation4], %s458
        // Predicated region
        $region65: #{tpu_custom_call.1} parent=63 // pred_check
          %p460 = pneg %p54
        $region66: #{tpu_custom_call.1} parent=63 // pred_check_branch
          %462 = sbr.rel (%p460) target = $region68
        $region67: #{tpu_custom_call.1} parent=63 // pred_region
          %463 = dma.done %s456, 4096
        $region68: #{tpu_custom_call.1} parent=63 // pred_fallthru
          _
        // Predicated region
        $region69: #{tpu_custom_call.1} parent=63 // pred_check
          %p464 = pneg %p75
        $region70: #{tpu_custom_call.1} parent=63 // pred_check_branch
          %466 = sbr.rel (%p464) target = $region72
        $region71: #{tpu_custom_call.1} parent=63 // pred_region
          %467 = dma.done [#allocation8], 2048
        $region72: #{tpu_custom_call.1} parent=63 // pred_fallthru
          _
        // Predicated region
        $region73: #{tpu_custom_call.1} parent=63 // pred_check
          %p468 = pneg %p96
        $region74: #{tpu_custom_call.1} parent=63 // pred_check_branch
          %470 = sbr.rel (%p468) target = $region76
        $region75: #{tpu_custom_call.1} parent=63 // pred_region
          %471 = dma.done [#allocation8], 512
        $region76: #{tpu_custom_call.1} parent=63 // pred_fallthru
          _
        // Predicated region
        $region77: #{tpu_custom_call.1} parent=63 // pred_check
          %p472 = pneg %p117
        $region78: #{tpu_custom_call.1} parent=63 // pred_check_branch
          %474 = sbr.rel (%p472) target = $region80
        $region79: #{tpu_custom_call.1} parent=63 // pred_region
          %475 = dma.done [#allocation11], 16
        $region80: #{tpu_custom_call.1} parent=63 // pred_fallthru
          _
        // Predicated region
        $region81: #{tpu_custom_call.1} parent=63 // pred_check
          %p476 = pneg %p138
        $region82: #{tpu_custom_call.1} parent=63 // pred_check_branch
          %478 = sbr.rel (%p476) target = $region84
        $region83: #{tpu_custom_call.1} parent=63 // pred_region
          %479 = dma.done [#allocation11], 16
        $region84: #{tpu_custom_call.1} parent=63 // pred_fallthru
          _
        // Predicated region
        $region85: #{tpu_custom_call.1} parent=63 // pred_check
          %p480 = pneg %p159
        $region86: #{tpu_custom_call.1} parent=63 // pred_check_branch
          %482 = sbr.rel (%p480) target = $region88
        $region87: #{tpu_custom_call.1} parent=63 // pred_region
          %483 = dma.done [#allocation14], 9216
        $region88: #{tpu_custom_call.1} parent=63 // pred_fallthru
          _
        // Predicated region
        $region89: #{tpu_custom_call.1} parent=63 // pred_check
          %p484 = pneg %p180
        $region90: #{tpu_custom_call.1} parent=63 // pred_check_branch
          %486 = sbr.rel (%p484) target = $region92
        $region91: #{tpu_custom_call.1} parent=63 // pred_region
          %487 = dma.done [#allocation14], 16
        $region92: #{tpu_custom_call.1} parent=63 // pred_fallthru
          _
        // Predicated region
        $region93: #{tpu_custom_call.1} parent=63 // pred_check
          %p488 = pneg %p201
        $region94: #{tpu_custom_call.1} parent=63 // pred_check_branch
          %490 = sbr.rel (%p488) target = $region96
        $region95: #{tpu_custom_call.1} parent=63 // pred_region
          %491 = dma.done [#allocation17], 16
        $region96: #{tpu_custom_call.1} parent=63 // pred_fallthru
          _
        // Predicated region
        $region97: #{tpu_custom_call.1} parent=63 // pred_check
          %p492 = pneg %p222
        $region98: #{tpu_custom_call.1} parent=63 // pred_check_branch
          %494 = sbr.rel (%p492) target = $region100
        $region99: #{tpu_custom_call.1} parent=63 // pred_region
          %495 = dma.done [#allocation17], 16
        $region100: #{tpu_custom_call.1} parent=63 // pred_fallthru
          _
        // Predicated region
        $region101: #{tpu_custom_call.1} parent=63 // pred_check
          %p496 = pneg %p243
        $region102: #{tpu_custom_call.1} parent=63 // pred_check_branch
          %498 = sbr.rel (%p496) target = $region104
        $region103: #{tpu_custom_call.1} parent=63 // pred_region
          %499 = dma.done [#allocation20], 9216
        $region104: #{tpu_custom_call.1} parent=63 // pred_fallthru
          _
        // Predicated region
        $region105: #{tpu_custom_call.1} parent=63 // pred_check
          %p500 = pneg %p264
        $region106: #{tpu_custom_call.1} parent=63 // pred_check_branch
          %502 = sbr.rel (%p500) target = $region108
        $region107: #{tpu_custom_call.1} parent=63 // pred_region
          %503 = dma.done [#allocation20], 16
        $region108: #{tpu_custom_call.1} parent=63 // pred_fallthru
          _
        %s504 = sand.u32 %s41, 1
        %s505 = scalar_lea.sflag [#allocation5], %s504
        %s506 = sand.u32 %s41, 1
        %s507 = smul.addr %s506, 256
        %s508 = scalar_lea.vmem [#allocation4], %s507
        %p509 = pneg %p54
        %p510 = pneg %p51
        %p511 = pneg %p75
        %p512 = pneg %p72
        %p513 = pneg %p96
        %p514 = pneg %p93
        %p515 = pneg %p117
        %p516 = pneg %p114
        %p517 = pneg %p138
        %p518 = pneg %p135
        %p519 = pneg %p159
        %p520 = pneg %p156
        %p521 = pneg %p180
        %p522 = pneg %p177
        %p523 = pneg %p201
        %p524 = pneg %p198
        %p525 = pneg %p222
        %p526 = pneg %p219
        %p527 = pneg %p243
        %p528 = pneg %p240
        %p529 = pneg %p264
        %p530 = pneg %p261
        %p531 = pneg %p290
        %p532 = pneg %p287
        %s533 = sand.u32 %s277, 1
        %s534 = scalar_lea.sflag [#allocation6], %s533
        %s535 = sand.u32 %s277, 1
        %s536 = smul.addr %s535, 256
        %s537 = scalar_lea.vmem [#allocation22], %s536
        %539 = vst [vmem:[#allocation2] sm:$0xff] 0.0
        %540 = vst [vmem:[#allocation2 + $0x8] sm:$0xff] 0.0
        %541 = vst [vmem:[#allocation2 + $0x10] sm:$0x3] 0.0
        %s542 = scalar_lea.vmem [#allocation2], 408
        %543 = vst [vmem:[%s542] sm:$0xff] 0.0
        %544 = vst [vmem:[%s542 + $0x8] sm:$0xff] 0.0
        %545 = vst [vmem:[%s542 + $0x10] sm:$0x3] 0.0
        %s546 = scalar_lea.vmem [#allocation2], 24
        %547 = vst [vmem:[%s546] sm:$0x1] 0.0
        %548 = vst [vmem:[%s546 + $0x18] sm:$0x1] 0.0
        %549 = vst [vmem:[%s546 + $0x30] sm:$0x1] 0.0
        %550 = vst [vmem:[%s546 + $0x48] sm:$0x1] 0.0
        %551 = vst [vmem:[%s546 + $0x60] sm:$0x1] 0.0
        %552 = vst [vmem:[%s546 + $0x78] sm:$0x1] 0.0
        %553 = vst [vmem:[%s546 + $0x90] sm:$0x1] 0.0
        %554 = vst [vmem:[%s546 + $0xa8] sm:$0x1] 0.0
        %555 = vst [vmem:[%s546 + $0xc0] sm:$0x1] 0.0
        %556 = vst [vmem:[%s546 + $0xd8] sm:$0x1] 0.0
        %557 = vst [vmem:[%s546 + $0xf0] sm:$0x1] 0.0
        %558 = vst [vmem:[%s546 + $0x108] sm:$0x1] 0.0
        %559 = vst [vmem:[%s546 + $0x120] sm:$0x1] 0.0
        %560 = vst [vmem:[%s546 + $0x138] sm:$0x1] 0.0
        %561 = vst [vmem:[%s546 + $0x150] sm:$0x1] 0.0
        %562 = vst [vmem:[%s546 + $0x168] sm:$0x1] 0.0
        %563 = vst [vmem:[%s546 + $0x11] sm:$0x1] 0.0
        %564 = vst [vmem:[%s546 + $0x29] sm:$0x1] 0.0
        %565 = vst [vmem:[%s546 + $0x41] sm:$0x1] 0.0
        %566 = vst [vmem:[%s546 + $0x59] sm:$0x1] 0.0
        %567 = vst [vmem:[%s546 + $0x71] sm:$0x1] 0.0
        %568 = vst [vmem:[%s546 + $0x89] sm:$0x1] 0.0
        %569 = vst [vmem:[%s546 + $0xa1] sm:$0x1] 0.0
        %570 = vst [vmem:[%s546 + $0xb9] sm:$0x1] 0.0
        %571 = vst [vmem:[%s546 + $0xd1] sm:$0x1] 0.0
        %572 = vst [vmem:[%s546 + $0xe9] sm:$0x1] 0.0
        %573 = vst [vmem:[%s546 + $0x101] sm:$0x1] 0.0
        %574 = vst [vmem:[%s546 + $0x119] sm:$0x1] 0.0
        %575 = vst [vmem:[%s546 + $0x131] sm:$0x1] 0.0
        %576 = vst [vmem:[%s546 + $0x149] sm:$0x1] 0.0
        %577 = vst [vmem:[%s546 + $0x161] sm:$0x1] 0.0
        %578 = vst [vmem:[%s546 + $0x179] sm:$0x1] 0.0
        %v579 = vld [vmem:[%s459] sm:$0xff]
        %v580 = vld [vmem:[%s459 + $0x8] sm:$0xff]
        %v581 = vld [vmem:[%s459 + $0x10] sm:$0xff]
        %v582 = vld [vmem:[%s459 + $0x18] sm:$0xff]
        %v583 = vld [vmem:[%s459 + $0x20] sm:$0xff]
        %v584 = vld [vmem:[%s459 + $0x28] sm:$0xff]
        %v585 = vld [vmem:[%s459 + $0x30] sm:$0xff]
        %v586 = vld [vmem:[%s459 + $0x38] sm:$0xff]
        %v587 = vld [vmem:[%s459 + $0x40] sm:$0xff]
        %v588 = vld [vmem:[%s459 + $0x48] sm:$0xff]
        %v589 = vld [vmem:[%s459 + $0x50] sm:$0xff]
        %v590 = vld [vmem:[%s459 + $0x58] sm:$0xff]
        %v591 = vld [vmem:[%s459 + $0x60] sm:$0xff]
        %v592 = vld [vmem:[%s459 + $0x68] sm:$0xff]
        %v593 = vld [vmem:[%s459 + $0x70] sm:$0xff]
        %v594 = vld [vmem:[%s459 + $0x78] sm:$0xff]
        %v595 = vld [vmem:[%s459 + $0x80] sm:$0xff]
        %v596 = vld [vmem:[%s459 + $0x88] sm:$0xff]
        %v597 = vld [vmem:[%s459 + $0x90] sm:$0xff]
        %v598 = vld [vmem:[%s459 + $0x98] sm:$0xff]
        %v599 = vld [vmem:[%s459 + $0xa0] sm:$0xff]
        %v600 = vld [vmem:[%s459 + $0xa8] sm:$0xff]
        %v601 = vld [vmem:[%s459 + $0xb0] sm:$0xff]
        %v602 = vld [vmem:[%s459 + $0xb8] sm:$0xff]
        %v603 = vld [vmem:[%s459 + $0xc0] sm:$0xff]
        %v604 = vld [vmem:[%s459 + $0xc8] sm:$0xff]
        %v605 = vld [vmem:[%s459 + $0xd0] sm:$0xff]
        %v606 = vld [vmem:[%s459 + $0xd8] sm:$0xff]
        %v607 = vld [vmem:[%s459 + $0xe0] sm:$0xff]
        %v608 = vld [vmem:[%s459 + $0xe8] sm:$0xff]
        %v609 = vld [vmem:[%s459 + $0xf0] sm:$0xff]
        %v610 = vld [vmem:[%s459 + $0xf8] sm:$0xff]
        %v611 = vld [vmem:[#allocation10] sm:$0x1]
        %v612 = vld [vmem:[#allocation12] sm:$0x1]
        %v613 = vadd.f32 %v579, %v580
        %v614 = vadd.f32 %v613, %v581
        %v615 = vadd.f32 %v614, %v582
        %v616 = vadd.f32 %v615, %v583
        %v617 = vadd.f32 %v616, %v584
        %v618 = vadd.f32 %v617, %v585
        %v619 = vadd.f32 %v618, %v586
        %v620 = vadd.f32 %v619, %v587
        %v621 = vadd.f32 %v620, %v588
        %v622 = vadd.f32 %v621, %v589
        %v623 = vadd.f32 %v622, %v590
        %v624 = vadd.f32 %v623, %v591
        %v625 = vadd.f32 %v624, %v592
        %v626 = vadd.f32 %v625, %v593
        %v627 = vadd.f32 %v626, %v594
        %v628 = vadd.f32 %v627, %v595
        %v629 = vadd.f32 %v628, %v596
        %v630 = vadd.f32 %v629, %v597
        %v631 = vadd.f32 %v630, %v598
        %v632 = vadd.f32 %v631, %v599
        %v633 = vadd.f32 %v632, %v600
        %v634 = vadd.f32 %v633, %v601
        %v635 = vadd.f32 %v634, %v602
        %v636 = vadd.f32 %v635, %v603
        %v637 = vadd.f32 %v636, %v604
        %v638 = vadd.f32 %v637, %v605
        %v639 = vadd.f32 %v638, %v606
        %v640 = vadd.f32 %v639, %v607
        %v641 = vadd.f32 %v640, %v608
        %v642 = vadd.f32 %v641, %v609
        %v643 = vadd.f32 %v642, %v610
        %v644 = vrot.slane %v643, 4
        %v645 = vadd.f32 %v643, %v644
        %v646 = vrot.slane %v645, 2
        %v647 = vadd.f32 %v645, %v646
        %v648 = vrot.slane %v647, 1
        %v649 = vadd.f32 %v647, %v648
        %v650 = vmul.f32 %v579, %v579
        %v651 = vmul.f32 %v580, %v580
        %v652 = vmul.f32 %v581, %v581
        %v653 = vmul.f32 %v582, %v582
        %v654 = vmul.f32 %v583, %v583
        %v655 = vmul.f32 %v584, %v584
        %v656 = vmul.f32 %v585, %v585
        %v657 = vmul.f32 %v586, %v586
        %v658 = vmul.f32 %v587, %v587
        %v659 = vmul.f32 %v588, %v588
        %v660 = vmul.f32 %v589, %v589
        %v661 = vmul.f32 %v590, %v590
        %v662 = vmul.f32 %v591, %v591
        %v663 = vmul.f32 %v592, %v592
        %v664 = vmul.f32 %v593, %v593
        %v665 = vmul.f32 %v594, %v594
        %v666 = vmul.f32 %v595, %v595
        %v667 = vmul.f32 %v596, %v596
        %v668 = vmul.f32 %v597, %v597
        %v669 = vmul.f32 %v598, %v598
        %v670 = vmul.f32 %v599, %v599
        %v671 = vmul.f32 %v600, %v600
        %v672 = vmul.f32 %v601, %v601
        %v673 = vmul.f32 %v602, %v602
        %v674 = vmul.f32 %v603, %v603
        %v675 = vmul.f32 %v604, %v604
        %v676 = vmul.f32 %v605, %v605
        %v677 = vmul.f32 %v606, %v606
        %v678 = vmul.f32 %v607, %v607
        %v679 = vmul.f32 %v608, %v608
        %v680 = vmul.f32 %v609, %v609
        %v681 = vmul.f32 %v610, %v610
        %v682 = vadd.f32 %v650, %v651
        %v683 = vadd.f32 %v682, %v652
        %v684 = vadd.f32 %v683, %v653
        %v685 = vadd.f32 %v684, %v654
        %v686 = vadd.f32 %v685, %v655
        %v687 = vadd.f32 %v686, %v656
        %v688 = vadd.f32 %v687, %v657
        %v689 = vadd.f32 %v688, %v658
        %v690 = vadd.f32 %v689, %v659
        %v691 = vadd.f32 %v690, %v660
        %v692 = vadd.f32 %v691, %v661
        %v693 = vadd.f32 %v692, %v662
        %v694 = vadd.f32 %v693, %v663
        %v695 = vadd.f32 %v694, %v664
        %v696 = vadd.f32 %v695, %v665
        %v697 = vadd.f32 %v696, %v666
        %v698 = vadd.f32 %v697, %v667
        %v699 = vadd.f32 %v698, %v668
        %v700 = vadd.f32 %v699, %v669
        %v701 = vadd.f32 %v700, %v670
        %v702 = vadd.f32 %v701, %v671
        %v703 = vadd.f32 %v702, %v672
        %v704 = vadd.f32 %v703, %v673
        %v705 = vadd.f32 %v704, %v674
        %v706 = vadd.f32 %v705, %v675
        %v707 = vadd.f32 %v706, %v676
        %v708 = vadd.f32 %v707, %v677
        %v709 = vadd.f32 %v708, %v678
        %v710 = vadd.f32 %v709, %v679
        %v711 = vadd.f32 %v710, %v680
        %v712 = vadd.f32 %v711, %v681
        %v713 = vrot.slane %v712, 4
        %v714 = vadd.f32 %v712, %v713
        %v715 = vrot.slane %v714, 2
        %v716 = vadd.f32 %v714, %v715
        %v717 = vrot.slane %v716, 1
        %v718 = vadd.f32 %v716, %v717
        %vm719 = vcmask 1040384
        %v720 = vsel %vm719, %v649, %v718
        %v721 = vld [vmem:[#allocation7] sm:$0xff]
        %v722 = vld [vmem:[#allocation7 + $0x8] sm:$0xff]
        %v723 = vld [vmem:[#allocation7 + $0x10] sm:$0xff]
        %v724 = vld [vmem:[#allocation7 + $0x18] sm:$0xff]
        %v725 = vld [vmem:[#allocation7 + $0x20] sm:$0xff]
        %v726 = vld [vmem:[#allocation7 + $0x28] sm:$0xff]
        %v727 = vld [vmem:[#allocation7 + $0x30] sm:$0xff]
        %v728 = vld [vmem:[#allocation7 + $0x38] sm:$0xff]
        %v729 = vld [vmem:[#allocation7 + $0x40] sm:$0xff]
        %v730 = vld [vmem:[#allocation7 + $0x48] sm:$0xff]
        %v731 = vld [vmem:[#allocation7 + $0x50] sm:$0xff]
        %v732 = vld [vmem:[#allocation7 + $0x58] sm:$0xff]
        %v733 = vld [vmem:[#allocation7 + $0x60] sm:$0xff]
        %v734 = vld [vmem:[#allocation7 + $0x68] sm:$0xff]
        %v735 = vld [vmem:[#allocation7 + $0x70] sm:$0xff]
        %v736 = vld [vmem:[#allocation7 + $0x78] sm:$0xff]
        %737 = vmatprep.subr.mxu0 0.0
        %v738 = vand.u32 %v721, 4294901760
        %739 = vmatpush1.msra.mxu0 %v738
        %740 = vmatprep.subr.mxu0 0.0
        %v741 = vand.u32 %v722, 4294901760
        %742 = vmatpush1.msra.mxu0 %v741
        %743 = vmatprep.subr.mxu0 0.0
        %v744 = vand.u32 %v723, 4294901760
        %745 = vmatpush1.msra.mxu0 %v744
        %746 = vmatprep.subr.mxu0 0.0
        %v747 = vand.u32 %v724, 4294901760
        %748 = vmatpush1.msra.mxu0 %v747
        %749 = vmatprep.subr.mxu0 0.0
        %v750 = vand.u32 %v725, 4294901760
        %751 = vmatpush1.msra.mxu0 %v750
        %752 = vmatprep.subr.mxu0 0.0
        %v753 = vand.u32 %v726, 4294901760
        %754 = vmatpush1.msra.mxu0 %v753
        %755 = vmatprep.subr.mxu0 0.0
        %v756 = vand.u32 %v727, 4294901760
        %757 = vmatpush1.msra.mxu0 %v756
        %758 = vmatprep.subr.mxu0 0.0
        %v759 = vand.u32 %v728, 4294901760
        %760 = vmatpush1.msra.mxu0 %v759
        %761 = vmatprep.subr.mxu0 0.0
        %v762 = vand.u32 %v729, 4294901760
        %763 = vmatpush1.msra.mxu0 %v762
        %764 = vmatprep.subr.mxu0 0.0
        %v765 = vand.u32 %v730, 4294901760
        %766 = vmatpush1.msra.mxu0 %v765
        %767 = vmatprep.subr.mxu0 0.0
        %v768 = vand.u32 %v731, 4294901760
        %769 = vmatpush1.msra.mxu0 %v768
        %770 = vmatprep.subr.mxu0 0.0
        %v771 = vand.u32 %v732, 4294901760
        %772 = vmatpush1.msra.mxu0 %v771
        %773 = vmatprep.subr.mxu0 0.0
        %v774 = vand.u32 %v733, 4294901760
        %775 = vmatpush1.msra.mxu0 %v774
        %776 = vmatprep.subr.mxu0 0.0
        %v777 = vand.u32 %v734, 4294901760
        %778 = vmatpush1.msra.mxu0 %v777
        %779 = vmatprep.subr.mxu0 0.0
        %v780 = vand.u32 %v735, 4294901760
        %781 = vmatpush1.msra.mxu0 %v780
        %782 = vmatprep.subr.mxu0 0.0
        %v783 = vand.u32 %v736, 4294901760
        %784 = vmatpush1.msra.mxu0 %v783
        %785 = vmatprep.subr.mxu0 0.0
        %786 = vmatpush1.msra.mxu0 0.0
        %787 = vmatprep.subr.mxu0 0.0
        %788 = vmatpush1.msra.mxu0 0.0
        %789 = vmatprep.subr.mxu0 0.0
        %790 = vmatpush1.msra.mxu0 0.0
        %791 = vmatprep.subr.mxu0 0.0
        %792 = vmatpush1.msra.mxu0 0.0
        %793 = vmatprep.subr.mxu0 0.0
        %794 = vmatpush1.msra.mxu0 0.0
        %795 = vmatprep.subr.mxu0 0.0
        %796 = vmatpush1.msra.mxu0 0.0
        %797 = vmatprep.subr.mxu0 0.0
        %798 = vmatpush1.msra.mxu0 0.0
        %799 = vmatprep.subr.mxu0 0.0
        %800 = vmatpush1.msra.mxu0 0.0
        %801 = vmatprep.subr.mxu0 0.0
        %802 = vmatpush1.msra.mxu0 0.0
        %803 = vmatprep.subr.mxu0 0.0
        %804 = vmatpush1.msra.mxu0 0.0
        %805 = vmatprep.subr.mxu0 0.0
        %806 = vmatpush1.msra.mxu0 0.0
        %807 = vmatprep.subr.mxu0 0.0
        %808 = vmatpush1.msra.mxu0 0.0
        %809 = vmatprep.subr.mxu0 0.0
        %810 = vmatpush1.msra.mxu0 0.0
        %811 = vmatprep.subr.mxu0 0.0
        %812 = vmatpush1.msra.mxu0 0.0
        %813 = vmatprep.subr.mxu0 0.0
        %814 = vmatpush1.msra.mxu0 0.0
        %815 = vmatprep.subr.mxu0 0.0
        %816 = vmatpush1.msra.mxu0 0.0
        %817 = vmatprep.mubr.f32.mxu0 0.0
        %v818 = vand.u32 %v720, 4294901760
        %v819 = vsub.f32 %v720, %v818
        %v820 = vand.u32 %v819, 4294901760
        %v821 = vsub.f32 %v819, %v820
        %v822 = vand.u32 %v821, 4294901760
        %823 = vmatmul.mubr.f32.gmra.mrb[0].mxu0 %v822
        %v824 = vpop.f32.mrb[0].mxu0
        %v825 = vadd.f32 0.0, %v824
        %v826 = vpop.f32.mrb[0].mxu0
        %827 = vdwg.mxu0
        %828 = vmatprep.subr.mxu0 0.0
        %v829 = vand.u32 %v721, 4294901760
        %v830 = vsub.f32 %v721, %v829
        %v831 = vand.u32 %v830, 4294901760
        %v832 = vsub.f32 %v830, %v831
        %v833 = vand.u32 %v832, 4294901760
        %834 = vmatpush1.msra.mxu0 %v833
        %835 = vmatprep.subr.mxu0 0.0
        %v836 = vand.u32 %v722, 4294901760
        %v837 = vsub.f32 %v722, %v836
        %v838 = vand.u32 %v837, 4294901760
        %v839 = vsub.f32 %v837, %v838
        %v840 = vand.u32 %v839, 4294901760
        %841 = vmatpush1.msra.mxu0 %v840
        %842 = vmatprep.subr.mxu0 0.0
        %v843 = vand.u32 %v723, 4294901760
        %v844 = vsub.f32 %v723, %v843
        %v845 = vand.u32 %v844, 4294901760
        %v846 = vsub.f32 %v844, %v845
        %v847 = vand.u32 %v846, 4294901760
        %848 = vmatpush1.msra.mxu0 %v847
        %849 = vmatprep.subr.mxu0 0.0
        %v850 = vand.u32 %v724, 4294901760
        %v851 = vsub.f32 %v724, %v850
        %v852 = vand.u32 %v851, 4294901760
        %v853 = vsub.f32 %v851, %v852
        %v854 = vand.u32 %v853, 4294901760
        %855 = vmatpush1.msra.mxu0 %v854
        %856 = vmatprep.subr.mxu0 0.0
        %v857 = vand.u32 %v725, 4294901760
        %v858 = vsub.f32 %v725, %v857
        %v859 = vand.u32 %v858, 4294901760
        %v860 = vsub.f32 %v858, %v859
        %v861 = vand.u32 %v860, 4294901760
        %862 = vmatpush1.msra.mxu0 %v861
        %863 = vmatprep.subr.mxu0 0.0
        %v864 = vand.u32 %v726, 4294901760
        %v865 = vsub.f32 %v726, %v864
        %v866 = vand.u32 %v865, 4294901760
        %v867 = vsub.f32 %v865, %v866
        %v868 = vand.u32 %v867, 4294901760
        %869 = vmatpush1.msra.mxu0 %v868
        %870 = vmatprep.subr.mxu0 0.0
        %v871 = vand.u32 %v727, 4294901760
        %v872 = vsub.f32 %v727, %v871
        %v873 = vand.u32 %v872, 4294901760
        %v874 = vsub.f32 %v872, %v873
        %v875 = vand.u32 %v874, 4294901760
        %876 = vmatpush1.msra.mxu0 %v875
        %877 = vmatprep.subr.mxu0 0.0
        %v878 = vand.u32 %v728, 4294901760
        %v879 = vsub.f32 %v728, %v878
        %v880 = vand.u32 %v879, 4294901760
        %v881 = vsub.f32 %v879, %v880
        %v882 = vand.u32 %v881, 4294901760
        %883 = vmatpush1.msra.mxu0 %v882
        %884 = vmatprep.subr.mxu0 0.0
        %v885 = vand.u32 %v729, 4294901760
        %v886 = vsub.f32 %v729, %v885
        %v887 = vand.u32 %v886, 4294901760
        %v888 = vsub.f32 %v886, %v887
        %v889 = vand.u32 %v888, 4294901760
        %890 = vmatpush1.msra.mxu0 %v889
        %891 = vmatprep.subr.mxu0 0.0
        %v892 = vand.u32 %v730, 4294901760
        %v893 = vsub.f32 %v730, %v892
        %v894 = vand.u32 %v893, 4294901760
        %v895 = vsub.f32 %v893, %v894
        %v896 = vand.u32 %v895, 4294901760
        %897 = vmatpush1.msra.mxu0 %v896
        %898 = vmatprep.subr.mxu0 0.0
        %v899 = vand.u32 %v731, 4294901760
        %v900 = vsub.f32 %v731, %v899
        %v901 = vand.u32 %v900, 4294901760
        %v902 = vsub.f32 %v900, %v901
        %v903 = vand.u32 %v902, 4294901760
        %904 = vmatpush1.msra.mxu0 %v903
        %905 = vmatprep.subr.mxu0 0.0
        %v906 = vand.u32 %v732, 4294901760
        %v907 = vsub.f32 %v732, %v906
        %v908 = vand.u32 %v907, 4294901760
        %v909 = vsub.f32 %v907, %v908
        %v910 = vand.u32 %v909, 4294901760
        %911 = vmatpush1.msra.mxu0 %v910
        %912 = vmatprep.subr.mxu0 0.0
        %v913 = vand.u32 %v733, 4294901760
        %v914 = vsub.f32 %v733, %v913
        %v915 = vand.u32 %v914, 4294901760
        %v916 = vsub.f32 %v914, %v915
        %v917 = vand.u32 %v916, 4294901760
        %918 = vmatpush1.msra.mxu0 %v917
        %919 = vmatprep.subr.mxu0 0.0
        %v920 = vand.u32 %v734, 4294901760
        %v921 = vsub.f32 %v734, %v920
        %v922 = vand.u32 %v921, 4294901760
        %v923 = vsub.f32 %v921, %v922
        %v924 = vand.u32 %v923, 4294901760
        %925 = vmatpush1.msra.mxu0 %v924
        %926 = vmatprep.subr.mxu0 0.0
        %v927 = vand.u32 %v735, 4294901760
        %v928 = vsub.f32 %v735, %v927
        %v929 = vand.u32 %v928, 4294901760
        %v930 = vsub.f32 %v928, %v929
        %v931 = vand.u32 %v930, 4294901760
        %932 = vmatpush1.msra.mxu0 %v931
        %933 = vmatprep.subr.mxu0 0.0
        %v934 = vand.u32 %v736, 4294901760
        %v935 = vsub.f32 %v736, %v934
        %v936 = vand.u32 %v935, 4294901760
        %v937 = vsub.f32 %v935, %v936
        %v938 = vand.u32 %v937, 4294901760
        %939 = vmatpush1.msra.mxu0 %v938
        %940 = vmatprep.subr.mxu0 0.0
        %941 = vmatpush1.msra.mxu0 0.0
        %942 = vmatprep.subr.mxu0 0.0
        %943 = vmatpush1.msra.mxu0 0.0
        %944 = vmatprep.subr.mxu0 0.0
        %945 = vmatpush1.msra.mxu0 0.0
        %946 = vmatprep.subr.mxu0 0.0
        %947 = vmatpush1.msra.mxu0 0.0
        %948 = vmatprep.subr.mxu0 0.0
        %949 = vmatpush1.msra.mxu0 0.0
        %950 = vmatprep.subr.mxu0 0.0
        %951 = vmatpush1.msra.mxu0 0.0
        %952 = vmatprep.subr.mxu0 0.0
        %953 = vmatpush1.msra.mxu0 0.0
        %954 = vmatprep.subr.mxu0 0.0
        %955 = vmatpush1.msra.mxu0 0.0
        %956 = vmatprep.subr.mxu0 0.0
        %957 = vmatpush1.msra.mxu0 0.0
        %958 = vmatprep.subr.mxu0 0.0
        %959 = vmatpush1.msra.mxu0 0.0
        %960 = vmatprep.subr.mxu0 0.0
        %961 = vmatpush1.msra.mxu0 0.0
        %962 = vmatprep.subr.mxu0 0.0
        %963 = vmatpush1.msra.mxu0 0.0
        %964 = vmatprep.subr.mxu0 0.0
        %965 = vmatpush1.msra.mxu0 0.0
        %966 = vmatprep.subr.mxu0 0.0
        %967 = vmatpush1.msra.mxu0 0.0
        %968 = vmatprep.subr.mxu0 0.0
        %969 = vmatpush1.msra.mxu0 0.0
        %970 = vmatprep.subr.mxu0 0.0
        %971 = vmatpush1.msra.mxu0 0.0
        %972 = vmatprep.mubr.f32.mxu0 0.0
        %v973 = vand.u32 %v720, 4294901760
        %974 = vmatmul.mubr.f32.gmra.mrb[0].mxu0 %v973
        %v975 = vpop.f32.mrb[0].mxu0
        %v976 = vadd.f32 %v825, %v975
        %v977 = vpop.f32.mrb[0].mxu0
        %978 = vdwg.mxu0
        %979 = vmatprep.subr.mxu0 0.0
        %v980 = vand.u32 %v721, 4294901760
        %v981 = vsub.f32 %v721, %v980
        %982 = vmatpush1.msra.mxu0 %v981
        %983 = vmatprep.subr.mxu0 0.0
        %v984 = vand.u32 %v722, 4294901760
        %v985 = vsub.f32 %v722, %v984
        %986 = vmatpush1.msra.mxu0 %v985
        %987 = vmatprep.subr.mxu0 0.0
        %v988 = vand.u32 %v723, 4294901760
        %v989 = vsub.f32 %v723, %v988
        %990 = vmatpush1.msra.mxu0 %v989
        %991 = vmatprep.subr.mxu0 0.0
        %v992 = vand.u32 %v724, 4294901760
        %v993 = vsub.f32 %v724, %v992
        %994 = vmatpush1.msra.mxu0 %v993
        %995 = vmatprep.subr.mxu0 0.0
        %v996 = vand.u32 %v725, 4294901760
        %v997 = vsub.f32 %v725, %v996
        %998 = vmatpush1.msra.mxu0 %v997
        %999 = vmatprep.subr.mxu0 0.0
        %v1000 = vand.u32 %v726, 4294901760
        %v1001 = vsub.f32 %v726, %v1000
        %1002 = vmatpush1.msra.mxu0 %v1001
        %1003 = vmatprep.subr.mxu0 0.0
        %v1004 = vand.u32 %v727, 4294901760
        %v1005 = vsub.f32 %v727, %v1004
        %1006 = vmatpush1.msra.mxu0 %v1005
        %1007 = vmatprep.subr.mxu0 0.0
        %v1008 = vand.u32 %v728, 4294901760
        %v1009 = vsub.f32 %v728, %v1008
        %1010 = vmatpush1.msra.mxu0 %v1009
        %1011 = vmatprep.subr.mxu0 0.0
        %v1012 = vand.u32 %v729, 4294901760
        %v1013 = vsub.f32 %v729, %v1012
        %1014 = vmatpush1.msra.mxu0 %v1013
        %1015 = vmatprep.subr.mxu0 0.0
        %v1016 = vand.u32 %v730, 4294901760
        %v1017 = vsub.f32 %v730, %v1016
        %1018 = vmatpush1.msra.mxu0 %v1017
        %1019 = vmatprep.subr.mxu0 0.0
        %v1020 = vand.u32 %v731, 4294901760
        %v1021 = vsub.f32 %v731, %v1020
        %1022 = vmatpush1.msra.mxu0 %v1021
        %1023 = vmatprep.subr.mxu0 0.0
        %v1024 = vand.u32 %v732, 4294901760
        %v1025 = vsub.f32 %v732, %v1024
        %1026 = vmatpush1.msra.mxu0 %v1025
        %1027 = vmatprep.subr.mxu0 0.0
        %v1028 = vand.u32 %v733, 4294901760
        %v1029 = vsub.f32 %v733, %v1028
        %1030 = vmatpush1.msra.mxu0 %v1029
        %1031 = vmatprep.subr.mxu0 0.0
        %v1032 = vand.u32 %v734, 4294901760
        %v1033 = vsub.f32 %v734, %v1032
        %1034 = vmatpush1.msra.mxu0 %v1033
        %1035 = vmatprep.subr.mxu0 0.0
        %v1036 = vand.u32 %v735, 4294901760
        %v1037 = vsub.f32 %v735, %v1036
        %1038 = vmatpush1.msra.mxu0 %v1037
        %1039 = vmatprep.subr.mxu0 0.0
        %v1040 = vand.u32 %v736, 4294901760
        %v1041 = vsub.f32 %v736, %v1040
        %1042 = vmatpush1.msra.mxu0 %v1041
        %1043 = vmatprep.subr.mxu0 0.0
        %1044 = vmatpush1.msra.mxu0 0.0
        %1045 = vmatprep.subr.mxu0 0.0
        %1046 = vmatpush1.msra.mxu0 0.0
        %1047 = vmatprep.subr.mxu0 0.0
        %1048 = vmatpush1.msra.mxu0 0.0
        %1049 = vmatprep.subr.mxu0 0.0
        %1050 = vmatpush1.msra.mxu0 0.0
        %1051 = vmatprep.subr.mxu0 0.0
        %1052 = vmatpush1.msra.mxu0 0.0
        %1053 = vmatprep.subr.mxu0 0.0
        %1054 = vmatpush1.msra.mxu0 0.0
        %1055 = vmatprep.subr.mxu0 0.0
        %1056 = vmatpush1.msra.mxu0 0.0
        %1057 = vmatprep.subr.mxu0 0.0
        %1058 = vmatpush1.msra.mxu0 0.0
        %1059 = vmatprep.subr.mxu0 0.0
        %1060 = vmatpush1.msra.mxu0 0.0
        %1061 = vmatprep.subr.mxu0 0.0
        %1062 = vmatpush1.msra.mxu0 0.0
        %1063 = vmatprep.subr.mxu0 0.0
        %1064 = vmatpush1.msra.mxu0 0.0
        %1065 = vmatprep.subr.mxu0 0.0
        %1066 = vmatpush1.msra.mxu0 0.0
        %1067 = vmatprep.subr.mxu0 0.0
        %1068 = vmatpush1.msra.mxu0 0.0
        %1069 = vmatprep.subr.mxu0 0.0
        %1070 = vmatpush1.msra.mxu0 0.0
        %1071 = vmatprep.subr.mxu0 0.0
        %1072 = vmatpush1.msra.mxu0 0.0
        %1073 = vmatprep.subr.mxu0 0.0
        %1074 = vmatpush1.msra.mxu0 0.0
        %1075 = vmatprep.mubr.f32.mxu0 0.0
        %v1076 = vand.u32 %v720, 4294901760
        %v1077 = vsub.f32 %v720, %v1076
        %1078 = vmatmul.mubr.f32.gmra.mrb[0].mxu0 %v1077
        %v1079 = vpop.f32.mrb[0].mxu0
        %v1080 = vadd.f32 %v976, %v1079
        %v1081 = vpop.f32.mrb[0].mxu0
        %1082 = vdwg.mxu0
        %1083 = vmatprep.subr.mxu0 0.0
        %v1084 = vand.u32 %v721, 4294901760
        %1085 = vmatpush1.msra.mxu0 %v1084
        %1086 = vmatprep.subr.mxu0 0.0
        %v1087 = vand.u32 %v722, 4294901760
        %1088 = vmatpush1.msra.mxu0 %v1087
        %1089 = vmatprep.subr.mxu0 0.0
        %v1090 = vand.u32 %v723, 4294901760
        %1091 = vmatpush1.msra.mxu0 %v1090
        %1092 = vmatprep.subr.mxu0 0.0
        %v1093 = vand.u32 %v724, 4294901760
        %1094 = vmatpush1.msra.mxu0 %v1093
        %1095 = vmatprep.subr.mxu0 0.0
        %v1096 = vand.u32 %v725, 4294901760
        %1097 = vmatpush1.msra.mxu0 %v1096
        %1098 = vmatprep.subr.mxu0 0.0
        %v1099 = vand.u32 %v726, 4294901760
        %1100 = vmatpush1.msra.mxu0 %v1099
        %1101 = vmatprep.subr.mxu0 0.0
        %v1102 = vand.u32 %v727, 4294901760
        %1103 = vmatpush1.msra.mxu0 %v1102
        %1104 = vmatprep.subr.mxu0 0.0
        %v1105 = vand.u32 %v728, 4294901760
        %1106 = vmatpush1.msra.mxu0 %v1105
        %1107 = vmatprep.subr.mxu0 0.0
        %v1108 = vand.u32 %v729, 4294901760
        %1109 = vmatpush1.msra.mxu0 %v1108
        %1110 = vmatprep.subr.mxu0 0.0
        %v1111 = vand.u32 %v730, 4294901760
        %1112 = vmatpush1.msra.mxu0 %v1111
        %1113 = vmatprep.subr.mxu0 0.0
        %v1114 = vand.u32 %v731, 4294901760
        %1115 = vmatpush1.msra.mxu0 %v1114
        %1116 = vmatprep.subr.mxu0 0.0
        %v1117 = vand.u32 %v732, 4294901760
        %1118 = vmatpush1.msra.mxu0 %v1117
        %1119 = vmatprep.subr.mxu0 0.0
        %v1120 = vand.u32 %v733, 4294901760
        %1121 = vmatpush1.msra.mxu0 %v1120
        %1122 = vmatprep.subr.mxu0 0.0
        %v1123 = vand.u32 %v734, 4294901760
        %1124 = vmatpush1.msra.mxu0 %v1123
        %1125 = vmatprep.subr.mxu0 0.0
        %v1126 = vand.u32 %v735, 4294901760
        %1127 = vmatpush1.msra.mxu0 %v1126
        %1128 = vmatprep.subr.mxu0 0.0
        %v1129 = vand.u32 %v736, 4294901760
        %1130 = vmatpush1.msra.mxu0 %v1129
        %1131 = vmatprep.subr.mxu0 0.0
        %1132 = vmatpush1.msra.mxu0 0.0
        %1133 = vmatprep.subr.mxu0 0.0
        %1134 = vmatpush1.msra.mxu0 0.0
        %1135 = vmatprep.subr.mxu0 0.0
        %1136 = vmatpush1.msra.mxu0 0.0
        %1137 = vmatprep.subr.mxu0 0.0
        %1138 = vmatpush1.msra.mxu0 0.0
        %1139 = vmatprep.subr.mxu0 0.0
        %1140 = vmatpush1.msra.mxu0 0.0
        %1141 = vmatprep.subr.mxu0 0.0
        %1142 = vmatpush1.msra.mxu0 0.0
        %1143 = vmatprep.subr.mxu0 0.0
        %1144 = vmatpush1.msra.mxu0 0.0
        %1145 = vmatprep.subr.mxu0 0.0
        %1146 = vmatpush1.msra.mxu0 0.0
        %1147 = vmatprep.subr.mxu0 0.0
        %1148 = vmatpush1.msra.mxu0 0.0
        %1149 = vmatprep.subr.mxu0 0.0
        %1150 = vmatpush1.msra.mxu0 0.0
        %1151 = vmatprep.subr.mxu0 0.0
        %1152 = vmatpush1.msra.mxu0 0.0
        %1153 = vmatprep.subr.mxu0 0.0
        %1154 = vmatpush1.msra.mxu0 0.0
        %1155 = vmatprep.subr.mxu0 0.0
        %1156 = vmatpush1.msra.mxu0 0.0
        %1157 = vmatprep.subr.mxu0 0.0
        %1158 = vmatpush1.msra.mxu0 0.0
        %1159 = vmatprep.subr.mxu0 0.0
        %1160 = vmatpush1.msra.mxu0 0.0
        %1161 = vmatprep.subr.mxu0 0.0
        %1162 = vmatpush1.msra.mxu0 0.0
        %1163 = vmatprep.mubr.f32.mxu0 0.0
        %v1164 = vand.u32 %v720, 4294901760
        %v1165 = vsub.f32 %v720, %v1164
        %v1166 = vand.u32 %v1165, 4294901760
        %1167 = vmatmul.mubr.f32.gmra.mrb[0].mxu0 %v1166
        %v1168 = vpop.f32.mrb[0].mxu0
        %v1169 = vadd.f32 %v1080, %v1168
        %v1170 = vpop.f32.mrb[0].mxu0
        %1171 = vdwg.mxu0
        %1172 = vmatprep.subr.mxu0 0.0
        %v1173 = vand.u32 %v721, 4294901760
        %v1174 = vsub.f32 %v721, %v1173
        %v1175 = vand.u32 %v1174, 4294901760
        %1176 = vmatpush1.msra.mxu0 %v1175
        %1177 = vmatprep.subr.mxu0 0.0
        %v1178 = vand.u32 %v722, 4294901760
        %v1179 = vsub.f32 %v722, %v1178
        %v1180 = vand.u32 %v1179, 4294901760
        %1181 = vmatpush1.msra.mxu0 %v1180
        %1182 = vmatprep.subr.mxu0 0.0
        %v1183 = vand.u32 %v723, 4294901760
        %v1184 = vsub.f32 %v723, %v1183
        %v1185 = vand.u32 %v1184, 4294901760
        %1186 = vmatpush1.msra.mxu0 %v1185
        %1187 = vmatprep.subr.mxu0 0.0
        %v1188 = vand.u32 %v724, 4294901760
        %v1189 = vsub.f32 %v724, %v1188
        %v1190 = vand.u32 %v1189, 4294901760
        %1191 = vmatpush1.msra.mxu0 %v1190
        %1192 = vmatprep.subr.mxu0 0.0
        %v1193 = vand.u32 %v725, 4294901760
        %v1194 = vsub.f32 %v725, %v1193
        %v1195 = vand.u32 %v1194, 4294901760
        %1196 = vmatpush1.msra.mxu0 %v1195
        %1197 = vmatprep.subr.mxu0 0.0
        %v1198 = vand.u32 %v726, 4294901760
        %v1199 = vsub.f32 %v726, %v1198
        %v1200 = vand.u32 %v1199, 4294901760
        %1201 = vmatpush1.msra.mxu0 %v1200
        %1202 = vmatprep.subr.mxu0 0.0
        %v1203 = vand.u32 %v727, 4294901760
        %v1204 = vsub.f32 %v727, %v1203
        %v1205 = vand.u32 %v1204, 4294901760
        %1206 = vmatpush1.msra.mxu0 %v1205
        %1207 = vmatprep.subr.mxu0 0.0
        %v1208 = vand.u32 %v728, 4294901760
        %v1209 = vsub.f32 %v728, %v1208
        %v1210 = vand.u32 %v1209, 4294901760
        %1211 = vmatpush1.msra.mxu0 %v1210
        %1212 = vmatprep.subr.mxu0 0.0
        %v1213 = vand.u32 %v729, 4294901760
        %v1214 = vsub.f32 %v729, %v1213
        %v1215 = vand.u32 %v1214, 4294901760
        %1216 = vmatpush1.msra.mxu0 %v1215
        %1217 = vmatprep.subr.mxu0 0.0
        %v1218 = vand.u32 %v730, 4294901760
        %v1219 = vsub.f32 %v730, %v1218
        %v1220 = vand.u32 %v1219, 4294901760
        %1221 = vmatpush1.msra.mxu0 %v1220
        %1222 = vmatprep.subr.mxu0 0.0
        %v1223 = vand.u32 %v731, 4294901760
        %v1224 = vsub.f32 %v731, %v1223
        %v1225 = vand.u32 %v1224, 4294901760
        %1226 = vmatpush1.msra.mxu0 %v1225
        %1227 = vmatprep.subr.mxu0 0.0
        %v1228 = vand.u32 %v732, 4294901760
        %v1229 = vsub.f32 %v732, %v1228
        %v1230 = vand.u32 %v1229, 4294901760
        %1231 = vmatpush1.msra.mxu0 %v1230
        %1232 = vmatprep.subr.mxu0 0.0
        %v1233 = vand.u32 %v733, 4294901760
        %v1234 = vsub.f32 %v733, %v1233
        %v1235 = vand.u32 %v1234, 4294901760
        %1236 = vmatpush1.msra.mxu0 %v1235
        %1237 = vmatprep.subr.mxu0 0.0
        %v1238 = vand.u32 %v734, 4294901760
        %v1239 = vsub.f32 %v734, %v1238
        %v1240 = vand.u32 %v1239, 4294901760
        %1241 = vmatpush1.msra.mxu0 %v1240
        %1242 = vmatprep.subr.mxu0 0.0
        %v1243 = vand.u32 %v735, 4294901760
        %v1244 = vsub.f32 %v735, %v1243
        %v1245 = vand.u32 %v1244, 4294901760
        %1246 = vmatpush1.msra.mxu0 %v1245
        %1247 = vmatprep.subr.mxu0 0.0
        %v1248 = vand.u32 %v736, 4294901760
        %v1249 = vsub.f32 %v736, %v1248
        %v1250 = vand.u32 %v1249, 4294901760
        %1251 = vmatpush1.msra.mxu0 %v1250
        %1252 = vmatprep.subr.mxu0 0.0
        %1253 = vmatpush1.msra.mxu0 0.0
        %1254 = vmatprep.subr.mxu0 0.0
        %1255 = vmatpush1.msra.mxu0 0.0
        %1256 = vmatprep.subr.mxu0 0.0
        %1257 = vmatpush1.msra.mxu0 0.0
        %1258 = vmatprep.subr.mxu0 0.0
        %1259 = vmatpush1.msra.mxu0 0.0
        %1260 = vmatprep.subr.mxu0 0.0
        %1261 = vmatpush1.msra.mxu0 0.0
        %1262 = vmatprep.subr.mxu0 0.0
        %1263 = vmatpush1.msra.mxu0 0.0
        %1264 = vmatprep.subr.mxu0 0.0
        %1265 = vmatpush1.msra.mxu0 0.0
        %1266 = vmatprep.subr.mxu0 0.0
        %1267 = vmatpush1.msra.mxu0 0.0
        %1268 = vmatprep.subr.mxu0 0.0
        %1269 = vmatpush1.msra.mxu0 0.0
        %1270 = vmatprep.subr.mxu0 0.0
        %1271 = vmatpush1.msra.mxu0 0.0
        %1272 = vmatprep.subr.mxu0 0.0
        %1273 = vmatpush1.msra.mxu0 0.0
        %1274 = vmatprep.subr.mxu0 0.0
        %1275 = vmatpush1.msra.mxu0 0.0
        %1276 = vmatprep.subr.mxu0 0.0
        %1277 = vmatpush1.msra.mxu0 0.0
        %1278 = vmatprep.subr.mxu0 0.0
        %1279 = vmatpush1.msra.mxu0 0.0
        %1280 = vmatprep.subr.mxu0 0.0
        %1281 = vmatpush1.msra.mxu0 0.0
        %1282 = vmatprep.subr.mxu0 0.0
        %1283 = vmatpush1.msra.mxu0 0.0
        %1284 = vmatprep.mubr.f32.mxu0 0.0
        %v1285 = vand.u32 %v720, 4294901760
        %1286 = vmatmul.mubr.f32.gmra.mrb[0].mxu0 %v1285
        %v1287 = vpop.f32.mrb[0].mxu0
        %v1288 = vadd.f32 %v1169, %v1287
        %v1289 = vpop.f32.mrb[0].mxu0
        %1290 = vdwg.mxu0
        %1291 = vmatprep.subr.mxu0 0.0
        %v1292 = vand.u32 %v721, 4294901760
        %1293 = vmatpush1.msra.mxu0 %v1292
        %1294 = vmatprep.subr.mxu0 0.0
        %v1295 = vand.u32 %v722, 4294901760
        %1296 = vmatpush1.msra.mxu0 %v1295
        %1297 = vmatprep.subr.mxu0 0.0
        %v1298 = vand.u32 %v723, 4294901760
        %1299 = vmatpush1.msra.mxu0 %v1298
        %1300 = vmatprep.subr.mxu0 0.0
        %v1301 = vand.u32 %v724, 4294901760
        %1302 = vmatpush1.msra.mxu0 %v1301
        %1303 = vmatprep.subr.mxu0 0.0
        %v1304 = vand.u32 %v725, 4294901760
        %1305 = vmatpush1.msra.mxu0 %v1304
        %1306 = vmatprep.subr.mxu0 0.0
        %v1307 = vand.u32 %v726, 4294901760
        %1308 = vmatpush1.msra.mxu0 %v1307
        %1309 = vmatprep.subr.mxu0 0.0
        %v1310 = vand.u32 %v727, 4294901760
        %1311 = vmatpush1.msra.mxu0 %v1310
        %1312 = vmatprep.subr.mxu0 0.0
        %v1313 = vand.u32 %v728, 4294901760
        %1314 = vmatpush1.msra.mxu0 %v1313
        %1315 = vmatprep.subr.mxu0 0.0
        %v1316 = vand.u32 %v729, 4294901760
        %1317 = vmatpush1.msra.mxu0 %v1316
        %1318 = vmatprep.subr.mxu0 0.0
        %v1319 = vand.u32 %v730, 4294901760
        %1320 = vmatpush1.msra.mxu0 %v1319
        %1321 = vmatprep.subr.mxu0 0.0
        %v1322 = vand.u32 %v731, 4294901760
        %1323 = vmatpush1.msra.mxu0 %v1322
        %1324 = vmatprep.subr.mxu0 0.0
        %v1325 = vand.u32 %v732, 4294901760
        %1326 = vmatpush1.msra.mxu0 %v1325
        %1327 = vmatprep.subr.mxu0 0.0
        %v1328 = vand.u32 %v733, 4294901760
        %1329 = vmatpush1.msra.mxu0 %v1328
        %1330 = vmatprep.subr.mxu0 0.0
        %v1331 = vand.u32 %v734, 4294901760
        %1332 = vmatpush1.msra.mxu0 %v1331
        %1333 = vmatprep.subr.mxu0 0.0
        %v1334 = vand.u32 %v735, 4294901760
        %1335 = vmatpush1.msra.mxu0 %v1334
        %1336 = vmatprep.subr.mxu0 0.0
        %v1337 = vand.u32 %v736, 4294901760
        %1338 = vmatpush1.msra.mxu0 %v1337
        %1339 = vmatprep.subr.mxu0 0.0
        %1340 = vmatpush1.msra.mxu0 0.0
        %1341 = vmatprep.subr.mxu0 0.0
        %1342 = vmatpush1.msra.mxu0 0.0
        %1343 = vmatprep.subr.mxu0 0.0
        %1344 = vmatpush1.msra.mxu0 0.0
        %1345 = vmatprep.subr.mxu0 0.0
        %1346 = vmatpush1.msra.mxu0 0.0
        %1347 = vmatprep.subr.mxu0 0.0
        %1348 = vmatpush1.msra.mxu0 0.0
        %1349 = vmatprep.subr.mxu0 0.0
        %1350 = vmatpush1.msra.mxu0 0.0
        %1351 = vmatprep.subr.mxu0 0.0
        %1352 = vmatpush1.msra.mxu0 0.0
        %1353 = vmatprep.subr.mxu0 0.0
        %1354 = vmatpush1.msra.mxu0 0.0
        %1355 = vmatprep.subr.mxu0 0.0
        %1356 = vmatpush1.msra.mxu0 0.0
        %1357 = vmatprep.subr.mxu0 0.0
        %1358 = vmatpush1.msra.mxu0 0.0
        %1359 = vmatprep.subr.mxu0 0.0
        %1360 = vmatpush1.msra.mxu0 0.0
        %1361 = vmatprep.subr.mxu0 0.0
        %1362 = vmatpush1.msra.mxu0 0.0
        %1363 = vmatprep.subr.mxu0 0.0
        %1364 = vmatpush1.msra.mxu0 0.0
        %1365 = vmatprep.subr.mxu0 0.0
        %1366 = vmatpush1.msra.mxu0 0.0
        %1367 = vmatprep.subr.mxu0 0.0
        %1368 = vmatpush1.msra.mxu0 0.0
        %1369 = vmatprep.subr.mxu0 0.0
        %1370 = vmatpush1.msra.mxu0 0.0
        %1371 = vmatprep.mubr.f32.mxu0 0.0
        %v1372 = vand.u32 %v720, 4294901760
        %1373 = vmatmul.mubr.f32.gmra.mrb[0].mxu0 %v1372
        %v1374 = vpop.f32.mrb[0].mxu0
        %v1375 = vadd.f32 %v1288, %v1374
        %v1376 = vpop.f32.mrb[0].mxu0
        %1377 = vdwg.mxu0
        %v1378 = vmul.f32 %v1375, 0.0009765625
        %v1379 = vmul.f32 %v1378, %v1378
        %v1381 = vrot.slane %v1379, 7
        %v1383 = vsub.f32 %v1378, %v1381
        %v1384 = vadd.f32 %v1383, 1e-06
        %v1385 = vrsqrt.pop %v1384
        %v1386 = vsel %vm719, %v1378, %v1385
        %v1387 = vld [vmem:[#allocation9] sm:$0xff]
        %v1388 = vld [vmem:[#allocation9 + $0x8] sm:$0xff]
        %v1389 = vld [vmem:[#allocation9 + $0x10] sm:$0xff]
        %v1390 = vld [vmem:[#allocation9 + $0x18] sm:$0xff]
        %vm1391 = vcmask 261120
        %v1393 = vsel %vm1391, %v1386, 0
        %1395 = vmatprep.subr.mxu0 0.0
        %v1396 = vand.u32 %v1387, 4294901760
        %1397 = vmatpush1.msra.mxu0 %v1396
        %1398 = vmatprep.subr.mxu0 0.0
        %v1399 = vand.u32 %v1388, 4294901760
        %1400 = vmatpush1.msra.mxu0 %v1399
        %1401 = vmatprep.subr.mxu0 0.0
        %v1402 = vand.u32 %v1389, 4294901760
        %1403 = vmatpush1.msra.mxu0 %v1402
        %1404 = vmatprep.subr.mxu0 0.0
        %v1405 = vand.u32 %v1390, 4294901760
        %1406 = vmatpush1.msra.mxu0 %v1405
        %1407 = vmatprep.subr.mxu0 0.0
        %1408 = vmatpush1.msra.mxu0 0.0
        %1409 = vmatprep.subr.mxu0 0.0
        %1410 = vmatpush1.msra.mxu0 0.0
        %1411 = vmatprep.subr.mxu0 0.0
        %1412 = vmatpush1.msra.mxu0 0.0
        %1413 = vmatprep.subr.mxu0 0.0
        %1414 = vmatpush1.msra.mxu0 0.0
        %1415 = vmatprep.subr.mxu0 0.0
        %1416 = vmatpush1.msra.mxu0 0.0
        %1417 = vmatprep.subr.mxu0 0.0
        %1418 = vmatpush1.msra.mxu0 0.0
        %1419 = vmatprep.subr.mxu0 0.0
        %1420 = vmatpush1.msra.mxu0 0.0
        %1421 = vmatprep.subr.mxu0 0.0
        %1422 = vmatpush1.msra.mxu0 0.0
        %1423 = vmatprep.subr.mxu0 0.0
        %1424 = vmatpush1.msra.mxu0 0.0
        %1425 = vmatprep.subr.mxu0 0.0
        %1426 = vmatpush1.msra.mxu0 0.0
        %1427 = vmatprep.subr.mxu0 0.0
        %1428 = vmatpush1.msra.mxu0 0.0
        %1429 = vmatprep.subr.mxu0 0.0
        %1430 = vmatpush1.msra.mxu0 0.0
        %1431 = vmatprep.subr.mxu0 0.0
        %1432 = vmatpush1.msra.mxu0 0.0
        %1433 = vmatprep.subr.mxu0 0.0
        %1434 = vmatpush1.msra.mxu0 0.0
        %1435 = vmatprep.subr.mxu0 0.0
        %1436 = vmatpush1.msra.mxu0 0.0
        %1437 = vmatprep.subr.mxu0 0.0
        %1438 = vmatpush1.msra.mxu0 0.0
        %1439 = vmatprep.subr.mxu0 0.0
        %1440 = vmatpush1.msra.mxu0 0.0
        %1441 = vmatprep.subr.mxu0 0.0
        %1442 = vmatpush1.msra.mxu0 0.0
        %1443 = vmatprep.subr.mxu0 0.0
        %1444 = vmatpush1.msra.mxu0 0.0
        %1445 = vmatprep.subr.mxu0 0.0
        %1446 = vmatpush1.msra.mxu0 0.0
        %1447 = vmatprep.subr.mxu0 0.0
        %1448 = vmatpush1.msra.mxu0 0.0
        %1449 = vmatprep.subr.mxu0 0.0
        %1450 = vmatpush1.msra.mxu0 0.0
        %1451 = vmatprep.subr.mxu0 0.0
        %1452 = vmatpush1.msra.mxu0 0.0
        %1453 = vmatprep.subr.mxu0 0.0
        %1454 = vmatpush1.msra.mxu0 0.0
        %1455 = vmatprep.subr.mxu0 0.0
        %1456 = vmatpush1.msra.mxu0 0.0
        %1457 = vmatprep.subr.mxu0 0.0
        %1458 = vmatpush1.msra.mxu0 0.0
        %1459 = vmatprep.subr.mxu0 0.0
        %1460 = vmatpush1.msra.mxu0 0.0
        %1461 = vmatprep.subr.mxu0 0.0
        %1462 = vmatpush1.msra.mxu0 0.0
        %1463 = vmatprep.mubr.f32.mxu0 0.0
        %v1464 = vand.u32 %v1393, 4294901760
        %v1465 = vsub.f32 %v1393, %v1464
        %v1466 = vand.u32 %v1465, 4294901760
        %v1467 = vsub.f32 %v1465, %v1466
        %v1468 = vand.u32 %v1467, 4294901760
        %1469 = vmatmul.mubr.f32.gmra.mrb[0].mxu0 %v1468
        %v1470 = vpop.f32.mrb[0].mxu0
        %v1471 = vadd.f32 0.0, %v1470
        %v1472 = vpop.f32.mrb[0].mxu0
        %1473 = vdwg.mxu0
        %1474 = vmatprep.subr.mxu0 0.0
        %v1475 = vand.u32 %v1387, 4294901760
        %v1476 = vsub.f32 %v1387, %v1475
        %v1477 = vand.u32 %v1476, 4294901760
        %v1478 = vsub.f32 %v1476, %v1477
        %v1479 = vand.u32 %v1478, 4294901760
        %1480 = vmatpush1.msra.mxu0 %v1479
        %1481 = vmatprep.subr.mxu0 0.0
        %v1482 = vand.u32 %v1388, 4294901760
        %v1483 = vsub.f32 %v1388, %v1482
        %v1484 = vand.u32 %v1483, 4294901760
        %v1485 = vsub.f32 %v1483, %v1484
        %v1486 = vand.u32 %v1485, 4294901760
        %1487 = vmatpush1.msra.mxu0 %v1486
        %1488 = vmatprep.subr.mxu0 0.0
        %v1489 = vand.u32 %v1389, 4294901760
        %v1490 = vsub.f32 %v1389, %v1489
        %v1491 = vand.u32 %v1490, 4294901760
        %v1492 = vsub.f32 %v1490, %v1491
        %v1493 = vand.u32 %v1492, 4294901760
        %1494 = vmatpush1.msra.mxu0 %v1493
        %1495 = vmatprep.subr.mxu0 0.0
        %v1496 = vand.u32 %v1390, 4294901760
        %v1497 = vsub.f32 %v1390, %v1496
        %v1498 = vand.u32 %v1497, 4294901760
        %v1499 = vsub.f32 %v1497, %v1498
        %v1500 = vand.u32 %v1499, 4294901760
        %1501 = vmatpush1.msra.mxu0 %v1500
        %1502 = vmatprep.subr.mxu0 0.0
        %1503 = vmatpush1.msra.mxu0 0.0
        %1504 = vmatprep.subr.mxu0 0.0
        %1505 = vmatpush1.msra.mxu0 0.0
        %1506 = vmatprep.subr.mxu0 0.0
        %1507 = vmatpush1.msra.mxu0 0.0
        %1508 = vmatprep.subr.mxu0 0.0
        %1509 = vmatpush1.msra.mxu0 0.0
        %1510 = vmatprep.subr.mxu0 0.0
        %1511 = vmatpush1.msra.mxu0 0.0
        %1512 = vmatprep.subr.mxu0 0.0
        %1513 = vmatpush1.msra.mxu0 0.0
        %1514 = vmatprep.subr.mxu0 0.0
        %1515 = vmatpush1.msra.mxu0 0.0
        %1516 = vmatprep.subr.mxu0 0.0
        %1517 = vmatpush1.msra.mxu0 0.0
        %1518 = vmatprep.subr.mxu0 0.0
        %1519 = vmatpush1.msra.mxu0 0.0
        %1520 = vmatprep.subr.mxu0 0.0
        %1521 = vmatpush1.msra.mxu0 0.0
        %1522 = vmatprep.subr.mxu0 0.0
        %1523 = vmatpush1.msra.mxu0 0.0
        %1524 = vmatprep.subr.mxu0 0.0
        %1525 = vmatpush1.msra.mxu0 0.0
        %1526 = vmatprep.subr.mxu0 0.0
        %1527 = vmatpush1.msra.mxu0 0.0
        %1528 = vmatprep.subr.mxu0 0.0
        %1529 = vmatpush1.msra.mxu0 0.0
        %1530 = vmatprep.subr.mxu0 0.0
        %1531 = vmatpush1.msra.mxu0 0.0
        %1532 = vmatprep.subr.mxu0 0.0
        %1533 = vmatpush1.msra.mxu0 0.0
        %1534 = vmatprep.subr.mxu0 0.0
        %1535 = vmatpush1.msra.mxu0 0.0
        %1536 = vmatprep.subr.mxu0 0.0
        %1537 = vmatpush1.msra.mxu0 0.0
        %1538 = vmatprep.subr.mxu0 0.0
        %1539 = vmatpush1.msra.mxu0 0.0
        %1540 = vmatprep.subr.mxu0 0.0
        %1541 = vmatpush1.msra.mxu0 0.0
        %1542 = vmatprep.subr.mxu0 0.0
        %1543 = vmatpush1.msra.mxu0 0.0
        %1544 = vmatprep.subr.mxu0 0.0
        %1545 = vmatpush1.msra.mxu0 0.0
        %1546 = vmatprep.subr.mxu0 0.0
        %1547 = vmatpush1.msra.mxu0 0.0
        %1548 = vmatprep.subr.mxu0 0.0
        %1549 = vmatpush1.msra.mxu0 0.0
        %1550 = vmatprep.subr.mxu0 0.0
        %1551 = vmatpush1.msra.mxu0 0.0
        %1552 = vmatprep.subr.mxu0 0.0
        %1553 = vmatpush1.msra.mxu0 0.0
        %1554 = vmatprep.subr.mxu0 0.0
        %1555 = vmatpush1.msra.mxu0 0.0
        %1556 = vmatprep.subr.mxu0 0.0
        %1557 = vmatpush1.msra.mxu0 0.0
        %1558 = vmatprep.mubr.f32.mxu0 0.0
        %v1559 = vand.u32 %v1393, 4294901760
        %1560 = vmatmul.mubr.f32.gmra.mrb[0].mxu0 %v1559
        %v1561 = vpop.f32.mrb[0].mxu0
        %v1562 = vadd.f32 %v1471, %v1561
        %v1563 = vpop.f32.mrb[0].mxu0
        %1564 = vdwg.mxu0
        %1565 = vmatprep.subr.mxu0 0.0
        %v1566 = vand.u32 %v1387, 4294901760
        %v1567 = vsub.f32 %v1387, %v1566
        %1568 = vmatpush1.msra.mxu0 %v1567
        %1569 = vmatprep.subr.mxu0 0.0
        %v1570 = vand.u32 %v1388, 4294901760
        %v1571 = vsub.f32 %v1388, %v1570
        %1572 = vmatpush1.msra.mxu0 %v1571
        %1573 = vmatprep.subr.mxu0 0.0
        %v1574 = vand.u32 %v1389, 4294901760
        %v1575 = vsub.f32 %v1389, %v1574
        %1576 = vmatpush1.msra.mxu0 %v1575
        %1577 = vmatprep.subr.mxu0 0.0
        %v1578 = vand.u32 %v1390, 4294901760
        %v1579 = vsub.f32 %v1390, %v1578
        %1580 = vmatpush1.msra.mxu0 %v1579
        %1581 = vmatprep.subr.mxu0 0.0
        %1582 = vmatpush1.msra.mxu0 0.0
        %1583 = vmatprep.subr.mxu0 0.0
        %1584 = vmatpush1.msra.mxu0 0.0
        %1585 = vmatprep.subr.mxu0 0.0
        %1586 = vmatpush1.msra.mxu0 0.0
        %1587 = vmatprep.subr.mxu0 0.0
        %1588 = vmatpush1.msra.mxu0 0.0
        %1589 = vmatprep.subr.mxu0 0.0
        %1590 = vmatpush1.msra.mxu0 0.0
        %1591 = vmatprep.subr.mxu0 0.0
        %1592 = vmatpush1.msra.mxu0 0.0
        %1593 = vmatprep.subr.mxu0 0.0
        %1594 = vmatpush1.msra.mxu0 0.0
        %1595 = vmatprep.subr.mxu0 0.0
        %1596 = vmatpush1.msra.mxu0 0.0
        %1597 = vmatprep.subr.mxu0 0.0
        %1598 = vmatpush1.msra.mxu0 0.0
        %1599 = vmatprep.subr.mxu0 0.0
        %1600 = vmatpush1.msra.mxu0 0.0
        %1601 = vmatprep.subr.mxu0 0.0
        %1602 = vmatpush1.msra.mxu0 0.0
        %1603 = vmatprep.subr.mxu0 0.0
        %1604 = vmatpush1.msra.mxu0 0.0
        %1605 = vmatprep.subr.mxu0 0.0
        %1606 = vmatpush1.msra.mxu0 0.0
        %1607 = vmatprep.subr.mxu0 0.0
        %1608 = vmatpush1.msra.mxu0 0.0
        %1609 = vmatprep.subr.mxu0 0.0
        %1610 = vmatpush1.msra.mxu0 0.0
        %1611 = vmatprep.subr.mxu0 0.0
        %1612 = vmatpush1.msra.mxu0 0.0
        %1613 = vmatprep.subr.mxu0 0.0
        %1614 = vmatpush1.msra.mxu0 0.0
        %1615 = vmatprep.subr.mxu0 0.0
        %1616 = vmatpush1.msra.mxu0 0.0
        %1617 = vmatprep.subr.mxu0 0.0
        %1618 = vmatpush1.msra.mxu0 0.0
        %1619 = vmatprep.subr.mxu0 0.0
        %1620 = vmatpush1.msra.mxu0 0.0
        %1621 = vmatprep.subr.mxu0 0.0
        %1622 = vmatpush1.msra.mxu0 0.0
        %1623 = vmatprep.subr.mxu0 0.0
        %1624 = vmatpush1.msra.mxu0 0.0
        %1625 = vmatprep.subr.mxu0 0.0
        %1626 = vmatpush1.msra.mxu0 0.0
        %1627 = vmatprep.subr.mxu0 0.0
        %1628 = vmatpush1.msra.mxu0 0.0
        %1629 = vmatprep.subr.mxu0 0.0
        %1630 = vmatpush1.msra.mxu0 0.0
        %1631 = vmatprep.subr.mxu0 0.0
        %1632 = vmatpush1.msra.mxu0 0.0
        %1633 = vmatprep.subr.mxu0 0.0
        %1634 = vmatpush1.msra.mxu0 0.0
        %1635 = vmatprep.subr.mxu0 0.0
        %1636 = vmatpush1.msra.mxu0 0.0
        %1637 = vmatprep.mubr.f32.mxu0 0.0
        %v1638 = vand.u32 %v1393, 4294901760
        %v1639 = vsub.f32 %v1393, %v1638
        %1640 = vmatmul.mubr.f32.gmra.mrb[0].mxu0 %v1639
        %v1641 = vpop.f32.mrb[0].mxu0
        %v1642 = vadd.f32 %v1562, %v1641
        %v1643 = vpop.f32.mrb[0].mxu0
        %1644 = vdwg.mxu0
        %1645 = vmatprep.subr.mxu0 0.0
        %v1646 = vand.u32 %v1387, 4294901760
        %1647 = vmatpush1.msra.mxu0 %v1646
        %1648 = vmatprep.subr.mxu0 0.0
        %v1649 = vand.u32 %v1388, 4294901760
        %1650 = vmatpush1.msra.mxu0 %v1649
        %1651 = vmatprep.subr.mxu0 0.0
        %v1652 = vand.u32 %v1389, 4294901760
        %1653 = vmatpush1.msra.mxu0 %v1652
        %1654 = vmatprep.subr.mxu0 0.0
        %v1655 = vand.u32 %v1390, 4294901760
        %1656 = vmatpush1.msra.mxu0 %v1655
        %1657 = vmatprep.subr.mxu0 0.0
        %1658 = vmatpush1.msra.mxu0 0.0
        %1659 = vmatprep.subr.mxu0 0.0
        %1660 = vmatpush1.msra.mxu0 0.0
        %1661 = vmatprep.subr.mxu0 0.0
        %1662 = vmatpush1.msra.mxu0 0.0
        %1663 = vmatprep.subr.mxu0 0.0
        %1664 = vmatpush1.msra.mxu0 0.0
        %1665 = vmatprep.subr.mxu0 0.0
        %1666 = vmatpush1.msra.mxu0 0.0
        %1667 = vmatprep.subr.mxu0 0.0
        %1668 = vmatpush1.msra.mxu0 0.0
        %1669 = vmatprep.subr.mxu0 0.0
        %1670 = vmatpush1.msra.mxu0 0.0
        %1671 = vmatprep.subr.mxu0 0.0
        %1672 = vmatpush1.msra.mxu0 0.0
        %1673 = vmatprep.subr.mxu0 0.0
        %1674 = vmatpush1.msra.mxu0 0.0
        %1675 = vmatprep.subr.mxu0 0.0
        %1676 = vmatpush1.msra.mxu0 0.0
        %1677 = vmatprep.subr.mxu0 0.0
        %1678 = vmatpush1.msra.mxu0 0.0
        %1679 = vmatprep.subr.mxu0 0.0
        %1680 = vmatpush1.msra.mxu0 0.0
        %1681 = vmatprep.subr.mxu0 0.0
        %1682 = vmatpush1.msra.mxu0 0.0
        %1683 = vmatprep.subr.mxu0 0.0
        %1684 = vmatpush1.msra.mxu0 0.0
        %1685 = vmatprep.subr.mxu0 0.0
        %1686 = vmatpush1.msra.mxu0 0.0
        %1687 = vmatprep.subr.mxu0 0.0
        %1688 = vmatpush1.msra.mxu0 0.0
        %1689 = vmatprep.subr.mxu0 0.0
        %1690 = vmatpush1.msra.mxu0 0.0
        %1691 = vmatprep.subr.mxu0 0.0
        %1692 = vmatpush1.msra.mxu0 0.0
        %1693 = vmatprep.subr.mxu0 0.0
        %1694 = vmatpush1.msra.mxu0 0.0
        %1695 = vmatprep.subr.mxu0 0.0
        %1696 = vmatpush1.msra.mxu0 0.0
        %1697 = vmatprep.subr.mxu0 0.0
        %1698 = vmatpush1.msra.mxu0 0.0
        %1699 = vmatprep.subr.mxu0 0.0
        %1700 = vmatpush1.msra.mxu0 0.0
        %1701 = vmatprep.subr.mxu0 0.0
        %1702 = vmatpush1.msra.mxu0 0.0
        %1703 = vmatprep.subr.mxu0 0.0
        %1704 = vmatpush1.msra.mxu0 0.0
        %1705 = vmatprep.subr.mxu0 0.0
        %1706 = vmatpush1.msra.mxu0 0.0
        %1707 = vmatprep.subr.mxu0 0.0
        %1708 = vmatpush1.msra.mxu0 0.0
        %1709 = vmatprep.subr.mxu0 0.0
        %1710 = vmatpush1.msra.mxu0 0.0
        %1711 = vmatprep.subr.mxu0 0.0
        %1712 = vmatpush1.msra.mxu0 0.0
        %1713 = vmatprep.mubr.f32.mxu0 0.0
        %v1714 = vand.u32 %v1393, 4294901760
        %v1715 = vsub.f32 %v1393, %v1714
        %v1716 = vand.u32 %v1715, 4294901760
        %1717 = vmatmul.mubr.f32.gmra.mrb[0].mxu0 %v1716
        %v1718 = vpop.f32.mrb[0].mxu0
        %v1719 = vadd.f32 %v1642, %v1718
        %v1720 = vpop.f32.mrb[0].mxu0
        %1721 = vdwg.mxu0
        %1722 = vmatprep.subr.mxu0 0.0
        %v1723 = vand.u32 %v1387, 4294901760
        %v1724 = vsub.f32 %v1387, %v1723
        %v1725 = vand.u32 %v1724, 4294901760
        %1726 = vmatpush1.msra.mxu0 %v1725
        %1727 = vmatprep.subr.mxu0 0.0
        %v1728 = vand.u32 %v1388, 4294901760
        %v1729 = vsub.f32 %v1388, %v1728
        %v1730 = vand.u32 %v1729, 4294901760
        %1731 = vmatpush1.msra.mxu0 %v1730
        %1732 = vmatprep.subr.mxu0 0.0
        %v1733 = vand.u32 %v1389, 4294901760
        %v1734 = vsub.f32 %v1389, %v1733
        %v1735 = vand.u32 %v1734, 4294901760
        %1736 = vmatpush1.msra.mxu0 %v1735
        %1737 = vmatprep.subr.mxu0 0.0
        %v1738 = vand.u32 %v1390, 4294901760
        %v1739 = vsub.f32 %v1390, %v1738
        %v1740 = vand.u32 %v1739, 4294901760
        %1741 = vmatpush1.msra.mxu0 %v1740
        %1742 = vmatprep.subr.mxu0 0.0
        %1743 = vmatpush1.msra.mxu0 0.0
        %1744 = vmatprep.subr.mxu0 0.0
        %1745 = vmatpush1.msra.mxu0 0.0
        %1746 = vmatprep.subr.mxu0 0.0
        %1747 = vmatpush1.msra.mxu0 0.0
        %1748 = vmatprep.subr.mxu0 0.0
        %1749 = vmatpush1.msra.mxu0 0.0
        %1750 = vmatprep.subr.mxu0 0.0
        %1751 = vmatpush1.msra.mxu0 0.0
        %1752 = vmatprep.subr.mxu0 0.0
        %1753 = vmatpush1.msra.mxu0 0.0
        %1754 = vmatprep.subr.mxu0 0.0
        %1755 = vmatpush1.msra.mxu0 0.0
        %1756 = vmatprep.subr.mxu0 0.0
        %1757 = vmatpush1.msra.mxu0 0.0
        %1758 = vmatprep.subr.mxu0 0.0
        %1759 = vmatpush1.msra.mxu0 0.0
        %1760 = vmatprep.subr.mxu0 0.0
        %1761 = vmatpush1.msra.mxu0 0.0
        %1762 = vmatprep.subr.mxu0 0.0
        %1763 = vmatpush1.msra.mxu0 0.0
        %1764 = vmatprep.subr.mxu0 0.0
        %1765 = vmatpush1.msra.mxu0 0.0
        %1766 = vmatprep.subr.mxu0 0.0
        %1767 = vmatpush1.msra.mxu0 0.0
        %1768 = vmatprep.subr.mxu0 0.0
        %1769 = vmatpush1.msra.mxu0 0.0
        %1770 = vmatprep.subr.mxu0 0.0
        %1771 = vmatpush1.msra.mxu0 0.0
        %1772 = vmatprep.subr.mxu0 0.0
        %1773 = vmatpush1.msra.mxu0 0.0
        %1774 = vmatprep.subr.mxu0 0.0
        %1775 = vmatpush1.msra.mxu0 0.0
        %1776 = vmatprep.subr.mxu0 0.0
        %1777 = vmatpush1.msra.mxu0 0.0
        %1778 = vmatprep.subr.mxu0 0.0
        %1779 = vmatpush1.msra.mxu0 0.0
        %1780 = vmatprep.subr.mxu0 0.0
        %1781 = vmatpush1.msra.mxu0 0.0
        %1782 = vmatprep.subr.mxu0 0.0
        %1783 = vmatpush1.msra.mxu0 0.0
        %1784 = vmatprep.subr.mxu0 0.0
        %1785 = vmatpush1.msra.mxu0 0.0
        %1786 = vmatprep.subr.mxu0 0.0
        %1787 = vmatpush1.msra.mxu0 0.0
        %1788 = vmatprep.subr.mxu0 0.0
        %1789 = vmatpush1.msra.mxu0 0.0
        %1790 = vmatprep.subr.mxu0 0.0
        %1791 = vmatpush1.msra.mxu0 0.0
        %1792 = vmatprep.subr.mxu0 0.0
        %1793 = vmatpush1.msra.mxu0 0.0
        %1794 = vmatprep.subr.mxu0 0.0
        %1795 = vmatpush1.msra.mxu0 0.0
        %1796 = vmatprep.subr.mxu0 0.0
        %1797 = vmatpush1.msra.mxu0 0.0
        %1798 = vmatprep.mubr.f32.mxu0 0.0
        %v1799 = vand.u32 %v1393, 4294901760
        %1800 = vmatmul.mubr.f32.gmra.mrb[0].mxu0 %v1799
        %v1801 = vpop.f32.mrb[0].mxu0
        %v1802 = vadd.f32 %v1719, %v1801
        %v1803 = vpop.f32.mrb[0].mxu0
        %1804 = vdwg.mxu0
        %1805 = vmatprep.subr.mxu0 0.0
        %v1806 = vand.u32 %v1387, 4294901760
        %1807 = vmatpush1.msra.mxu0 %v1806
        %1808 = vmatprep.subr.mxu0 0.0
        %v1809 = vand.u32 %v1388, 4294901760
        %1810 = vmatpush1.msra.mxu0 %v1809
        %1811 = vmatprep.subr.mxu0 0.0
        %v1812 = vand.u32 %v1389, 4294901760
        %1813 = vmatpush1.msra.mxu0 %v1812
        %1814 = vmatprep.subr.mxu0 0.0
        %v1815 = vand.u32 %v1390, 4294901760
        %1816 = vmatpush1.msra.mxu0 %v1815
        %1817 = vmatprep.subr.mxu0 0.0
        %1818 = vmatpush1.msra.mxu0 0.0
        %1819 = vmatprep.subr.mxu0 0.0
        %1820 = vmatpush1.msra.mxu0 0.0
        %1821 = vmatprep.subr.mxu0 0.0
        %1822 = vmatpush1.msra.mxu0 0.0
        %1823 = vmatprep.subr.mxu0 0.0
        %1824 = vmatpush1.msra.mxu0 0.0
        %1825 = vmatprep.subr.mxu0 0.0
        %1826 = vmatpush1.msra.mxu0 0.0
        %1827 = vmatprep.subr.mxu0 0.0
        %1828 = vmatpush1.msra.mxu0 0.0
        %1829 = vmatprep.subr.mxu0 0.0
        %1830 = vmatpush1.msra.mxu0 0.0
        %1831 = vmatprep.subr.mxu0 0.0
        %1832 = vmatpush1.msra.mxu0 0.0
        %1833 = vmatprep.subr.mxu0 0.0
        %1834 = vmatpush1.msra.mxu0 0.0
        %1835 = vmatprep.subr.mxu0 0.0
        %1836 = vmatpush1.msra.mxu0 0.0
        %1837 = vmatprep.subr.mxu0 0.0
        %1838 = vmatpush1.msra.mxu0 0.0
        %1839 = vmatprep.subr.mxu0 0.0
        %1840 = vmatpush1.msra.mxu0 0.0
        %1841 = vmatprep.subr.mxu0 0.0
        %1842 = vmatpush1.msra.mxu0 0.0
        %1843 = vmatprep.subr.mxu0 0.0
        %1844 = vmatpush1.msra.mxu0 0.0
        %1845 = vmatprep.subr.mxu0 0.0
        %1846 = vmatpush1.msra.mxu0 0.0
        %1847 = vmatprep.subr.mxu0 0.0
        %1848 = vmatpush1.msra.mxu0 0.0
        %1849 = vmatprep.subr.mxu0 0.0
        %1850 = vmatpush1.msra.mxu0 0.0
        %1851 = vmatprep.subr.mxu0 0.0
        %1852 = vmatpush1.msra.mxu0 0.0
        %1853 = vmatprep.subr.mxu0 0.0
        %1854 = vmatpush1.msra.mxu0 0.0
        %1855 = vmatprep.subr.mxu0 0.0
        %1856 = vmatpush1.msra.mxu0 0.0
        %1857 = vmatprep.subr.mxu0 0.0
        %1858 = vmatpush1.msra.mxu0 0.0
        %1859 = vmatprep.subr.mxu0 0.0
        %1860 = vmatpush1.msra.mxu0 0.0
        %1861 = vmatprep.subr.mxu0 0.0
        %1862 = vmatpush1.msra.mxu0 0.0
        %1863 = vmatprep.subr.mxu0 0.0
        %1864 = vmatpush1.msra.mxu0 0.0
        %1865 = vmatprep.subr.mxu0 0.0
        %1866 = vmatpush1.msra.mxu0 0.0
        %1867 = vmatprep.subr.mxu0 0.0
        %1868 = vmatpush1.msra.mxu0 0.0
        %1869 = vmatprep.subr.mxu0 0.0
        %1870 = vmatpush1.msra.mxu0 0.0
        %1871 = vmatprep.subr.mxu0 0.0
        %1872 = vmatpush1.msra.mxu0 0.0
        %1873 = vmatprep.mubr.f32.mxu0 0.0
        %v1874 = vand.u32 %v1393, 4294901760
        %1875 = vmatmul.mubr.f32.gmra.mrb[0].mxu0 %v1874
        %v1876 = vpop.f32.mrb[0].mxu0
        %v1877 = vadd.f32 %v1802, %v1876
        %v1878 = vpop.f32.mrb[0].mxu0
        %1879 = vdwg.mxu0
        %v1880 = vlaneseq
        %v1881 = vshrl.u32 %v1880, 7
        %v1882 = vsub.s32 0, %v1881
        %v1883 = vrot.slane %v1877, %v1882
        %v1884 = vsub.f32 %v579, %v1883
        %v1885 = vsub.f32 %v580, %v1883
        %v1886 = vsub.f32 %v581, %v1883
        %v1887 = vsub.f32 %v582, %v1883
        %v1888 = vsub.f32 %v583, %v1883
        %v1889 = vsub.f32 %v584, %v1883
        %v1890 = vsub.f32 %v585, %v1883
        %v1891 = vsub.f32 %v586, %v1883
        %v1892 = vsub.f32 %v587, %v1883
        %v1893 = vsub.f32 %v588, %v1883
        %v1894 = vsub.f32 %v589, %v1883
        %v1895 = vsub.f32 %v590, %v1883
        %v1896 = vsub.f32 %v591, %v1883
        %v1897 = vsub.f32 %v592, %v1883
        %v1898 = vsub.f32 %v593, %v1883
        %v1899 = vsub.f32 %v594, %v1883
        %v1900 = vsub.f32 %v595, %v1883
        %v1901 = vsub.f32 %v596, %v1883
        %v1902 = vsub.f32 %v597, %v1883
        %v1903 = vsub.f32 %v598, %v1883
        %v1904 = vsub.f32 %v599, %v1883
        %v1905 = vsub.f32 %v600, %v1883
        %v1906 = vsub.f32 %v601, %v1883
        %v1907 = vsub.f32 %v602, %v1883
        %v1908 = vsub.f32 %v603, %v1883
        %v1909 = vsub.f32 %v604, %v1883
        %v1910 = vsub.f32 %v605, %v1883
        %v1911 = vsub.f32 %v606, %v1883
        %v1912 = vsub.f32 %v607, %v1883
        %v1913 = vsub.f32 %v608, %v1883
        %v1914 = vsub.f32 %v609, %v1883
        %v1915 = vsub.f32 %v610, %v1883
        %v1916 = vlaneseq
        %v1917 = vshrl.u32 %v1916, 7
        %v1918 = vsub.s32 1, %v1917
        %v1919 = vrot.slane %v1877, %v1918
        %v1920 = vmul.f32 %v1884, %v1919
        %v1921 = vmul.f32 %v1885, %v1919
        %v1922 = vmul.f32 %v1886, %v1919
        %v1923 = vmul.f32 %v1887, %v1919
        %v1924 = vmul.f32 %v1888, %v1919
        %v1925 = vmul.f32 %v1889, %v1919
        %v1926 = vmul.f32 %v1890, %v1919
        %v1927 = vmul.f32 %v1891, %v1919
        %v1928 = vmul.f32 %v1892, %v1919
        %v1929 = vmul.f32 %v1893, %v1919
        %v1930 = vmul.f32 %v1894, %v1919
        %v1931 = vmul.f32 %v1895, %v1919
        %v1932 = vmul.f32 %v1896, %v1919
        %v1933 = vmul.f32 %v1897, %v1919
        %v1934 = vmul.f32 %v1898, %v1919
        %v1935 = vmul.f32 %v1899, %v1919
        %v1936 = vmul.f32 %v1900, %v1919
        %v1937 = vmul.f32 %v1901, %v1919
        %v1938 = vmul.f32 %v1902, %v1919
        %v1939 = vmul.f32 %v1903, %v1919
        %v1940 = vmul.f32 %v1904, %v1919
        %v1941 = vmul.f32 %v1905, %v1919
        %v1942 = vmul.f32 %v1906, %v1919
        %v1943 = vmul.f32 %v1907, %v1919
        %v1944 = vmul.f32 %v1908, %v1919
        %v1945 = vmul.f32 %v1909, %v1919
        %v1946 = vmul.f32 %v1910, %v1919
        %v1947 = vmul.f32 %v1911, %v1919
        %v1948 = vmul.f32 %v1912, %v1919
        %v1949 = vmul.f32 %v1913, %v1919
        %v1950 = vmul.f32 %v1914, %v1919
        %v1951 = vmul.f32 %v1915, %v1919
        %v1953 = vlaneseq
        %v1954 = vshrl.u32 %v1953, 7
        %v1955 = vsub.s32 0, %v1954
        %v1956 = vrot.slane %v611, %v1955
        %v1958 = vmul.f32 %v1920, %v1956
        %v1959 = vmul.f32 %v1921, %v1956
        %v1960 = vmul.f32 %v1922, %v1956
        %v1961 = vmul.f32 %v1923, %v1956
        %v1962 = vmul.f32 %v1924, %v1956
        %v1963 = vmul.f32 %v1925, %v1956
        %v1964 = vmul.f32 %v1926, %v1956
        %v1965 = vmul.f32 %v1927, %v1956
        %v1966 = vmul.f32 %v1928, %v1956
        %v1967 = vmul.f32 %v1929, %v1956
        %v1968 = vmul.f32 %v1930, %v1956
        %v1969 = vmul.f32 %v1931, %v1956
        %v1970 = vmul.f32 %v1932, %v1956
        %v1971 = vmul.f32 %v1933, %v1956
        %v1972 = vmul.f32 %v1934, %v1956
        %v1973 = vmul.f32 %v1935, %v1956
        %v1974 = vmul.f32 %v1936, %v1956
        %v1975 = vmul.f32 %v1937, %v1956
        %v1976 = vmul.f32 %v1938, %v1956
        %v1977 = vmul.f32 %v1939, %v1956
        %v1978 = vmul.f32 %v1940, %v1956
        %v1979 = vmul.f32 %v1941, %v1956
        %v1980 = vmul.f32 %v1942, %v1956
        %v1981 = vmul.f32 %v1943, %v1956
        %v1982 = vmul.f32 %v1944, %v1956
        %v1983 = vmul.f32 %v1945, %v1956
        %v1984 = vmul.f32 %v1946, %v1956
        %v1985 = vmul.f32 %v1947, %v1956
        %v1986 = vmul.f32 %v1948, %v1956
        %v1987 = vmul.f32 %v1949, %v1956
        %v1988 = vmul.f32 %v1950, %v1956
        %v1989 = vmul.f32 %v1951, %v1956
        %v1991 = vlaneseq
        %v1992 = vshrl.u32 %v1991, 7
        %v1993 = vsub.s32 0, %v1992
        %v1994 = vrot.slane %v612, %v1993
        %v1996 = vadd.f32 %v1958, %v1994
        %v1997 = vadd.f32 %v1959, %v1994
        %v1998 = vadd.f32 %v1960, %v1994
        %v1999 = vadd.f32 %v1961, %v1994
        %v2000 = vadd.f32 %v1962, %v1994
        %v2001 = vadd.f32 %v1963, %v1994
        %v2002 = vadd.f32 %v1964, %v1994
        %v2003 = vadd.f32 %v1965, %v1994
        %v2004 = vadd.f32 %v1966, %v1994
        %v2005 = vadd.f32 %v1967, %v1994
        %v2006 = vadd.f32 %v1968, %v1994
        %v2007 = vadd.f32 %v1969, %v1994
        %v2008 = vadd.f32 %v1970, %v1994
        %v2009 = vadd.f32 %v1971, %v1994
        %v2010 = vadd.f32 %v1972, %v1994
        %v2011 = vadd.f32 %v1973, %v1994
        %v2012 = vadd.f32 %v1974, %v1994
        %v2013 = vadd.f32 %v1975, %v1994
        %v2014 = vadd.f32 %v1976, %v1994
        %v2015 = vadd.f32 %v1977, %v1994
        %v2016 = vadd.f32 %v1978, %v1994
        %v2017 = vadd.f32 %v1979, %v1994
        %v2018 = vadd.f32 %v1980, %v1994
        %v2019 = vadd.f32 %v1981, %v1994
        %v2020 = vadd.f32 %v1982, %v1994
        %v2021 = vadd.f32 %v1983, %v1994
        %v2022 = vadd.f32 %v1984, %v1994
        %v2023 = vadd.f32 %v1985, %v1994
        %v2024 = vadd.f32 %v1986, %v1994
        %v2025 = vadd.f32 %v1987, %v1994
        %v2026 = vadd.f32 %v1988, %v1994
        %v2027 = vadd.f32 %v1989, %v1994
        %v2028 = vxor.u32 %v1996, 2147483648
        %v2029 = vxor.u32 %v1997, 2147483648
        %v2030 = vxor.u32 %v1998, 2147483648
        %v2031 = vxor.u32 %v1999, 2147483648
        %v2032 = vxor.u32 %v2000, 2147483648
        %v2033 = vxor.u32 %v2001, 2147483648
        %v2034 = vxor.u32 %v2002, 2147483648
        %v2035 = vxor.u32 %v2003, 2147483648
        %v2036 = vxor.u32 %v2004, 2147483648
        %v2037 = vxor.u32 %v2005, 2147483648
        %v2038 = vxor.u32 %v2006, 2147483648
        %v2039 = vxor.u32 %v2007, 2147483648
        %v2040 = vxor.u32 %v2008, 2147483648
        %v2041 = vxor.u32 %v2009, 2147483648
        %v2042 = vxor.u32 %v2010, 2147483648
        %v2043 = vxor.u32 %v2011, 2147483648
        %v2044 = vxor.u32 %v2012, 2147483648
        %v2045 = vxor.u32 %v2013, 2147483648
        %v2046 = vxor.u32 %v2014, 2147483648
        %v2047 = vxor.u32 %v2015, 2147483648
        %v2048 = vxor.u32 %v2016, 2147483648
        %v2049 = vxor.u32 %v2017, 2147483648
        %v2050 = vxor.u32 %v2018, 2147483648
        %v2051 = vxor.u32 %v2019, 2147483648
        %v2052 = vxor.u32 %v2020, 2147483648
        %v2053 = vxor.u32 %v2021, 2147483648
        %v2054 = vxor.u32 %v2022, 2147483648
        %v2055 = vxor.u32 %v2023, 2147483648
        %v2056 = vxor.u32 %v2024, 2147483648
        %v2057 = vxor.u32 %v2025, 2147483648
        %v2058 = vxor.u32 %v2026, 2147483648
        %v2059 = vxor.u32 %v2027, 2147483648
        %v2060 = vmul.f32 %v2028, 1.442695
        %v2061 = vpow.pop %v2060
        %v2062 = vmul.f32 %v2029, 1.442695
        %v2063 = vpow.pop %v2062
        %v2064 = vmul.f32 %v2030, 1.442695
        %v2065 = vpow.pop %v2064
        %v2066 = vmul.f32 %v2031, 1.442695
        %v2067 = vpow.pop %v2066
        %v2068 = vmul.f32 %v2032, 1.442695
        %v2069 = vpow.pop %v2068
        %v2070 = vmul.f32 %v2033, 1.442695
        %v2071 = vpow.pop %v2070
        %v2072 = vmul.f32 %v2034, 1.442695
        %v2073 = vpow.pop %v2072
        %v2074 = vmul.f32 %v2035, 1.442695
        %v2075 = vpow.pop %v2074
        %v2076 = vmul.f32 %v2036, 1.442695
        %v2077 = vpow.pop %v2076
        %v2078 = vmul.f32 %v2037, 1.442695
        %v2079 = vpow.pop %v2078
        %v2080 = vmul.f32 %v2038, 1.442695
        %v2081 = vpow.pop %v2080
        %v2082 = vmul.f32 %v2039, 1.442695
        %v2083 = vpow.pop %v2082
        %v2084 = vmul.f32 %v2040, 1.442695
        %v2085 = vpow.pop %v2084
        %v2086 = vmul.f32 %v2041, 1.442695
        %v2087 = vpow.pop %v2086
        %v2088 = vmul.f32 %v2042, 1.442695
        %v2089 = vpow.pop %v2088
        %v2090 = vmul.f32 %v2043, 1.442695
        %v2091 = vpow.pop %v2090
        %v2092 = vmul.f32 %v2044, 1.442695
        %v2093 = vpow.pop %v2092
        %v2094 = vmul.f32 %v2045, 1.442695
        %v2095 = vpow.pop %v2094
        %v2096 = vmul.f32 %v2046, 1.442695
        %v2097 = vpow.pop %v2096
        %v2098 = vmul.f32 %v2047, 1.442695
        %v2099 = vpow.pop %v2098
        %v2100 = vmul.f32 %v2048, 1.442695
        %v2101 = vpow.pop %v2100
        %v2102 = vmul.f32 %v2049, 1.442695
        %v2103 = vpow.pop %v2102
        %v2104 = vmul.f32 %v2050, 1.442695
        %v2105 = vpow.pop %v2104
        %v2106 = vmul.f32 %v2051, 1.442695
        %v2107 = vpow.pop %v2106
        %v2108 = vmul.f32 %v2052, 1.442695
        %v2109 = vpow.pop %v2108
        %v2110 = vmul.f32 %v2053, 1.442695
        %v2111 = vpow.pop %v2110
        %v2112 = vmul.f32 %v2054, 1.442695
        %v2113 = vpow.pop %v2112
        %v2114 = vmul.f32 %v2055, 1.442695
        %v2115 = vpow.pop %v2114
        %v2116 = vmul.f32 %v2056, 1.442695
        %v2117 = vpow.pop %v2116
        %v2118 = vmul.f32 %v2057, 1.442695
        %v2119 = vpow.pop %v2118
        %v2120 = vmul.f32 %v2058, 1.442695
        %v2121 = vpow.pop %v2120
        %v2122 = vmul.f32 %v2059, 1.442695
        %v2123 = vpow.pop %v2122
        %v2124 = vadd.f32 %v2061, 1.0
        %v2125 = vadd.f32 %v2063, 1.0
        %v2126 = vadd.f32 %v2065, 1.0
        %v2127 = vadd.f32 %v2067, 1.0
        %v2128 = vadd.f32 %v2069, 1.0
        %v2129 = vadd.f32 %v2071, 1.0
        %v2130 = vadd.f32 %v2073, 1.0
        %v2131 = vadd.f32 %v2075, 1.0
        %v2132 = vadd.f32 %v2077, 1.0
        %v2133 = vadd.f32 %v2079, 1.0
        %v2134 = vadd.f32 %v2081, 1.0
        %v2135 = vadd.f32 %v2083, 1.0
        %v2136 = vadd.f32 %v2085, 1.0
        %v2137 = vadd.f32 %v2087, 1.0
        %v2138 = vadd.f32 %v2089, 1.0
        %v2139 = vadd.f32 %v2091, 1.0
        %v2140 = vadd.f32 %v2093, 1.0
        %v2141 = vadd.f32 %v2095, 1.0
        %v2142 = vadd.f32 %v2097, 1.0
        %v2143 = vadd.f32 %v2099, 1.0
        %v2144 = vadd.f32 %v2101, 1.0
        %v2145 = vadd.f32 %v2103, 1.0
        %v2146 = vadd.f32 %v2105, 1.0
        %v2147 = vadd.f32 %v2107, 1.0
        %v2148 = vadd.f32 %v2109, 1.0
        %v2149 = vadd.f32 %v2111, 1.0
        %v2150 = vadd.f32 %v2113, 1.0
        %v2151 = vadd.f32 %v2115, 1.0
        %v2152 = vadd.f32 %v2117, 1.0
        %v2153 = vadd.f32 %v2119, 1.0
        %v2154 = vadd.f32 %v2121, 1.0
        %v2155 = vadd.f32 %v2123, 1.0
        %v2156 = vrcp.pop %v2124
        %v2157 = vmul.f32 1.0, %v2156
        %v2158 = vrcp.pop %v2125
        %v2159 = vmul.f32 1.0, %v2158
        %v2160 = vrcp.pop %v2126
        %v2161 = vmul.f32 1.0, %v2160
        %v2162 = vrcp.pop %v2127
        %v2163 = vmul.f32 1.0, %v2162
        %v2164 = vrcp.pop %v2128
        %v2165 = vmul.f32 1.0, %v2164
        %v2166 = vrcp.pop %v2129
        %v2167 = vmul.f32 1.0, %v2166
        %v2168 = vrcp.pop %v2130
        %v2169 = vmul.f32 1.0, %v2168
        %v2170 = vrcp.pop %v2131
        %v2171 = vmul.f32 1.0, %v2170
        %v2172 = vrcp.pop %v2132
        %v2173 = vmul.f32 1.0, %v2172
        %v2174 = vrcp.pop %v2133
        %v2175 = vmul.f32 1.0, %v2174
        %v2176 = vrcp.pop %v2134
        %v2177 = vmul.f32 1.0, %v2176
        %v2178 = vrcp.pop %v2135
        %v2179 = vmul.f32 1.0, %v2178
        %v2180 = vrcp.pop %v2136
        %v2181 = vmul.f32 1.0, %v2180
        %v2182 = vrcp.pop %v2137
        %v2183 = vmul.f32 1.0, %v2182
        %v2184 = vrcp.pop %v2138
        %v2185 = vmul.f32 1.0, %v2184
        %v2186 = vrcp.pop %v2139
        %v2187 = vmul.f32 1.0, %v2186
        %v2188 = vrcp.pop %v2140
        %v2189 = vmul.f32 1.0, %v2188
        %v2190 = vrcp.pop %v2141
        %v2191 = vmul.f32 1.0, %v2190
        %v2192 = vrcp.pop %v2142
        %v2193 = vmul.f32 1.0, %v2192
        %v2194 = vrcp.pop %v2143
        %v2195 = vmul.f32 1.0, %v2194
        %v2196 = vrcp.pop %v2144
        %v2197 = vmul.f32 1.0, %v2196
        %v2198 = vrcp.pop %v2145
        %v2199 = vmul.f32 1.0, %v2198
        %v2200 = vrcp.pop %v2146
        %v2201 = vmul.f32 1.0, %v2200
        %v2202 = vrcp.pop %v2147
        %v2203 = vmul.f32 1.0, %v2202
        %v2204 = vrcp.pop %v2148
        %v2205 = vmul.f32 1.0, %v2204
        %v2206 = vrcp.pop %v2149
        %v2207 = vmul.f32 1.0, %v2206
        %v2208 = vrcp.pop %v2150
        %v2209 = vmul.f32 1.0, %v2208
        %v2210 = vrcp.pop %v2151
        %v2211 = vmul.f32 1.0, %v2210
        %v2212 = vrcp.pop %v2152
        %v2213 = vmul.f32 1.0, %v2212
        %v2214 = vrcp.pop %v2153
        %v2215 = vmul.f32 1.0, %v2214
        %v2216 = vrcp.pop %v2154
        %v2217 = vmul.f32 1.0, %v2216
        %v2218 = vrcp.pop %v2155
        %v2219 = vmul.f32 1.0, %v2218
        %v2220 = vmul.f32 %v1996, %v2157
        %v2221 = vmul.f32 %v1997, %v2159
        %v2222 = vmul.f32 %v1998, %v2161
        %v2223 = vmul.f32 %v1999, %v2163
        %v2224 = vmul.f32 %v2000, %v2165
        %v2225 = vmul.f32 %v2001, %v2167
        %v2226 = vmul.f32 %v2002, %v2169
        %v2227 = vmul.f32 %v2003, %v2171
        %v2228 = vmul.f32 %v2004, %v2173
        %v2229 = vmul.f32 %v2005, %v2175
        %v2230 = vmul.f32 %v2006, %v2177
        %v2231 = vmul.f32 %v2007, %v2179
        %v2232 = vmul.f32 %v2008, %v2181
        %v2233 = vmul.f32 %v2009, %v2183
        %v2234 = vmul.f32 %v2010, %v2185
        %v2235 = vmul.f32 %v2011, %v2187
        %v2236 = vmul.f32 %v2012, %v2189
        %v2237 = vmul.f32 %v2013, %v2191
        %v2238 = vmul.f32 %v2014, %v2193
        %v2239 = vmul.f32 %v2015, %v2195
        %v2240 = vmul.f32 %v2016, %v2197
        %v2241 = vmul.f32 %v2017, %v2199
        %v2242 = vmul.f32 %v2018, %v2201
        %v2243 = vmul.f32 %v2019, %v2203
        %v2244 = vmul.f32 %v2020, %v2205
        %v2245 = vmul.f32 %v2021, %v2207
        %v2246 = vmul.f32 %v2022, %v2209
        %v2247 = vmul.f32 %v2023, %v2211
        %v2248 = vmul.f32 %v2024, %v2213
        %v2249 = vmul.f32 %v2025, %v2215
        %v2250 = vmul.f32 %v2026, %v2217
        %v2251 = vmul.f32 %v2027, %v2219
        %v2252 = vld [vmem:[#allocation15] sm:$0x1]
        %2253 = vst [vmem:[%s546 + $0x1] sm:$0xff] %v2220
        %2254 = vst [vmem:[%s546 + $0x9] sm:$0xff] %v2221
        %2255 = vst [vmem:[%s546 + $0x19] sm:$0xff] %v2222
        %2256 = vst [vmem:[%s546 + $0x21] sm:$0xff] %v2223
        %2257 = vst [vmem:[%s546 + $0x31] sm:$0xff] %v2224
        %2258 = vst [vmem:[%s546 + $0x39] sm:$0xff] %v2225
        %2259 = vst [vmem:[%s546 + $0x49] sm:$0xff] %v2226
        %2260 = vst [vmem:[%s546 + $0x51] sm:$0xff] %v2227
        %2261 = vst [vmem:[%s546 + $0x61] sm:$0xff] %v2228
        %2262 = vst [vmem:[%s546 + $0x69] sm:$0xff] %v2229
        %2263 = vst [vmem:[%s546 + $0x79] sm:$0xff] %v2230
        %2264 = vst [vmem:[%s546 + $0x81] sm:$0xff] %v2231
        %2265 = vst [vmem:[%s546 + $0x91] sm:$0xff] %v2232
        %2266 = vst [vmem:[%s546 + $0x99] sm:$0xff] %v2233
        %2267 = vst [vmem:[%s546 + $0xa9] sm:$0xff] %v2234
        %2268 = vst [vmem:[%s546 + $0xb1] sm:$0xff] %v2235
        %2269 = vst [vmem:[%s546 + $0xc1] sm:$0xff] %v2236
        %2270 = vst [vmem:[%s546 + $0xc9] sm:$0xff] %v2237
        %2271 = vst [vmem:[%s546 + $0xd9] sm:$0xff] %v2238
        %2272 = vst [vmem:[%s546 + $0xe1] sm:$0xff] %v2239
        %2273 = vst [vmem:[%s546 + $0xf1] sm:$0xff] %v2240
        %2274 = vst [vmem:[%s546 + $0xf9] sm:$0xff] %v2241
        %2275 = vst [vmem:[%s546 + $0x109] sm:$0xff] %v2242
        %2276 = vst [vmem:[%s546 + $0x111] sm:$0xff] %v2243
        %2277 = vst [vmem:[%s546 + $0x121] sm:$0xff] %v2244
        %2278 = vst [vmem:[%s546 + $0x129] sm:$0xff] %v2245
        %2279 = vst [vmem:[%s546 + $0x139] sm:$0xff] %v2246
        %2280 = vst [vmem:[%s546 + $0x141] sm:$0xff] %v2247
        %2281 = vst [vmem:[%s546 + $0x151] sm:$0xff] %v2248
        %2282 = vst [vmem:[%s546 + $0x159] sm:$0xff] %v2249
        %2283 = vst [vmem:[%s546 + $0x169] sm:$0xff] %v2250
        %2284 = vst [vmem:[%s546 + $0x171] sm:$0xff] %v2251
        %v2285 = vld [vmem:[#allocation2] sm:$0xff]
        %v2286 = vld [vmem:[#allocation2 + $0x8] sm:$0xff]
        %v2287 = vld [vmem:[#allocation2 + $0x18] sm:$0xff]
        %v2288 = vld [vmem:[#allocation2 + $0x20] sm:$0xff]
        %v2289 = vld [vmem:[#allocation2 + $0x30] sm:$0xff]
        %v2290 = vld [vmem:[#allocation2 + $0x38] sm:$0xff]
        %v2291 = vld [vmem:[#allocation2 + $0x48] sm:$0xff]
        %v2292 = vld [vmem:[#allocation2 + $0x50] sm:$0xff]
        %v2293 = vld [vmem:[#allocation2 + $0x60] sm:$0xff]
        %v2294 = vld [vmem:[#allocation2 + $0x68] sm:$0xff]
        %v2295 = vld [vmem:[#allocation2 + $0x78] sm:$0xff]
        %v2296 = vld [vmem:[#allocation2 + $0x80] sm:$0xff]
        %v2297 = vld [vmem:[#allocation2 + $0x90] sm:$0xff]
        %v2298 = vld [vmem:[#allocation2 + $0x98] sm:$0xff]
        %v2299 = vld [vmem:[#allocation2 + $0xa8] sm:$0xff]
        %v2300 = vld [vmem:[#allocation2 + $0xb0] sm:$0xff]
        %v2301 = vld [vmem:[#allocation2 + $0xc0] sm:$0xff]
        %v2302 = vld [vmem:[#allocation2 + $0xc8] sm:$0xff]
        %v2303 = vld [vmem:[#allocation2 + $0xd8] sm:$0xff]
        %v2304 = vld [vmem:[#allocation2 + $0xe0] sm:$0xff]
        %v2305 = vld [vmem:[#allocation2 + $0xf0] sm:$0xff]
        %v2306 = vld [vmem:[#allocation2 + $0xf8] sm:$0xff]
        %v2307 = vld [vmem:[#allocation2 + $0x108] sm:$0xff]
        %v2308 = vld [vmem:[#allocation2 + $0x110] sm:$0xff]
        %v2309 = vld [vmem:[#allocation2 + $0x120] sm:$0xff]
        %v2310 = vld [vmem:[#allocation2 + $0x128] sm:$0xff]
        %v2311 = vld [vmem:[#allocation2 + $0x138] sm:$0xff]
        %v2312 = vld [vmem:[#allocation2 + $0x140] sm:$0xff]
        %v2313 = vld [vmem:[#allocation2 + $0x150] sm:$0xff]
        %v2314 = vld [vmem:[#allocation2 + $0x158] sm:$0xff]
        %v2315 = vld [vmem:[#allocation2 + $0x168] sm:$0xff]
        %v2316 = vld [vmem:[#allocation2 + $0x170] sm:$0xff]
        %v2317 = vpack.c.bf16 %v2286, %v2285
        %v2318 = vpack.c.bf16 %v2288, %v2287
        %v2319 = vpack.c.bf16 %v2290, %v2289
        %v2320 = vpack.c.bf16 %v2292, %v2291
        %v2321 = vpack.c.bf16 %v2294, %v2293
        %v2322 = vpack.c.bf16 %v2296, %v2295
        %v2323 = vpack.c.bf16 %v2298, %v2297
        %v2324 = vpack.c.bf16 %v2300, %v2299
        %v2325 = vpack.c.bf16 %v2302, %v2301
        %v2326 = vpack.c.bf16 %v2304, %v2303
        %v2327 = vpack.c.bf16 %v2306, %v2305
        %v2328 = vpack.c.bf16 %v2308, %v2307
        %v2329 = vpack.c.bf16 %v2310, %v2309
        %v2330 = vpack.c.bf16 %v2312, %v2311
        %v2331 = vpack.c.bf16 %v2314, %v2313
        %v2332 = vpack.c.bf16 %v2316, %v2315
        %2333 = vst [vmem:[#allocation3] sm:$0xff] %v2317
        %2334 = vst [vmem:[#allocation3 + $0x48] sm:$0xff] %v2318
        %2335 = vst [vmem:[#allocation3 + $0x90] sm:$0xff] %v2319
        %2336 = vst [vmem:[#allocation3 + $0xd8] sm:$0xff] %v2320
        %2337 = vst [vmem:[#allocation3 + $0x120] sm:$0xff] %v2321
        %2338 = vst [vmem:[#allocation3 + $0x168] sm:$0xff] %v2322
        %2339 = vst [vmem:[#allocation3 + $0x1b0] sm:$0xff] %v2323
        %2340 = vst [vmem:[#allocation3 + $0x1f8] sm:$0xff] %v2324
        %2341 = vst [vmem:[#allocation3 + $0x240] sm:$0xff] %v2325
        %2342 = vst [vmem:[#allocation3 + $0x288] sm:$0xff] %v2326
        %2343 = vst [vmem:[#allocation3 + $0x2d0] sm:$0xff] %v2327
        %2344 = vst [vmem:[#allocation3 + $0x318] sm:$0xff] %v2328
        %2345 = vst [vmem:[#allocation3 + $0x360] sm:$0xff] %v2329
        %2346 = vst [vmem:[#allocation3 + $0x3a8] sm:$0xff] %v2330
        %2347 = vst [vmem:[#allocation3 + $0x3f0] sm:$0xff] %v2331
        %2348 = vst [vmem:[#allocation3 + $0x438] sm:$0xff] %v2332
        %v2349 = vld [vmem:[#allocation2 + $0x1] sm:$0xff]
        %v2350 = vld [vmem:[#allocation2 + $0x9] sm:$0xff]
        %v2351 = vld [vmem:[#allocation2 + $0x19] sm:$0xff]
        %v2352 = vld [vmem:[#allocation2 + $0x21] sm:$0xff]
        %v2353 = vld [vmem:[#allocation2 + $0x31] sm:$0xff]
        %v2354 = vld [vmem:[#allocation2 + $0x39] sm:$0xff]
        %v2355 = vld [vmem:[#allocation2 + $0x49] sm:$0xff]
        %v2356 = vld [vmem:[#allocation2 + $0x51] sm:$0xff]
        %v2357 = vld [vmem:[#allocation2 + $0x61] sm:$0xff]
        %v2358 = vld [vmem:[#allocation2 + $0x69] sm:$0xff]
        %v2359 = vld [vmem:[#allocation2 + $0x79] sm:$0xff]
        %v2360 = vld [vmem:[#allocation2 + $0x81] sm:$0xff]
        %v2361 = vld [vmem:[#allocation2 + $0x91] sm:$0xff]
        %v2362 = vld [vmem:[#allocation2 + $0x99] sm:$0xff]
        %v2363 = vld [vmem:[#allocation2 + $0xa9] sm:$0xff]
        %v2364 = vld [vmem:[#allocation2 + $0xb1] sm:$0xff]
        %v2365 = vld [vmem:[#allocation2 + $0xc1] sm:$0xff]
        %v2366 = vld [vmem:[#allocation2 + $0xc9] sm:$0xff]
        %v2367 = vld [vmem:[#allocation2 + $0xd9] sm:$0xff]
        %v2368 = vld [vmem:[#allocation2 + $0xe1] sm:$0xff]
        %v2369 = vld [vmem:[#allocation2 + $0xf1] sm:$0xff]
        %v2370 = vld [vmem:[#allocation2 + $0xf9] sm:$0xff]
        %v2371 = vld [vmem:[#allocation2 + $0x109] sm:$0xff]
        %v2372 = vld [vmem:[#allocation2 + $0x111] sm:$0xff]
        %v2373 = vld [vmem:[#allocation2 + $0x121] sm:$0xff]
        %v2374 = vld [vmem:[#allocation2 + $0x129] sm:$0xff]
        %v2375 = vld [vmem:[#allocation2 + $0x139] sm:$0xff]
        %v2376 = vld [vmem:[#allocation2 + $0x141] sm:$0xff]
        %v2377 = vld [vmem:[#allocation2 + $0x151] sm:$0xff]
        %v2378 = vld [vmem:[#allocation2 + $0x159] sm:$0xff]
        %v2379 = vld [vmem:[#allocation2 + $0x169] sm:$0xff]
        %v2380 = vld [vmem:[#allocation2 + $0x171] sm:$0xff]
        %v2381 = vpack.c.bf16 %v2350, %v2349
        %v2382 = vpack.c.bf16 %v2352, %v2351
        %v2383 = vpack.c.bf16 %v2354, %v2353
        %v2384 = vpack.c.bf16 %v2356, %v2355
        %v2385 = vpack.c.bf16 %v2358, %v2357
        %v2386 = vpack.c.bf16 %v2360, %v2359
        %v2387 = vpack.c.bf16 %v2362, %v2361
        %v2388 = vpack.c.bf16 %v2364, %v2363
        %v2389 = vpack.c.bf16 %v2366, %v2365
        %v2390 = vpack.c.bf16 %v2368, %v2367
        %v2391 = vpack.c.bf16 %v2370, %v2369
        %v2392 = vpack.c.bf16 %v2372, %v2371
        %v2393 = vpack.c.bf16 %v2374, %v2373
        %v2394 = vpack.c.bf16 %v2376, %v2375
        %v2395 = vpack.c.bf16 %v2378, %v2377
        %v2396 = vpack.c.bf16 %v2380, %v2379
        %2397 = vst [vmem:[#allocation3 + $0x8] sm:$0xff] %v2381
        %2398 = vst [vmem:[#allocation3 + $0x50] sm:$0xff] %v2382
        %2399 = vst [vmem:[#allocation3 + $0x98] sm:$0xff] %v2383
        %2400 = vst [vmem:[#allocation3 + $0xe0] sm:$0xff] %v2384
        %2401 = vst [vmem:[#allocation3 + $0x128] sm:$0xff] %v2385
        %2402 = vst [vmem:[#allocation3 + $0x170] sm:$0xff] %v2386
        %2403 = vst [vmem:[#allocation3 + $0x1b8] sm:$0xff] %v2387
        %2404 = vst [vmem:[#allocation3 + $0x200] sm:$0xff] %v2388
        %2405 = vst [vmem:[#allocation3 + $0x248] sm:$0xff] %v2389
        %2406 = vst [vmem:[#allocation3 + $0x290] sm:$0xff] %v2390
        %2407 = vst [vmem:[#allocation3 + $0x2d8] sm:$0xff] %v2391
        %2408 = vst [vmem:[#allocation3 + $0x320] sm:$0xff] %v2392
        %2409 = vst [vmem:[#allocation3 + $0x368] sm:$0xff] %v2393
        %2410 = vst [vmem:[#allocation3 + $0x3b0] sm:$0xff] %v2394
        %2411 = vst [vmem:[#allocation3 + $0x3f8] sm:$0xff] %v2395
        %2412 = vst [vmem:[#allocation3 + $0x440] sm:$0xff] %v2396
        %v2413 = vld [vmem:[#allocation2 + $0x2] sm:$0xff]
        %v2414 = vld [vmem:[#allocation2 + $0xa] sm:$0xff]
        %v2415 = vld [vmem:[#allocation2 + $0x1a] sm:$0xff]
        %v2416 = vld [vmem:[#allocation2 + $0x22] sm:$0xff]
        %v2417 = vld [vmem:[#allocation2 + $0x32] sm:$0xff]
        %v2418 = vld [vmem:[#allocation2 + $0x3a] sm:$0xff]
        %v2419 = vld [vmem:[#allocation2 + $0x4a] sm:$0xff]
        %v2420 = vld [vmem:[#allocation2 + $0x52] sm:$0xff]
        %v2421 = vld [vmem:[#allocation2 + $0x62] sm:$0xff]
        %v2422 = vld [vmem:[#allocation2 + $0x6a] sm:$0xff]
        %v2423 = vld [vmem:[#allocation2 + $0x7a] sm:$0xff]
        %v2424 = vld [vmem:[#allocation2 + $0x82] sm:$0xff]
        %v2425 = vld [vmem:[#allocation2 + $0x92] sm:$0xff]
        %v2426 = vld [vmem:[#allocation2 + $0x9a] sm:$0xff]
        %v2427 = vld [vmem:[#allocation2 + $0xaa] sm:$0xff]
        %v2428 = vld [vmem:[#allocation2 + $0xb2] sm:$0xff]
        %v2429 = vld [vmem:[#allocation2 + $0xc2] sm:$0xff]
        %v2430 = vld [vmem:[#allocation2 + $0xca] sm:$0xff]
        %v2431 = vld [vmem:[#allocation2 + $0xda] sm:$0xff]
        %v2432 = vld [vmem:[#allocation2 + $0xe2] sm:$0xff]
        %v2433 = vld [vmem:[#allocation2 + $0xf2] sm:$0xff]
        %v2434 = vld [vmem:[#allocation2 + $0xfa] sm:$0xff]
        %v2435 = vld [vmem:[#allocation2 + $0x10a] sm:$0xff]
        %v2436 = vld [vmem:[#allocation2 + $0x112] sm:$0xff]
        %v2437 = vld [vmem:[#allocation2 + $0x122] sm:$0xff]
        %v2438 = vld [vmem:[#allocation2 + $0x12a] sm:$0xff]
        %v2439 = vld [vmem:[#allocation2 + $0x13a] sm:$0xff]
        %v2440 = vld [vmem:[#allocation2 + $0x142] sm:$0xff]
        %v2441 = vld [vmem:[#allocation2 + $0x152] sm:$0xff]
        %v2442 = vld [vmem:[#allocation2 + $0x15a] sm:$0xff]
        %v2443 = vld [vmem:[#allocation2 + $0x16a] sm:$0xff]
        %v2444 = vld [vmem:[#allocation2 + $0x172] sm:$0xff]
        %v2445 = vpack.c.bf16 %v2414, %v2413
        %v2446 = vpack.c.bf16 %v2416, %v2415
        %v2447 = vpack.c.bf16 %v2418, %v2417
        %v2448 = vpack.c.bf16 %v2420, %v2419
        %v2449 = vpack.c.bf16 %v2422, %v2421
        %v2450 = vpack.c.bf16 %v2424, %v2423
        %v2451 = vpack.c.bf16 %v2426, %v2425
        %v2452 = vpack.c.bf16 %v2428, %v2427
        %v2453 = vpack.c.bf16 %v2430, %v2429
        %v2454 = vpack.c.bf16 %v2432, %v2431
        %v2455 = vpack.c.bf16 %v2434, %v2433
        %v2456 = vpack.c.bf16 %v2436, %v2435
        %v2457 = vpack.c.bf16 %v2438, %v2437
        %v2458 = vpack.c.bf16 %v2440, %v2439
        %v2459 = vpack.c.bf16 %v2442, %v2441
        %v2460 = vpack.c.bf16 %v2444, %v2443
        %2461 = vst [vmem:[#allocation3 + $0x10] sm:$0xff] %v2445
        %2462 = vst [vmem:[#allocation3 + $0x58] sm:$0xff] %v2446
        %2463 = vst [vmem:[#allocation3 + $0xa0] sm:$0xff] %v2447
        %2464 = vst [vmem:[#allocation3 + $0xe8] sm:$0xff] %v2448
        %2465 = vst [vmem:[#allocation3 + $0x130] sm:$0xff] %v2449
        %2466 = vst [vmem:[#allocation3 + $0x178] sm:$0xff] %v2450
        %2467 = vst [vmem:[#allocation3 + $0x1c0] sm:$0xff] %v2451
        %2468 = vst [vmem:[#allocation3 + $0x208] sm:$0xff] %v2452
        %2469 = vst [vmem:[#allocation3 + $0x250] sm:$0xff] %v2453
        %2470 = vst [vmem:[#allocation3 + $0x298] sm:$0xff] %v2454
        %2471 = vst [vmem:[#allocation3 + $0x2e0] sm:$0xff] %v2455
        %2472 = vst [vmem:[#allocation3 + $0x328] sm:$0xff] %v2456
        %2473 = vst [vmem:[#allocation3 + $0x370] sm:$0xff] %v2457
        %2474 = vst [vmem:[#allocation3 + $0x3b8] sm:$0xff] %v2458
        %2475 = vst [vmem:[#allocation3 + $0x400] sm:$0xff] %v2459
        %2476 = vst [vmem:[#allocation3 + $0x448] sm:$0xff] %v2460
        %v2477 = vld [vmem:[%s546] sm:$0xff]
        %v2478 = vld [vmem:[%s546 + $0x8] sm:$0xff]
        %v2479 = vld [vmem:[%s546 + $0x18] sm:$0xff]
        %v2480 = vld [vmem:[%s546 + $0x20] sm:$0xff]
        %v2481 = vld [vmem:[%s546 + $0x30] sm:$0xff]
        %v2482 = vld [vmem:[%s546 + $0x38] sm:$0xff]
        %v2483 = vld [vmem:[%s546 + $0x48] sm:$0xff]
        %v2484 = vld [vmem:[%s546 + $0x50] sm:$0xff]
        %v2485 = vld [vmem:[%s546 + $0x60] sm:$0xff]
        %v2486 = vld [vmem:[%s546 + $0x68] sm:$0xff]
        %v2487 = vld [vmem:[%s546 + $0x78] sm:$0xff]
        %v2488 = vld [vmem:[%s546 + $0x80] sm:$0xff]
        %v2489 = vld [vmem:[%s546 + $0x90] sm:$0xff]
        %v2490 = vld [vmem:[%s546 + $0x98] sm:$0xff]
        %v2491 = vld [vmem:[%s546 + $0xa8] sm:$0xff]
        %v2492 = vld [vmem:[%s546 + $0xb0] sm:$0xff]
        %v2493 = vld [vmem:[%s546 + $0xc0] sm:$0xff]
        %v2494 = vld [vmem:[%s546 + $0xc8] sm:$0xff]
        %v2495 = vld [vmem:[%s546 + $0xd8] sm:$0xff]
        %v2496 = vld [vmem:[%s546 + $0xe0] sm:$0xff]
        %v2497 = vld [vmem:[%s546 + $0xf0] sm:$0xff]
        %v2498 = vld [vmem:[%s546 + $0xf8] sm:$0xff]
        %v2499 = vld [vmem:[%s546 + $0x108] sm:$0xff]
        %v2500 = vld [vmem:[%s546 + $0x110] sm:$0xff]
        %v2501 = vld [vmem:[%s546 + $0x120] sm:$0xff]
        %v2502 = vld [vmem:[%s546 + $0x128] sm:$0xff]
        %v2503 = vld [vmem:[%s546 + $0x138] sm:$0xff]
        %v2504 = vld [vmem:[%s546 + $0x140] sm:$0xff]
        %v2505 = vld [vmem:[%s546 + $0x150] sm:$0xff]
        %v2506 = vld [vmem:[%s546 + $0x158] sm:$0xff]
        %v2507 = vld [vmem:[%s546 + $0x168] sm:$0xff]
        %v2508 = vld [vmem:[%s546 + $0x170] sm:$0xff]
        %v2509 = vpack.c.bf16 %v2478, %v2477
        %v2510 = vpack.c.bf16 %v2480, %v2479
        %v2511 = vpack.c.bf16 %v2482, %v2481
        %v2512 = vpack.c.bf16 %v2484, %v2483
        %v2513 = vpack.c.bf16 %v2486, %v2485
        %v2514 = vpack.c.bf16 %v2488, %v2487
        %v2515 = vpack.c.bf16 %v2490, %v2489
        %v2516 = vpack.c.bf16 %v2492, %v2491
        %v2517 = vpack.c.bf16 %v2494, %v2493
        %v2518 = vpack.c.bf16 %v2496, %v2495
        %v2519 = vpack.c.bf16 %v2498, %v2497
        %v2520 = vpack.c.bf16 %v2500, %v2499
        %v2521 = vpack.c.bf16 %v2502, %v2501
        %v2522 = vpack.c.bf16 %v2504, %v2503
        %v2523 = vpack.c.bf16 %v2506, %v2505
        %v2524 = vpack.c.bf16 %v2508, %v2507
        %2525 = vst [vmem:[#allocation3 + $0x18] sm:$0xff] %v2509
        %2526 = vst [vmem:[#allocation3 + $0x60] sm:$0xff] %v2510
        %2527 = vst [vmem:[#allocation3 + $0xa8] sm:$0xff] %v2511
        %2528 = vst [vmem:[#allocation3 + $0xf0] sm:$0xff] %v2512
        %2529 = vst [vmem:[#allocation3 + $0x138] sm:$0xff] %v2513
        %2530 = vst [vmem:[#allocation3 + $0x180] sm:$0xff] %v2514
        %2531 = vst [vmem:[#allocation3 + $0x1c8] sm:$0xff] %v2515
        %2532 = vst [vmem:[#allocation3 + $0x210] sm:$0xff] %v2516
        %2533 = vst [vmem:[#allocation3 + $0x258] sm:$0xff] %v2517
        %2534 = vst [vmem:[#allocation3 + $0x2a0] sm:$0xff] %v2518
        %2535 = vst [vmem:[#allocation3 + $0x2e8] sm:$0xff] %v2519
        %2536 = vst [vmem:[#allocation3 + $0x330] sm:$0xff] %v2520
        %2537 = vst [vmem:[#allocation3 + $0x378] sm:$0xff] %v2521
        %2538 = vst [vmem:[#allocation3 + $0x3c0] sm:$0xff] %v2522
        %2539 = vst [vmem:[#allocation3 + $0x408] sm:$0xff] %v2523
        %2540 = vst [vmem:[#allocation3 + $0x450] sm:$0xff] %v2524
        %v2541 = vld [vmem:[%s546 + $0x1] sm:$0xff]
        %v2542 = vld [vmem:[%s546 + $0x9] sm:$0xff]
        %v2543 = vld [vmem:[%s546 + $0x19] sm:$0xff]
        %v2544 = vld [vmem:[%s546 + $0x21] sm:$0xff]
        %v2545 = vld [vmem:[%s546 + $0x31] sm:$0xff]
        %v2546 = vld [vmem:[%s546 + $0x39] sm:$0xff]
        %v2547 = vld [vmem:[%s546 + $0x49] sm:$0xff]
        %v2548 = vld [vmem:[%s546 + $0x51] sm:$0xff]
        %v2549 = vld [vmem:[%s546 + $0x61] sm:$0xff]
        %v2550 = vld [vmem:[%s546 + $0x69] sm:$0xff]
        %v2551 = vld [vmem:[%s546 + $0x79] sm:$0xff]
        %v2552 = vld [vmem:[%s546 + $0x81] sm:$0xff]
        %v2553 = vld [vmem:[%s546 + $0x91] sm:$0xff]
        %v2554 = vld [vmem:[%s546 + $0x99] sm:$0xff]
        %v2555 = vld [vmem:[%s546 + $0xa9] sm:$0xff]
        %v2556 = vld [vmem:[%s546 + $0xb1] sm:$0xff]
        %v2557 = vld [vmem:[%s546 + $0xc1] sm:$0xff]
        %v2558 = vld [vmem:[%s546 + $0xc9] sm:$0xff]
        %v2559 = vld [vmem:[%s546 + $0xd9] sm:$0xff]
        %v2560 = vld [vmem:[%s546 + $0xe1] sm:$0xff]
        %v2561 = vld [vmem:[%s546 + $0xf1] sm:$0xff]
        %v2562 = vld [vmem:[%s546 + $0xf9] sm:$0xff]
        %v2563 = vld [vmem:[%s546 + $0x109] sm:$0xff]
        %v2564 = vld [vmem:[%s546 + $0x111] sm:$0xff]
        %v2565 = vld [vmem:[%s546 + $0x121] sm:$0xff]
        %v2566 = vld [vmem:[%s546 + $0x129] sm:$0xff]
        %v2567 = vld [vmem:[%s546 + $0x139] sm:$0xff]
        %v2568 = vld [vmem:[%s546 + $0x141] sm:$0xff]
        %v2569 = vld [vmem:[%s546 + $0x151] sm:$0xff]
        %v2570 = vld [vmem:[%s546 + $0x159] sm:$0xff]
        %v2571 = vld [vmem:[%s546 + $0x169] sm:$0xff]
        %v2572 = vld [vmem:[%s546 + $0x171] sm:$0xff]
        %v2573 = vpack.c.bf16 %v2542, %v2541
        %v2574 = vpack.c.bf16 %v2544, %v2543
        %v2575 = vpack.c.bf16 %v2546, %v2545
        %v2576 = vpack.c.bf16 %v2548, %v2547
        %v2577 = vpack.c.bf16 %v2550, %v2549
        %v2578 = vpack.c.bf16 %v2552, %v2551
        %v2579 = vpack.c.bf16 %v2554, %v2553
        %v2580 = vpack.c.bf16 %v2556, %v2555
        %v2581 = vpack.c.bf16 %v2558, %v2557
        %v2582 = vpack.c.bf16 %v2560, %v2559
        %v2583 = vpack.c.bf16 %v2562, %v2561
        %v2584 = vpack.c.bf16 %v2564, %v2563
        %v2585 = vpack.c.bf16 %v2566, %v2565
        %v2586 = vpack.c.bf16 %v2568, %v2567
        %v2587 = vpack.c.bf16 %v2570, %v2569
        %v2588 = vpack.c.bf16 %v2572, %v2571
        %2589 = vst [vmem:[#allocation3 + $0x20] sm:$0xff] %v2573
        %2590 = vst [vmem:[#allocation3 + $0x68] sm:$0xff] %v2574
        %2591 = vst [vmem:[#allocation3 + $0xb0] sm:$0xff] %v2575
        %2592 = vst [vmem:[#allocation3 + $0xf8] sm:$0xff] %v2576
        %2593 = vst [vmem:[#allocation3 + $0x140] sm:$0xff] %v2577
        %2594 = vst [vmem:[#allocation3 + $0x188] sm:$0xff] %v2578
        %2595 = vst [vmem:[#allocation3 + $0x1d0] sm:$0xff] %v2579
        %2596 = vst [vmem:[#allocation3 + $0x218] sm:$0xff] %v2580
        %2597 = vst [vmem:[#allocation3 + $0x260] sm:$0xff] %v2581
        %2598 = vst [vmem:[#allocation3 + $0x2a8] sm:$0xff] %v2582
        %2599 = vst [vmem:[#allocation3 + $0x2f0] sm:$0xff] %v2583
        %2600 = vst [vmem:[#allocation3 + $0x338] sm:$0xff] %v2584
        %2601 = vst [vmem:[#allocation3 + $0x380] sm:$0xff] %v2585
        %2602 = vst [vmem:[#allocation3 + $0x3c8] sm:$0xff] %v2586
        %2603 = vst [vmem:[#allocation3 + $0x410] sm:$0xff] %v2587
        %2604 = vst [vmem:[#allocation3 + $0x458] sm:$0xff] %v2588
        %v2605 = vld [vmem:[%s546 + $0x2] sm:$0xff]
        %v2606 = vld [vmem:[%s546 + $0xa] sm:$0xff]
        %v2607 = vld [vmem:[%s546 + $0x1a] sm:$0xff]
        %v2608 = vld [vmem:[%s546 + $0x22] sm:$0xff]
        %v2609 = vld [vmem:[%s546 + $0x32] sm:$0xff]
        %v2610 = vld [vmem:[%s546 + $0x3a] sm:$0xff]
        %v2611 = vld [vmem:[%s546 + $0x4a] sm:$0xff]
        %v2612 = vld [vmem:[%s546 + $0x52] sm:$0xff]
        %v2613 = vld [vmem:[%s546 + $0x62] sm:$0xff]
        %v2614 = vld [vmem:[%s546 + $0x6a] sm:$0xff]
        %v2615 = vld [vmem:[%s546 + $0x7a] sm:$0xff]
        %v2616 = vld [vmem:[%s546 + $0x82] sm:$0xff]
        %v2617 = vld [vmem:[%s546 + $0x92] sm:$0xff]
        %v2618 = vld [vmem:[%s546 + $0x9a] sm:$0xff]
        %v2619 = vld [vmem:[%s546 + $0xaa] sm:$0xff]
        %v2620 = vld [vmem:[%s546 + $0xb2] sm:$0xff]
        %v2621 = vld [vmem:[%s546 + $0xc2] sm:$0xff]
        %v2622 = vld [vmem:[%s546 + $0xca] sm:$0xff]
        %v2623 = vld [vmem:[%s546 + $0xda] sm:$0xff]
        %v2624 = vld [vmem:[%s546 + $0xe2] sm:$0xff]
        %v2625 = vld [vmem:[%s546 + $0xf2] sm:$0xff]
        %v2626 = vld [vmem:[%s546 + $0xfa] sm:$0xff]
        %v2627 = vld [vmem:[%s546 + $0x10a] sm:$0xff]
        %v2628 = vld [vmem:[%s546 + $0x112] sm:$0xff]
        %v2629 = vld [vmem:[%s546 + $0x122] sm:$0xff]
        %v2630 = vld [vmem:[%s546 + $0x12a] sm:$0xff]
        %v2631 = vld [vmem:[%s546 + $0x13a] sm:$0xff]
        %v2632 = vld [vmem:[%s546 + $0x142] sm:$0xff]
        %v2633 = vld [vmem:[%s546 + $0x152] sm:$0xff]
        %v2634 = vld [vmem:[%s546 + $0x15a] sm:$0xff]
        %v2635 = vld [vmem:[%s546 + $0x16a] sm:$0xff]
        %v2636 = vld [vmem:[%s546 + $0x172] sm:$0xff]
        %v2637 = vpack.c.bf16 %v2606, %v2605
        %v2638 = vpack.c.bf16 %v2608, %v2607
        %v2639 = vpack.c.bf16 %v2610, %v2609
        %v2640 = vpack.c.bf16 %v2612, %v2611
        %v2641 = vpack.c.bf16 %v2614, %v2613
        %v2642 = vpack.c.bf16 %v2616, %v2615
        %v2643 = vpack.c.bf16 %v2618, %v2617
        %v2644 = vpack.c.bf16 %v2620, %v2619
        %v2645 = vpack.c.bf16 %v2622, %v2621
        %v2646 = vpack.c.bf16 %v2624, %v2623
        %v2647 = vpack.c.bf16 %v2626, %v2625
        %v2648 = vpack.c.bf16 %v2628, %v2627
        %v2649 = vpack.c.bf16 %v2630, %v2629
        %v2650 = vpack.c.bf16 %v2632, %v2631
        %v2651 = vpack.c.bf16 %v2634, %v2633
        %v2652 = vpack.c.bf16 %v2636, %v2635
        %2653 = vst [vmem:[#allocation3 + $0x28] sm:$0xff] %v2637
        %2654 = vst [vmem:[#allocation3 + $0x70] sm:$0xff] %v2638
        %2655 = vst [vmem:[#allocation3 + $0xb8] sm:$0xff] %v2639
        %2656 = vst [vmem:[#allocation3 + $0x100] sm:$0xff] %v2640
        %2657 = vst [vmem:[#allocation3 + $0x148] sm:$0xff] %v2641
        %2658 = vst [vmem:[#allocation3 + $0x190] sm:$0xff] %v2642
        %2659 = vst [vmem:[#allocation3 + $0x1d8] sm:$0xff] %v2643
        %2660 = vst [vmem:[#allocation3 + $0x220] sm:$0xff] %v2644
        %2661 = vst [vmem:[#allocation3 + $0x268] sm:$0xff] %v2645
        %2662 = vst [vmem:[#allocation3 + $0x2b0] sm:$0xff] %v2646
        %2663 = vst [vmem:[#allocation3 + $0x2f8] sm:$0xff] %v2647
        %2664 = vst [vmem:[#allocation3 + $0x340] sm:$0xff] %v2648
        %2665 = vst [vmem:[#allocation3 + $0x388] sm:$0xff] %v2649
        %2666 = vst [vmem:[#allocation3 + $0x3d0] sm:$0xff] %v2650
        %2667 = vst [vmem:[#allocation3 + $0x418] sm:$0xff] %v2651
        %2668 = vst [vmem:[#allocation3 + $0x460] sm:$0xff] %v2652
        %s2669 = scalar_lea.vmem [#allocation2], 48
        %v2670 = vld [vmem:[%s2669] sm:$0xff]
        %v2671 = vld [vmem:[%s2669 + $0x8] sm:$0xff]
        %v2672 = vld [vmem:[%s2669 + $0x18] sm:$0xff]
        %v2673 = vld [vmem:[%s2669 + $0x20] sm:$0xff]
        %v2674 = vld [vmem:[%s2669 + $0x30] sm:$0xff]
        %v2675 = vld [vmem:[%s2669 + $0x38] sm:$0xff]
        %v2676 = vld [vmem:[%s2669 + $0x48] sm:$0xff]
        %v2677 = vld [vmem:[%s2669 + $0x50] sm:$0xff]
        %v2678 = vld [vmem:[%s2669 + $0x60] sm:$0xff]
        %v2679 = vld [vmem:[%s2669 + $0x68] sm:$0xff]
        %v2680 = vld [vmem:[%s2669 + $0x78] sm:$0xff]
        %v2681 = vld [vmem:[%s2669 + $0x80] sm:$0xff]
        %v2682 = vld [vmem:[%s2669 + $0x90] sm:$0xff]
        %v2683 = vld [vmem:[%s2669 + $0x98] sm:$0xff]
        %v2684 = vld [vmem:[%s2669 + $0xa8] sm:$0xff]
        %v2685 = vld [vmem:[%s2669 + $0xb0] sm:$0xff]
        %v2686 = vld [vmem:[%s2669 + $0xc0] sm:$0xff]
        %v2687 = vld [vmem:[%s2669 + $0xc8] sm:$0xff]
        %v2688 = vld [vmem:[%s2669 + $0xd8] sm:$0xff]
        %v2689 = vld [vmem:[%s2669 + $0xe0] sm:$0xff]
        %v2690 = vld [vmem:[%s2669 + $0xf0] sm:$0xff]
        %v2691 = vld [vmem:[%s2669 + $0xf8] sm:$0xff]
        %v2692 = vld [vmem:[%s2669 + $0x108] sm:$0xff]
        %v2693 = vld [vmem:[%s2669 + $0x110] sm:$0xff]
        %v2694 = vld [vmem:[%s2669 + $0x120] sm:$0xff]
        %v2695 = vld [vmem:[%s2669 + $0x128] sm:$0xff]
        %v2696 = vld [vmem:[%s2669 + $0x138] sm:$0xff]
        %v2697 = vld [vmem:[%s2669 + $0x140] sm:$0xff]
        %v2698 = vld [vmem:[%s2669 + $0x150] sm:$0xff]
        %v2699 = vld [vmem:[%s2669 + $0x158] sm:$0xff]
        %v2700 = vld [vmem:[%s2669 + $0x168] sm:$0xff]
        %v2701 = vld [vmem:[%s2669 + $0x170] sm:$0xff]
        %v2702 = vpack.c.bf16 %v2671, %v2670
        %v2703 = vpack.c.bf16 %v2673, %v2672
        %v2704 = vpack.c.bf16 %v2675, %v2674
        %v2705 = vpack.c.bf16 %v2677, %v2676
        %v2706 = vpack.c.bf16 %v2679, %v2678
        %v2707 = vpack.c.bf16 %v2681, %v2680
        %v2708 = vpack.c.bf16 %v2683, %v2682
        %v2709 = vpack.c.bf16 %v2685, %v2684
        %v2710 = vpack.c.bf16 %v2687, %v2686
        %v2711 = vpack.c.bf16 %v2689, %v2688
        %v2712 = vpack.c.bf16 %v2691, %v2690
        %v2713 = vpack.c.bf16 %v2693, %v2692
        %v2714 = vpack.c.bf16 %v2695, %v2694
        %v2715 = vpack.c.bf16 %v2697, %v2696
        %v2716 = vpack.c.bf16 %v2699, %v2698
        %v2717 = vpack.c.bf16 %v2701, %v2700
        %2718 = vst [vmem:[#allocation3 + $0x30] sm:$0xff] %v2702
        %2719 = vst [vmem:[#allocation3 + $0x78] sm:$0xff] %v2703
        %2720 = vst [vmem:[#allocation3 + $0xc0] sm:$0xff] %v2704
        %2721 = vst [vmem:[#allocation3 + $0x108] sm:$0xff] %v2705
        %2722 = vst [vmem:[#allocation3 + $0x150] sm:$0xff] %v2706
        %2723 = vst [vmem:[#allocation3 + $0x198] sm:$0xff] %v2707
        %2724 = vst [vmem:[#allocation3 + $0x1e0] sm:$0xff] %v2708
        %2725 = vst [vmem:[#allocation3 + $0x228] sm:$0xff] %v2709
        %2726 = vst [vmem:[#allocation3 + $0x270] sm:$0xff] %v2710
        %2727 = vst [vmem:[#allocation3 + $0x2b8] sm:$0xff] %v2711
        %2728 = vst [vmem:[#allocation3 + $0x300] sm:$0xff] %v2712
        %2729 = vst [vmem:[#allocation3 + $0x348] sm:$0xff] %v2713
        %2730 = vst [vmem:[#allocation3 + $0x390] sm:$0xff] %v2714
        %2731 = vst [vmem:[#allocation3 + $0x3d8] sm:$0xff] %v2715
        %2732 = vst [vmem:[#allocation3 + $0x420] sm:$0xff] %v2716
        %2733 = vst [vmem:[#allocation3 + $0x468] sm:$0xff] %v2717
        %v2734 = vld [vmem:[%s2669 + $0x1] sm:$0xff]
        %v2735 = vld [vmem:[%s2669 + $0x9] sm:$0xff]
        %v2736 = vld [vmem:[%s2669 + $0x19] sm:$0xff]
        %v2737 = vld [vmem:[%s2669 + $0x21] sm:$0xff]
        %v2738 = vld [vmem:[%s2669 + $0x31] sm:$0xff]
        %v2739 = vld [vmem:[%s2669 + $0x39] sm:$0xff]
        %v2740 = vld [vmem:[%s2669 + $0x49] sm:$0xff]
        %v2741 = vld [vmem:[%s2669 + $0x51] sm:$0xff]
        %v2742 = vld [vmem:[%s2669 + $0x61] sm:$0xff]
        %v2743 = vld [vmem:[%s2669 + $0x69] sm:$0xff]
        %v2744 = vld [vmem:[%s2669 + $0x79] sm:$0xff]
        %v2745 = vld [vmem:[%s2669 + $0x81] sm:$0xff]
        %v2746 = vld [vmem:[%s2669 + $0x91] sm:$0xff]
        %v2747 = vld [vmem:[%s2669 + $0x99] sm:$0xff]
        %v2748 = vld [vmem:[%s2669 + $0xa9] sm:$0xff]
        %v2749 = vld [vmem:[%s2669 + $0xb1] sm:$0xff]
        %v2750 = vld [vmem:[%s2669 + $0xc1] sm:$0xff]
        %v2751 = vld [vmem:[%s2669 + $0xc9] sm:$0xff]
        %v2752 = vld [vmem:[%s2669 + $0xd9] sm:$0xff]
        %v2753 = vld [vmem:[%s2669 + $0xe1] sm:$0xff]
        %v2754 = vld [vmem:[%s2669 + $0xf1] sm:$0xff]
        %v2755 = vld [vmem:[%s2669 + $0xf9] sm:$0xff]
        %v2756 = vld [vmem:[%s2669 + $0x109] sm:$0xff]
        %v2757 = vld [vmem:[%s2669 + $0x111] sm:$0xff]
        %v2758 = vld [vmem:[%s2669 + $0x121] sm:$0xff]
        %v2759 = vld [vmem:[%s2669 + $0x129] sm:$0xff]
        %v2760 = vld [vmem:[%s2669 + $0x139] sm:$0xff]
        %v2761 = vld [vmem:[%s2669 + $0x141] sm:$0xff]
        %v2762 = vld [vmem:[%s2669 + $0x151] sm:$0xff]
        %v2763 = vld [vmem:[%s2669 + $0x159] sm:$0xff]
        %v2764 = vld [vmem:[%s2669 + $0x169] sm:$0xff]
        %v2765 = vld [vmem:[%s2669 + $0x171] sm:$0xff]
        %v2766 = vpack.c.bf16 %v2735, %v2734
        %v2767 = vpack.c.bf16 %v2737, %v2736
        %v2768 = vpack.c.bf16 %v2739, %v2738
        %v2769 = vpack.c.bf16 %v2741, %v2740
        %v2770 = vpack.c.bf16 %v2743, %v2742
        %v2771 = vpack.c.bf16 %v2745, %v2744
        %v2772 = vpack.c.bf16 %v2747, %v2746
        %v2773 = vpack.c.bf16 %v2749, %v2748
        %v2774 = vpack.c.bf16 %v2751, %v2750
        %v2775 = vpack.c.bf16 %v2753, %v2752
        %v2776 = vpack.c.bf16 %v2755, %v2754
        %v2777 = vpack.c.bf16 %v2757, %v2756
        %v2778 = vpack.c.bf16 %v2759, %v2758
        %v2779 = vpack.c.bf16 %v2761, %v2760
        %v2780 = vpack.c.bf16 %v2763, %v2762
        %v2781 = vpack.c.bf16 %v2765, %v2764
        %2782 = vst [vmem:[#allocation3 + $0x38] sm:$0xff] %v2766
        %2783 = vst [vmem:[#allocation3 + $0x80] sm:$0xff] %v2767
        %2784 = vst [vmem:[#allocation3 + $0xc8] sm:$0xff] %v2768
        %2785 = vst [vmem:[#allocation3 + $0x110] sm:$0xff] %v2769
        %2786 = vst [vmem:[#allocation3 + $0x158] sm:$0xff] %v2770
        %2787 = vst [vmem:[#allocation3 + $0x1a0] sm:$0xff] %v2771
        %2788 = vst [vmem:[#allocation3 + $0x1e8] sm:$0xff] %v2772
        %2789 = vst [vmem:[#allocation3 + $0x230] sm:$0xff] %v2773
        %2790 = vst [vmem:[#allocation3 + $0x278] sm:$0xff] %v2774
        %2791 = vst [vmem:[#allocation3 + $0x2c0] sm:$0xff] %v2775
        %2792 = vst [vmem:[#allocation3 + $0x308] sm:$0xff] %v2776
        %2793 = vst [vmem:[#allocation3 + $0x350] sm:$0xff] %v2777
        %2794 = vst [vmem:[#allocation3 + $0x398] sm:$0xff] %v2778
        %2795 = vst [vmem:[#allocation3 + $0x3e0] sm:$0xff] %v2779
        %2796 = vst [vmem:[#allocation3 + $0x428] sm:$0xff] %v2780
        %2797 = vst [vmem:[#allocation3 + $0x470] sm:$0xff] %v2781
        %v2798 = vld [vmem:[%s2669 + $0x2] sm:$0xff]
        %v2799 = vld [vmem:[%s2669 + $0xa] sm:$0xff]
        %v2800 = vld [vmem:[%s2669 + $0x1a] sm:$0xff]
        %v2801 = vld [vmem:[%s2669 + $0x22] sm:$0xff]
        %v2802 = vld [vmem:[%s2669 + $0x32] sm:$0xff]
        %v2803 = vld [vmem:[%s2669 + $0x3a] sm:$0xff]
        %v2804 = vld [vmem:[%s2669 + $0x4a] sm:$0xff]
        %v2805 = vld [vmem:[%s2669 + $0x52] sm:$0xff]
        %v2806 = vld [vmem:[%s2669 + $0x62] sm:$0xff]
        %v2807 = vld [vmem:[%s2669 + $0x6a] sm:$0xff]
        %v2808 = vld [vmem:[%s2669 + $0x7a] sm:$0xff]
        %v2809 = vld [vmem:[%s2669 + $0x82] sm:$0xff]
        %v2810 = vld [vmem:[%s2669 + $0x92] sm:$0xff]
        %v2811 = vld [vmem:[%s2669 + $0x9a] sm:$0xff]
        %v2812 = vld [vmem:[%s2669 + $0xaa] sm:$0xff]
        %v2813 = vld [vmem:[%s2669 + $0xb2] sm:$0xff]
        %v2814 = vld [vmem:[%s2669 + $0xc2] sm:$0xff]
        %v2815 = vld [vmem:[%s2669 + $0xca] sm:$0xff]
        %v2816 = vld [vmem:[%s2669 + $0xda] sm:$0xff]
        %v2817 = vld [vmem:[%s2669 + $0xe2] sm:$0xff]
        %v2818 = vld [vmem:[%s2669 + $0xf2] sm:$0xff]
        %v2819 = vld [vmem:[%s2669 + $0xfa] sm:$0xff]
        %v2820 = vld [vmem:[%s2669 + $0x10a] sm:$0xff]
        %v2821 = vld [vmem:[%s2669 + $0x112] sm:$0xff]
        %v2822 = vld [vmem:[%s2669 + $0x122] sm:$0xff]
        %v2823 = vld [vmem:[%s2669 + $0x12a] sm:$0xff]
        %v2824 = vld [vmem:[%s2669 + $0x13a] sm:$0xff]
        %v2825 = vld [vmem:[%s2669 + $0x142] sm:$0xff]
        %v2826 = vld [vmem:[%s2669 + $0x152] sm:$0xff]
        %v2827 = vld [vmem:[%s2669 + $0x15a] sm:$0xff]
        %v2828 = vld [vmem:[%s2669 + $0x16a] sm:$0xff]
        %v2829 = vld [vmem:[%s2669 + $0x172] sm:$0xff]
        %v2830 = vpack.c.bf16 %v2799, %v2798
        %v2831 = vpack.c.bf16 %v2801, %v2800
        %v2832 = vpack.c.bf16 %v2803, %v2802
        %v2833 = vpack.c.bf16 %v2805, %v2804
        %v2834 = vpack.c.bf16 %v2807, %v2806
        %v2835 = vpack.c.bf16 %v2809, %v2808
        %v2836 = vpack.c.bf16 %v2811, %v2810
        %v2837 = vpack.c.bf16 %v2813, %v2812
        %v2838 = vpack.c.bf16 %v2815, %v2814
        %v2839 = vpack.c.bf16 %v2817, %v2816
        %v2840 = vpack.c.bf16 %v2819, %v2818
        %v2841 = vpack.c.bf16 %v2821, %v2820
        %v2842 = vpack.c.bf16 %v2823, %v2822
        %v2843 = vpack.c.bf16 %v2825, %v2824
        %v2844 = vpack.c.bf16 %v2827, %v2826
        %v2845 = vpack.c.bf16 %v2829, %v2828
        %2846 = vst [vmem:[#allocation3 + $0x40] sm:$0xff] %v2830
        %2847 = vst [vmem:[#allocation3 + $0x88] sm:$0xff] %v2831
        %2848 = vst [vmem:[#allocation3 + $0xd0] sm:$0xff] %v2832
        %2849 = vst [vmem:[#allocation3 + $0x118] sm:$0xff] %v2833
        %2850 = vst [vmem:[#allocation3 + $0x160] sm:$0xff] %v2834
        %2851 = vst [vmem:[#allocation3 + $0x1a8] sm:$0xff] %v2835
        %2852 = vst [vmem:[#allocation3 + $0x1f0] sm:$0xff] %v2836
        %2853 = vst [vmem:[#allocation3 + $0x238] sm:$0xff] %v2837
        %2854 = vst [vmem:[#allocation3 + $0x280] sm:$0xff] %v2838
        %2855 = vst [vmem:[#allocation3 + $0x2c8] sm:$0xff] %v2839
        %2856 = vst [vmem:[#allocation3 + $0x310] sm:$0xff] %v2840
        %2857 = vst [vmem:[#allocation3 + $0x358] sm:$0xff] %v2841
        %2858 = vst [vmem:[#allocation3 + $0x3a0] sm:$0xff] %v2842
        %2859 = vst [vmem:[#allocation3 + $0x3e8] sm:$0xff] %v2843
        %2860 = vst [vmem:[#allocation3 + $0x430] sm:$0xff] %v2844
        %2861 = vst [vmem:[#allocation3 + $0x478] sm:$0xff] %v2845
        %v2862 = vld [vmem:[#allocation3] sm:$0xff]
        %v2863 = vld [vmem:[#allocation3 + $0x8] sm:$0xff]
        %v2864 = vld [vmem:[#allocation3 + $0x10] sm:$0xff]
        %v2865 = vld [vmem:[#allocation3 + $0x18] sm:$0xff]
        %v2866 = vld [vmem:[#allocation3 + $0x20] sm:$0xff]
        %v2867 = vld [vmem:[#allocation3 + $0x28] sm:$0xff]
        %v2868 = vld [vmem:[#allocation3 + $0x30] sm:$0xff]
        %v2869 = vld [vmem:[#allocation3 + $0x38] sm:$0xff]
        %v2870 = vld [vmem:[#allocation3 + $0x40] sm:$0xff]
        %v2871 = vld [vmem:[#allocation3 + $0x48] sm:$0xff]
        %v2872 = vld [vmem:[#allocation3 + $0x50] sm:$0xff]
        %v2873 = vld [vmem:[#allocation3 + $0x58] sm:$0xff]
        %v2874 = vld [vmem:[#allocation3 + $0x60] sm:$0xff]
        %v2875 = vld [vmem:[#allocation3 + $0x68] sm:$0xff]
        %v2876 = vld [vmem:[#allocation3 + $0x70] sm:$0xff]
        %v2877 = vld [vmem:[#allocation3 + $0x78] sm:$0xff]
        %v2878 = vld [vmem:[#allocation3 + $0x80] sm:$0xff]
        %v2879 = vld [vmem:[#allocation3 + $0x88] sm:$0xff]
        %v2880 = vld [vmem:[#allocation3 + $0x90] sm:$0xff]
        %v2881 = vld [vmem:[#allocation3 + $0x98] sm:$0xff]
        %v2882 = vld [vmem:[#allocation3 + $0xa0] sm:$0xff]
        %v2883 = vld [vmem:[#allocation3 + $0xa8] sm:$0xff]
        %v2884 = vld [vmem:[#allocation3 + $0xb0] sm:$0xff]
        %v2885 = vld [vmem:[#allocation3 + $0xb8] sm:$0xff]
        %v2886 = vld [vmem:[#allocation3 + $0xc0] sm:$0xff]
        %v2887 = vld [vmem:[#allocation3 + $0xc8] sm:$0xff]
        %v2888 = vld [vmem:[#allocation3 + $0xd0] sm:$0xff]
        %v2889 = vld [vmem:[#allocation3 + $0xd8] sm:$0xff]
        %v2890 = vld [vmem:[#allocation3 + $0xe0] sm:$0xff]
        %v2891 = vld [vmem:[#allocation3 + $0xe8] sm:$0xff]
        %v2892 = vld [vmem:[#allocation3 + $0xf0] sm:$0xff]
        %v2893 = vld [vmem:[#allocation3 + $0xf8] sm:$0xff]
        %v2894 = vld [vmem:[#allocation3 + $0x100] sm:$0xff]
        %v2895 = vld [vmem:[#allocation3 + $0x108] sm:$0xff]
        %v2896 = vld [vmem:[#allocation3 + $0x110] sm:$0xff]
        %v2897 = vld [vmem:[#allocation3 + $0x118] sm:$0xff]
        %v2898 = vld [vmem:[#allocation3 + $0x120] sm:$0xff]
        %v2899 = vld [vmem:[#allocation3 + $0x128] sm:$0xff]
        %v2900 = vld [vmem:[#allocation3 + $0x130] sm:$0xff]
        %v2901 = vld [vmem:[#allocation3 + $0x138] sm:$0xff]
        %v2902 = vld [vmem:[#allocation3 + $0x140] sm:$0xff]
        %v2903 = vld [vmem:[#allocation3 + $0x148] sm:$0xff]
        %v2904 = vld [vmem:[#allocation3 + $0x150] sm:$0xff]
        %v2905 = vld [vmem:[#allocation3 + $0x158] sm:$0xff]
        %v2906 = vld [vmem:[#allocation3 + $0x160] sm:$0xff]
        %v2907 = vld [vmem:[#allocation3 + $0x168] sm:$0xff]
        %v2908 = vld [vmem:[#allocation3 + $0x170] sm:$0xff]
        %v2909 = vld [vmem:[#allocation3 + $0x178] sm:$0xff]
        %v2910 = vld [vmem:[#allocation3 + $0x180] sm:$0xff]
        %v2911 = vld [vmem:[#allocation3 + $0x188] sm:$0xff]
        %v2912 = vld [vmem:[#allocation3 + $0x190] sm:$0xff]
        %v2913 = vld [vmem:[#allocation3 + $0x198] sm:$0xff]
        %v2914 = vld [vmem:[#allocation3 + $0x1a0] sm:$0xff]
        %v2915 = vld [vmem:[#allocation3 + $0x1a8] sm:$0xff]
        %v2916 = vld [vmem:[#allocation3 + $0x1b0] sm:$0xff]
        %v2917 = vld [vmem:[#allocation3 + $0x1b8] sm:$0xff]
        %v2918 = vld [vmem:[#allocation3 + $0x1c0] sm:$0xff]
        %v2919 = vld [vmem:[#allocation3 + $0x1c8] sm:$0xff]
        %v2920 = vld [vmem:[#allocation3 + $0x1d0] sm:$0xff]
        %v2921 = vld [vmem:[#allocation3 + $0x1d8] sm:$0xff]
        %v2922 = vld [vmem:[#allocation3 + $0x1e0] sm:$0xff]
        %v2923 = vld [vmem:[#allocation3 + $0x1e8] sm:$0xff]
        %v2924 = vld [vmem:[#allocation3 + $0x1f0] sm:$0xff]
        %v2925 = vld [vmem:[#allocation3 + $0x1f8] sm:$0xff]
        %v2926 = vld [vmem:[#allocation3 + $0x200] sm:$0xff]
        %v2927 = vld [vmem:[#allocation3 + $0x208] sm:$0xff]
        %v2928 = vld [vmem:[#allocation3 + $0x210] sm:$0xff]
        %v2929 = vld [vmem:[#allocation3 + $0x218] sm:$0xff]
        %v2930 = vld [vmem:[#allocation3 + $0x220] sm:$0xff]
        %v2931 = vld [vmem:[#allocation3 + $0x228] sm:$0xff]
        %v2932 = vld [vmem:[#allocation3 + $0x230] sm:$0xff]
        %v2933 = vld [vmem:[#allocation3 + $0x238] sm:$0xff]
        %v2934 = vld [vmem:[#allocation3 + $0x240] sm:$0xff]
        %v2935 = vld [vmem:[#allocation3 + $0x248] sm:$0xff]
        %v2936 = vld [vmem:[#allocation3 + $0x250] sm:$0xff]
        %v2937 = vld [vmem:[#allocation3 + $0x258] sm:$0xff]
        %v2938 = vld [vmem:[#allocation3 + $0x260] sm:$0xff]
        %v2939 = vld [vmem:[#allocation3 + $0x268] sm:$0xff]
        %v2940 = vld [vmem:[#allocation3 + $0x270] sm:$0xff]
        %v2941 = vld [vmem:[#allocation3 + $0x278] sm:$0xff]
        %v2942 = vld [vmem:[#allocation3 + $0x280] sm:$0xff]
        %v2943 = vld [vmem:[#allocation3 + $0x288] sm:$0xff]
        %v2944 = vld [vmem:[#allocation3 + $0x290] sm:$0xff]
        %v2945 = vld [vmem:[#allocation3 + $0x298] sm:$0xff]
        %v2946 = vld [vmem:[#allocation3 + $0x2a0] sm:$0xff]
        %v2947 = vld [vmem:[#allocation3 + $0x2a8] sm:$0xff]
        %v2948 = vld [vmem:[#allocation3 + $0x2b0] sm:$0xff]
        %v2949 = vld [vmem:[#allocation3 + $0x2b8] sm:$0xff]
        %v2950 = vld [vmem:[#allocation3 + $0x2c0] sm:$0xff]
        %v2951 = vld [vmem:[#allocation3 + $0x2c8] sm:$0xff]
        %v2952 = vld [vmem:[#allocation3 + $0x2d0] sm:$0xff]
        %v2953 = vld [vmem:[#allocation3 + $0x2d8] sm:$0xff]
        %v2954 = vld [vmem:[#allocation3 + $0x2e0] sm:$0xff]
        %v2955 = vld [vmem:[#allocation3 + $0x2e8] sm:$0xff]
        %v2956 = vld [vmem:[#allocation3 + $0x2f0] sm:$0xff]
        %v2957 = vld [vmem:[#allocation3 + $0x2f8] sm:$0xff]
        %v2958 = vld [vmem:[#allocation3 + $0x300] sm:$0xff]
        %v2959 = vld [vmem:[#allocation3 + $0x308] sm:$0xff]
        %v2960 = vld [vmem:[#allocation3 + $0x310] sm:$0xff]
        %v2961 = vld [vmem:[#allocation3 + $0x318] sm:$0xff]
        %v2962 = vld [vmem:[#allocation3 + $0x320] sm:$0xff]
        %v2963 = vld [vmem:[#allocation3 + $0x328] sm:$0xff]
        %v2964 = vld [vmem:[#allocation3 + $0x330] sm:$0xff]
        %v2965 = vld [vmem:[#allocation3 + $0x338] sm:$0xff]
        %v2966 = vld [vmem:[#allocation3 + $0x340] sm:$0xff]
        %v2967 = vld [vmem:[#allocation3 + $0x348] sm:$0xff]
        %v2968 = vld [vmem:[#allocation3 + $0x350] sm:$0xff]
        %v2969 = vld [vmem:[#allocation3 + $0x358] sm:$0xff]
        %v2970 = vld [vmem:[#allocation3 + $0x360] sm:$0xff]
        %v2971 = vld [vmem:[#allocation3 + $0x368] sm:$0xff]
        %v2972 = vld [vmem:[#allocation3 + $0x370] sm:$0xff]
        %v2973 = vld [vmem:[#allocation3 + $0x378] sm:$0xff]
        %v2974 = vld [vmem:[#allocation3 + $0x380] sm:$0xff]
        %v2975 = vld [vmem:[#allocation3 + $0x388] sm:$0xff]
        %v2976 = vld [vmem:[#allocation3 + $0x390] sm:$0xff]
        %v2977 = vld [vmem:[#allocation3 + $0x398] sm:$0xff]
        %v2978 = vld [vmem:[#allocation3 + $0x3a0] sm:$0xff]
        %v2979 = vld [vmem:[#allocation3 + $0x3a8] sm:$0xff]
        %v2980 = vld [vmem:[#allocation3 + $0x3b0] sm:$0xff]
        %v2981 = vld [vmem:[#allocation3 + $0x3b8] sm:$0xff]
        %v2982 = vld [vmem:[#allocation3 + $0x3c0] sm:$0xff]
        %v2983 = vld [vmem:[#allocation3 + $0x3c8] sm:$0xff]
        %v2984 = vld [vmem:[#allocation3 + $0x3d0] sm:$0xff]
        %v2985 = vld [vmem:[#allocation3 + $0x3d8] sm:$0xff]
        %v2986 = vld [vmem:[#allocation3 + $0x3e0] sm:$0xff]
        %v2987 = vld [vmem:[#allocation3 + $0x3e8] sm:$0xff]
        %v2988 = vld [vmem:[#allocation3 + $0x3f0] sm:$0xff]
        %v2989 = vld [vmem:[#allocation3 + $0x3f8] sm:$0xff]
        %v2990 = vld [vmem:[#allocation3 + $0x400] sm:$0xff]
        %v2991 = vld [vmem:[#allocation3 + $0x408] sm:$0xff]
        %v2992 = vld [vmem:[#allocation3 + $0x410] sm:$0xff]
        %v2993 = vld [vmem:[#allocation3 + $0x418] sm:$0xff]
        %v2994 = vld [vmem:[#allocation3 + $0x420] sm:$0xff]
        %v2995 = vld [vmem:[#allocation3 + $0x428] sm:$0xff]
        %v2996 = vld [vmem:[#allocation3 + $0x430] sm:$0xff]
        %v2997 = vld [vmem:[#allocation3 + $0x438] sm:$0xff]
        %v2998 = vld [vmem:[#allocation3 + $0x440] sm:$0xff]
        %v2999 = vld [vmem:[#allocation3 + $0x448] sm:$0xff]
        %v3000 = vld [vmem:[#allocation3 + $0x450] sm:$0xff]
        %v3001 = vld [vmem:[#allocation3 + $0x458] sm:$0xff]
        %v3002 = vld [vmem:[#allocation3 + $0x460] sm:$0xff]
        %v3003 = vld [vmem:[#allocation3 + $0x468] sm:$0xff]
        %v3004 = vld [vmem:[#allocation3 + $0x470] sm:$0xff]
        %v3005 = vld [vmem:[#allocation3 + $0x478] sm:$0xff]
        %v3006 = vld [vmem:[#allocation13] sm:$0xf]
        %v3007 = vld [vmem:[#allocation13 + $0x4] sm:$0xf]
        %v3008 = vld [vmem:[#allocation13 + $0x8] sm:$0xf]
        %v3009 = vld [vmem:[#allocation13 + $0xc] sm:$0xf]
        %v3010 = vld [vmem:[#allocation13 + $0x10] sm:$0xf]
        %v3011 = vld [vmem:[#allocation13 + $0x14] sm:$0xf]
        %v3012 = vld [vmem:[#allocation13 + $0x18] sm:$0xf]
        %v3013 = vld [vmem:[#allocation13 + $0x1c] sm:$0xf]
        %v3014 = vld [vmem:[#allocation13 + $0x20] sm:$0xf]
        %v3015 = vld [vmem:[#allocation13 + $0x24] sm:$0xf]
        %v3016 = vld [vmem:[#allocation13 + $0x28] sm:$0xf]
        %v3017 = vld [vmem:[#allocation13 + $0x2c] sm:$0xf]
        %v3018 = vld [vmem:[#allocation13 + $0x30] sm:$0xf]
        %v3019 = vld [vmem:[#allocation13 + $0x34] sm:$0xf]
        %v3020 = vld [vmem:[#allocation13 + $0x38] sm:$0xf]
        %v3021 = vld [vmem:[#allocation13 + $0x3c] sm:$0xf]
        %v3022 = vld [vmem:[#allocation13 + $0x40] sm:$0xf]
        %v3023 = vld [vmem:[#allocation13 + $0x44] sm:$0xf]
        %v3024 = vld [vmem:[#allocation13 + $0x48] sm:$0xf]
        %v3025 = vld [vmem:[#allocation13 + $0x4c] sm:$0xf]
        %v3026 = vld [vmem:[#allocation13 + $0x50] sm:$0xf]
        %v3027 = vld [vmem:[#allocation13 + $0x54] sm:$0xf]
        %v3028 = vld [vmem:[#allocation13 + $0x58] sm:$0xf]
        %v3029 = vld [vmem:[#allocation13 + $0x5c] sm:$0xf]
        %v3030 = vld [vmem:[#allocation13 + $0x60] sm:$0xf]
        %v3031 = vld [vmem:[#allocation13 + $0x64] sm:$0xf]
        %v3032 = vld [vmem:[#allocation13 + $0x68] sm:$0xf]
        %v3033 = vld [vmem:[#allocation13 + $0x6c] sm:$0xf]
        %v3034 = vld [vmem:[#allocation13 + $0x70] sm:$0xf]
        %v3035 = vld [vmem:[#allocation13 + $0x74] sm:$0xf]
        %v3036 = vld [vmem:[#allocation13 + $0x78] sm:$0xf]
        %v3037 = vld [vmem:[#allocation13 + $0x7c] sm:$0xf]
        %v3038 = vld [vmem:[#allocation13 + $0x80] sm:$0xf]
        %v3039 = vld [vmem:[#allocation13 + $0x84] sm:$0xf]
        %v3040 = vld [vmem:[#allocation13 + $0x88] sm:$0xf]
        %v3041 = vld [vmem:[#allocation13 + $0x8c] sm:$0xf]
        %v3042 = vld [vmem:[#allocation13 + $0x90] sm:$0xf]
        %v3043 = vld [vmem:[#allocation13 + $0x94] sm:$0xf]
        %v3044 = vld [vmem:[#allocation13 + $0x98] sm:$0xf]
        %v3045 = vld [vmem:[#allocation13 + $0x9c] sm:$0xf]
        %v3046 = vld [vmem:[#allocation13 + $0xa0] sm:$0xf]
        %v3047 = vld [vmem:[#allocation13 + $0xa4] sm:$0xf]
        %v3048 = vld [vmem:[#allocation13 + $0xa8] sm:$0xf]
        %v3049 = vld [vmem:[#allocation13 + $0xac] sm:$0xf]
        %v3050 = vld [vmem:[#allocation13 + $0xb0] sm:$0xf]
        %v3051 = vld [vmem:[#allocation13 + $0xb4] sm:$0xf]
        %v3052 = vld [vmem:[#allocation13 + $0xb8] sm:$0xf]
        %v3053 = vld [vmem:[#allocation13 + $0xbc] sm:$0xf]
        %v3054 = vld [vmem:[#allocation13 + $0xc0] sm:$0xf]
        %v3055 = vld [vmem:[#allocation13 + $0xc4] sm:$0xf]
        %v3056 = vld [vmem:[#allocation13 + $0xc8] sm:$0xf]
        %v3057 = vld [vmem:[#allocation13 + $0xcc] sm:$0xf]
        %v3058 = vld [vmem:[#allocation13 + $0xd0] sm:$0xf]
        %v3059 = vld [vmem:[#allocation13 + $0xd4] sm:$0xf]
        %v3060 = vld [vmem:[#allocation13 + $0xd8] sm:$0xf]
        %v3061 = vld [vmem:[#allocation13 + $0xdc] sm:$0xf]
        %v3062 = vld [vmem:[#allocation13 + $0xe0] sm:$0xf]
        %v3063 = vld [vmem:[#allocation13 + $0xe4] sm:$0xf]
        %v3064 = vld [vmem:[#allocation13 + $0xe8] sm:$0xf]
        %v3065 = vld [vmem:[#allocation13 + $0xec] sm:$0xf]
        %v3066 = vld [vmem:[#allocation13 + $0xf0] sm:$0xf]
        %v3067 = vld [vmem:[#allocation13 + $0xf4] sm:$0xf]
        %v3068 = vld [vmem:[#allocation13 + $0xf8] sm:$0xf]
        %v3069 = vld [vmem:[#allocation13 + $0xfc] sm:$0xf]
        %v3070 = vld [vmem:[#allocation13 + $0x100] sm:$0xf]
        %v3071 = vld [vmem:[#allocation13 + $0x104] sm:$0xf]
        %v3072 = vld [vmem:[#allocation13 + $0x108] sm:$0xf]
        %v3073 = vld [vmem:[#allocation13 + $0x10c] sm:$0xf]
        %v3074 = vld [vmem:[#allocation13 + $0x110] sm:$0xf]
        %v3075 = vld [vmem:[#allocation13 + $0x114] sm:$0xf]
        %v3076 = vld [vmem:[#allocation13 + $0x118] sm:$0xf]
        %v3077 = vld [vmem:[#allocation13 + $0x11c] sm:$0xf]
        %v3078 = vld [vmem:[#allocation13 + $0x120] sm:$0xf]
        %v3079 = vld [vmem:[#allocation13 + $0x124] sm:$0xf]
        %v3080 = vld [vmem:[#allocation13 + $0x128] sm:$0xf]
        %v3081 = vld [vmem:[#allocation13 + $0x12c] sm:$0xf]
        %v3082 = vld [vmem:[#allocation13 + $0x130] sm:$0xf]
        %v3083 = vld [vmem:[#allocation13 + $0x134] sm:$0xf]
        %v3084 = vld [vmem:[#allocation13 + $0x138] sm:$0xf]
        %v3085 = vld [vmem:[#allocation13 + $0x13c] sm:$0xf]
        %v3086 = vld [vmem:[#allocation13 + $0x140] sm:$0xf]
        %v3087 = vld [vmem:[#allocation13 + $0x144] sm:$0xf]
        %v3088 = vld [vmem:[#allocation13 + $0x148] sm:$0xf]
        %v3089 = vld [vmem:[#allocation13 + $0x14c] sm:$0xf]
        %v3090 = vld [vmem:[#allocation13 + $0x150] sm:$0xf]
        %v3091 = vld [vmem:[#allocation13 + $0x154] sm:$0xf]
        %v3092 = vld [vmem:[#allocation13 + $0x158] sm:$0xf]
        %v3093 = vld [vmem:[#allocation13 + $0x15c] sm:$0xf]
        %v3094 = vld [vmem:[#allocation13 + $0x160] sm:$0xf]
        %v3095 = vld [vmem:[#allocation13 + $0x164] sm:$0xf]
        %v3096 = vld [vmem:[#allocation13 + $0x168] sm:$0xf]
        %v3097 = vld [vmem:[#allocation13 + $0x16c] sm:$0xf]
        %v3098 = vld [vmem:[#allocation13 + $0x170] sm:$0xf]
        %v3099 = vld [vmem:[#allocation13 + $0x174] sm:$0xf]
        %v3100 = vld [vmem:[#allocation13 + $0x178] sm:$0xf]
        %v3101 = vld [vmem:[#allocation13 + $0x17c] sm:$0xf]
        %v3102 = vld [vmem:[#allocation13 + $0x180] sm:$0xf]
        %v3103 = vld [vmem:[#allocation13 + $0x184] sm:$0xf]
        %v3104 = vld [vmem:[#allocation13 + $0x188] sm:$0xf]
        %v3105 = vld [vmem:[#allocation13 + $0x18c] sm:$0xf]
        %v3106 = vld [vmem:[#allocation13 + $0x190] sm:$0xf]
        %v3107 = vld [vmem:[#allocation13 + $0x194] sm:$0xf]
        %v3108 = vld [vmem:[#allocation13 + $0x198] sm:$0xf]
        %v3109 = vld [vmem:[#allocation13 + $0x19c] sm:$0xf]
        %v3110 = vld [vmem:[#allocation13 + $0x1a0] sm:$0xf]
        %v3111 = vld [vmem:[#allocation13 + $0x1a4] sm:$0xf]
        %v3112 = vld [vmem:[#allocation13 + $0x1a8] sm:$0xf]
        %v3113 = vld [vmem:[#allocation13 + $0x1ac] sm:$0xf]
        %v3114 = vld [vmem:[#allocation13 + $0x1b0] sm:$0xf]
        %v3115 = vld [vmem:[#allocation13 + $0x1b4] sm:$0xf]
        %v3116 = vld [vmem:[#allocation13 + $0x1b8] sm:$0xf]
        %v3117 = vld [vmem:[#allocation13 + $0x1bc] sm:$0xf]
        %v3118 = vld [vmem:[#allocation13 + $0x1c0] sm:$0xf]
        %v3119 = vld [vmem:[#allocation13 + $0x1c4] sm:$0xf]
        %v3120 = vld [vmem:[#allocation13 + $0x1c8] sm:$0xf]
        %v3121 = vld [vmem:[#allocation13 + $0x1cc] sm:$0xf]
        %v3122 = vld [vmem:[#allocation13 + $0x1d0] sm:$0xf]
        %v3123 = vld [vmem:[#allocation13 + $0x1d4] sm:$0xf]
        %v3124 = vld [vmem:[#allocation13 + $0x1d8] sm:$0xf]
        %v3125 = vld [vmem:[#allocation13 + $0x1dc] sm:$0xf]
        %v3126 = vld [vmem:[#allocation13 + $0x1e0] sm:$0xf]
        %v3127 = vld [vmem:[#allocation13 + $0x1e4] sm:$0xf]
        %v3128 = vld [vmem:[#allocation13 + $0x1e8] sm:$0xf]
        %v3129 = vld [vmem:[#allocation13 + $0x1ec] sm:$0xf]
        %v3130 = vld [vmem:[#allocation13 + $0x1f0] sm:$0xf]
        %v3131 = vld [vmem:[#allocation13 + $0x1f4] sm:$0xf]
        %v3132 = vld [vmem:[#allocation13 + $0x1f8] sm:$0xf]
        %v3133 = vld [vmem:[#allocation13 + $0x1fc] sm:$0xf]
        %v3134 = vld [vmem:[#allocation13 + $0x200] sm:$0xf]
        %v3135 = vld [vmem:[#allocation13 + $0x204] sm:$0xf]
        %v3136 = vld [vmem:[#allocation13 + $0x208] sm:$0xf]
        %v3137 = vld [vmem:[#allocation13 + $0x20c] sm:$0xf]
        %v3138 = vld [vmem:[#allocation13 + $0x210] sm:$0xf]
        %v3139 = vld [vmem:[#allocation13 + $0x214] sm:$0xf]
        %v3140 = vld [vmem:[#allocation13 + $0x218] sm:$0xf]
        %v3141 = vld [vmem:[#allocation13 + $0x21c] sm:$0xf]
        %v3142 = vld [vmem:[#allocation13 + $0x220] sm:$0xf]
        %v3143 = vld [vmem:[#allocation13 + $0x224] sm:$0xf]
        %v3144 = vld [vmem:[#allocation13 + $0x228] sm:$0xf]
        %v3145 = vld [vmem:[#allocation13 + $0x22c] sm:$0xf]
        %v3146 = vld [vmem:[#allocation13 + $0x230] sm:$0xf]
        %v3147 = vld [vmem:[#allocation13 + $0x234] sm:$0xf]
        %v3148 = vld [vmem:[#allocation13 + $0x238] sm:$0xf]
        %v3149 = vld [vmem:[#allocation13 + $0x23c] sm:$0xf]
        %v3151 = vlaneseq
        %v3152 = vshrl.u32 %v3151, 7
        %v3153 = vsub.s32 0, %v3152
        %v3154 = vrot.slane %v2252, %v3153
        %v3300 = vunpack.c.l.b16 %v3006
        %v3301 = vunpack.c.l.b16 %v3007
        %v3302 = vunpack.c.l.b16 %v3008
        %v3303 = vunpack.c.l.b16 %v3009
        %v3304 = vunpack.c.l.b16 %v3010
        %v3305 = vunpack.c.l.b16 %v3011
        %v3306 = vunpack.c.l.b16 %v3012
        %v3307 = vunpack.c.l.b16 %v3013
        %v3308 = vunpack.c.l.b16 %v3014
        %v3309 = vunpack.c.l.b16 %v3015
        %v3310 = vunpack.c.l.b16 %v3016
        %v3311 = vunpack.c.l.b16 %v3017
        %v3312 = vunpack.c.l.b16 %v3018
        %v3313 = vunpack.c.l.b16 %v3019
        %v3314 = vunpack.c.l.b16 %v3020
        %v3315 = vunpack.c.l.b16 %v3021
        %v3316 = vunpack.c.l.b16 %v3022
        %v3317 = vunpack.c.l.b16 %v3023
        %v3318 = vunpack.c.l.b16 %v3024
        %v3319 = vunpack.c.l.b16 %v3025
        %v3320 = vunpack.c.l.b16 %v3026
        %v3321 = vunpack.c.l.b16 %v3027
        %v3322 = vunpack.c.l.b16 %v3028
        %v3323 = vunpack.c.l.b16 %v3029
        %v3324 = vunpack.c.l.b16 %v3030
        %v3325 = vunpack.c.l.b16 %v3031
        %v3326 = vunpack.c.l.b16 %v3032
        %v3327 = vunpack.c.l.b16 %v3033
        %v3328 = vunpack.c.l.b16 %v3034
        %v3329 = vunpack.c.l.b16 %v3035
        %v3330 = vunpack.c.l.b16 %v3036
        %v3331 = vunpack.c.l.b16 %v3037
        %v3332 = vunpack.c.l.b16 %v3038
        %v3333 = vunpack.c.l.b16 %v3039
        %v3334 = vunpack.c.l.b16 %v3040
        %v3335 = vunpack.c.l.b16 %v3041
        %v3336 = vunpack.c.l.b16 %v3042
        %v3337 = vunpack.c.l.b16 %v3043
        %v3338 = vunpack.c.l.b16 %v3044
        %v3339 = vunpack.c.l.b16 %v3045
        %v3340 = vunpack.c.l.b16 %v3046
        %v3341 = vunpack.c.l.b16 %v3047
        %v3342 = vunpack.c.l.b16 %v3048
        %v3343 = vunpack.c.l.b16 %v3049
        %v3344 = vunpack.c.l.b16 %v3050
        %v3345 = vunpack.c.l.b16 %v3051
        %v3346 = vunpack.c.l.b16 %v3052
        %v3347 = vunpack.c.l.b16 %v3053
        %v3348 = vunpack.c.l.b16 %v3054
        %v3349 = vunpack.c.l.b16 %v3055
        %v3350 = vunpack.c.l.b16 %v3056
        %v3351 = vunpack.c.l.b16 %v3057
        %v3352 = vunpack.c.l.b16 %v3058
        %v3353 = vunpack.c.l.b16 %v3059
        %v3354 = vunpack.c.l.b16 %v3060
        %v3355 = vunpack.c.l.b16 %v3061
        %v3356 = vunpack.c.l.b16 %v3062
        %v3357 = vunpack.c.l.b16 %v3063
        %v3358 = vunpack.c.l.b16 %v3064
        %v3359 = vunpack.c.l.b16 %v3065
        %v3360 = vunpack.c.l.b16 %v3066
        %v3361 = vunpack.c.l.b16 %v3067
        %v3362 = vunpack.c.l.b16 %v3068
        %v3363 = vunpack.c.l.b16 %v3069
        %v3364 = vunpack.c.l.b16 %v3070
        %v3365 = vunpack.c.l.b16 %v3071
        %v3366 = vunpack.c.l.b16 %v3072
        %v3367 = vunpack.c.l.b16 %v3073
        %v3368 = vunpack.c.l.b16 %v3074
        %v3369 = vunpack.c.l.b16 %v3075
        %v3370 = vunpack.c.l.b16 %v3076
        %v3371 = vunpack.c.l.b16 %v3077
        %v3372 = vunpack.c.l.b16 %v3078
        %v3373 = vunpack.c.l.b16 %v3079
        %v3374 = vunpack.c.l.b16 %v3080
        %v3375 = vunpack.c.l.b16 %v3081
        %v3376 = vunpack.c.l.b16 %v3082
        %v3377 = vunpack.c.l.b16 %v3083
        %v3378 = vunpack.c.l.b16 %v3084
        %v3379 = vunpack.c.l.b16 %v3085
        %v3380 = vunpack.c.l.b16 %v3086
        %v3381 = vunpack.c.l.b16 %v3087
        %v3382 = vunpack.c.l.b16 %v3088
        %v3383 = vunpack.c.l.b16 %v3089
        %v3384 = vunpack.c.l.b16 %v3090
        %v3385 = vunpack.c.l.b16 %v3091
        %v3386 = vunpack.c.l.b16 %v3092
        %v3387 = vunpack.c.l.b16 %v3093
        %v3388 = vunpack.c.l.b16 %v3094
        %v3389 = vunpack.c.l.b16 %v3095
        %v3390 = vunpack.c.l.b16 %v3096
        %v3391 = vunpack.c.l.b16 %v3097
        %v3392 = vunpack.c.l.b16 %v3098
        %v3393 = vunpack.c.l.b16 %v3099
        %v3394 = vunpack.c.l.b16 %v3100
        %v3395 = vunpack.c.l.b16 %v3101
        %v3396 = vunpack.c.l.b16 %v3102
        %v3397 = vunpack.c.l.b16 %v3103
        %v3398 = vunpack.c.l.b16 %v3104
        %v3399 = vunpack.c.l.b16 %v3105
        %v3400 = vunpack.c.l.b16 %v3106
        %v3401 = vunpack.c.l.b16 %v3107
        %v3402 = vunpack.c.l.b16 %v3108
        %v3403 = vunpack.c.l.b16 %v3109
        %v3404 = vunpack.c.l.b16 %v3110
        %v3405 = vunpack.c.l.b16 %v3111
        %v3406 = vunpack.c.l.b16 %v3112
        %v3407 = vunpack.c.l.b16 %v3113
        %v3408 = vunpack.c.l.b16 %v3114
        %v3409 = vunpack.c.l.b16 %v3115
        %v3410 = vunpack.c.l.b16 %v3116
        %v3411 = vunpack.c.l.b16 %v3117
        %v3412 = vunpack.c.l.b16 %v3118
        %v3413 = vunpack.c.l.b16 %v3119
        %v3414 = vunpack.c.l.b16 %v3120
        %v3415 = vunpack.c.l.b16 %v3121
        %v3416 = vunpack.c.l.b16 %v3122
        %v3417 = vunpack.c.l.b16 %v3123
        %v3418 = vunpack.c.l.b16 %v3124
        %v3419 = vunpack.c.l.b16 %v3125
        %v3420 = vunpack.c.l.b16 %v3126
        %v3421 = vunpack.c.l.b16 %v3127
        %v3422 = vunpack.c.l.b16 %v3128
        %v3423 = vunpack.c.l.b16 %v3129
        %v3424 = vunpack.c.l.b16 %v3130
        %v3425 = vunpack.c.l.b16 %v3131
        %v3426 = vunpack.c.l.b16 %v3132
        %v3427 = vunpack.c.l.b16 %v3133
        %v3428 = vunpack.c.l.b16 %v3134
        %v3429 = vunpack.c.l.b16 %v3135
        %v3430 = vunpack.c.l.b16 %v3136
        %v3431 = vunpack.c.l.b16 %v3137
        %v3432 = vunpack.c.l.b16 %v3138
        %v3433 = vunpack.c.l.b16 %v3139
        %v3434 = vunpack.c.l.b16 %v3140
        %v3435 = vunpack.c.l.b16 %v3141
        %v3436 = vunpack.c.l.b16 %v3142
        %v3437 = vunpack.c.l.b16 %v3143
        %v3438 = vunpack.c.l.b16 %v3144
        %v3439 = vunpack.c.l.b16 %v3145
        %v3440 = vunpack.c.l.b16 %v3146
        %v3441 = vunpack.c.l.b16 %v3147
        %v3442 = vunpack.c.l.b16 %v3148
        %v3443 = vunpack.c.l.b16 %v3149
        %v3444 = vpack.c.b16 %v3301, %v3300
        %v3445 = vpack.c.b16 %v3303, %v3302
        %v3446 = vpack.c.b16 %v3305, %v3304
        %v3447 = vpack.c.b16 %v3307, %v3306
        %v3448 = vpack.c.b16 %v3309, %v3308
        %v3449 = vpack.c.b16 %v3311, %v3310
        %v3450 = vpack.c.b16 %v3313, %v3312
        %v3451 = vpack.c.b16 %v3315, %v3314
        %v3452 = vpack.c.b16 %v3317, %v3316
        %v3453 = vpack.c.b16 %v3319, %v3318
        %v3454 = vpack.c.b16 %v3321, %v3320
        %v3455 = vpack.c.b16 %v3323, %v3322
        %v3456 = vpack.c.b16 %v3325, %v3324
        %v3457 = vpack.c.b16 %v3327, %v3326
        %v3458 = vpack.c.b16 %v3329, %v3328
        %v3459 = vpack.c.b16 %v3331, %v3330
        %v3460 = vpack.c.b16 %v3333, %v3332
        %v3461 = vpack.c.b16 %v3335, %v3334
        %v3462 = vpack.c.b16 %v3337, %v3336
        %v3463 = vpack.c.b16 %v3339, %v3338
        %v3464 = vpack.c.b16 %v3341, %v3340
        %v3465 = vpack.c.b16 %v3343, %v3342
        %v3466 = vpack.c.b16 %v3345, %v3344
        %v3467 = vpack.c.b16 %v3347, %v3346
        %v3468 = vpack.c.b16 %v3349, %v3348
        %v3469 = vpack.c.b16 %v3351, %v3350
        %v3470 = vpack.c.b16 %v3353, %v3352
        %v3471 = vpack.c.b16 %v3355, %v3354
        %v3472 = vpack.c.b16 %v3357, %v3356
        %v3473 = vpack.c.b16 %v3359, %v3358
        %v3474 = vpack.c.b16 %v3361, %v3360
        %v3475 = vpack.c.b16 %v3363, %v3362
        %v3476 = vpack.c.b16 %v3365, %v3364
        %v3477 = vpack.c.b16 %v3367, %v3366
        %v3478 = vpack.c.b16 %v3369, %v3368
        %v3479 = vpack.c.b16 %v3371, %v3370
        %v3480 = vpack.c.b16 %v3373, %v3372
        %v3481 = vpack.c.b16 %v3375, %v3374
        %v3482 = vpack.c.b16 %v3377, %v3376
        %v3483 = vpack.c.b16 %v3379, %v3378
        %v3484 = vpack.c.b16 %v3381, %v3380
        %v3485 = vpack.c.b16 %v3383, %v3382
        %v3486 = vpack.c.b16 %v3385, %v3384
        %v3487 = vpack.c.b16 %v3387, %v3386
        %v3488 = vpack.c.b16 %v3389, %v3388
        %v3489 = vpack.c.b16 %v3391, %v3390
        %v3490 = vpack.c.b16 %v3393, %v3392
        %v3491 = vpack.c.b16 %v3395, %v3394
        %v3492 = vpack.c.b16 %v3397, %v3396
        %v3493 = vpack.c.b16 %v3399, %v3398
        %v3494 = vpack.c.b16 %v3401, %v3400
        %v3495 = vpack.c.b16 %v3403, %v3402
        %v3496 = vpack.c.b16 %v3405, %v3404
        %v3497 = vpack.c.b16 %v3407, %v3406
        %v3498 = vpack.c.b16 %v3409, %v3408
        %v3499 = vpack.c.b16 %v3411, %v3410
        %v3500 = vpack.c.b16 %v3413, %v3412
        %v3501 = vpack.c.b16 %v3415, %v3414
        %v3502 = vpack.c.b16 %v3417, %v3416
        %v3503 = vpack.c.b16 %v3419, %v3418
        %v3504 = vpack.c.b16 %v3421, %v3420
        %v3505 = vpack.c.b16 %v3423, %v3422
        %v3506 = vpack.c.b16 %v3425, %v3424
        %v3507 = vpack.c.b16 %v3427, %v3426
        %v3508 = vpack.c.b16 %v3429, %v3428
        %v3509 = vpack.c.b16 %v3431, %v3430
        %v3510 = vpack.c.b16 %v3433, %v3432
        %v3511 = vpack.c.b16 %v3435, %v3434
        %v3512 = vpack.c.b16 %v3437, %v3436
        %v3513 = vpack.c.b16 %v3439, %v3438
        %v3514 = vpack.c.b16 %v3441, %v3440
        %v3515 = vpack.c.b16 %v3443, %v3442
        %3588 = vmatprep.subr.bf16.mxu0 0
        %3589 = vmatpush1.bf16.msra.mxu0 %v3444
        %3590 = vmatprep.subr.bf16.mxu0 0
        %3591 = vmatpush1.bf16.msra.mxu0 %v3445
        %3592 = vmatprep.subr.bf16.mxu0 0
        %3593 = vmatpush1.bf16.msra.mxu0 %v3446
        %3594 = vmatprep.subr.bf16.mxu0 0
        %3595 = vmatpush1.bf16.msra.mxu0 %v3447
        %3596 = vmatprep.subr.bf16.mxu0 0
        %3597 = vmatpush1.bf16.msra.mxu0 %v3448
        %3598 = vmatprep.subr.bf16.mxu0 0
        %3599 = vmatpush1.bf16.msra.mxu0 %v3449
        %3600 = vmatprep.subr.bf16.mxu0 0
        %3601 = vmatpush1.bf16.msra.mxu0 %v3450
        %3602 = vmatprep.subr.bf16.mxu0 0
        %3603 = vmatpush1.bf16.msra.mxu0 %v3451
        %3604 = vmatprep.subr.bf16.mxu0 0
        %3605 = vmatpush1.bf16.msra.mxu0 %v3452
        %3606 = vmatprep.subr.bf16.mxu0 0
        %3607 = vmatpush1.bf16.msra.mxu0 %v3453
        %3608 = vmatprep.subr.bf16.mxu0 0
        %3609 = vmatpush1.bf16.msra.mxu0 %v3454
        %3610 = vmatprep.subr.bf16.mxu0 0
        %3611 = vmatpush1.bf16.msra.mxu0 %v3455
        %3612 = vmatprep.subr.bf16.mxu0 0
        %3613 = vmatpush1.bf16.msra.mxu0 %v3456
        %3614 = vmatprep.subr.bf16.mxu0 0
        %3615 = vmatpush1.bf16.msra.mxu0 %v3457
        %3616 = vmatprep.subr.bf16.mxu0 0
        %3617 = vmatpush1.bf16.msra.mxu0 %v3458
        %3618 = vmatprep.subr.bf16.mxu0 0
        %3619 = vmatpush1.bf16.msra.mxu0 %v3459
        %3620 = vmatprep.mubr.bf16.mxu0 %v2863
        %3621 = vmatmul.mubr.bf16.gmra.mrb[0].mxu0 %v2862
        %v3622 = vpop.f32.mrb[0].mxu0
        %v3623 = vadd.f32 %v3154, %v3622
        %v3624 = vpop.f32.mrb[0].mxu0
        %v3625 = vpop.f32.mrb[0].mxu0
        %v3626 = vadd.f32 %v3154, %v3625
        %v3627 = vpop.f32.mrb[0].mxu0
        %3628 = vmatprep.mubr.bf16.mxu0 %v2872
        %3629 = vmatmul.mubr.bf16.gmra.mrb[0].mxu0 %v2871
        %v3630 = vpop.f32.mrb[0].mxu0
        %v3631 = vadd.f32 %v3154, %v3630
        %v3632 = vpop.f32.mrb[0].mxu0
        %v3633 = vpop.f32.mrb[0].mxu0
        %v3634 = vadd.f32 %v3154, %v3633
        %v3635 = vpop.f32.mrb[0].mxu0
        %3636 = vmatprep.mubr.bf16.mxu0 %v2881
        %3637 = vmatmul.mubr.bf16.gmra.mrb[0].mxu0 %v2880
        %v3638 = vpop.f32.mrb[0].mxu0
        %v3639 = vadd.f32 %v3154, %v3638
        %v3640 = vpop.f32.mrb[0].mxu0
        %v3641 = vpop.f32.mrb[0].mxu0
        %v3642 = vadd.f32 %v3154, %v3641
        %v3643 = vpop.f32.mrb[0].mxu0
        %3644 = vmatprep.mubr.bf16.mxu0 %v2890
        %3645 = vmatmul.mubr.bf16.gmra.mrb[0].mxu0 %v2889
        %v3646 = vpop.f32.mrb[0].mxu0
        %v3647 = vadd.f32 %v3154, %v3646
        %v3648 = vpop.f32.mrb[0].mxu0
        %v3649 = vpop.f32.mrb[0].mxu0
        %v3650 = vadd.f32 %v3154, %v3649
        %v3651 = vpop.f32.mrb[0].mxu0
        %3652 = vmatprep.mubr.bf16.mxu0 %v2899
        %3653 = vmatmul.mubr.bf16.gmra.mrb[0].mxu0 %v2898
        %v3654 = vpop.f32.mrb[0].mxu0
        %v3655 = vadd.f32 %v3154, %v3654
        %v3656 = vpop.f32.mrb[0].mxu0
        %v3657 = vpop.f32.mrb[0].mxu0
        %v3658 = vadd.f32 %v3154, %v3657
        %v3659 = vpop.f32.mrb[0].mxu0
        %3660 = vmatprep.mubr.bf16.mxu0 %v2908
        %3661 = vmatmul.mubr.bf16.gmra.mrb[0].mxu0 %v2907
        %v3662 = vpop.f32.mrb[0].mxu0
        %v3663 = vadd.f32 %v3154, %v3662
        %v3664 = vpop.f32.mrb[0].mxu0
        %v3665 = vpop.f32.mrb[0].mxu0
        %v3666 = vadd.f32 %v3154, %v3665
        %v3667 = vpop.f32.mrb[0].mxu0
        %3668 = vmatprep.mubr.bf16.mxu0 %v2917
        %3669 = vmatmul.mubr.bf16.gmra.mrb[0].mxu0 %v2916
        %v3670 = vpop.f32.mrb[0].mxu0
        %v3671 = vadd.f32 %v3154, %v3670
        %v3672 = vpop.f32.mrb[0].mxu0
        %v3673 = vpop.f32.mrb[0].mxu0
        %v3674 = vadd.f32 %v3154, %v3673
        %v3675 = vpop.f32.mrb[0].mxu0
        %3676 = vmatprep.mubr.bf16.mxu0 %v2926
        %3677 = vmatmul.mubr.bf16.gmra.mrb[0].mxu0 %v2925
        %v3678 = vpop.f32.mrb[0].mxu0
        %v3679 = vadd.f32 %v3154, %v3678
        %v3680 = vpop.f32.mrb[0].mxu0
        %v3681 = vpop.f32.mrb[0].mxu0
        %v3682 = vadd.f32 %v3154, %v3681
        %v3683 = vpop.f32.mrb[0].mxu0
        %3684 = vmatprep.mubr.bf16.mxu0 %v2935
        %3685 = vmatmul.mubr.bf16.gmra.mrb[0].mxu0 %v2934
        %v3686 = vpop.f32.mrb[0].mxu0
        %v3687 = vadd.f32 %v3154, %v3686
        %v3688 = vpop.f32.mrb[0].mxu0
        %v3689 = vpop.f32.mrb[0].mxu0
        %v3690 = vadd.f32 %v3154, %v3689
        %v3691 = vpop.f32.mrb[0].mxu0
        %3692 = vmatprep.mubr.bf16.mxu0 %v2944
        %3693 = vmatmul.mubr.bf16.gmra.mrb[0].mxu0 %v2943
        %v3694 = vpop.f32.mrb[0].mxu0
        %v3695 = vadd.f32 %v3154, %v3694
        %v3696 = vpop.f32.mrb[0].mxu0
        %v3697 = vpop.f32.mrb[0].mxu0
        %v3698 = vadd.f32 %v3154, %v3697
        %v3699 = vpop.f32.mrb[0].mxu0
        %3700 = vmatprep.mubr.bf16.mxu0 %v2953
        %3701 = vmatmul.mubr.bf16.gmra.mrb[0].mxu0 %v2952
        %v3702 = vpop.f32.mrb[0].mxu0
        %v3703 = vadd.f32 %v3154, %v3702
        %v3704 = vpop.f32.mrb[0].mxu0
        %v3705 = vpop.f32.mrb[0].mxu0
        %v3706 = vadd.f32 %v3154, %v3705
        %v3707 = vpop.f32.mrb[0].mxu0
        %3708 = vmatprep.mubr.bf16.mxu0 %v2962
        %3709 = vmatmul.mubr.bf16.gmra.mrb[0].mxu0 %v2961
        %v3710 = vpop.f32.mrb[0].mxu0
        %v3711 = vadd.f32 %v3154, %v3710
        %v3712 = vpop.f32.mrb[0].mxu0
        %v3713 = vpop.f32.mrb[0].mxu0
        %v3714 = vadd.f32 %v3154, %v3713
        %v3715 = vpop.f32.mrb[0].mxu0
        %3716 = vmatprep.mubr.bf16.mxu0 %v2971
        %3717 = vmatmul.mubr.bf16.gmra.mrb[0].mxu0 %v2970
        %v3718 = vpop.f32.mrb[0].mxu0
        %v3719 = vadd.f32 %v3154, %v3718
        %v3720 = vpop.f32.mrb[0].mxu0
        %v3721 = vpop.f32.mrb[0].mxu0
        %v3722 = vadd.f32 %v3154, %v3721
        %v3723 = vpop.f32.mrb[0].mxu0
        %3724 = vmatprep.mubr.bf16.mxu0 %v2980
        %3725 = vmatmul.mubr.bf16.gmra.mrb[0].mxu0 %v2979
        %v3726 = vpop.f32.mrb[0].mxu0
        %v3727 = vadd.f32 %v3154, %v3726
        %v3728 = vpop.f32.mrb[0].mxu0
        %v3729 = vpop.f32.mrb[0].mxu0
        %v3730 = vadd.f32 %v3154, %v3729
        %v3731 = vpop.f32.mrb[0].mxu0
        %3732 = vmatprep.mubr.bf16.mxu0 %v2989
        %3733 = vmatmul.mubr.bf16.gmra.mrb[0].mxu0 %v2988
        %v3734 = vpop.f32.mrb[0].mxu0
        %v3735 = vadd.f32 %v3154, %v3734
        %v3736 = vpop.f32.mrb[0].mxu0
        %v3737 = vpop.f32.mrb[0].mxu0
        %v3738 = vadd.f32 %v3154, %v3737
        %v3739 = vpop.f32.mrb[0].mxu0
        %3740 = vmatprep.mubr.bf16.mxu0 %v2998
        %3741 = vmatmul.mubr.bf16.gmra.mrb[0].mxu0 %v2997
        %v3742 = vpop.f32.mrb[0].mxu0
        %v3743 = vadd.f32 %v3154, %v3742
        %v3744 = vpop.f32.mrb[0].mxu0
        %v3745 = vpop.f32.mrb[0].mxu0
        %v3746 = vadd.f32 %v3154, %v3745
        %v3747 = vpop.f32.mrb[0].mxu0
        %3748 = vdwg.mxu0
        %3749 = vmatprep.subr.bf16.mxu0 0
        %3750 = vmatpush1.bf16.msra.mxu0 %v3460
        %3751 = vmatprep.subr.bf16.mxu0 0
        %3752 = vmatpush1.bf16.msra.mxu0 %v3461
        %3753 = vmatprep.subr.bf16.mxu0 0
        %3754 = vmatpush1.bf16.msra.mxu0 %v3462
        %3755 = vmatprep.subr.bf16.mxu0 0
        %3756 = vmatpush1.bf16.msra.mxu0 %v3463
        %3757 = vmatprep.subr.bf16.mxu0 0
        %3758 = vmatpush1.bf16.msra.mxu0 %v3464
        %3759 = vmatprep.subr.bf16.mxu0 0
        %3760 = vmatpush1.bf16.msra.mxu0 %v3465
        %3761 = vmatprep.subr.bf16.mxu0 0
        %3762 = vmatpush1.bf16.msra.mxu0 %v3466
        %3763 = vmatprep.subr.bf16.mxu0 0
        %3764 = vmatpush1.bf16.msra.mxu0 %v3467
        %3765 = vmatprep.subr.bf16.mxu0 0
        %3766 = vmatpush1.bf16.msra.mxu0 %v3468
        %3767 = vmatprep.subr.bf16.mxu0 0
        %3768 = vmatpush1.bf16.msra.mxu0 %v3469
        %3769 = vmatprep.subr.bf16.mxu0 0
        %3770 = vmatpush1.bf16.msra.mxu0 %v3470
        %3771 = vmatprep.subr.bf16.mxu0 0
        %3772 = vmatpush1.bf16.msra.mxu0 %v3471
        %3773 = vmatprep.subr.bf16.mxu0 0
        %3774 = vmatpush1.bf16.msra.mxu0 %v3472
        %3775 = vmatprep.subr.bf16.mxu0 0
        %3776 = vmatpush1.bf16.msra.mxu0 %v3473
        %3777 = vmatprep.subr.bf16.mxu0 0
        %3778 = vmatpush1.bf16.msra.mxu0 %v3474
        %3779 = vmatprep.subr.bf16.mxu0 0
        %3780 = vmatpush1.bf16.msra.mxu0 %v3475
        %3781 = vmatprep.mubr.bf16.mxu0 %v2865
        %3782 = vmatmul.mubr.bf16.gmra.mrb[0].mxu0 %v2864
        %v3783 = vpop.f32.mrb[0].mxu0
        %v3784 = vadd.f32 %v3623, %v3783
        %v3785 = vpop.f32.mrb[0].mxu0
        %v3786 = vpop.f32.mrb[0].mxu0
        %v3787 = vadd.f32 %v3626, %v3786
        %v3788 = vpop.f32.mrb[0].mxu0
        %3789 = vmatprep.mubr.bf16.mxu0 %v2874
        %3790 = vmatmul.mubr.bf16.gmra.mrb[0].mxu0 %v2873
        %v3791 = vpop.f32.mrb[0].mxu0
        %v3792 = vadd.f32 %v3631, %v3791
        %v3793 = vpop.f32.mrb[0].mxu0
        %v3794 = vpop.f32.mrb[0].mxu0
        %v3795 = vadd.f32 %v3634, %v3794
        %v3796 = vpop.f32.mrb[0].mxu0
        %3797 = vmatprep.mubr.bf16.mxu0 %v2883
        %3798 = vmatmul.mubr.bf16.gmra.mrb[0].mxu0 %v2882
        %v3799 = vpop.f32.mrb[0].mxu0
        %v3800 = vadd.f32 %v3639, %v3799
        %v3801 = vpop.f32.mrb[0].mxu0
        %v3802 = vpop.f32.mrb[0].mxu0
        %v3803 = vadd.f32 %v3642, %v3802
        %v3804 = vpop.f32.mrb[0].mxu0
        %3805 = vmatprep.mubr.bf16.mxu0 %v2892
        %3806 = vmatmul.mubr.bf16.gmra.mrb[0].mxu0 %v2891
        %v3807 = vpop.f32.mrb[0].mxu0
        %v3808 = vadd.f32 %v3647, %v3807
        %v3809 = vpop.f32.mrb[0].mxu0
        %v3810 = vpop.f32.mrb[0].mxu0
        %v3811 = vadd.f32 %v3650, %v3810
        %v3812 = vpop.f32.mrb[0].mxu0
        %3813 = vmatprep.mubr.bf16.mxu0 %v2901
        %3814 = vmatmul.mubr.bf16.gmra.mrb[0].mxu0 %v2900
        %v3815 = vpop.f32.mrb[0].mxu0
        %v3816 = vadd.f32 %v3655, %v3815
        %v3817 = vpop.f32.mrb[0].mxu0
        %v3818 = vpop.f32.mrb[0].mxu0
        %v3819 = vadd.f32 %v3658, %v3818
        %v3820 = vpop.f32.mrb[0].mxu0
        %3821 = vmatprep.mubr.bf16.mxu0 %v2910
        %3822 = vmatmul.mubr.bf16.gmra.mrb[0].mxu0 %v2909
        %v3823 = vpop.f32.mrb[0].mxu0
        %v3824 = vadd.f32 %v3663, %v3823
        %v3825 = vpop.f32.mrb[0].mxu0
        %v3826 = vpop.f32.mrb[0].mxu0
        %v3827 = vadd.f32 %v3666, %v3826
        %v3828 = vpop.f32.mrb[0].mxu0
        %3829 = vmatprep.mubr.bf16.mxu0 %v2919
        %3830 = vmatmul.mubr.bf16.gmra.mrb[0].mxu0 %v2918
        %v3831 = vpop.f32.mrb[0].mxu0
        %v3832 = vadd.f32 %v3671, %v3831
        %v3833 = vpop.f32.mrb[0].mxu0
        %v3834 = vpop.f32.mrb[0].mxu0
        %v3835 = vadd.f32 %v3674, %v3834
        %v3836 = vpop.f32.mrb[0].mxu0
        %3837 = vmatprep.mubr.bf16.mxu0 %v2928
        %3838 = vmatmul.mubr.bf16.gmra.mrb[0].mxu0 %v2927
        %v3839 = vpop.f32.mrb[0].mxu0
        %v3840 = vadd.f32 %v3679, %v3839
        %v3841 = vpop.f32.mrb[0].mxu0
        %v3842 = vpop.f32.mrb[0].mxu0
        %v3843 = vadd.f32 %v3682, %v3842
        %v3844 = vpop.f32.mrb[0].mxu0
        %3845 = vmatprep.mubr.bf16.mxu0 %v2937
        %3846 = vmatmul.mubr.bf16.gmra.mrb[0].mxu0 %v2936
        %v3847 = vpop.f32.mrb[0].mxu0
        %v3848 = vadd.f32 %v3687, %v3847
        %v3849 = vpop.f32.mrb[0].mxu0
        %v3850 = vpop.f32.mrb[0].mxu0
        %v3851 = vadd.f32 %v3690, %v3850
        %v3852 = vpop.f32.mrb[0].mxu0
        %3853 = vmatprep.mubr.bf16.mxu0 %v2946
        %3854 = vmatmul.mubr.bf16.gmra.mrb[0].mxu0 %v2945
        %v3855 = vpop.f32.mrb[0].mxu0
        %v3856 = vadd.f32 %v3695, %v3855
        %v3857 = vpop.f32.mrb[0].mxu0
        %v3858 = vpop.f32.mrb[0].mxu0
        %v3859 = vadd.f32 %v3698, %v3858
        %v3860 = vpop.f32.mrb[0].mxu0
        %3861 = vmatprep.mubr.bf16.mxu0 %v2955
        %3862 = vmatmul.mubr.bf16.gmra.mrb[0].mxu0 %v2954
        %v3863 = vpop.f32.mrb[0].mxu0
        %v3864 = vadd.f32 %v3703, %v3863
        %v3865 = vpop.f32.mrb[0].mxu0
        %v3866 = vpop.f32.mrb[0].mxu0
        %v3867 = vadd.f32 %v3706, %v3866
        %v3868 = vpop.f32.mrb[0].mxu0
        %3869 = vmatprep.mubr.bf16.mxu0 %v2964
        %3870 = vmatmul.mubr.bf16.gmra.mrb[0].mxu0 %v2963
        %v3871 = vpop.f32.mrb[0].mxu0
        %v3872 = vadd.f32 %v3711, %v3871
        %v3873 = vpop.f32.mrb[0].mxu0
        %v3874 = vpop.f32.mrb[0].mxu0
        %v3875 = vadd.f32 %v3714, %v3874
        %v3876 = vpop.f32.mrb[0].mxu0
        %3877 = vmatprep.mubr.bf16.mxu0 %v2973
        %3878 = vmatmul.mubr.bf16.gmra.mrb[0].mxu0 %v2972
        %v3879 = vpop.f32.mrb[0].mxu0
        %v3880 = vadd.f32 %v3719, %v3879
        %v3881 = vpop.f32.mrb[0].mxu0
        %v3882 = vpop.f32.mrb[0].mxu0
        %v3883 = vadd.f32 %v3722, %v3882
        %v3884 = vpop.f32.mrb[0].mxu0
        %3885 = vmatprep.mubr.bf16.mxu0 %v2982
        %3886 = vmatmul.mubr.bf16.gmra.mrb[0].mxu0 %v2981
        %v3887 = vpop.f32.mrb[0].mxu0
        %v3888 = vadd.f32 %v3727, %v3887
        %v3889 = vpop.f32.mrb[0].mxu0
        %v3890 = vpop.f32.mrb[0].mxu0
        %v3891 = vadd.f32 %v3730, %v3890
        %v3892 = vpop.f32.mrb[0].mxu0
        %3893 = vmatprep.mubr.bf16.mxu0 %v2991
        %3894 = vmatmul.mubr.bf16.gmra.mrb[0].mxu0 %v2990
        %v3895 = vpop.f32.mrb[0].mxu0
        %v3896 = vadd.f32 %v3735, %v3895
        %v3897 = vpop.f32.mrb[0].mxu0
        %v3898 = vpop.f32.mrb[0].mxu0
        %v3899 = vadd.f32 %v3738, %v3898
        %v3900 = vpop.f32.mrb[0].mxu0
        %3901 = vmatprep.mubr.bf16.mxu0 %v3000
        %3902 = vmatmul.mubr.bf16.gmra.mrb[0].mxu0 %v2999
        %v3903 = vpop.f32.mrb[0].mxu0
        %v3904 = vadd.f32 %v3743, %v3903
        %v3905 = vpop.f32.mrb[0].mxu0
        %v3906 = vpop.f32.mrb[0].mxu0
        %v3907 = vadd.f32 %v3746, %v3906
        %v3908 = vpop.f32.mrb[0].mxu0
        %3909 = vdwg.mxu0
        %3910 = vmatprep.subr.bf16.mxu0 0
        %3911 = vmatpush1.bf16.msra.mxu0 %v3476
        %3912 = vmatprep.subr.bf16.mxu0 0
        %3913 = vmatpush1.bf16.msra.mxu0 %v3477
        %3914 = vmatprep.subr.bf16.mxu0 0
        %3915 = vmatpush1.bf16.msra.mxu0 %v3478
        %3916 = vmatprep.subr.bf16.mxu0 0
        %3917 = vmatpush1.bf16.msra.mxu0 %v3479
        %3918 = vmatprep.subr.bf16.mxu0 0
        %3919 = vmatpush1.bf16.msra.mxu0 %v3480
        %3920 = vmatprep.subr.bf16.mxu0 0
        %3921 = vmatpush1.bf16.msra.mxu0 %v3481
        %3922 = vmatprep.subr.bf16.mxu0 0
        %3923 = vmatpush1.bf16.msra.mxu0 %v3482
        %3924 = vmatprep.subr.bf16.mxu0 0
        %3925 = vmatpush1.bf16.msra.mxu0 %v3483
        %3926 = vmatprep.subr.bf16.mxu0 0
        %3927 = vmatpush1.bf16.msra.mxu0 %v3484
        %3928 = vmatprep.subr.bf16.mxu0 0
        %3929 = vmatpush1.bf16.msra.mxu0 %v3485
        %3930 = vmatprep.subr.bf16.mxu0 0
        %3931 = vmatpush1.bf16.msra.mxu0 %v3486
        %3932 = vmatprep.subr.bf16.mxu0 0
        %3933 = vmatpush1.bf16.msra.mxu0 %v3487
        %3934 = vmatprep.subr.bf16.mxu0 0
        %3935 = vmatpush1.bf16.msra.mxu0 %v3488
        %3936 = vmatprep.subr.bf16.mxu0 0
        %3937 = vmatpush1.bf16.msra.mxu0 %v3489
        %3938 = vmatprep.subr.bf16.mxu0 0
        %3939 = vmatpush1.bf16.msra.mxu0 %v3490
        %3940 = vmatprep.subr.bf16.mxu0 0
        %3941 = vmatpush1.bf16.msra.mxu0 %v3491
        %3942 = vmatprep.mubr.bf16.mxu0 %v2867
        %3943 = vmatmul.mubr.bf16.gmra.mrb[0].mxu0 %v2866
        %v3944 = vpop.f32.mrb[0].mxu0
        %v3945 = vadd.f32 %v3784, %v3944
        %v3946 = vpop.f32.mrb[0].mxu0
        %v3947 = vpop.f32.mrb[0].mxu0
        %v3948 = vadd.f32 %v3787, %v3947
        %v3949 = vpop.f32.mrb[0].mxu0
        %3950 = vmatprep.mubr.bf16.mxu0 %v2876
        %3951 = vmatmul.mubr.bf16.gmra.mrb[0].mxu0 %v2875
        %v3952 = vpop.f32.mrb[0].mxu0
        %v3953 = vadd.f32 %v3792, %v3952
        %v3954 = vpop.f32.mrb[0].mxu0
        %v3955 = vpop.f32.mrb[0].mxu0
        %v3956 = vadd.f32 %v3795, %v3955
        %v3957 = vpop.f32.mrb[0].mxu0
        %3958 = vmatprep.mubr.bf16.mxu0 %v2885
        %3959 = vmatmul.mubr.bf16.gmra.mrb[0].mxu0 %v2884
        %v3960 = vpop.f32.mrb[0].mxu0
        %v3961 = vadd.f32 %v3800, %v3960
        %v3962 = vpop.f32.mrb[0].mxu0
        %v3963 = vpop.f32.mrb[0].mxu0
        %v3964 = vadd.f32 %v3803, %v3963
        %v3965 = vpop.f32.mrb[0].mxu0
        %3966 = vmatprep.mubr.bf16.mxu0 %v2894
        %3967 = vmatmul.mubr.bf16.gmra.mrb[0].mxu0 %v2893
        %v3968 = vpop.f32.mrb[0].mxu0
        %v3969 = vadd.f32 %v3808, %v3968
        %v3970 = vpop.f32.mrb[0].mxu0
        %v3971 = vpop.f32.mrb[0].mxu0
        %v3972 = vadd.f32 %v3811, %v3971
        %v3973 = vpop.f32.mrb[0].mxu0
        %3974 = vmatprep.mubr.bf16.mxu0 %v2903
        %3975 = vmatmul.mubr.bf16.gmra.mrb[0].mxu0 %v2902
        %v3976 = vpop.f32.mrb[0].mxu0
        %v3977 = vadd.f32 %v3816, %v3976
        %v3978 = vpop.f32.mrb[0].mxu0
        %v3979 = vpop.f32.mrb[0].mxu0
        %v3980 = vadd.f32 %v3819, %v3979
        %v3981 = vpop.f32.mrb[0].mxu0
        %3982 = vmatprep.mubr.bf16.mxu0 %v2912
        %3983 = vmatmul.mubr.bf16.gmra.mrb[0].mxu0 %v2911
        %v3984 = vpop.f32.mrb[0].mxu0
        %v3985 = vadd.f32 %v3824, %v3984
        %v3986 = vpop.f32.mrb[0].mxu0
        %v3987 = vpop.f32.mrb[0].mxu0
        %v3988 = vadd.f32 %v3827, %v3987
        %v3989 = vpop.f32.mrb[0].mxu0
        %3990 = vmatprep.mubr.bf16.mxu0 %v2921
        %3991 = vmatmul.mubr.bf16.gmra.mrb[0].mxu0 %v2920
        %v3992 = vpop.f32.mrb[0].mxu0
        %v3993 = vadd.f32 %v3832, %v3992
        %v3994 = vpop.f32.mrb[0].mxu0
        %v3995 = vpop.f32.mrb[0].mxu0
        %v3996 = vadd.f32 %v3835, %v3995
        %v3997 = vpop.f32.mrb[0].mxu0
        %3998 = vmatprep.mubr.bf16.mxu0 %v2930
        %3999 = vmatmul.mubr.bf16.gmra.mrb[0].mxu0 %v2929
        %v4000 = vpop.f32.mrb[0].mxu0
        %v4001 = vadd.f32 %v3840, %v4000
        %v4002 = vpop.f32.mrb[0].mxu0
        %v4003 = vpop.f32.mrb[0].mxu0
        %v4004 = vadd.f32 %v3843, %v4003
        %v4005 = vpop.f32.mrb[0].mxu0
        %4006 = vmatprep.mubr.bf16.mxu0 %v2939
        %4007 = vmatmul.mubr.bf16.gmra.mrb[0].mxu0 %v2938
        %v4008 = vpop.f32.mrb[0].mxu0
        %v4009 = vadd.f32 %v3848, %v4008
        %v4010 = vpop.f32.mrb[0].mxu0
        %v4011 = vpop.f32.mrb[0].mxu0
        %v4012 = vadd.f32 %v3851, %v4011
        %v4013 = vpop.f32.mrb[0].mxu0
        %4014 = vmatprep.mubr.bf16.mxu0 %v2948
        %4015 = vmatmul.mubr.bf16.gmra.mrb[0].mxu0 %v2947
        %v4016 = vpop.f32.mrb[0].mxu0
        %v4017 = vadd.f32 %v3856, %v4016
        %v4018 = vpop.f32.mrb[0].mxu0
        %v4019 = vpop.f32.mrb[0].mxu0
        %v4020 = vadd.f32 %v3859, %v4019
        %v4021 = vpop.f32.mrb[0].mxu0
        %4022 = vmatprep.mubr.bf16.mxu0 %v2957
        %4023 = vmatmul.mubr.bf16.gmra.mrb[0].mxu0 %v2956
        %v4024 = vpop.f32.mrb[0].mxu0
        %v4025 = vadd.f32 %v3864, %v4024
        %v4026 = vpop.f32.mrb[0].mxu0
        %v4027 = vpop.f32.mrb[0].mxu0
        %v4028 = vadd.f32 %v3867, %v4027
        %v4029 = vpop.f32.mrb[0].mxu0
        %4030 = vmatprep.mubr.bf16.mxu0 %v2966
        %4031 = vmatmul.mubr.bf16.gmra.mrb[0].mxu0 %v2965
        %v4032 = vpop.f32.mrb[0].mxu0
        %v4033 = vadd.f32 %v3872, %v4032
        %v4034 = vpop.f32.mrb[0].mxu0
        %v4035 = vpop.f32.mrb[0].mxu0
        %v4036 = vadd.f32 %v3875, %v4035
        %v4037 = vpop.f32.mrb[0].mxu0
        %4038 = vmatprep.mubr.bf16.mxu0 %v2975
        %4039 = vmatmul.mubr.bf16.gmra.mrb[0].mxu0 %v2974
        %v4040 = vpop.f32.mrb[0].mxu0
        %v4041 = vadd.f32 %v3880, %v4040
        %v4042 = vpop.f32.mrb[0].mxu0
        %v4043 = vpop.f32.mrb[0].mxu0
        %v4044 = vadd.f32 %v3883, %v4043
        %v4045 = vpop.f32.mrb[0].mxu0
        %4046 = vmatprep.mubr.bf16.mxu0 %v2984
        %4047 = vmatmul.mubr.bf16.gmra.mrb[0].mxu0 %v2983
        %v4048 = vpop.f32.mrb[0].mxu0
        %v4049 = vadd.f32 %v3888, %v4048
        %v4050 = vpop.f32.mrb[0].mxu0
        %v4051 = vpop.f32.mrb[0].mxu0
        %v4052 = vadd.f32 %v3891, %v4051
        %v4053 = vpop.f32.mrb[0].mxu0
        %4054 = vmatprep.mubr.bf16.mxu0 %v2993
        %4055 = vmatmul.mubr.bf16.gmra.mrb[0].mxu0 %v2992
        %v4056 = vpop.f32.mrb[0].mxu0
        %v4057 = vadd.f32 %v3896, %v4056
        %v4058 = vpop.f32.mrb[0].mxu0
        %v4059 = vpop.f32.mrb[0].mxu0
        %v4060 = vadd.f32 %v3899, %v4059
        %v4061 = vpop.f32.mrb[0].mxu0
        %4062 = vmatprep.mubr.bf16.mxu0 %v3002
        %4063 = vmatmul.mubr.bf16.gmra.mrb[0].mxu0 %v3001
        %v4064 = vpop.f32.mrb[0].mxu0
        %v4065 = vadd.f32 %v3904, %v4064
        %v4066 = vpop.f32.mrb[0].mxu0
        %v4067 = vpop.f32.mrb[0].mxu0
        %v4068 = vadd.f32 %v3907, %v4067
        %v4069 = vpop.f32.mrb[0].mxu0
        %4070 = vdwg.mxu0
        %4071 = vmatprep.subr.bf16.mxu0 0
        %4072 = vmatpush1.bf16.msra.mxu0 %v3492
        %4073 = vmatprep.subr.bf16.mxu0 0
        %4074 = vmatpush1.bf16.msra.mxu0 %v3493
        %4075 = vmatprep.subr.bf16.mxu0 0
        %4076 = vmatpush1.bf16.msra.mxu0 %v3494
        %4077 = vmatprep.subr.bf16.mxu0 0
        %4078 = vmatpush1.bf16.msra.mxu0 %v3495
        %4079 = vmatprep.subr.bf16.mxu0 0
        %4080 = vmatpush1.bf16.msra.mxu0 %v3496
        %4081 = vmatprep.subr.bf16.mxu0 0
        %4082 = vmatpush1.bf16.msra.mxu0 %v3497
        %4083 = vmatprep.subr.bf16.mxu0 0
        %4084 = vmatpush1.bf16.msra.mxu0 %v3498
        %4085 = vmatprep.subr.bf16.mxu0 0
        %4086 = vmatpush1.bf16.msra.mxu0 %v3499
        %4087 = vmatprep.subr.bf16.mxu0 0
        %4088 = vmatpush1.bf16.msra.mxu0 %v3500
        %4089 = vmatprep.subr.bf16.mxu0 0
        %4090 = vmatpush1.bf16.msra.mxu0 %v3501
        %4091 = vmatprep.subr.bf16.mxu0 0
        %4092 = vmatpush1.bf16.msra.mxu0 %v3502
        %4093 = vmatprep.subr.bf16.mxu0 0
        %4094 = vmatpush1.bf16.msra.mxu0 %v3503
        %4095 = vmatprep.subr.bf16.mxu0 0
        %4096 = vmatpush1.bf16.msra.mxu0 %v3504
        %4097 = vmatprep.subr.bf16.mxu0 0
        %4098 = vmatpush1.bf16.msra.mxu0 %v3505
        %4099 = vmatprep.subr.bf16.mxu0 0
        %4100 = vmatpush1.bf16.msra.mxu0 %v3506
        %4101 = vmatprep.subr.bf16.mxu0 0
        %4102 = vmatpush1.bf16.msra.mxu0 %v3507
        %4103 = vmatprep.mubr.bf16.mxu0 %v2869
        %4104 = vmatmul.mubr.bf16.gmra.mrb[0].mxu0 %v2868
        %v4105 = vpop.f32.mrb[0].mxu0
        %v4106 = vadd.f32 %v3945, %v4105
        %v4107 = vpop.f32.mrb[0].mxu0
        %v4108 = vpop.f32.mrb[0].mxu0
        %v4109 = vadd.f32 %v3948, %v4108
        %v4110 = vpop.f32.mrb[0].mxu0
        %4111 = vmatprep.mubr.bf16.mxu0 %v2878
        %4112 = vmatmul.mubr.bf16.gmra.mrb[0].mxu0 %v2877
        %v4113 = vpop.f32.mrb[0].mxu0
        %v4114 = vadd.f32 %v3953, %v4113
        %v4115 = vpop.f32.mrb[0].mxu0
        %v4116 = vpop.f32.mrb[0].mxu0
        %v4117 = vadd.f32 %v3956, %v4116
        %v4118 = vpop.f32.mrb[0].mxu0
        %4119 = vmatprep.mubr.bf16.mxu0 %v2887
        %4120 = vmatmul.mubr.bf16.gmra.mrb[0].mxu0 %v2886
        %v4121 = vpop.f32.mrb[0].mxu0
        %v4122 = vadd.f32 %v3961, %v4121
        %v4123 = vpop.f32.mrb[0].mxu0
        %v4124 = vpop.f32.mrb[0].mxu0
        %v4125 = vadd.f32 %v3964, %v4124
        %v4126 = vpop.f32.mrb[0].mxu0
        %4127 = vmatprep.mubr.bf16.mxu0 %v2896
        %4128 = vmatmul.mubr.bf16.gmra.mrb[0].mxu0 %v2895
        %v4129 = vpop.f32.mrb[0].mxu0
        %v4130 = vadd.f32 %v3969, %v4129
        %v4131 = vpop.f32.mrb[0].mxu0
        %v4132 = vpop.f32.mrb[0].mxu0
        %v4133 = vadd.f32 %v3972, %v4132
        %v4134 = vpop.f32.mrb[0].mxu0
        %4135 = vmatprep.mubr.bf16.mxu0 %v2905
        %4136 = vmatmul.mubr.bf16.gmra.mrb[0].mxu0 %v2904
        %v4137 = vpop.f32.mrb[0].mxu0
        %v4138 = vadd.f32 %v3977, %v4137
        %v4139 = vpop.f32.mrb[0].mxu0
        %v4140 = vpop.f32.mrb[0].mxu0
        %v4141 = vadd.f32 %v3980, %v4140
        %v4142 = vpop.f32.mrb[0].mxu0
        %4143 = vmatprep.mubr.bf16.mxu0 %v2914
        %4144 = vmatmul.mubr.bf16.gmra.mrb[0].mxu0 %v2913
        %v4145 = vpop.f32.mrb[0].mxu0
        %v4146 = vadd.f32 %v3985, %v4145
        %v4147 = vpop.f32.mrb[0].mxu0
        %v4148 = vpop.f32.mrb[0].mxu0
        %v4149 = vadd.f32 %v3988, %v4148
        %v4150 = vpop.f32.mrb[0].mxu0
        %4151 = vmatprep.mubr.bf16.mxu0 %v2923
        %4152 = vmatmul.mubr.bf16.gmra.mrb[0].mxu0 %v2922
        %v4153 = vpop.f32.mrb[0].mxu0
        %v4154 = vadd.f32 %v3993, %v4153
        %v4155 = vpop.f32.mrb[0].mxu0
        %v4156 = vpop.f32.mrb[0].mxu0
        %v4157 = vadd.f32 %v3996, %v4156
        %v4158 = vpop.f32.mrb[0].mxu0
        %4159 = vmatprep.mubr.bf16.mxu0 %v2932
        %4160 = vmatmul.mubr.bf16.gmra.mrb[0].mxu0 %v2931
        %v4161 = vpop.f32.mrb[0].mxu0
        %v4162 = vadd.f32 %v4001, %v4161
        %v4163 = vpop.f32.mrb[0].mxu0
        %v4164 = vpop.f32.mrb[0].mxu0
        %v4165 = vadd.f32 %v4004, %v4164
        %v4166 = vpop.f32.mrb[0].mxu0
        %4167 = vmatprep.mubr.bf16.mxu0 %v2941
        %4168 = vmatmul.mubr.bf16.gmra.mrb[0].mxu0 %v2940
        %v4169 = vpop.f32.mrb[0].mxu0
        %v4170 = vadd.f32 %v4009, %v4169
        %v4171 = vpop.f32.mrb[0].mxu0
        %v4172 = vpop.f32.mrb[0].mxu0
        %v4173 = vadd.f32 %v4012, %v4172
        %v4174 = vpop.f32.mrb[0].mxu0
        %4175 = vmatprep.mubr.bf16.mxu0 %v2950
        %4176 = vmatmul.mubr.bf16.gmra.mrb[0].mxu0 %v2949
        %v4177 = vpop.f32.mrb[0].mxu0
        %v4178 = vadd.f32 %v4017, %v4177
        %v4179 = vpop.f32.mrb[0].mxu0
        %v4180 = vpop.f32.mrb[0].mxu0
        %v4181 = vadd.f32 %v4020, %v4180
        %v4182 = vpop.f32.mrb[0].mxu0
        %4183 = vmatprep.mubr.bf16.mxu0 %v2959
        %4184 = vmatmul.mubr.bf16.gmra.mrb[0].mxu0 %v2958
        %v4185 = vpop.f32.mrb[0].mxu0
        %v4186 = vadd.f32 %v4025, %v4185
        %v4187 = vpop.f32.mrb[0].mxu0
        %v4188 = vpop.f32.mrb[0].mxu0
        %v4189 = vadd.f32 %v4028, %v4188
        %v4190 = vpop.f32.mrb[0].mxu0
        %4191 = vmatprep.mubr.bf16.mxu0 %v2968
        %4192 = vmatmul.mubr.bf16.gmra.mrb[0].mxu0 %v2967
        %v4193 = vpop.f32.mrb[0].mxu0
        %v4194 = vadd.f32 %v4033, %v4193
        %v4195 = vpop.f32.mrb[0].mxu0
        %v4196 = vpop.f32.mrb[0].mxu0
        %v4197 = vadd.f32 %v4036, %v4196
        %v4198 = vpop.f32.mrb[0].mxu0
        %4199 = vmatprep.mubr.bf16.mxu0 %v2977
        %4200 = vmatmul.mubr.bf16.gmra.mrb[0].mxu0 %v2976
        %v4201 = vpop.f32.mrb[0].mxu0
        %v4202 = vadd.f32 %v4041, %v4201
        %v4203 = vpop.f32.mrb[0].mxu0
        %v4204 = vpop.f32.mrb[0].mxu0
        %v4205 = vadd.f32 %v4044, %v4204
        %v4206 = vpop.f32.mrb[0].mxu0
        %4207 = vmatprep.mubr.bf16.mxu0 %v2986
        %4208 = vmatmul.mubr.bf16.gmra.mrb[0].mxu0 %v2985
        %v4209 = vpop.f32.mrb[0].mxu0
        %v4210 = vadd.f32 %v4049, %v4209
        %v4211 = vpop.f32.mrb[0].mxu0
        %v4212 = vpop.f32.mrb[0].mxu0
        %v4213 = vadd.f32 %v4052, %v4212
        %v4214 = vpop.f32.mrb[0].mxu0
        %4215 = vmatprep.mubr.bf16.mxu0 %v2995
        %4216 = vmatmul.mubr.bf16.gmra.mrb[0].mxu0 %v2994
        %v4217 = vpop.f32.mrb[0].mxu0
        %v4218 = vadd.f32 %v4057, %v4217
        %v4219 = vpop.f32.mrb[0].mxu0
        %v4220 = vpop.f32.mrb[0].mxu0
        %v4221 = vadd.f32 %v4060, %v4220
        %v4222 = vpop.f32.mrb[0].mxu0
        %4223 = vmatprep.mubr.bf16.mxu0 %v3004
        %4224 = vmatmul.mubr.bf16.gmra.mrb[0].mxu0 %v3003
        %v4225 = vpop.f32.mrb[0].mxu0
        %v4226 = vadd.f32 %v4065, %v4225
        %v4227 = vpop.f32.mrb[0].mxu0
        %v4228 = vpop.f32.mrb[0].mxu0
        %v4229 = vadd.f32 %v4068, %v4228
        %v4230 = vpop.f32.mrb[0].mxu0
        %4231 = vdwg.mxu0
        %4232 = vmatprep.subr.bf16.mxu0 0
        %4233 = vmatpush1.bf16.msra.mxu0 %v3508
        %4234 = vmatprep.subr.bf16.mxu0 0
        %4235 = vmatpush1.bf16.msra.mxu0 %v3509
        %4236 = vmatprep.subr.bf16.mxu0 0
        %4237 = vmatpush1.bf16.msra.mxu0 %v3510
        %4238 = vmatprep.subr.bf16.mxu0 0
        %4239 = vmatpush1.bf16.msra.mxu0 %v3511
        %4240 = vmatprep.subr.bf16.mxu0 0
        %4241 = vmatpush1.bf16.msra.mxu0 %v3512
        %4242 = vmatprep.subr.bf16.mxu0 0
        %4243 = vmatpush1.bf16.msra.mxu0 %v3513
        %4244 = vmatprep.subr.bf16.mxu0 0
        %4245 = vmatpush1.bf16.msra.mxu0 %v3514
        %4246 = vmatprep.subr.bf16.mxu0 0
        %4247 = vmatpush1.bf16.msra.mxu0 %v3515
        %4248 = vmatprep.subr.bf16.mxu0 0
        %4249 = vmatpush1.bf16.msra.mxu0 0
        %4250 = vmatprep.subr.bf16.mxu0 0
        %4251 = vmatpush1.bf16.msra.mxu0 0
        %4252 = vmatprep.subr.bf16.mxu0 0
        %4253 = vmatpush1.bf16.msra.mxu0 0
        %4254 = vmatprep.subr.bf16.mxu0 0
        %4255 = vmatpush1.bf16.msra.mxu0 0
        %4256 = vmatprep.subr.bf16.mxu0 0
        %4257 = vmatpush1.bf16.msra.mxu0 0
        %4258 = vmatprep.subr.bf16.mxu0 0
        %4259 = vmatpush1.bf16.msra.mxu0 0
        %4260 = vmatprep.subr.bf16.mxu0 0
        %4261 = vmatpush1.bf16.msra.mxu0 0
        %4262 = vmatprep.subr.bf16.mxu0 0
        %4263 = vmatpush1.bf16.msra.mxu0 0
        %4264 = vmatprep.mubr.bf16.mxu0 0
        %4265 = vmatmul.mubr.bf16.gmra.mrb[0].mxu0 %v2870
        %v4266 = vpop.f32.mrb[0].mxu0
        %v4267 = vadd.f32 %v4106, %v4266
        %v4268 = vpop.f32.mrb[0].mxu0
        %v4269 = vpop.f32.mrb[0].mxu0
        %v4270 = vadd.f32 %v4109, %v4269
        %v4271 = vpop.f32.mrb[0].mxu0
        %4272 = vmatprep.mubr.bf16.mxu0 0
        %4273 = vmatmul.mubr.bf16.gmra.mrb[0].mxu0 %v2879
        %v4274 = vpop.f32.mrb[0].mxu0
        %v4275 = vadd.f32 %v4114, %v4274
        %v4276 = vpop.f32.mrb[0].mxu0
        %v4277 = vpop.f32.mrb[0].mxu0
        %v4278 = vadd.f32 %v4117, %v4277
        %v4279 = vpop.f32.mrb[0].mxu0
        %4280 = vmatprep.mubr.bf16.mxu0 0
        %4281 = vmatmul.mubr.bf16.gmra.mrb[0].mxu0 %v2888
        %v4282 = vpop.f32.mrb[0].mxu0
        %v4283 = vadd.f32 %v4122, %v4282
        %v4284 = vpop.f32.mrb[0].mxu0
        %v4285 = vpop.f32.mrb[0].mxu0
        %v4286 = vadd.f32 %v4125, %v4285
        %v4287 = vpop.f32.mrb[0].mxu0
        %4288 = vmatprep.mubr.bf16.mxu0 0
        %4289 = vmatmul.mubr.bf16.gmra.mrb[0].mxu0 %v2897
        %v4290 = vpop.f32.mrb[0].mxu0
        %v4291 = vadd.f32 %v4130, %v4290
        %v4292 = vpop.f32.mrb[0].mxu0
        %v4293 = vpop.f32.mrb[0].mxu0
        %v4294 = vadd.f32 %v4133, %v4293
        %v4295 = vpop.f32.mrb[0].mxu0
        %4296 = vmatprep.mubr.bf16.mxu0 0
        %4297 = vmatmul.mubr.bf16.gmra.mrb[0].mxu0 %v2906
        %v4298 = vpop.f32.mrb[0].mxu0
        %v4299 = vadd.f32 %v4138, %v4298
        %v4300 = vpop.f32.mrb[0].mxu0
        %v4301 = vpop.f32.mrb[0].mxu0
        %v4302 = vadd.f32 %v4141, %v4301
        %v4303 = vpop.f32.mrb[0].mxu0
        %4304 = vmatprep.mubr.bf16.mxu0 0
        %4305 = vmatmul.mubr.bf16.gmra.mrb[0].mxu0 %v2915
        %v4306 = vpop.f32.mrb[0].mxu0
        %v4307 = vadd.f32 %v4146, %v4306
        %v4308 = vpop.f32.mrb[0].mxu0
        %v4309 = vpop.f32.mrb[0].mxu0
        %v4310 = vadd.f32 %v4149, %v4309
        %v4311 = vpop.f32.mrb[0].mxu0
        %4312 = vmatprep.mubr.bf16.mxu0 0
        %4313 = vmatmul.mubr.bf16.gmra.mrb[0].mxu0 %v2924
        %v4314 = vpop.f32.mrb[0].mxu0
        %v4315 = vadd.f32 %v4154, %v4314
        %v4316 = vpop.f32.mrb[0].mxu0
        %v4317 = vpop.f32.mrb[0].mxu0
        %v4318 = vadd.f32 %v4157, %v4317
        %v4319 = vpop.f32.mrb[0].mxu0
        %4320 = vmatprep.mubr.bf16.mxu0 0
        %4321 = vmatmul.mubr.bf16.gmra.mrb[0].mxu0 %v2933
        %v4322 = vpop.f32.mrb[0].mxu0
        %v4323 = vadd.f32 %v4162, %v4322
        %v4324 = vpop.f32.mrb[0].mxu0
        %v4325 = vpop.f32.mrb[0].mxu0
        %v4326 = vadd.f32 %v4165, %v4325
        %v4327 = vpop.f32.mrb[0].mxu0
        %4328 = vmatprep.mubr.bf16.mxu0 0
        %4329 = vmatmul.mubr.bf16.gmra.mrb[0].mxu0 %v2942
        %v4330 = vpop.f32.mrb[0].mxu0
        %v4331 = vadd.f32 %v4170, %v4330
        %v4332 = vpop.f32.mrb[0].mxu0
        %v4333 = vpop.f32.mrb[0].mxu0
        %v4334 = vadd.f32 %v4173, %v4333
        %v4335 = vpop.f32.mrb[0].mxu0
        %4336 = vmatprep.mubr.bf16.mxu0 0
        %4337 = vmatmul.mubr.bf16.gmra.mrb[0].mxu0 %v2951
        %v4338 = vpop.f32.mrb[0].mxu0
        %v4339 = vadd.f32 %v4178, %v4338
        %v4340 = vpop.f32.mrb[0].mxu0
        %v4341 = vpop.f32.mrb[0].mxu0
        %v4342 = vadd.f32 %v4181, %v4341
        %v4343 = vpop.f32.mrb[0].mxu0
        %4344 = vmatprep.mubr.bf16.mxu0 0
        %4345 = vmatmul.mubr.bf16.gmra.mrb[0].mxu0 %v2960
        %v4346 = vpop.f32.mrb[0].mxu0
        %v4347 = vadd.f32 %v4186, %v4346
        %v4348 = vpop.f32.mrb[0].mxu0
        %v4349 = vpop.f32.mrb[0].mxu0
        %v4350 = vadd.f32 %v4189, %v4349
        %v4351 = vpop.f32.mrb[0].mxu0
        %4352 = vmatprep.mubr.bf16.mxu0 0
        %4353 = vmatmul.mubr.bf16.gmra.mrb[0].mxu0 %v2969
        %v4354 = vpop.f32.mrb[0].mxu0
        %v4355 = vadd.f32 %v4194, %v4354
        %v4356 = vpop.f32.mrb[0].mxu0
        %v4357 = vpop.f32.mrb[0].mxu0
        %v4358 = vadd.f32 %v4197, %v4357
        %v4359 = vpop.f32.mrb[0].mxu0
        %4360 = vmatprep.mubr.bf16.mxu0 0
        %4361 = vmatmul.mubr.bf16.gmra.mrb[0].mxu0 %v2978
        %v4362 = vpop.f32.mrb[0].mxu0
        %v4363 = vadd.f32 %v4202, %v4362
        %v4364 = vpop.f32.mrb[0].mxu0
        %v4365 = vpop.f32.mrb[0].mxu0
        %v4366 = vadd.f32 %v4205, %v4365
        %v4367 = vpop.f32.mrb[0].mxu0
        %4368 = vmatprep.mubr.bf16.mxu0 0
        %4369 = vmatmul.mubr.bf16.gmra.mrb[0].mxu0 %v2987
        %v4370 = vpop.f32.mrb[0].mxu0
        %v4371 = vadd.f32 %v4210, %v4370
        %v4372 = vpop.f32.mrb[0].mxu0
        %v4373 = vpop.f32.mrb[0].mxu0
        %v4374 = vadd.f32 %v4213, %v4373
        %v4375 = vpop.f32.mrb[0].mxu0
        %4376 = vmatprep.mubr.bf16.mxu0 0
        %4377 = vmatmul.mubr.bf16.gmra.mrb[0].mxu0 %v2996
        %v4378 = vpop.f32.mrb[0].mxu0
        %v4379 = vadd.f32 %v4218, %v4378
        %v4380 = vpop.f32.mrb[0].mxu0
        %v4381 = vpop.f32.mrb[0].mxu0
        %v4382 = vadd.f32 %v4221, %v4381
        %v4383 = vpop.f32.mrb[0].mxu0
        %4384 = vmatprep.mubr.bf16.mxu0 0
        %4385 = vmatmul.mubr.bf16.gmra.mrb[0].mxu0 %v3005
        %v4386 = vpop.f32.mrb[0].mxu0
        %v4387 = vadd.f32 %v4226, %v4386
        %v4388 = vpop.f32.mrb[0].mxu0
        %v4389 = vpop.f32.mrb[0].mxu0
        %v4390 = vadd.f32 %v4229, %v4389
        %v4391 = vpop.f32.mrb[0].mxu0
        %4392 = vdwg.mxu0
        %v4393 = vld [vmem:[#allocation16] sm:$0x1]
        %v4394 = vld [vmem:[#allocation18] sm:$0x1]
        %v4395 = vadd.f32 %v4267, %v4270
        %v4396 = vadd.f32 %v4395, %v4275
        %v4397 = vadd.f32 %v4396, %v4278
        %v4398 = vadd.f32 %v4397, %v4283
        %v4399 = vadd.f32 %v4398, %v4286
        %v4400 = vadd.f32 %v4399, %v4291
        %v4401 = vadd.f32 %v4400, %v4294
        %v4402 = vadd.f32 %v4401, %v4299
        %v4403 = vadd.f32 %v4402, %v4302
        %v4404 = vadd.f32 %v4403, %v4307
        %v4405 = vadd.f32 %v4404, %v4310
        %v4406 = vadd.f32 %v4405, %v4315
        %v4407 = vadd.f32 %v4406, %v4318
        %v4408 = vadd.f32 %v4407, %v4323
        %v4409 = vadd.f32 %v4408, %v4326
        %v4410 = vadd.f32 %v4409, %v4331
        %v4411 = vadd.f32 %v4410, %v4334
        %v4412 = vadd.f32 %v4411, %v4339
        %v4413 = vadd.f32 %v4412, %v4342
        %v4414 = vadd.f32 %v4413, %v4347
        %v4415 = vadd.f32 %v4414, %v4350
        %v4416 = vadd.f32 %v4415, %v4355
        %v4417 = vadd.f32 %v4416, %v4358
        %v4418 = vadd.f32 %v4417, %v4363
        %v4419 = vadd.f32 %v4418, %v4366
        %v4420 = vadd.f32 %v4419, %v4371
        %v4421 = vadd.f32 %v4420, %v4374
        %v4422 = vadd.f32 %v4421, %v4379
        %v4423 = vadd.f32 %v4422, %v4382
        %v4424 = vadd.f32 %v4423, %v4387
        %v4425 = vadd.f32 %v4424, %v4390
        %v4426 = vrot.slane %v4425, 4
        %v4427 = vadd.f32 %v4425, %v4426
        %v4428 = vrot.slane %v4427, 2
        %v4429 = vadd.f32 %v4427, %v4428
        %v4430 = vrot.slane %v4429, 1
        %v4431 = vadd.f32 %v4429, %v4430
        %v4432 = vmul.f32 %v4267, %v4267
        %v4433 = vmul.f32 %v4270, %v4270
        %v4434 = vmul.f32 %v4275, %v4275
        %v4435 = vmul.f32 %v4278, %v4278
        %v4436 = vmul.f32 %v4283, %v4283
        %v4437 = vmul.f32 %v4286, %v4286
        %v4438 = vmul.f32 %v4291, %v4291
        %v4439 = vmul.f32 %v4294, %v4294
        %v4440 = vmul.f32 %v4299, %v4299
        %v4441 = vmul.f32 %v4302, %v4302
        %v4442 = vmul.f32 %v4307, %v4307
        %v4443 = vmul.f32 %v4310, %v4310
        %v4444 = vmul.f32 %v4315, %v4315
        %v4445 = vmul.f32 %v4318, %v4318
        %v4446 = vmul.f32 %v4323, %v4323
        %v4447 = vmul.f32 %v4326, %v4326
        %v4448 = vmul.f32 %v4331, %v4331
        %v4449 = vmul.f32 %v4334, %v4334
        %v4450 = vmul.f32 %v4339, %v4339
        %v4451 = vmul.f32 %v4342, %v4342
        %v4452 = vmul.f32 %v4347, %v4347
        %v4453 = vmul.f32 %v4350, %v4350
        %v4454 = vmul.f32 %v4355, %v4355
        %v4455 = vmul.f32 %v4358, %v4358
        %v4456 = vmul.f32 %v4363, %v4363
        %v4457 = vmul.f32 %v4366, %v4366
        %v4458 = vmul.f32 %v4371, %v4371
        %v4459 = vmul.f32 %v4374, %v4374
        %v4460 = vmul.f32 %v4379, %v4379
        %v4461 = vmul.f32 %v4382, %v4382
        %v4462 = vmul.f32 %v4387, %v4387
        %v4463 = vmul.f32 %v4390, %v4390
        %v4464 = vadd.f32 %v4432, %v4433
        %v4465 = vadd.f32 %v4464, %v4434
        %v4466 = vadd.f32 %v4465, %v4435
        %v4467 = vadd.f32 %v4466, %v4436
        %v4468 = vadd.f32 %v4467, %v4437
        %v4469 = vadd.f32 %v4468, %v4438
        %v4470 = vadd.f32 %v4469, %v4439
        %v4471 = vadd.f32 %v4470, %v4440
        %v4472 = vadd.f32 %v4471, %v4441
        %v4473 = vadd.f32 %v4472, %v4442
        %v4474 = vadd.f32 %v4473, %v4443
        %v4475 = vadd.f32 %v4474, %v4444
        %v4476 = vadd.f32 %v4475, %v4445
        %v4477 = vadd.f32 %v4476, %v4446
        %v4478 = vadd.f32 %v4477, %v4447
        %v4479 = vadd.f32 %v4478, %v4448
        %v4480 = vadd.f32 %v4479, %v4449
        %v4481 = vadd.f32 %v4480, %v4450
        %v4482 = vadd.f32 %v4481, %v4451
        %v4483 = vadd.f32 %v4482, %v4452
        %v4484 = vadd.f32 %v4483, %v4453
        %v4485 = vadd.f32 %v4484, %v4454
        %v4486 = vadd.f32 %v4485, %v4455
        %v4487 = vadd.f32 %v4486, %v4456
        %v4488 = vadd.f32 %v4487, %v4457
        %v4489 = vadd.f32 %v4488, %v4458
        %v4490 = vadd.f32 %v4489, %v4459
        %v4491 = vadd.f32 %v4490, %v4460
        %v4492 = vadd.f32 %v4491, %v4461
        %v4493 = vadd.f32 %v4492, %v4462
        %v4494 = vadd.f32 %v4493, %v4463
        %v4495 = vrot.slane %v4494, 4
        %v4496 = vadd.f32 %v4494, %v4495
        %v4497 = vrot.slane %v4496, 2
        %v4498 = vadd.f32 %v4496, %v4497
        %v4499 = vrot.slane %v4498, 1
        %v4500 = vadd.f32 %v4498, %v4499
        %v4501 = vsel %vm719, %v4431, %v4500
        %v4502 = vld [vmem:[#allocation7] sm:$0xff]
        %v4503 = vld [vmem:[#allocation7 + $0x8] sm:$0xff]
        %v4504 = vld [vmem:[#allocation7 + $0x10] sm:$0xff]
        %v4505 = vld [vmem:[#allocation7 + $0x18] sm:$0xff]
        %v4506 = vld [vmem:[#allocation7 + $0x20] sm:$0xff]
        %v4507 = vld [vmem:[#allocation7 + $0x28] sm:$0xff]
        %v4508 = vld [vmem:[#allocation7 + $0x30] sm:$0xff]
        %v4509 = vld [vmem:[#allocation7 + $0x38] sm:$0xff]
        %v4510 = vld [vmem:[#allocation7 + $0x40] sm:$0xff]
        %v4511 = vld [vmem:[#allocation7 + $0x48] sm:$0xff]
        %v4512 = vld [vmem:[#allocation7 + $0x50] sm:$0xff]
        %v4513 = vld [vmem:[#allocation7 + $0x58] sm:$0xff]
        %v4514 = vld [vmem:[#allocation7 + $0x60] sm:$0xff]
        %v4515 = vld [vmem:[#allocation7 + $0x68] sm:$0xff]
        %v4516 = vld [vmem:[#allocation7 + $0x70] sm:$0xff]
        %v4517 = vld [vmem:[#allocation7 + $0x78] sm:$0xff]
        %4518 = vmatprep.subr.mxu0 0.0
        %v4519 = vand.u32 %v4502, 4294901760
        %4520 = vmatpush1.msra.mxu0 %v4519
        %4521 = vmatprep.subr.mxu0 0.0
        %v4522 = vand.u32 %v4503, 4294901760
        %4523 = vmatpush1.msra.mxu0 %v4522
        %4524 = vmatprep.subr.mxu0 0.0
        %v4525 = vand.u32 %v4504, 4294901760
        %4526 = vmatpush1.msra.mxu0 %v4525
        %4527 = vmatprep.subr.mxu0 0.0
        %v4528 = vand.u32 %v4505, 4294901760
        %4529 = vmatpush1.msra.mxu0 %v4528
        %4530 = vmatprep.subr.mxu0 0.0
        %v4531 = vand.u32 %v4506, 4294901760
        %4532 = vmatpush1.msra.mxu0 %v4531
        %4533 = vmatprep.subr.mxu0 0.0
        %v4534 = vand.u32 %v4507, 4294901760
        %4535 = vmatpush1.msra.mxu0 %v4534
        %4536 = vmatprep.subr.mxu0 0.0
        %v4537 = vand.u32 %v4508, 4294901760
        %4538 = vmatpush1.msra.mxu0 %v4537
        %4539 = vmatprep.subr.mxu0 0.0
        %v4540 = vand.u32 %v4509, 4294901760
        %4541 = vmatpush1.msra.mxu0 %v4540
        %4542 = vmatprep.subr.mxu0 0.0
        %v4543 = vand.u32 %v4510, 4294901760
        %4544 = vmatpush1.msra.mxu0 %v4543
        %4545 = vmatprep.subr.mxu0 0.0
        %v4546 = vand.u32 %v4511, 4294901760
        %4547 = vmatpush1.msra.mxu0 %v4546
        %4548 = vmatprep.subr.mxu0 0.0
        %v4549 = vand.u32 %v4512, 4294901760
        %4550 = vmatpush1.msra.mxu0 %v4549
        %4551 = vmatprep.subr.mxu0 0.0
        %v4552 = vand.u32 %v4513, 4294901760
        %4553 = vmatpush1.msra.mxu0 %v4552
        %4554 = vmatprep.subr.mxu0 0.0
        %v4555 = vand.u32 %v4514, 4294901760
        %4556 = vmatpush1.msra.mxu0 %v4555
        %4557 = vmatprep.subr.mxu0 0.0
        %v4558 = vand.u32 %v4515, 4294901760
        %4559 = vmatpush1.msra.mxu0 %v4558
        %4560 = vmatprep.subr.mxu0 0.0
        %v4561 = vand.u32 %v4516, 4294901760
        %4562 = vmatpush1.msra.mxu0 %v4561
        %4563 = vmatprep.subr.mxu0 0.0
        %v4564 = vand.u32 %v4517, 4294901760
        %4565 = vmatpush1.msra.mxu0 %v4564
        %4566 = vmatprep.subr.mxu0 0.0
        %4567 = vmatpush1.msra.mxu0 0.0
        %4568 = vmatprep.subr.mxu0 0.0
        %4569 = vmatpush1.msra.mxu0 0.0
        %4570 = vmatprep.subr.mxu0 0.0
        %4571 = vmatpush1.msra.mxu0 0.0
        %4572 = vmatprep.subr.mxu0 0.0
        %4573 = vmatpush1.msra.mxu0 0.0
        %4574 = vmatprep.subr.mxu0 0.0
        %4575 = vmatpush1.msra.mxu0 0.0
        %4576 = vmatprep.subr.mxu0 0.0
        %4577 = vmatpush1.msra.mxu0 0.0
        %4578 = vmatprep.subr.mxu0 0.0
        %4579 = vmatpush1.msra.mxu0 0.0
        %4580 = vmatprep.subr.mxu0 0.0
        %4581 = vmatpush1.msra.mxu0 0.0
        %4582 = vmatprep.subr.mxu0 0.0
        %4583 = vmatpush1.msra.mxu0 0.0
        %4584 = vmatprep.subr.mxu0 0.0
        %4585 = vmatpush1.msra.mxu0 0.0
        %4586 = vmatprep.subr.mxu0 0.0
        %4587 = vmatpush1.msra.mxu0 0.0
        %4588 = vmatprep.subr.mxu0 0.0
        %4589 = vmatpush1.msra.mxu0 0.0
        %4590 = vmatprep.subr.mxu0 0.0
        %4591 = vmatpush1.msra.mxu0 0.0
        %4592 = vmatprep.subr.mxu0 0.0
        %4593 = vmatpush1.msra.mxu0 0.0
        %4594 = vmatprep.subr.mxu0 0.0
        %4595 = vmatpush1.msra.mxu0 0.0
        %4596 = vmatprep.subr.mxu0 0.0
        %4597 = vmatpush1.msra.mxu0 0.0
        %4598 = vmatprep.mubr.f32.mxu0 0.0
        %v4599 = vand.u32 %v4501, 4294901760
        %v4600 = vsub.f32 %v4501, %v4599
        %v4601 = vand.u32 %v4600, 4294901760
        %v4602 = vsub.f32 %v4600, %v4601
        %v4603 = vand.u32 %v4602, 4294901760
        %4604 = vmatmul.mubr.f32.gmra.mrb[0].mxu0 %v4603
        %v4605 = vpop.f32.mrb[0].mxu0
        %v4606 = vadd.f32 0.0, %v4605
        %v4607 = vpop.f32.mrb[0].mxu0
        %4608 = vdwg.mxu0
        %4609 = vmatprep.subr.mxu0 0.0
        %v4610 = vand.u32 %v4502, 4294901760
        %v4611 = vsub.f32 %v4502, %v4610
        %v4612 = vand.u32 %v4611, 4294901760
        %v4613 = vsub.f32 %v4611, %v4612
        %v4614 = vand.u32 %v4613, 4294901760
        %4615 = vmatpush1.msra.mxu0 %v4614
        %4616 = vmatprep.subr.mxu0 0.0
        %v4617 = vand.u32 %v4503, 4294901760
        %v4618 = vsub.f32 %v4503, %v4617
        %v4619 = vand.u32 %v4618, 4294901760
        %v4620 = vsub.f32 %v4618, %v4619
        %v4621 = vand.u32 %v4620, 4294901760
        %4622 = vmatpush1.msra.mxu0 %v4621
        %4623 = vmatprep.subr.mxu0 0.0
        %v4624 = vand.u32 %v4504, 4294901760
        %v4625 = vsub.f32 %v4504, %v4624
        %v4626 = vand.u32 %v4625, 4294901760
        %v4627 = vsub.f32 %v4625, %v4626
        %v4628 = vand.u32 %v4627, 4294901760
        %4629 = vmatpush1.msra.mxu0 %v4628
        %4630 = vmatprep.subr.mxu0 0.0
        %v4631 = vand.u32 %v4505, 4294901760
        %v4632 = vsub.f32 %v4505, %v4631
        %v4633 = vand.u32 %v4632, 4294901760
        %v4634 = vsub.f32 %v4632, %v4633
        %v4635 = vand.u32 %v4634, 4294901760
        %4636 = vmatpush1.msra.mxu0 %v4635
        %4637 = vmatprep.subr.mxu0 0.0
        %v4638 = vand.u32 %v4506, 4294901760
        %v4639 = vsub.f32 %v4506, %v4638
        %v4640 = vand.u32 %v4639, 4294901760
        %v4641 = vsub.f32 %v4639, %v4640
        %v4642 = vand.u32 %v4641, 4294901760
        %4643 = vmatpush1.msra.mxu0 %v4642
        %4644 = vmatprep.subr.mxu0 0.0
        %v4645 = vand.u32 %v4507, 4294901760
        %v4646 = vsub.f32 %v4507, %v4645
        %v4647 = vand.u32 %v4646, 4294901760
        %v4648 = vsub.f32 %v4646, %v4647
        %v4649 = vand.u32 %v4648, 4294901760
        %4650 = vmatpush1.msra.mxu0 %v4649
        %4651 = vmatprep.subr.mxu0 0.0
        %v4652 = vand.u32 %v4508, 4294901760
        %v4653 = vsub.f32 %v4508, %v4652
        %v4654 = vand.u32 %v4653, 4294901760
        %v4655 = vsub.f32 %v4653, %v4654
        %v4656 = vand.u32 %v4655, 4294901760
        %4657 = vmatpush1.msra.mxu0 %v4656
        %4658 = vmatprep.subr.mxu0 0.0
        %v4659 = vand.u32 %v4509, 4294901760
        %v4660 = vsub.f32 %v4509, %v4659
        %v4661 = vand.u32 %v4660, 4294901760
        %v4662 = vsub.f32 %v4660, %v4661
        %v4663 = vand.u32 %v4662, 4294901760
        %4664 = vmatpush1.msra.mxu0 %v4663
        %4665 = vmatprep.subr.mxu0 0.0
        %v4666 = vand.u32 %v4510, 4294901760
        %v4667 = vsub.f32 %v4510, %v4666
        %v4668 = vand.u32 %v4667, 4294901760
        %v4669 = vsub.f32 %v4667, %v4668
        %v4670 = vand.u32 %v4669, 4294901760
        %4671 = vmatpush1.msra.mxu0 %v4670
        %4672 = vmatprep.subr.mxu0 0.0
        %v4673 = vand.u32 %v4511, 4294901760
        %v4674 = vsub.f32 %v4511, %v4673
        %v4675 = vand.u32 %v4674, 4294901760
        %v4676 = vsub.f32 %v4674, %v4675
        %v4677 = vand.u32 %v4676, 4294901760
        %4678 = vmatpush1.msra.mxu0 %v4677
        %4679 = vmatprep.subr.mxu0 0.0
        %v4680 = vand.u32 %v4512, 4294901760
        %v4681 = vsub.f32 %v4512, %v4680
        %v4682 = vand.u32 %v4681, 4294901760
        %v4683 = vsub.f32 %v4681, %v4682
        %v4684 = vand.u32 %v4683, 4294901760
        %4685 = vmatpush1.msra.mxu0 %v4684
        %4686 = vmatprep.subr.mxu0 0.0
        %v4687 = vand.u32 %v4513, 4294901760
        %v4688 = vsub.f32 %v4513, %v4687
        %v4689 = vand.u32 %v4688, 4294901760
        %v4690 = vsub.f32 %v4688, %v4689
        %v4691 = vand.u32 %v4690, 4294901760
        %4692 = vmatpush1.msra.mxu0 %v4691
        %4693 = vmatprep.subr.mxu0 0.0
        %v4694 = vand.u32 %v4514, 4294901760
        %v4695 = vsub.f32 %v4514, %v4694
        %v4696 = vand.u32 %v4695, 4294901760
        %v4697 = vsub.f32 %v4695, %v4696
        %v4698 = vand.u32 %v4697, 4294901760
        %4699 = vmatpush1.msra.mxu0 %v4698
        %4700 = vmatprep.subr.mxu0 0.0
        %v4701 = vand.u32 %v4515, 4294901760
        %v4702 = vsub.f32 %v4515, %v4701
        %v4703 = vand.u32 %v4702, 4294901760
        %v4704 = vsub.f32 %v4702, %v4703
        %v4705 = vand.u32 %v4704, 4294901760
        %4706 = vmatpush1.msra.mxu0 %v4705
        %4707 = vmatprep.subr.mxu0 0.0
        %v4708 = vand.u32 %v4516, 4294901760
        %v4709 = vsub.f32 %v4516, %v4708
        %v4710 = vand.u32 %v4709, 4294901760
        %v4711 = vsub.f32 %v4709, %v4710
        %v4712 = vand.u32 %v4711, 4294901760
        %4713 = vmatpush1.msra.mxu0 %v4712
        %4714 = vmatprep.subr.mxu0 0.0
        %v4715 = vand.u32 %v4517, 4294901760
        %v4716 = vsub.f32 %v4517, %v4715
        %v4717 = vand.u32 %v4716, 4294901760
        %v4718 = vsub.f32 %v4716, %v4717
        %v4719 = vand.u32 %v4718, 4294901760
        %4720 = vmatpush1.msra.mxu0 %v4719
        %4721 = vmatprep.subr.mxu0 0.0
        %4722 = vmatpush1.msra.mxu0 0.0
        %4723 = vmatprep.subr.mxu0 0.0
        %4724 = vmatpush1.msra.mxu0 0.0
        %4725 = vmatprep.subr.mxu0 0.0
        %4726 = vmatpush1.msra.mxu0 0.0
        %4727 = vmatprep.subr.mxu0 0.0
        %4728 = vmatpush1.msra.mxu0 0.0
        %4729 = vmatprep.subr.mxu0 0.0
        %4730 = vmatpush1.msra.mxu0 0.0
        %4731 = vmatprep.subr.mxu0 0.0
        %4732 = vmatpush1.msra.mxu0 0.0
        %4733 = vmatprep.subr.mxu0 0.0
        %4734 = vmatpush1.msra.mxu0 0.0
        %4735 = vmatprep.subr.mxu0 0.0
        %4736 = vmatpush1.msra.mxu0 0.0
        %4737 = vmatprep.subr.mxu0 0.0
        %4738 = vmatpush1.msra.mxu0 0.0
        %4739 = vmatprep.subr.mxu0 0.0
        %4740 = vmatpush1.msra.mxu0 0.0
        %4741 = vmatprep.subr.mxu0 0.0
        %4742 = vmatpush1.msra.mxu0 0.0
        %4743 = vmatprep.subr.mxu0 0.0
        %4744 = vmatpush1.msra.mxu0 0.0
        %4745 = vmatprep.subr.mxu0 0.0
        %4746 = vmatpush1.msra.mxu0 0.0
        %4747 = vmatprep.subr.mxu0 0.0
        %4748 = vmatpush1.msra.mxu0 0.0
        %4749 = vmatprep.subr.mxu0 0.0
        %4750 = vmatpush1.msra.mxu0 0.0
        %4751 = vmatprep.subr.mxu0 0.0
        %4752 = vmatpush1.msra.mxu0 0.0
        %4753 = vmatprep.mubr.f32.mxu0 0.0
        %v4754 = vand.u32 %v4501, 4294901760
        %4755 = vmatmul.mubr.f32.gmra.mrb[0].mxu0 %v4754
        %v4756 = vpop.f32.mrb[0].mxu0
        %v4757 = vadd.f32 %v4606, %v4756
        %v4758 = vpop.f32.mrb[0].mxu0
        %4759 = vdwg.mxu0
        %4760 = vmatprep.subr.mxu0 0.0
        %v4761 = vand.u32 %v4502, 4294901760
        %v4762 = vsub.f32 %v4502, %v4761
        %4763 = vmatpush1.msra.mxu0 %v4762
        %4764 = vmatprep.subr.mxu0 0.0
        %v4765 = vand.u32 %v4503, 4294901760
        %v4766 = vsub.f32 %v4503, %v4765
        %4767 = vmatpush1.msra.mxu0 %v4766
        %4768 = vmatprep.subr.mxu0 0.0
        %v4769 = vand.u32 %v4504, 4294901760
        %v4770 = vsub.f32 %v4504, %v4769
        %4771 = vmatpush1.msra.mxu0 %v4770
        %4772 = vmatprep.subr.mxu0 0.0
        %v4773 = vand.u32 %v4505, 4294901760
        %v4774 = vsub.f32 %v4505, %v4773
        %4775 = vmatpush1.msra.mxu0 %v4774
        %4776 = vmatprep.subr.mxu0 0.0
        %v4777 = vand.u32 %v4506, 4294901760
        %v4778 = vsub.f32 %v4506, %v4777
        %4779 = vmatpush1.msra.mxu0 %v4778
        %4780 = vmatprep.subr.mxu0 0.0
        %v4781 = vand.u32 %v4507, 4294901760
        %v4782 = vsub.f32 %v4507, %v4781
        %4783 = vmatpush1.msra.mxu0 %v4782
        %4784 = vmatprep.subr.mxu0 0.0
        %v4785 = vand.u32 %v4508, 4294901760
        %v4786 = vsub.f32 %v4508, %v4785
        %4787 = vmatpush1.msra.mxu0 %v4786
        %4788 = vmatprep.subr.mxu0 0.0
        %v4789 = vand.u32 %v4509, 4294901760
        %v4790 = vsub.f32 %v4509, %v4789
        %4791 = vmatpush1.msra.mxu0 %v4790
        %4792 = vmatprep.subr.mxu0 0.0
        %v4793 = vand.u32 %v4510, 4294901760
        %v4794 = vsub.f32 %v4510, %v4793
        %4795 = vmatpush1.msra.mxu0 %v4794
        %4796 = vmatprep.subr.mxu0 0.0
        %v4797 = vand.u32 %v4511, 4294901760
        %v4798 = vsub.f32 %v4511, %v4797
        %4799 = vmatpush1.msra.mxu0 %v4798
        %4800 = vmatprep.subr.mxu0 0.0
        %v4801 = vand.u32 %v4512, 4294901760
        %v4802 = vsub.f32 %v4512, %v4801
        %4803 = vmatpush1.msra.mxu0 %v4802
        %4804 = vmatprep.subr.mxu0 0.0
        %v4805 = vand.u32 %v4513, 4294901760
        %v4806 = vsub.f32 %v4513, %v4805
        %4807 = vmatpush1.msra.mxu0 %v4806
        %4808 = vmatprep.subr.mxu0 0.0
        %v4809 = vand.u32 %v4514, 4294901760
        %v4810 = vsub.f32 %v4514, %v4809
        %4811 = vmatpush1.msra.mxu0 %v4810
        %4812 = vmatprep.subr.mxu0 0.0
        %v4813 = vand.u32 %v4515, 4294901760
        %v4814 = vsub.f32 %v4515, %v4813
        %4815 = vmatpush1.msra.mxu0 %v4814
        %4816 = vmatprep.subr.mxu0 0.0
        %v4817 = vand.u32 %v4516, 4294901760
        %v4818 = vsub.f32 %v4516, %v4817
        %4819 = vmatpush1.msra.mxu0 %v4818
        %4820 = vmatprep.subr.mxu0 0.0
        %v4821 = vand.u32 %v4517, 4294901760
        %v4822 = vsub.f32 %v4517, %v4821
        %4823 = vmatpush1.msra.mxu0 %v4822
        %4824 = vmatprep.subr.mxu0 0.0
        %4825 = vmatpush1.msra.mxu0 0.0
        %4826 = vmatprep.subr.mxu0 0.0
        %4827 = vmatpush1.msra.mxu0 0.0
        %4828 = vmatprep.subr.mxu0 0.0
        %4829 = vmatpush1.msra.mxu0 0.0
        %4830 = vmatprep.subr.mxu0 0.0
        %4831 = vmatpush1.msra.mxu0 0.0
        %4832 = vmatprep.subr.mxu0 0.0
        %4833 = vmatpush1.msra.mxu0 0.0
        %4834 = vmatprep.subr.mxu0 0.0
        %4835 = vmatpush1.msra.mxu0 0.0
        %4836 = vmatprep.subr.mxu0 0.0
        %4837 = vmatpush1.msra.mxu0 0.0
        %4838 = vmatprep.subr.mxu0 0.0
        %4839 = vmatpush1.msra.mxu0 0.0
        %4840 = vmatprep.subr.mxu0 0.0
        %4841 = vmatpush1.msra.mxu0 0.0
        %4842 = vmatprep.subr.mxu0 0.0
        %4843 = vmatpush1.msra.mxu0 0.0
        %4844 = vmatprep.subr.mxu0 0.0
        %4845 = vmatpush1.msra.mxu0 0.0
        %4846 = vmatprep.subr.mxu0 0.0
        %4847 = vmatpush1.msra.mxu0 0.0
        %4848 = vmatprep.subr.mxu0 0.0
        %4849 = vmatpush1.msra.mxu0 0.0
        %4850 = vmatprep.subr.mxu0 0.0
        %4851 = vmatpush1.msra.mxu0 0.0
        %4852 = vmatprep.subr.mxu0 0.0
        %4853 = vmatpush1.msra.mxu0 0.0
        %4854 = vmatprep.subr.mxu0 0.0
        %4855 = vmatpush1.msra.mxu0 0.0
        %4856 = vmatprep.mubr.f32.mxu0 0.0
        %v4857 = vand.u32 %v4501, 4294901760
        %v4858 = vsub.f32 %v4501, %v4857
        %4859 = vmatmul.mubr.f32.gmra.mrb[0].mxu0 %v4858
        %v4860 = vpop.f32.mrb[0].mxu0
        %v4861 = vadd.f32 %v4757, %v4860
        %v4862 = vpop.f32.mrb[0].mxu0
        %4863 = vdwg.mxu0
        %4864 = vmatprep.subr.mxu0 0.0
        %v4865 = vand.u32 %v4502, 4294901760
        %4866 = vmatpush1.msra.mxu0 %v4865
        %4867 = vmatprep.subr.mxu0 0.0
        %v4868 = vand.u32 %v4503, 4294901760
        %4869 = vmatpush1.msra.mxu0 %v4868
        %4870 = vmatprep.subr.mxu0 0.0
        %v4871 = vand.u32 %v4504, 4294901760
        %4872 = vmatpush1.msra.mxu0 %v4871
        %4873 = vmatprep.subr.mxu0 0.0
        %v4874 = vand.u32 %v4505, 4294901760
        %4875 = vmatpush1.msra.mxu0 %v4874
        %4876 = vmatprep.subr.mxu0 0.0
        %v4877 = vand.u32 %v4506, 4294901760
        %4878 = vmatpush1.msra.mxu0 %v4877
        %4879 = vmatprep.subr.mxu0 0.0
        %v4880 = vand.u32 %v4507, 4294901760
        %4881 = vmatpush1.msra.mxu0 %v4880
        %4882 = vmatprep.subr.mxu0 0.0
        %v4883 = vand.u32 %v4508, 4294901760
        %4884 = vmatpush1.msra.mxu0 %v4883
        %4885 = vmatprep.subr.mxu0 0.0
        %v4886 = vand.u32 %v4509, 4294901760
        %4887 = vmatpush1.msra.mxu0 %v4886
        %4888 = vmatprep.subr.mxu0 0.0
        %v4889 = vand.u32 %v4510, 4294901760
        %4890 = vmatpush1.msra.mxu0 %v4889
        %4891 = vmatprep.subr.mxu0 0.0
        %v4892 = vand.u32 %v4511, 4294901760
        %4893 = vmatpush1.msra.mxu0 %v4892
        %4894 = vmatprep.subr.mxu0 0.0
        %v4895 = vand.u32 %v4512, 4294901760
        %4896 = vmatpush1.msra.mxu0 %v4895
        %4897 = vmatprep.subr.mxu0 0.0
        %v4898 = vand.u32 %v4513, 4294901760
        %4899 = vmatpush1.msra.mxu0 %v4898
        %4900 = vmatprep.subr.mxu0 0.0
        %v4901 = vand.u32 %v4514, 4294901760
        %4902 = vmatpush1.msra.mxu0 %v4901
        %4903 = vmatprep.subr.mxu0 0.0
        %v4904 = vand.u32 %v4515, 4294901760
        %4905 = vmatpush1.msra.mxu0 %v4904
        %4906 = vmatprep.subr.mxu0 0.0
        %v4907 = vand.u32 %v4516, 4294901760
        %4908 = vmatpush1.msra.mxu0 %v4907
        %4909 = vmatprep.subr.mxu0 0.0
        %v4910 = vand.u32 %v4517, 4294901760
        %4911 = vmatpush1.msra.mxu0 %v4910
        %4912 = vmatprep.subr.mxu0 0.0
        %4913 = vmatpush1.msra.mxu0 0.0
        %4914 = vmatprep.subr.mxu0 0.0
        %4915 = vmatpush1.msra.mxu0 0.0
        %4916 = vmatprep.subr.mxu0 0.0
        %4917 = vmatpush1.msra.mxu0 0.0
        %4918 = vmatprep.subr.mxu0 0.0
        %4919 = vmatpush1.msra.mxu0 0.0
        %4920 = vmatprep.subr.mxu0 0.0
        %4921 = vmatpush1.msra.mxu0 0.0
        %4922 = vmatprep.subr.mxu0 0.0
        %4923 = vmatpush1.msra.mxu0 0.0
        %4924 = vmatprep.subr.mxu0 0.0
        %4925 = vmatpush1.msra.mxu0 0.0
        %4926 = vmatprep.subr.mxu0 0.0
        %4927 = vmatpush1.msra.mxu0 0.0
        %4928 = vmatprep.subr.mxu0 0.0
        %4929 = vmatpush1.msra.mxu0 0.0
        %4930 = vmatprep.subr.mxu0 0.0
        %4931 = vmatpush1.msra.mxu0 0.0
        %4932 = vmatprep.subr.mxu0 0.0
        %4933 = vmatpush1.msra.mxu0 0.0
        %4934 = vmatprep.subr.mxu0 0.0
        %4935 = vmatpush1.msra.mxu0 0.0
        %4936 = vmatprep.subr.mxu0 0.0
        %4937 = vmatpush1.msra.mxu0 0.0
        %4938 = vmatprep.subr.mxu0 0.0
        %4939 = vmatpush1.msra.mxu0 0.0
        %4940 = vmatprep.subr.mxu0 0.0
        %4941 = vmatpush1.msra.mxu0 0.0
        %4942 = vmatprep.subr.mxu0 0.0
        %4943 = vmatpush1.msra.mxu0 0.0
        %4944 = vmatprep.mubr.f32.mxu0 0.0
        %v4945 = vand.u32 %v4501, 4294901760
        %v4946 = vsub.f32 %v4501, %v4945
        %v4947 = vand.u32 %v4946, 4294901760
        %4948 = vmatmul.mubr.f32.gmra.mrb[0].mxu0 %v4947
        %v4949 = vpop.f32.mrb[0].mxu0
        %v4950 = vadd.f32 %v4861, %v4949
        %v4951 = vpop.f32.mrb[0].mxu0
        %4952 = vdwg.mxu0
        %4953 = vmatprep.subr.mxu0 0.0
        %v4954 = vand.u32 %v4502, 4294901760
        %v4955 = vsub.f32 %v4502, %v4954
        %v4956 = vand.u32 %v4955, 4294901760
        %4957 = vmatpush1.msra.mxu0 %v4956
        %4958 = vmatprep.subr.mxu0 0.0
        %v4959 = vand.u32 %v4503, 4294901760
        %v4960 = vsub.f32 %v4503, %v4959
        %v4961 = vand.u32 %v4960, 4294901760
        %4962 = vmatpush1.msra.mxu0 %v4961
        %4963 = vmatprep.subr.mxu0 0.0
        %v4964 = vand.u32 %v4504, 4294901760
        %v4965 = vsub.f32 %v4504, %v4964
        %v4966 = vand.u32 %v4965, 4294901760
        %4967 = vmatpush1.msra.mxu0 %v4966
        %4968 = vmatprep.subr.mxu0 0.0
        %v4969 = vand.u32 %v4505, 4294901760
        %v4970 = vsub.f32 %v4505, %v4969
        %v4971 = vand.u32 %v4970, 4294901760
        %4972 = vmatpush1.msra.mxu0 %v4971
        %4973 = vmatprep.subr.mxu0 0.0
        %v4974 = vand.u32 %v4506, 4294901760
        %v4975 = vsub.f32 %v4506, %v4974
        %v4976 = vand.u32 %v4975, 4294901760
        %4977 = vmatpush1.msra.mxu0 %v4976
        %4978 = vmatprep.subr.mxu0 0.0
        %v4979 = vand.u32 %v4507, 4294901760
        %v4980 = vsub.f32 %v4507, %v4979
        %v4981 = vand.u32 %v4980, 4294901760
        %4982 = vmatpush1.msra.mxu0 %v4981
        %4983 = vmatprep.subr.mxu0 0.0
        %v4984 = vand.u32 %v4508, 4294901760
        %v4985 = vsub.f32 %v4508, %v4984
        %v4986 = vand.u32 %v4985, 4294901760
        %4987 = vmatpush1.msra.mxu0 %v4986
        %4988 = vmatprep.subr.mxu0 0.0
        %v4989 = vand.u32 %v4509, 4294901760
        %v4990 = vsub.f32 %v4509, %v4989
        %v4991 = vand.u32 %v4990, 4294901760
        %4992 = vmatpush1.msra.mxu0 %v4991
        %4993 = vmatprep.subr.mxu0 0.0
        %v4994 = vand.u32 %v4510, 4294901760
        %v4995 = vsub.f32 %v4510, %v4994
        %v4996 = vand.u32 %v4995, 4294901760
        %4997 = vmatpush1.msra.mxu0 %v4996
        %4998 = vmatprep.subr.mxu0 0.0
        %v4999 = vand.u32 %v4511, 4294901760
        %v5000 = vsub.f32 %v4511, %v4999
        %v5001 = vand.u32 %v5000, 4294901760
        %5002 = vmatpush1.msra.mxu0 %v5001
        %5003 = vmatprep.subr.mxu0 0.0
        %v5004 = vand.u32 %v4512, 4294901760
        %v5005 = vsub.f32 %v4512, %v5004
        %v5006 = vand.u32 %v5005, 4294901760
        %5007 = vmatpush1.msra.mxu0 %v5006
        %5008 = vmatprep.subr.mxu0 0.0
        %v5009 = vand.u32 %v4513, 4294901760
        %v5010 = vsub.f32 %v4513, %v5009
        %v5011 = vand.u32 %v5010, 4294901760
        %5012 = vmatpush1.msra.mxu0 %v5011
        %5013 = vmatprep.subr.mxu0 0.0
        %v5014 = vand.u32 %v4514, 4294901760
        %v5015 = vsub.f32 %v4514, %v5014
        %v5016 = vand.u32 %v5015, 4294901760
        %5017 = vmatpush1.msra.mxu0 %v5016
        %5018 = vmatprep.subr.mxu0 0.0
        %v5019 = vand.u32 %v4515, 4294901760
        %v5020 = vsub.f32 %v4515, %v5019
        %v5021 = vand.u32 %v5020, 4294901760
        %5022 = vmatpush1.msra.mxu0 %v5021
        %5023 = vmatprep.subr.mxu0 0.0
        %v5024 = vand.u32 %v4516, 4294901760
        %v5025 = vsub.f32 %v4516, %v5024
        %v5026 = vand.u32 %v5025, 4294901760
        %5027 = vmatpush1.msra.mxu0 %v5026
        %5028 = vmatprep.subr.mxu0 0.0
        %v5029 = vand.u32 %v4517, 4294901760
        %v5030 = vsub.f32 %v4517, %v5029
        %v5031 = vand.u32 %v5030, 4294901760
        %5032 = vmatpush1.msra.mxu0 %v5031
        %5033 = vmatprep.subr.mxu0 0.0
        %5034 = vmatpush1.msra.mxu0 0.0
        %5035 = vmatprep.subr.mxu0 0.0
        %5036 = vmatpush1.msra.mxu0 0.0
        %5037 = vmatprep.subr.mxu0 0.0
        %5038 = vmatpush1.msra.mxu0 0.0
        %5039 = vmatprep.subr.mxu0 0.0
        %5040 = vmatpush1.msra.mxu0 0.0
        %5041 = vmatprep.subr.mxu0 0.0
        %5042 = vmatpush1.msra.mxu0 0.0
        %5043 = vmatprep.subr.mxu0 0.0
        %5044 = vmatpush1.msra.mxu0 0.0
        %5045 = vmatprep.subr.mxu0 0.0
        %5046 = vmatpush1.msra.mxu0 0.0
        %5047 = vmatprep.subr.mxu0 0.0
        %5048 = vmatpush1.msra.mxu0 0.0
        %5049 = vmatprep.subr.mxu0 0.0
        %5050 = vmatpush1.msra.mxu0 0.0
        %5051 = vmatprep.subr.mxu0 0.0
        %5052 = vmatpush1.msra.mxu0 0.0
        %5053 = vmatprep.subr.mxu0 0.0
        %5054 = vmatpush1.msra.mxu0 0.0
        %5055 = vmatprep.subr.mxu0 0.0
        %5056 = vmatpush1.msra.mxu0 0.0
        %5057 = vmatprep.subr.mxu0 0.0
        %5058 = vmatpush1.msra.mxu0 0.0
        %5059 = vmatprep.subr.mxu0 0.0
        %5060 = vmatpush1.msra.mxu0 0.0
        %5061 = vmatprep.subr.mxu0 0.0
        %5062 = vmatpush1.msra.mxu0 0.0
        %5063 = vmatprep.subr.mxu0 0.0
        %5064 = vmatpush1.msra.mxu0 0.0
        %5065 = vmatprep.mubr.f32.mxu0 0.0
        %v5066 = vand.u32 %v4501, 4294901760
        %5067 = vmatmul.mubr.f32.gmra.mrb[0].mxu0 %v5066
        %v5068 = vpop.f32.mrb[0].mxu0
        %v5069 = vadd.f32 %v4950, %v5068
        %v5070 = vpop.f32.mrb[0].mxu0
        %5071 = vdwg.mxu0
        %5072 = vmatprep.subr.mxu0 0.0
        %v5073 = vand.u32 %v4502, 4294901760
        %5074 = vmatpush1.msra.mxu0 %v5073
        %5075 = vmatprep.subr.mxu0 0.0
        %v5076 = vand.u32 %v4503, 4294901760
        %5077 = vmatpush1.msra.mxu0 %v5076
        %5078 = vmatprep.subr.mxu0 0.0
        %v5079 = vand.u32 %v4504, 4294901760
        %5080 = vmatpush1.msra.mxu0 %v5079
        %5081 = vmatprep.subr.mxu0 0.0
        %v5082 = vand.u32 %v4505, 4294901760
        %5083 = vmatpush1.msra.mxu0 %v5082
        %5084 = vmatprep.subr.mxu0 0.0
        %v5085 = vand.u32 %v4506, 4294901760
        %5086 = vmatpush1.msra.mxu0 %v5085
        %5087 = vmatprep.subr.mxu0 0.0
        %v5088 = vand.u32 %v4507, 4294901760
        %5089 = vmatpush1.msra.mxu0 %v5088
        %5090 = vmatprep.subr.mxu0 0.0
        %v5091 = vand.u32 %v4508, 4294901760
        %5092 = vmatpush1.msra.mxu0 %v5091
        %5093 = vmatprep.subr.mxu0 0.0
        %v5094 = vand.u32 %v4509, 4294901760
        %5095 = vmatpush1.msra.mxu0 %v5094
        %5096 = vmatprep.subr.mxu0 0.0
        %v5097 = vand.u32 %v4510, 4294901760
        %5098 = vmatpush1.msra.mxu0 %v5097
        %5099 = vmatprep.subr.mxu0 0.0
        %v5100 = vand.u32 %v4511, 4294901760
        %5101 = vmatpush1.msra.mxu0 %v5100
        %5102 = vmatprep.subr.mxu0 0.0
        %v5103 = vand.u32 %v4512, 4294901760
        %5104 = vmatpush1.msra.mxu0 %v5103
        %5105 = vmatprep.subr.mxu0 0.0
        %v5106 = vand.u32 %v4513, 4294901760
        %5107 = vmatpush1.msra.mxu0 %v5106
        %5108 = vmatprep.subr.mxu0 0.0
        %v5109 = vand.u32 %v4514, 4294901760
        %5110 = vmatpush1.msra.mxu0 %v5109
        %5111 = vmatprep.subr.mxu0 0.0
        %v5112 = vand.u32 %v4515, 4294901760
        %5113 = vmatpush1.msra.mxu0 %v5112
        %5114 = vmatprep.subr.mxu0 0.0
        %v5115 = vand.u32 %v4516, 4294901760
        %5116 = vmatpush1.msra.mxu0 %v5115
        %5117 = vmatprep.subr.mxu0 0.0
        %v5118 = vand.u32 %v4517, 4294901760
        %5119 = vmatpush1.msra.mxu0 %v5118
        %5120 = vmatprep.subr.mxu0 0.0
        %5121 = vmatpush1.msra.mxu0 0.0
        %5122 = vmatprep.subr.mxu0 0.0
        %5123 = vmatpush1.msra.mxu0 0.0
        %5124 = vmatprep.subr.mxu0 0.0
        %5125 = vmatpush1.msra.mxu0 0.0
        %5126 = vmatprep.subr.mxu0 0.0
        %5127 = vmatpush1.msra.mxu0 0.0
        %5128 = vmatprep.subr.mxu0 0.0
        %5129 = vmatpush1.msra.mxu0 0.0
        %5130 = vmatprep.subr.mxu0 0.0
        %5131 = vmatpush1.msra.mxu0 0.0
        %5132 = vmatprep.subr.mxu0 0.0
        %5133 = vmatpush1.msra.mxu0 0.0
        %5134 = vmatprep.subr.mxu0 0.0
        %5135 = vmatpush1.msra.mxu0 0.0
        %5136 = vmatprep.subr.mxu0 0.0
        %5137 = vmatpush1.msra.mxu0 0.0
        %5138 = vmatprep.subr.mxu0 0.0
        %5139 = vmatpush1.msra.mxu0 0.0
        %5140 = vmatprep.subr.mxu0 0.0
        %5141 = vmatpush1.msra.mxu0 0.0
        %5142 = vmatprep.subr.mxu0 0.0
        %5143 = vmatpush1.msra.mxu0 0.0
        %5144 = vmatprep.subr.mxu0 0.0
        %5145 = vmatpush1.msra.mxu0 0.0
        %5146 = vmatprep.subr.mxu0 0.0
        %5147 = vmatpush1.msra.mxu0 0.0
        %5148 = vmatprep.subr.mxu0 0.0
        %5149 = vmatpush1.msra.mxu0 0.0
        %5150 = vmatprep.subr.mxu0 0.0
        %5151 = vmatpush1.msra.mxu0 0.0
        %5152 = vmatprep.mubr.f32.mxu0 0.0
        %v5153 = vand.u32 %v4501, 4294901760
        %5154 = vmatmul.mubr.f32.gmra.mrb[0].mxu0 %v5153
        %v5155 = vpop.f32.mrb[0].mxu0
        %v5156 = vadd.f32 %v5069, %v5155
        %v5157 = vpop.f32.mrb[0].mxu0
        %5158 = vdwg.mxu0
        %v5159 = vmul.f32 %v5156, 0.0009765625
        %v5160 = vmul.f32 %v5159, %v5159
        %v5162 = vrot.slane %v5160, 7
        %v5164 = vsub.f32 %v5159, %v5162
        %v5165 = vadd.f32 %v5164, 1e-06
        %v5166 = vrsqrt.pop %v5165
        %v5167 = vsel %vm719, %v5159, %v5166
        %v5168 = vld [vmem:[#allocation9] sm:$0xff]
        %v5169 = vld [vmem:[#allocation9 + $0x8] sm:$0xff]
        %v5170 = vld [vmem:[#allocation9 + $0x10] sm:$0xff]
        %v5171 = vld [vmem:[#allocation9 + $0x18] sm:$0xff]
        %v5173 = vsel %vm1391, %v5167, 0
        %5175 = vmatprep.subr.mxu0 0.0
        %v5176 = vand.u32 %v5168, 4294901760
        %5177 = vmatpush1.msra.mxu0 %v5176
        %5178 = vmatprep.subr.mxu0 0.0
        %v5179 = vand.u32 %v5169, 4294901760
        %5180 = vmatpush1.msra.mxu0 %v5179
        %5181 = vmatprep.subr.mxu0 0.0
        %v5182 = vand.u32 %v5170, 4294901760
        %5183 = vmatpush1.msra.mxu0 %v5182
        %5184 = vmatprep.subr.mxu0 0.0
        %v5185 = vand.u32 %v5171, 4294901760
        %5186 = vmatpush1.msra.mxu0 %v5185
        %5187 = vmatprep.subr.mxu0 0.0
        %5188 = vmatpush1.msra.mxu0 0.0
        %5189 = vmatprep.subr.mxu0 0.0
        %5190 = vmatpush1.msra.mxu0 0.0
        %5191 = vmatprep.subr.mxu0 0.0
        %5192 = vmatpush1.msra.mxu0 0.0
        %5193 = vmatprep.subr.mxu0 0.0
        %5194 = vmatpush1.msra.mxu0 0.0
        %5195 = vmatprep.subr.mxu0 0.0
        %5196 = vmatpush1.msra.mxu0 0.0
        %5197 = vmatprep.subr.mxu0 0.0
        %5198 = vmatpush1.msra.mxu0 0.0
        %5199 = vmatprep.subr.mxu0 0.0
        %5200 = vmatpush1.msra.mxu0 0.0
        %5201 = vmatprep.subr.mxu0 0.0
        %5202 = vmatpush1.msra.mxu0 0.0
        %5203 = vmatprep.subr.mxu0 0.0
        %5204 = vmatpush1.msra.mxu0 0.0
        %5205 = vmatprep.subr.mxu0 0.0
        %5206 = vmatpush1.msra.mxu0 0.0
        %5207 = vmatprep.subr.mxu0 0.0
        %5208 = vmatpush1.msra.mxu0 0.0
        %5209 = vmatprep.subr.mxu0 0.0
        %5210 = vmatpush1.msra.mxu0 0.0
        %5211 = vmatprep.subr.mxu0 0.0
        %5212 = vmatpush1.msra.mxu0 0.0
        %5213 = vmatprep.subr.mxu0 0.0
        %5214 = vmatpush1.msra.mxu0 0.0
        %5215 = vmatprep.subr.mxu0 0.0
        %5216 = vmatpush1.msra.mxu0 0.0
        %5217 = vmatprep.subr.mxu0 0.0
        %5218 = vmatpush1.msra.mxu0 0.0
        %5219 = vmatprep.subr.mxu0 0.0
        %5220 = vmatpush1.msra.mxu0 0.0
        %5221 = vmatprep.subr.mxu0 0.0
        %5222 = vmatpush1.msra.mxu0 0.0
        %5223 = vmatprep.subr.mxu0 0.0
        %5224 = vmatpush1.msra.mxu0 0.0
        %5225 = vmatprep.subr.mxu0 0.0
        %5226 = vmatpush1.msra.mxu0 0.0
        %5227 = vmatprep.subr.mxu0 0.0
        %5228 = vmatpush1.msra.mxu0 0.0
        %5229 = vmatprep.subr.mxu0 0.0
        %5230 = vmatpush1.msra.mxu0 0.0
        %5231 = vmatprep.subr.mxu0 0.0
        %5232 = vmatpush1.msra.mxu0 0.0
        %5233 = vmatprep.subr.mxu0 0.0
        %5234 = vmatpush1.msra.mxu0 0.0
        %5235 = vmatprep.subr.mxu0 0.0
        %5236 = vmatpush1.msra.mxu0 0.0
        %5237 = vmatprep.subr.mxu0 0.0
        %5238 = vmatpush1.msra.mxu0 0.0
        %5239 = vmatprep.subr.mxu0 0.0
        %5240 = vmatpush1.msra.mxu0 0.0
        %5241 = vmatprep.subr.mxu0 0.0
        %5242 = vmatpush1.msra.mxu0 0.0
        %5243 = vmatprep.mubr.f32.mxu0 0.0
        %v5244 = vand.u32 %v5173, 4294901760
        %v5245 = vsub.f32 %v5173, %v5244
        %v5246 = vand.u32 %v5245, 4294901760
        %v5247 = vsub.f32 %v5245, %v5246
        %v5248 = vand.u32 %v5247, 4294901760
        %5249 = vmatmul.mubr.f32.gmra.mrb[0].mxu0 %v5248
        %v5250 = vpop.f32.mrb[0].mxu0
        %v5251 = vadd.f32 0.0, %v5250
        %v5252 = vpop.f32.mrb[0].mxu0
        %5253 = vdwg.mxu0
        %5254 = vmatprep.subr.mxu0 0.0
        %v5255 = vand.u32 %v5168, 4294901760
        %v5256 = vsub.f32 %v5168, %v5255
        %v5257 = vand.u32 %v5256, 4294901760
        %v5258 = vsub.f32 %v5256, %v5257
        %v5259 = vand.u32 %v5258, 4294901760
        %5260 = vmatpush1.msra.mxu0 %v5259
        %5261 = vmatprep.subr.mxu0 0.0
        %v5262 = vand.u32 %v5169, 4294901760
        %v5263 = vsub.f32 %v5169, %v5262
        %v5264 = vand.u32 %v5263, 4294901760
        %v5265 = vsub.f32 %v5263, %v5264
        %v5266 = vand.u32 %v5265, 4294901760
        %5267 = vmatpush1.msra.mxu0 %v5266
        %5268 = vmatprep.subr.mxu0 0.0
        %v5269 = vand.u32 %v5170, 4294901760
        %v5270 = vsub.f32 %v5170, %v5269
        %v5271 = vand.u32 %v5270, 4294901760
        %v5272 = vsub.f32 %v5270, %v5271
        %v5273 = vand.u32 %v5272, 4294901760
        %5274 = vmatpush1.msra.mxu0 %v5273
        %5275 = vmatprep.subr.mxu0 0.0
        %v5276 = vand.u32 %v5171, 4294901760
        %v5277 = vsub.f32 %v5171, %v5276
        %v5278 = vand.u32 %v5277, 4294901760
        %v5279 = vsub.f32 %v5277, %v5278
        %v5280 = vand.u32 %v5279, 4294901760
        %5281 = vmatpush1.msra.mxu0 %v5280
        %5282 = vmatprep.subr.mxu0 0.0
        %5283 = vmatpush1.msra.mxu0 0.0
        %5284 = vmatprep.subr.mxu0 0.0
        %5285 = vmatpush1.msra.mxu0 0.0
        %5286 = vmatprep.subr.mxu0 0.0
        %5287 = vmatpush1.msra.mxu0 0.0
        %5288 = vmatprep.subr.mxu0 0.0
        %5289 = vmatpush1.msra.mxu0 0.0
        %5290 = vmatprep.subr.mxu0 0.0
        %5291 = vmatpush1.msra.mxu0 0.0
        %5292 = vmatprep.subr.mxu0 0.0
        %5293 = vmatpush1.msra.mxu0 0.0
        %5294 = vmatprep.subr.mxu0 0.0
        %5295 = vmatpush1.msra.mxu0 0.0
        %5296 = vmatprep.subr.mxu0 0.0
        %5297 = vmatpush1.msra.mxu0 0.0
        %5298 = vmatprep.subr.mxu0 0.0
        %5299 = vmatpush1.msra.mxu0 0.0
        %5300 = vmatprep.subr.mxu0 0.0
        %5301 = vmatpush1.msra.mxu0 0.0
        %5302 = vmatprep.subr.mxu0 0.0
        %5303 = vmatpush1.msra.mxu0 0.0
        %5304 = vmatprep.subr.mxu0 0.0
        %5305 = vmatpush1.msra.mxu0 0.0
        %5306 = vmatprep.subr.mxu0 0.0
        %5307 = vmatpush1.msra.mxu0 0.0
        %5308 = vmatprep.subr.mxu0 0.0
        %5309 = vmatpush1.msra.mxu0 0.0
        %5310 = vmatprep.subr.mxu0 0.0
        %5311 = vmatpush1.msra.mxu0 0.0
        %5312 = vmatprep.subr.mxu0 0.0
        %5313 = vmatpush1.msra.mxu0 0.0
        %5314 = vmatprep.subr.mxu0 0.0
        %5315 = vmatpush1.msra.mxu0 0.0
        %5316 = vmatprep.subr.mxu0 0.0
        %5317 = vmatpush1.msra.mxu0 0.0
        %5318 = vmatprep.subr.mxu0 0.0
        %5319 = vmatpush1.msra.mxu0 0.0
        %5320 = vmatprep.subr.mxu0 0.0
        %5321 = vmatpush1.msra.mxu0 0.0
        %5322 = vmatprep.subr.mxu0 0.0
        %5323 = vmatpush1.msra.mxu0 0.0
        %5324 = vmatprep.subr.mxu0 0.0
        %5325 = vmatpush1.msra.mxu0 0.0
        %5326 = vmatprep.subr.mxu0 0.0
        %5327 = vmatpush1.msra.mxu0 0.0
        %5328 = vmatprep.subr.mxu0 0.0
        %5329 = vmatpush1.msra.mxu0 0.0
        %5330 = vmatprep.subr.mxu0 0.0
        %5331 = vmatpush1.msra.mxu0 0.0
        %5332 = vmatprep.subr.mxu0 0.0
        %5333 = vmatpush1.msra.mxu0 0.0
        %5334 = vmatprep.subr.mxu0 0.0
        %5335 = vmatpush1.msra.mxu0 0.0
        %5336 = vmatprep.subr.mxu0 0.0
        %5337 = vmatpush1.msra.mxu0 0.0
        %5338 = vmatprep.mubr.f32.mxu0 0.0
        %v5339 = vand.u32 %v5173, 4294901760
        %5340 = vmatmul.mubr.f32.gmra.mrb[0].mxu0 %v5339
        %v5341 = vpop.f32.mrb[0].mxu0
        %v5342 = vadd.f32 %v5251, %v5341
        %v5343 = vpop.f32.mrb[0].mxu0
        %5344 = vdwg.mxu0
        %5345 = vmatprep.subr.mxu0 0.0
        %v5346 = vand.u32 %v5168, 4294901760
        %v5347 = vsub.f32 %v5168, %v5346
        %5348 = vmatpush1.msra.mxu0 %v5347
        %5349 = vmatprep.subr.mxu0 0.0
        %v5350 = vand.u32 %v5169, 4294901760
        %v5351 = vsub.f32 %v5169, %v5350
        %5352 = vmatpush1.msra.mxu0 %v5351
        %5353 = vmatprep.subr.mxu0 0.0
        %v5354 = vand.u32 %v5170, 4294901760
        %v5355 = vsub.f32 %v5170, %v5354
        %5356 = vmatpush1.msra.mxu0 %v5355
        %5357 = vmatprep.subr.mxu0 0.0
        %v5358 = vand.u32 %v5171, 4294901760
        %v5359 = vsub.f32 %v5171, %v5358
        %5360 = vmatpush1.msra.mxu0 %v5359
        %5361 = vmatprep.subr.mxu0 0.0
        %5362 = vmatpush1.msra.mxu0 0.0
        %5363 = vmatprep.subr.mxu0 0.0
        %5364 = vmatpush1.msra.mxu0 0.0
        %5365 = vmatprep.subr.mxu0 0.0
        %5366 = vmatpush1.msra.mxu0 0.0
        %5367 = vmatprep.subr.mxu0 0.0
        %5368 = vmatpush1.msra.mxu0 0.0
        %5369 = vmatprep.subr.mxu0 0.0
        %5370 = vmatpush1.msra.mxu0 0.0
        %5371 = vmatprep.subr.mxu0 0.0
        %5372 = vmatpush1.msra.mxu0 0.0
        %5373 = vmatprep.subr.mxu0 0.0
        %5374 = vmatpush1.msra.mxu0 0.0
        %5375 = vmatprep.subr.mxu0 0.0
        %5376 = vmatpush1.msra.mxu0 0.0
        %5377 = vmatprep.subr.mxu0 0.0
        %5378 = vmatpush1.msra.mxu0 0.0
        %5379 = vmatprep.subr.mxu0 0.0
        %5380 = vmatpush1.msra.mxu0 0.0
        %5381 = vmatprep.subr.mxu0 0.0
        %5382 = vmatpush1.msra.mxu0 0.0
        %5383 = vmatprep.subr.mxu0 0.0
        %5384 = vmatpush1.msra.mxu0 0.0
        %5385 = vmatprep.subr.mxu0 0.0
        %5386 = vmatpush1.msra.mxu0 0.0
        %5387 = vmatprep.subr.mxu0 0.0
        %5388 = vmatpush1.msra.mxu0 0.0
        %5389 = vmatprep.subr.mxu0 0.0
        %5390 = vmatpush1.msra.mxu0 0.0
        %5391 = vmatprep.subr.mxu0 0.0
        %5392 = vmatpush1.msra.mxu0 0.0
        %5393 = vmatprep.subr.mxu0 0.0
        %5394 = vmatpush1.msra.mxu0 0.0
        %5395 = vmatprep.subr.mxu0 0.0
        %5396 = vmatpush1.msra.mxu0 0.0
        %5397 = vmatprep.subr.mxu0 0.0
        %5398 = vmatpush1.msra.mxu0 0.0
        %5399 = vmatprep.subr.mxu0 0.0
        %5400 = vmatpush1.msra.mxu0 0.0
        %5401 = vmatprep.subr.mxu0 0.0
        %5402 = vmatpush1.msra.mxu0 0.0
        %5403 = vmatprep.subr.mxu0 0.0
        %5404 = vmatpush1.msra.mxu0 0.0
        %5405 = vmatprep.subr.mxu0 0.0
        %5406 = vmatpush1.msra.mxu0 0.0
        %5407 = vmatprep.subr.mxu0 0.0
        %5408 = vmatpush1.msra.mxu0 0.0
        %5409 = vmatprep.subr.mxu0 0.0
        %5410 = vmatpush1.msra.mxu0 0.0
        %5411 = vmatprep.subr.mxu0 0.0
        %5412 = vmatpush1.msra.mxu0 0.0
        %5413 = vmatprep.subr.mxu0 0.0
        %5414 = vmatpush1.msra.mxu0 0.0
        %5415 = vmatprep.subr.mxu0 0.0
        %5416 = vmatpush1.msra.mxu0 0.0
        %5417 = vmatprep.mubr.f32.mxu0 0.0
        %v5418 = vand.u32 %v5173, 4294901760
        %v5419 = vsub.f32 %v5173, %v5418
        %5420 = vmatmul.mubr.f32.gmra.mrb[0].mxu0 %v5419
        %v5421 = vpop.f32.mrb[0].mxu0
        %v5422 = vadd.f32 %v5342, %v5421
        %v5423 = vpop.f32.mrb[0].mxu0
        %5424 = vdwg.mxu0
        %5425 = vmatprep.subr.mxu0 0.0
        %v5426 = vand.u32 %v5168, 4294901760
        %5427 = vmatpush1.msra.mxu0 %v5426
        %5428 = vmatprep.subr.mxu0 0.0
        %v5429 = vand.u32 %v5169, 4294901760
        %5430 = vmatpush1.msra.mxu0 %v5429
        %5431 = vmatprep.subr.mxu0 0.0
        %v5432 = vand.u32 %v5170, 4294901760
        %5433 = vmatpush1.msra.mxu0 %v5432
        %5434 = vmatprep.subr.mxu0 0.0
        %v5435 = vand.u32 %v5171, 4294901760
        %5436 = vmatpush1.msra.mxu0 %v5435
        %5437 = vmatprep.subr.mxu0 0.0
        %5438 = vmatpush1.msra.mxu0 0.0
        %5439 = vmatprep.subr.mxu0 0.0
        %5440 = vmatpush1.msra.mxu0 0.0
        %5441 = vmatprep.subr.mxu0 0.0
        %5442 = vmatpush1.msra.mxu0 0.0
        %5443 = vmatprep.subr.mxu0 0.0
        %5444 = vmatpush1.msra.mxu0 0.0
        %5445 = vmatprep.subr.mxu0 0.0
        %5446 = vmatpush1.msra.mxu0 0.0
        %5447 = vmatprep.subr.mxu0 0.0
        %5448 = vmatpush1.msra.mxu0 0.0
        %5449 = vmatprep.subr.mxu0 0.0
        %5450 = vmatpush1.msra.mxu0 0.0
        %5451 = vmatprep.subr.mxu0 0.0
        %5452 = vmatpush1.msra.mxu0 0.0
        %5453 = vmatprep.subr.mxu0 0.0
        %5454 = vmatpush1.msra.mxu0 0.0
        %5455 = vmatprep.subr.mxu0 0.0
        %5456 = vmatpush1.msra.mxu0 0.0
        %5457 = vmatprep.subr.mxu0 0.0
        %5458 = vmatpush1.msra.mxu0 0.0
        %5459 = vmatprep.subr.mxu0 0.0
        %5460 = vmatpush1.msra.mxu0 0.0
        %5461 = vmatprep.subr.mxu0 0.0
        %5462 = vmatpush1.msra.mxu0 0.0
        %5463 = vmatprep.subr.mxu0 0.0
        %5464 = vmatpush1.msra.mxu0 0.0
        %5465 = vmatprep.subr.mxu0 0.0
        %5466 = vmatpush1.msra.mxu0 0.0
        %5467 = vmatprep.subr.mxu0 0.0
        %5468 = vmatpush1.msra.mxu0 0.0
        %5469 = vmatprep.subr.mxu0 0.0
        %5470 = vmatpush1.msra.mxu0 0.0
        %5471 = vmatprep.subr.mxu0 0.0
        %5472 = vmatpush1.msra.mxu0 0.0
        %5473 = vmatprep.subr.mxu0 0.0
        %5474 = vmatpush1.msra.mxu0 0.0
        %5475 = vmatprep.subr.mxu0 0.0
        %5476 = vmatpush1.msra.mxu0 0.0
        %5477 = vmatprep.subr.mxu0 0.0
        %5478 = vmatpush1.msra.mxu0 0.0
        %5479 = vmatprep.subr.mxu0 0.0
        %5480 = vmatpush1.msra.mxu0 0.0
        %5481 = vmatprep.subr.mxu0 0.0
        %5482 = vmatpush1.msra.mxu0 0.0
        %5483 = vmatprep.subr.mxu0 0.0
        %5484 = vmatpush1.msra.mxu0 0.0
        %5485 = vmatprep.subr.mxu0 0.0
        %5486 = vmatpush1.msra.mxu0 0.0
        %5487 = vmatprep.subr.mxu0 0.0
        %5488 = vmatpush1.msra.mxu0 0.0
        %5489 = vmatprep.subr.mxu0 0.0
        %5490 = vmatpush1.msra.mxu0 0.0
        %5491 = vmatprep.subr.mxu0 0.0
        %5492 = vmatpush1.msra.mxu0 0.0
        %5493 = vmatprep.mubr.f32.mxu0 0.0
        %v5494 = vand.u32 %v5173, 4294901760
        %v5495 = vsub.f32 %v5173, %v5494
        %v5496 = vand.u32 %v5495, 4294901760
        %5497 = vmatmul.mubr.f32.gmra.mrb[0].mxu0 %v5496
        %v5498 = vpop.f32.mrb[0].mxu0
        %v5499 = vadd.f32 %v5422, %v5498
        %v5500 = vpop.f32.mrb[0].mxu0
        %5501 = vdwg.mxu0
        %5502 = vmatprep.subr.mxu0 0.0
        %v5503 = vand.u32 %v5168, 4294901760
        %v5504 = vsub.f32 %v5168, %v5503
        %v5505 = vand.u32 %v5504, 4294901760
        %5506 = vmatpush1.msra.mxu0 %v5505
        %5507 = vmatprep.subr.mxu0 0.0
        %v5508 = vand.u32 %v5169, 4294901760
        %v5509 = vsub.f32 %v5169, %v5508
        %v5510 = vand.u32 %v5509, 4294901760
        %5511 = vmatpush1.msra.mxu0 %v5510
        %5512 = vmatprep.subr.mxu0 0.0
        %v5513 = vand.u32 %v5170, 4294901760
        %v5514 = vsub.f32 %v5170, %v5513
        %v5515 = vand.u32 %v5514, 4294901760
        %5516 = vmatpush1.msra.mxu0 %v5515
        %5517 = vmatprep.subr.mxu0 0.0
        %v5518 = vand.u32 %v5171, 4294901760
        %v5519 = vsub.f32 %v5171, %v5518
        %v5520 = vand.u32 %v5519, 4294901760
        %5521 = vmatpush1.msra.mxu0 %v5520
        %5522 = vmatprep.subr.mxu0 0.0
        %5523 = vmatpush1.msra.mxu0 0.0
        %5524 = vmatprep.subr.mxu0 0.0
        %5525 = vmatpush1.msra.mxu0 0.0
        %5526 = vmatprep.subr.mxu0 0.0
        %5527 = vmatpush1.msra.mxu0 0.0
        %5528 = vmatprep.subr.mxu0 0.0
        %5529 = vmatpush1.msra.mxu0 0.0
        %5530 = vmatprep.subr.mxu0 0.0
        %5531 = vmatpush1.msra.mxu0 0.0
        %5532 = vmatprep.subr.mxu0 0.0
        %5533 = vmatpush1.msra.mxu0 0.0
        %5534 = vmatprep.subr.mxu0 0.0
        %5535 = vmatpush1.msra.mxu0 0.0
        %5536 = vmatprep.subr.mxu0 0.0
        %5537 = vmatpush1.msra.mxu0 0.0
        %5538 = vmatprep.subr.mxu0 0.0
        %5539 = vmatpush1.msra.mxu0 0.0
        %5540 = vmatprep.subr.mxu0 0.0
        %5541 = vmatpush1.msra.mxu0 0.0
        %5542 = vmatprep.subr.mxu0 0.0
        %5543 = vmatpush1.msra.mxu0 0.0
        %5544 = vmatprep.subr.mxu0 0.0
        %5545 = vmatpush1.msra.mxu0 0.0
        %5546 = vmatprep.subr.mxu0 0.0
        %5547 = vmatpush1.msra.mxu0 0.0
        %5548 = vmatprep.subr.mxu0 0.0
        %5549 = vmatpush1.msra.mxu0 0.0
        %5550 = vmatprep.subr.mxu0 0.0
        %5551 = vmatpush1.msra.mxu0 0.0
        %5552 = vmatprep.subr.mxu0 0.0
        %5553 = vmatpush1.msra.mxu0 0.0
        %5554 = vmatprep.subr.mxu0 0.0
        %5555 = vmatpush1.msra.mxu0 0.0
        %5556 = vmatprep.subr.mxu0 0.0
        %5557 = vmatpush1.msra.mxu0 0.0
        %5558 = vmatprep.subr.mxu0 0.0
        %5559 = vmatpush1.msra.mxu0 0.0
        %5560 = vmatprep.subr.mxu0 0.0
        %5561 = vmatpush1.msra.mxu0 0.0
        %5562 = vmatprep.subr.mxu0 0.0
        %5563 = vmatpush1.msra.mxu0 0.0
        %5564 = vmatprep.subr.mxu0 0.0
        %5565 = vmatpush1.msra.mxu0 0.0
        %5566 = vmatprep.subr.mxu0 0.0
        %5567 = vmatpush1.msra.mxu0 0.0
        %5568 = vmatprep.subr.mxu0 0.0
        %5569 = vmatpush1.msra.mxu0 0.0
        %5570 = vmatprep.subr.mxu0 0.0
        %5571 = vmatpush1.msra.mxu0 0.0
        %5572 = vmatprep.subr.mxu0 0.0
        %5573 = vmatpush1.msra.mxu0 0.0
        %5574 = vmatprep.subr.mxu0 0.0
        %5575 = vmatpush1.msra.mxu0 0.0
        %5576 = vmatprep.subr.mxu0 0.0
        %5577 = vmatpush1.msra.mxu0 0.0
        %5578 = vmatprep.mubr.f32.mxu0 0.0
        %v5579 = vand.u32 %v5173, 4294901760
        %5580 = vmatmul.mubr.f32.gmra.mrb[0].mxu0 %v5579
        %v5581 = vpop.f32.mrb[0].mxu0
        %v5582 = vadd.f32 %v5499, %v5581
        %v5583 = vpop.f32.mrb[0].mxu0
        %5584 = vdwg.mxu0
        %5585 = vmatprep.subr.mxu0 0.0
        %v5586 = vand.u32 %v5168, 4294901760
        %5587 = vmatpush1.msra.mxu0 %v5586
        %5588 = vmatprep.subr.mxu0 0.0
        %v5589 = vand.u32 %v5169, 4294901760
        %5590 = vmatpush1.msra.mxu0 %v5589
        %5591 = vmatprep.subr.mxu0 0.0
        %v5592 = vand.u32 %v5170, 4294901760
        %5593 = vmatpush1.msra.mxu0 %v5592
        %5594 = vmatprep.subr.mxu0 0.0
        %v5595 = vand.u32 %v5171, 4294901760
        %5596 = vmatpush1.msra.mxu0 %v5595
        %5597 = vmatprep.subr.mxu0 0.0
        %5598 = vmatpush1.msra.mxu0 0.0
        %5599 = vmatprep.subr.mxu0 0.0
        %5600 = vmatpush1.msra.mxu0 0.0
        %5601 = vmatprep.subr.mxu0 0.0
        %5602 = vmatpush1.msra.mxu0 0.0
        %5603 = vmatprep.subr.mxu0 0.0
        %5604 = vmatpush1.msra.mxu0 0.0
        %5605 = vmatprep.subr.mxu0 0.0
        %5606 = vmatpush1.msra.mxu0 0.0
        %5607 = vmatprep.subr.mxu0 0.0
        %5608 = vmatpush1.msra.mxu0 0.0
        %5609 = vmatprep.subr.mxu0 0.0
        %5610 = vmatpush1.msra.mxu0 0.0
        %5611 = vmatprep.subr.mxu0 0.0
        %5612 = vmatpush1.msra.mxu0 0.0
        %5613 = vmatprep.subr.mxu0 0.0
        %5614 = vmatpush1.msra.mxu0 0.0
        %5615 = vmatprep.subr.mxu0 0.0
        %5616 = vmatpush1.msra.mxu0 0.0
        %5617 = vmatprep.subr.mxu0 0.0
        %5618 = vmatpush1.msra.mxu0 0.0
        %5619 = vmatprep.subr.mxu0 0.0
        %5620 = vmatpush1.msra.mxu0 0.0
        %5621 = vmatprep.subr.mxu0 0.0
        %5622 = vmatpush1.msra.mxu0 0.0
        %5623 = vmatprep.subr.mxu0 0.0
        %5624 = vmatpush1.msra.mxu0 0.0
        %5625 = vmatprep.subr.mxu0 0.0
        %5626 = vmatpush1.msra.mxu0 0.0
        %5627 = vmatprep.subr.mxu0 0.0
        %5628 = vmatpush1.msra.mxu0 0.0
        %5629 = vmatprep.subr.mxu0 0.0
        %5630 = vmatpush1.msra.mxu0 0.0
        %5631 = vmatprep.subr.mxu0 0.0
        %5632 = vmatpush1.msra.mxu0 0.0
        %5633 = vmatprep.subr.mxu0 0.0
        %5634 = vmatpush1.msra.mxu0 0.0
        %5635 = vmatprep.subr.mxu0 0.0
        %5636 = vmatpush1.msra.mxu0 0.0
        %5637 = vmatprep.subr.mxu0 0.0
        %5638 = vmatpush1.msra.mxu0 0.0
        %5639 = vmatprep.subr.mxu0 0.0
        %5640 = vmatpush1.msra.mxu0 0.0
        %5641 = vmatprep.subr.mxu0 0.0
        %5642 = vmatpush1.msra.mxu0 0.0
        %5643 = vmatprep.subr.mxu0 0.0
        %5644 = vmatpush1.msra.mxu0 0.0
        %5645 = vmatprep.subr.mxu0 0.0
        %5646 = vmatpush1.msra.mxu0 0.0
        %5647 = vmatprep.subr.mxu0 0.0
        %5648 = vmatpush1.msra.mxu0 0.0
        %5649 = vmatprep.subr.mxu0 0.0
        %5650 = vmatpush1.msra.mxu0 0.0
        %5651 = vmatprep.subr.mxu0 0.0
        %5652 = vmatpush1.msra.mxu0 0.0
        %5653 = vmatprep.mubr.f32.mxu0 0.0
        %v5654 = vand.u32 %v5173, 4294901760
        %5655 = vmatmul.mubr.f32.gmra.mrb[0].mxu0 %v5654
        %v5656 = vpop.f32.mrb[0].mxu0
        %v5657 = vadd.f32 %v5582, %v5656
        %v5658 = vpop.f32.mrb[0].mxu0
        %5659 = vdwg.mxu0
        %v5660 = vlaneseq
        %v5661 = vshrl.u32 %v5660, 7
        %v5662 = vsub.s32 0, %v5661
        %v5663 = vrot.slane %v5657, %v5662
        %v5664 = vsub.f32 %v4267, %v5663
        %v5665 = vsub.f32 %v4270, %v5663
        %v5666 = vsub.f32 %v4275, %v5663
        %v5667 = vsub.f32 %v4278, %v5663
        %v5668 = vsub.f32 %v4283, %v5663
        %v5669 = vsub.f32 %v4286, %v5663
        %v5670 = vsub.f32 %v4291, %v5663
        %v5671 = vsub.f32 %v4294, %v5663
        %v5672 = vsub.f32 %v4299, %v5663
        %v5673 = vsub.f32 %v4302, %v5663
        %v5674 = vsub.f32 %v4307, %v5663
        %v5675 = vsub.f32 %v4310, %v5663
        %v5676 = vsub.f32 %v4315, %v5663
        %v5677 = vsub.f32 %v4318, %v5663
        %v5678 = vsub.f32 %v4323, %v5663
        %v5679 = vsub.f32 %v4326, %v5663
        %v5680 = vsub.f32 %v4331, %v5663
        %v5681 = vsub.f32 %v4334, %v5663
        %v5682 = vsub.f32 %v4339, %v5663
        %v5683 = vsub.f32 %v4342, %v5663
        %v5684 = vsub.f32 %v4347, %v5663
        %v5685 = vsub.f32 %v4350, %v5663
        %v5686 = vsub.f32 %v4355, %v5663
        %v5687 = vsub.f32 %v4358, %v5663
        %v5688 = vsub.f32 %v4363, %v5663
        %v5689 = vsub.f32 %v4366, %v5663
        %v5690 = vsub.f32 %v4371, %v5663
        %v5691 = vsub.f32 %v4374, %v5663
        %v5692 = vsub.f32 %v4379, %v5663
        %v5693 = vsub.f32 %v4382, %v5663
        %v5694 = vsub.f32 %v4387, %v5663
        %v5695 = vsub.f32 %v4390, %v5663
        %v5696 = vlaneseq
        %v5697 = vshrl.u32 %v5696, 7
        %v5698 = vsub.s32 1, %v5697
        %v5699 = vrot.slane %v5657, %v5698
        %v5700 = vmul.f32 %v5664, %v5699
        %v5701 = vmul.f32 %v5665, %v5699
        %v5702 = vmul.f32 %v5666, %v5699
        %v5703 = vmul.f32 %v5667, %v5699
        %v5704 = vmul.f32 %v5668, %v5699
        %v5705 = vmul.f32 %v5669, %v5699
        %v5706 = vmul.f32 %v5670, %v5699
        %v5707 = vmul.f32 %v5671, %v5699
        %v5708 = vmul.f32 %v5672, %v5699
        %v5709 = vmul.f32 %v5673, %v5699
        %v5710 = vmul.f32 %v5674, %v5699
        %v5711 = vmul.f32 %v5675, %v5699
        %v5712 = vmul.f32 %v5676, %v5699
        %v5713 = vmul.f32 %v5677, %v5699
        %v5714 = vmul.f32 %v5678, %v5699
        %v5715 = vmul.f32 %v5679, %v5699
        %v5716 = vmul.f32 %v5680, %v5699
        %v5717 = vmul.f32 %v5681, %v5699
        %v5718 = vmul.f32 %v5682, %v5699
        %v5719 = vmul.f32 %v5683, %v5699
        %v5720 = vmul.f32 %v5684, %v5699
        %v5721 = vmul.f32 %v5685, %v5699
        %v5722 = vmul.f32 %v5686, %v5699
        %v5723 = vmul.f32 %v5687, %v5699
        %v5724 = vmul.f32 %v5688, %v5699
        %v5725 = vmul.f32 %v5689, %v5699
        %v5726 = vmul.f32 %v5690, %v5699
        %v5727 = vmul.f32 %v5691, %v5699
        %v5728 = vmul.f32 %v5692, %v5699
        %v5729 = vmul.f32 %v5693, %v5699
        %v5730 = vmul.f32 %v5694, %v5699
        %v5731 = vmul.f32 %v5695, %v5699
        %v5733 = vlaneseq
        %v5734 = vshrl.u32 %v5733, 7
        %v5735 = vsub.s32 0, %v5734
        %v5736 = vrot.slane %v4393, %v5735
        %v5738 = vmul.f32 %v5700, %v5736
        %v5739 = vmul.f32 %v5701, %v5736
        %v5740 = vmul.f32 %v5702, %v5736
        %v5741 = vmul.f32 %v5703, %v5736
        %v5742 = vmul.f32 %v5704, %v5736
        %v5743 = vmul.f32 %v5705, %v5736
        %v5744 = vmul.f32 %v5706, %v5736
        %v5745 = vmul.f32 %v5707, %v5736
        %v5746 = vmul.f32 %v5708, %v5736
        %v5747 = vmul.f32 %v5709, %v5736
        %v5748 = vmul.f32 %v5710, %v5736
        %v5749 = vmul.f32 %v5711, %v5736
        %v5750 = vmul.f32 %v5712, %v5736
        %v5751 = vmul.f32 %v5713, %v5736
        %v5752 = vmul.f32 %v5714, %v5736
        %v5753 = vmul.f32 %v5715, %v5736
        %v5754 = vmul.f32 %v5716, %v5736
        %v5755 = vmul.f32 %v5717, %v5736
        %v5756 = vmul.f32 %v5718, %v5736
        %v5757 = vmul.f32 %v5719, %v5736
        %v5758 = vmul.f32 %v5720, %v5736
        %v5759 = vmul.f32 %v5721, %v5736
        %v5760 = vmul.f32 %v5722, %v5736
        %v5761 = vmul.f32 %v5723, %v5736
        %v5762 = vmul.f32 %v5724, %v5736
        %v5763 = vmul.f32 %v5725, %v5736
        %v5764 = vmul.f32 %v5726, %v5736
        %v5765 = vmul.f32 %v5727, %v5736
        %v5766 = vmul.f32 %v5728, %v5736
        %v5767 = vmul.f32 %v5729, %v5736
        %v5768 = vmul.f32 %v5730, %v5736
        %v5769 = vmul.f32 %v5731, %v5736
        %v5771 = vlaneseq
        %v5772 = vshrl.u32 %v5771, 7
        %v5773 = vsub.s32 0, %v5772
        %v5774 = vrot.slane %v4394, %v5773
        %v5776 = vadd.f32 %v5738, %v5774
        %v5777 = vadd.f32 %v5739, %v5774
        %v5778 = vadd.f32 %v5740, %v5774
        %v5779 = vadd.f32 %v5741, %v5774
        %v5780 = vadd.f32 %v5742, %v5774
        %v5781 = vadd.f32 %v5743, %v5774
        %v5782 = vadd.f32 %v5744, %v5774
        %v5783 = vadd.f32 %v5745, %v5774
        %v5784 = vadd.f32 %v5746, %v5774
        %v5785 = vadd.f32 %v5747, %v5774
        %v5786 = vadd.f32 %v5748, %v5774
        %v5787 = vadd.f32 %v5749, %v5774
        %v5788 = vadd.f32 %v5750, %v5774
        %v5789 = vadd.f32 %v5751, %v5774
        %v5790 = vadd.f32 %v5752, %v5774
        %v5791 = vadd.f32 %v5753, %v5774
        %v5792 = vadd.f32 %v5754, %v5774
        %v5793 = vadd.f32 %v5755, %v5774
        %v5794 = vadd.f32 %v5756, %v5774
        %v5795 = vadd.f32 %v5757, %v5774
        %v5796 = vadd.f32 %v5758, %v5774
        %v5797 = vadd.f32 %v5759, %v5774
        %v5798 = vadd.f32 %v5760, %v5774
        %v5799 = vadd.f32 %v5761, %v5774
        %v5800 = vadd.f32 %v5762, %v5774
        %v5801 = vadd.f32 %v5763, %v5774
        %v5802 = vadd.f32 %v5764, %v5774
        %v5803 = vadd.f32 %v5765, %v5774
        %v5804 = vadd.f32 %v5766, %v5774
        %v5805 = vadd.f32 %v5767, %v5774
        %v5806 = vadd.f32 %v5768, %v5774
        %v5807 = vadd.f32 %v5769, %v5774
        %v5808 = vxor.u32 %v5776, 2147483648
        %v5809 = vxor.u32 %v5777, 2147483648
        %v5810 = vxor.u32 %v5778, 2147483648
        %v5811 = vxor.u32 %v5779, 2147483648
        %v5812 = vxor.u32 %v5780, 2147483648
        %v5813 = vxor.u32 %v5781, 2147483648
        %v5814 = vxor.u32 %v5782, 2147483648
        %v5815 = vxor.u32 %v5783, 2147483648
        %v5816 = vxor.u32 %v5784, 2147483648
        %v5817 = vxor.u32 %v5785, 2147483648
        %v5818 = vxor.u32 %v5786, 2147483648
        %v5819 = vxor.u32 %v5787, 2147483648
        %v5820 = vxor.u32 %v5788, 2147483648
        %v5821 = vxor.u32 %v5789, 2147483648
        %v5822 = vxor.u32 %v5790, 2147483648
        %v5823 = vxor.u32 %v5791, 2147483648
        %v5824 = vxor.u32 %v5792, 2147483648
        %v5825 = vxor.u32 %v5793, 2147483648
        %v5826 = vxor.u32 %v5794, 2147483648
        %v5827 = vxor.u32 %v5795, 2147483648
        %v5828 = vxor.u32 %v5796, 2147483648
        %v5829 = vxor.u32 %v5797, 2147483648
        %v5830 = vxor.u32 %v5798, 2147483648
        %v5831 = vxor.u32 %v5799, 2147483648
        %v5832 = vxor.u32 %v5800, 2147483648
        %v5833 = vxor.u32 %v5801, 2147483648
        %v5834 = vxor.u32 %v5802, 2147483648
        %v5835 = vxor.u32 %v5803, 2147483648
        %v5836 = vxor.u32 %v5804, 2147483648
        %v5837 = vxor.u32 %v5805, 2147483648
        %v5838 = vxor.u32 %v5806, 2147483648
        %v5839 = vxor.u32 %v5807, 2147483648
        %v5840 = vmul.f32 %v5808, 1.442695
        %v5841 = vpow.pop %v5840
        %v5842 = vmul.f32 %v5809, 1.442695
        %v5843 = vpow.pop %v5842
        %v5844 = vmul.f32 %v5810, 1.442695
        %v5845 = vpow.pop %v5844
        %v5846 = vmul.f32 %v5811, 1.442695
        %v5847 = vpow.pop %v5846
        %v5848 = vmul.f32 %v5812, 1.442695
        %v5849 = vpow.pop %v5848
        %v5850 = vmul.f32 %v5813, 1.442695
        %v5851 = vpow.pop %v5850
        %v5852 = vmul.f32 %v5814, 1.442695
        %v5853 = vpow.pop %v5852
        %v5854 = vmul.f32 %v5815, 1.442695
        %v5855 = vpow.pop %v5854
        %v5856 = vmul.f32 %v5816, 1.442695
        %v5857 = vpow.pop %v5856
        %v5858 = vmul.f32 %v5817, 1.442695
        %v5859 = vpow.pop %v5858
        %v5860 = vmul.f32 %v5818, 1.442695
        %v5861 = vpow.pop %v5860
        %v5862 = vmul.f32 %v5819, 1.442695
        %v5863 = vpow.pop %v5862
        %v5864 = vmul.f32 %v5820, 1.442695
        %v5865 = vpow.pop %v5864
        %v5866 = vmul.f32 %v5821, 1.442695
        %v5867 = vpow.pop %v5866
        %v5868 = vmul.f32 %v5822, 1.442695
        %v5869 = vpow.pop %v5868
        %v5870 = vmul.f32 %v5823, 1.442695
        %v5871 = vpow.pop %v5870
        %v5872 = vmul.f32 %v5824, 1.442695
        %v5873 = vpow.pop %v5872
        %v5874 = vmul.f32 %v5825, 1.442695
        %v5875 = vpow.pop %v5874
        %v5876 = vmul.f32 %v5826, 1.442695
        %v5877 = vpow.pop %v5876
        %v5878 = vmul.f32 %v5827, 1.442695
        %v5879 = vpow.pop %v5878
        %v5880 = vmul.f32 %v5828, 1.442695
        %v5881 = vpow.pop %v5880
        %v5882 = vmul.f32 %v5829, 1.442695
        %v5883 = vpow.pop %v5882
        %v5884 = vmul.f32 %v5830, 1.442695
        %v5885 = vpow.pop %v5884
        %v5886 = vmul.f32 %v5831, 1.442695
        %v5887 = vpow.pop %v5886
        %v5888 = vmul.f32 %v5832, 1.442695
        %v5889 = vpow.pop %v5888
        %v5890 = vmul.f32 %v5833, 1.442695
        %v5891 = vpow.pop %v5890
        %v5892 = vmul.f32 %v5834, 1.442695
        %v5893 = vpow.pop %v5892
        %v5894 = vmul.f32 %v5835, 1.442695
        %v5895 = vpow.pop %v5894
        %v5896 = vmul.f32 %v5836, 1.442695
        %v5897 = vpow.pop %v5896
        %v5898 = vmul.f32 %v5837, 1.442695
        %v5899 = vpow.pop %v5898
        %v5900 = vmul.f32 %v5838, 1.442695
        %v5901 = vpow.pop %v5900
        %v5902 = vmul.f32 %v5839, 1.442695
        %v5903 = vpow.pop %v5902
        %v5904 = vadd.f32 %v5841, 1.0
        %v5905 = vadd.f32 %v5843, 1.0
        %v5906 = vadd.f32 %v5845, 1.0
        %v5907 = vadd.f32 %v5847, 1.0
        %v5908 = vadd.f32 %v5849, 1.0
        %v5909 = vadd.f32 %v5851, 1.0
        %v5910 = vadd.f32 %v5853, 1.0
        %v5911 = vadd.f32 %v5855, 1.0
        %v5912 = vadd.f32 %v5857, 1.0
        %v5913 = vadd.f32 %v5859, 1.0
        %v5914 = vadd.f32 %v5861, 1.0
        %v5915 = vadd.f32 %v5863, 1.0
        %v5916 = vadd.f32 %v5865, 1.0
        %v5917 = vadd.f32 %v5867, 1.0
        %v5918 = vadd.f32 %v5869, 1.0
        %v5919 = vadd.f32 %v5871, 1.0
        %v5920 = vadd.f32 %v5873, 1.0
        %v5921 = vadd.f32 %v5875, 1.0
        %v5922 = vadd.f32 %v5877, 1.0
        %v5923 = vadd.f32 %v5879, 1.0
        %v5924 = vadd.f32 %v5881, 1.0
        %v5925 = vadd.f32 %v5883, 1.0
        %v5926 = vadd.f32 %v5885, 1.0
        %v5927 = vadd.f32 %v5887, 1.0
        %v5928 = vadd.f32 %v5889, 1.0
        %v5929 = vadd.f32 %v5891, 1.0
        %v5930 = vadd.f32 %v5893, 1.0
        %v5931 = vadd.f32 %v5895, 1.0
        %v5932 = vadd.f32 %v5897, 1.0
        %v5933 = vadd.f32 %v5899, 1.0
        %v5934 = vadd.f32 %v5901, 1.0
        %v5935 = vadd.f32 %v5903, 1.0
        %v5936 = vrcp.pop %v5904
        %v5937 = vmul.f32 1.0, %v5936
        %v5938 = vrcp.pop %v5905
        %v5939 = vmul.f32 1.0, %v5938
        %v5940 = vrcp.pop %v5906
        %v5941 = vmul.f32 1.0, %v5940
        %v5942 = vrcp.pop %v5907
        %v5943 = vmul.f32 1.0, %v5942
        %v5944 = vrcp.pop %v5908
        %v5945 = vmul.f32 1.0, %v5944
        %v5946 = vrcp.pop %v5909
        %v5947 = vmul.f32 1.0, %v5946
        %v5948 = vrcp.pop %v5910
        %v5949 = vmul.f32 1.0, %v5948
        %v5950 = vrcp.pop %v5911
        %v5951 = vmul.f32 1.0, %v5950
        %v5952 = vrcp.pop %v5912
        %v5953 = vmul.f32 1.0, %v5952
        %v5954 = vrcp.pop %v5913
        %v5955 = vmul.f32 1.0, %v5954
        %v5956 = vrcp.pop %v5914
        %v5957 = vmul.f32 1.0, %v5956
        %v5958 = vrcp.pop %v5915
        %v5959 = vmul.f32 1.0, %v5958
        %v5960 = vrcp.pop %v5916
        %v5961 = vmul.f32 1.0, %v5960
        %v5962 = vrcp.pop %v5917
        %v5963 = vmul.f32 1.0, %v5962
        %v5964 = vrcp.pop %v5918
        %v5965 = vmul.f32 1.0, %v5964
        %v5966 = vrcp.pop %v5919
        %v5967 = vmul.f32 1.0, %v5966
        %v5968 = vrcp.pop %v5920
        %v5969 = vmul.f32 1.0, %v5968
        %v5970 = vrcp.pop %v5921
        %v5971 = vmul.f32 1.0, %v5970
        %v5972 = vrcp.pop %v5922
        %v5973 = vmul.f32 1.0, %v5972
        %v5974 = vrcp.pop %v5923
        %v5975 = vmul.f32 1.0, %v5974
        %v5976 = vrcp.pop %v5924
        %v5977 = vmul.f32 1.0, %v5976
        %v5978 = vrcp.pop %v5925
        %v5979 = vmul.f32 1.0, %v5978
        %v5980 = vrcp.pop %v5926
        %v5981 = vmul.f32 1.0, %v5980
        %v5982 = vrcp.pop %v5927
        %v5983 = vmul.f32 1.0, %v5982
        %v5984 = vrcp.pop %v5928
        %v5985 = vmul.f32 1.0, %v5984
        %v5986 = vrcp.pop %v5929
        %v5987 = vmul.f32 1.0, %v5986
        %v5988 = vrcp.pop %v5930
        %v5989 = vmul.f32 1.0, %v5988
        %v5990 = vrcp.pop %v5931
        %v5991 = vmul.f32 1.0, %v5990
        %v5992 = vrcp.pop %v5932
        %v5993 = vmul.f32 1.0, %v5992
        %v5994 = vrcp.pop %v5933
        %v5995 = vmul.f32 1.0, %v5994
        %v5996 = vrcp.pop %v5934
        %v5997 = vmul.f32 1.0, %v5996
        %v5998 = vrcp.pop %v5935
        %v5999 = vmul.f32 1.0, %v5998
        %v6000 = vmul.f32 %v5776, %v5937
        %v6001 = vmul.f32 %v5777, %v5939
        %v6002 = vmul.f32 %v5778, %v5941
        %v6003 = vmul.f32 %v5779, %v5943
        %v6004 = vmul.f32 %v5780, %v5945
        %v6005 = vmul.f32 %v5781, %v5947
        %v6006 = vmul.f32 %v5782, %v5949
        %v6007 = vmul.f32 %v5783, %v5951
        %v6008 = vmul.f32 %v5784, %v5953
        %v6009 = vmul.f32 %v5785, %v5955
        %v6010 = vmul.f32 %v5786, %v5957
        %v6011 = vmul.f32 %v5787, %v5959
        %v6012 = vmul.f32 %v5788, %v5961
        %v6013 = vmul.f32 %v5789, %v5963
        %v6014 = vmul.f32 %v5790, %v5965
        %v6015 = vmul.f32 %v5791, %v5967
        %v6016 = vmul.f32 %v5792, %v5969
        %v6017 = vmul.f32 %v5793, %v5971
        %v6018 = vmul.f32 %v5794, %v5973
        %v6019 = vmul.f32 %v5795, %v5975
        %v6020 = vmul.f32 %v5796, %v5977
        %v6021 = vmul.f32 %v5797, %v5979
        %v6022 = vmul.f32 %v5798, %v5981
        %v6023 = vmul.f32 %v5799, %v5983
        %v6024 = vmul.f32 %v5800, %v5985
        %v6025 = vmul.f32 %v5801, %v5987
        %v6026 = vmul.f32 %v5802, %v5989
        %v6027 = vmul.f32 %v5803, %v5991
        %v6028 = vmul.f32 %v5804, %v5993
        %v6029 = vmul.f32 %v5805, %v5995
        %v6030 = vmul.f32 %v5806, %v5997
        %v6031 = vmul.f32 %v5807, %v5999
        %v6032 = vld [vmem:[#allocation21] sm:$0x1]
        %6033 = vst [vmem:[%s546 + $0x1] sm:$0xff] %v6000
        %6034 = vst [vmem:[%s546 + $0x9] sm:$0xff] %v6001
        %6035 = vst [vmem:[%s546 + $0x19] sm:$0xff] %v6002
        %6036 = vst [vmem:[%s546 + $0x21] sm:$0xff] %v6003
        %6037 = vst [vmem:[%s546 + $0x31] sm:$0xff] %v6004
        %6038 = vst [vmem:[%s546 + $0x39] sm:$0xff] %v6005
        %6039 = vst [vmem:[%s546 + $0x49] sm:$0xff] %v6006
        %6040 = vst [vmem:[%s546 + $0x51] sm:$0xff] %v6007
        %6041 = vst [vmem:[%s546 + $0x61] sm:$0xff] %v6008
        %6042 = vst [vmem:[%s546 + $0x69] sm:$0xff] %v6009
        %6043 = vst [vmem:[%s546 + $0x79] sm:$0xff] %v6010
        %6044 = vst [vmem:[%s546 + $0x81] sm:$0xff] %v6011
        %6045 = vst [vmem:[%s546 + $0x91] sm:$0xff] %v6012
        %6046 = vst [vmem:[%s546 + $0x99] sm:$0xff] %v6013
        %6047 = vst [vmem:[%s546 + $0xa9] sm:$0xff] %v6014
        %6048 = vst [vmem:[%s546 + $0xb1] sm:$0xff] %v6015
        %6049 = vst [vmem:[%s546 + $0xc1] sm:$0xff] %v6016
        %6050 = vst [vmem:[%s546 + $0xc9] sm:$0xff] %v6017
        %6051 = vst [vmem:[%s546 + $0xd9] sm:$0xff] %v6018
        %6052 = vst [vmem:[%s546 + $0xe1] sm:$0xff] %v6019
        %6053 = vst [vmem:[%s546 + $0xf1] sm:$0xff] %v6020
        %6054 = vst [vmem:[%s546 + $0xf9] sm:$0xff] %v6021
        %6055 = vst [vmem:[%s546 + $0x109] sm:$0xff] %v6022
        %6056 = vst [vmem:[%s546 + $0x111] sm:$0xff] %v6023
        %6057 = vst [vmem:[%s546 + $0x121] sm:$0xff] %v6024
        %6058 = vst [vmem:[%s546 + $0x129] sm:$0xff] %v6025
        %6059 = vst [vmem:[%s546 + $0x139] sm:$0xff] %v6026
        %6060 = vst [vmem:[%s546 + $0x141] sm:$0xff] %v6027
        %6061 = vst [vmem:[%s546 + $0x151] sm:$0xff] %v6028
        %6062 = vst [vmem:[%s546 + $0x159] sm:$0xff] %v6029
        %6063 = vst [vmem:[%s546 + $0x169] sm:$0xff] %v6030
        %6064 = vst [vmem:[%s546 + $0x171] sm:$0xff] %v6031
        %v6065 = vld [vmem:[#allocation2] sm:$0xff]
        %v6066 = vld [vmem:[#allocation2 + $0x8] sm:$0xff]
        %v6067 = vld [vmem:[#allocation2 + $0x18] sm:$0xff]
        %v6068 = vld [vmem:[#allocation2 + $0x20] sm:$0xff]
        %v6069 = vld [vmem:[#allocation2 + $0x30] sm:$0xff]
        %v6070 = vld [vmem:[#allocation2 + $0x38] sm:$0xff]
        %v6071 = vld [vmem:[#allocation2 + $0x48] sm:$0xff]
        %v6072 = vld [vmem:[#allocation2 + $0x50] sm:$0xff]
        %v6073 = vld [vmem:[#allocation2 + $0x60] sm:$0xff]
        %v6074 = vld [vmem:[#allocation2 + $0x68] sm:$0xff]
        %v6075 = vld [vmem:[#allocation2 + $0x78] sm:$0xff]
        %v6076 = vld [vmem:[#allocation2 + $0x80] sm:$0xff]
        %v6077 = vld [vmem:[#allocation2 + $0x90] sm:$0xff]
        %v6078 = vld [vmem:[#allocation2 + $0x98] sm:$0xff]
        %v6079 = vld [vmem:[#allocation2 + $0xa8] sm:$0xff]
        %v6080 = vld [vmem:[#allocation2 + $0xb0] sm:$0xff]
        %v6081 = vld [vmem:[#allocation2 + $0xc0] sm:$0xff]
        %v6082 = vld [vmem:[#allocation2 + $0xc8] sm:$0xff]
        %v6083 = vld [vmem:[#allocation2 + $0xd8] sm:$0xff]
        %v6084 = vld [vmem:[#allocation2 + $0xe0] sm:$0xff]
        %v6085 = vld [vmem:[#allocation2 + $0xf0] sm:$0xff]
        %v6086 = vld [vmem:[#allocation2 + $0xf8] sm:$0xff]
        %v6087 = vld [vmem:[#allocation2 + $0x108] sm:$0xff]
        %v6088 = vld [vmem:[#allocation2 + $0x110] sm:$0xff]
        %v6089 = vld [vmem:[#allocation2 + $0x120] sm:$0xff]
        %v6090 = vld [vmem:[#allocation2 + $0x128] sm:$0xff]
        %v6091 = vld [vmem:[#allocation2 + $0x138] sm:$0xff]
        %v6092 = vld [vmem:[#allocation2 + $0x140] sm:$0xff]
        %v6093 = vld [vmem:[#allocation2 + $0x150] sm:$0xff]
        %v6094 = vld [vmem:[#allocation2 + $0x158] sm:$0xff]
        %v6095 = vld [vmem:[#allocation2 + $0x168] sm:$0xff]
        %v6096 = vld [vmem:[#allocation2 + $0x170] sm:$0xff]
        %v6097 = vpack.c.bf16 %v6066, %v6065
        %v6098 = vpack.c.bf16 %v6068, %v6067
        %v6099 = vpack.c.bf16 %v6070, %v6069
        %v6100 = vpack.c.bf16 %v6072, %v6071
        %v6101 = vpack.c.bf16 %v6074, %v6073
        %v6102 = vpack.c.bf16 %v6076, %v6075
        %v6103 = vpack.c.bf16 %v6078, %v6077
        %v6104 = vpack.c.bf16 %v6080, %v6079
        %v6105 = vpack.c.bf16 %v6082, %v6081
        %v6106 = vpack.c.bf16 %v6084, %v6083
        %v6107 = vpack.c.bf16 %v6086, %v6085
        %v6108 = vpack.c.bf16 %v6088, %v6087
        %v6109 = vpack.c.bf16 %v6090, %v6089
        %v6110 = vpack.c.bf16 %v6092, %v6091
        %v6111 = vpack.c.bf16 %v6094, %v6093
        %v6112 = vpack.c.bf16 %v6096, %v6095
        %6113 = vst [vmem:[#allocation3] sm:$0xff] %v6097
        %6114 = vst [vmem:[#allocation3 + $0x48] sm:$0xff] %v6098
        %6115 = vst [vmem:[#allocation3 + $0x90] sm:$0xff] %v6099
        %6116 = vst [vmem:[#allocation3 + $0xd8] sm:$0xff] %v6100
        %6117 = vst [vmem:[#allocation3 + $0x120] sm:$0xff] %v6101
        %6118 = vst [vmem:[#allocation3 + $0x168] sm:$0xff] %v6102
        %6119 = vst [vmem:[#allocation3 + $0x1b0] sm:$0xff] %v6103
        %6120 = vst [vmem:[#allocation3 + $0x1f8] sm:$0xff] %v6104
        %6121 = vst [vmem:[#allocation3 + $0x240] sm:$0xff] %v6105
        %6122 = vst [vmem:[#allocation3 + $0x288] sm:$0xff] %v6106
        %6123 = vst [vmem:[#allocation3 + $0x2d0] sm:$0xff] %v6107
        %6124 = vst [vmem:[#allocation3 + $0x318] sm:$0xff] %v6108
        %6125 = vst [vmem:[#allocation3 + $0x360] sm:$0xff] %v6109
        %6126 = vst [vmem:[#allocation3 + $0x3a8] sm:$0xff] %v6110
        %6127 = vst [vmem:[#allocation3 + $0x3f0] sm:$0xff] %v6111
        %6128 = vst [vmem:[#allocation3 + $0x438] sm:$0xff] %v6112
        %v6129 = vld [vmem:[#allocation2 + $0x1] sm:$0xff]
        %v6130 = vld [vmem:[#allocation2 + $0x9] sm:$0xff]
        %v6131 = vld [vmem:[#allocation2 + $0x19] sm:$0xff]
        %v6132 = vld [vmem:[#allocation2 + $0x21] sm:$0xff]
        %v6133 = vld [vmem:[#allocation2 + $0x31] sm:$0xff]
        %v6134 = vld [vmem:[#allocation2 + $0x39] sm:$0xff]
        %v6135 = vld [vmem:[#allocation2 + $0x49] sm:$0xff]
        %v6136 = vld [vmem:[#allocation2 + $0x51] sm:$0xff]
        %v6137 = vld [vmem:[#allocation2 + $0x61] sm:$0xff]
        %v6138 = vld [vmem:[#allocation2 + $0x69] sm:$0xff]
        %v6139 = vld [vmem:[#allocation2 + $0x79] sm:$0xff]
        %v6140 = vld [vmem:[#allocation2 + $0x81] sm:$0xff]
        %v6141 = vld [vmem:[#allocation2 + $0x91] sm:$0xff]
        %v6142 = vld [vmem:[#allocation2 + $0x99] sm:$0xff]
        %v6143 = vld [vmem:[#allocation2 + $0xa9] sm:$0xff]
        %v6144 = vld [vmem:[#allocation2 + $0xb1] sm:$0xff]
        %v6145 = vld [vmem:[#allocation2 + $0xc1] sm:$0xff]
        %v6146 = vld [vmem:[#allocation2 + $0xc9] sm:$0xff]
        %v6147 = vld [vmem:[#allocation2 + $0xd9] sm:$0xff]
        %v6148 = vld [vmem:[#allocation2 + $0xe1] sm:$0xff]
        %v6149 = vld [vmem:[#allocation2 + $0xf1] sm:$0xff]
        %v6150 = vld [vmem:[#allocation2 + $0xf9] sm:$0xff]
        %v6151 = vld [vmem:[#allocation2 + $0x109] sm:$0xff]
        %v6152 = vld [vmem:[#allocation2 + $0x111] sm:$0xff]
        %v6153 = vld [vmem:[#allocation2 + $0x121] sm:$0xff]
        %v6154 = vld [vmem:[#allocation2 + $0x129] sm:$0xff]
        %v6155 = vld [vmem:[#allocation2 + $0x139] sm:$0xff]
        %v6156 = vld [vmem:[#allocation2 + $0x141] sm:$0xff]
        %v6157 = vld [vmem:[#allocation2 + $0x151] sm:$0xff]
        %v6158 = vld [vmem:[#allocation2 + $0x159] sm:$0xff]
        %v6159 = vld [vmem:[#allocation2 + $0x169] sm:$0xff]
        %v6160 = vld [vmem:[#allocation2 + $0x171] sm:$0xff]
        %v6161 = vpack.c.bf16 %v6130, %v6129
        %v6162 = vpack.c.bf16 %v6132, %v6131
        %v6163 = vpack.c.bf16 %v6134, %v6133
        %v6164 = vpack.c.bf16 %v6136, %v6135
        %v6165 = vpack.c.bf16 %v6138, %v6137
        %v6166 = vpack.c.bf16 %v6140, %v6139
        %v6167 = vpack.c.bf16 %v6142, %v6141
        %v6168 = vpack.c.bf16 %v6144, %v6143
        %v6169 = vpack.c.bf16 %v6146, %v6145
        %v6170 = vpack.c.bf16 %v6148, %v6147
        %v6171 = vpack.c.bf16 %v6150, %v6149
        %v6172 = vpack.c.bf16 %v6152, %v6151
        %v6173 = vpack.c.bf16 %v6154, %v6153
        %v6174 = vpack.c.bf16 %v6156, %v6155
        %v6175 = vpack.c.bf16 %v6158, %v6157
        %v6176 = vpack.c.bf16 %v6160, %v6159
        %6177 = vst [vmem:[#allocation3 + $0x8] sm:$0xff] %v6161
        %6178 = vst [vmem:[#allocation3 + $0x50] sm:$0xff] %v6162
        %6179 = vst [vmem:[#allocation3 + $0x98] sm:$0xff] %v6163
        %6180 = vst [vmem:[#allocation3 + $0xe0] sm:$0xff] %v6164
        %6181 = vst [vmem:[#allocation3 + $0x128] sm:$0xff] %v6165
        %6182 = vst [vmem:[#allocation3 + $0x170] sm:$0xff] %v6166
        %6183 = vst [vmem:[#allocation3 + $0x1b8] sm:$0xff] %v6167
        %6184 = vst [vmem:[#allocation3 + $0x200] sm:$0xff] %v6168
        %6185 = vst [vmem:[#allocation3 + $0x248] sm:$0xff] %v6169
        %6186 = vst [vmem:[#allocation3 + $0x290] sm:$0xff] %v6170
        %6187 = vst [vmem:[#allocation3 + $0x2d8] sm:$0xff] %v6171
        %6188 = vst [vmem:[#allocation3 + $0x320] sm:$0xff] %v6172
        %6189 = vst [vmem:[#allocation3 + $0x368] sm:$0xff] %v6173
        %6190 = vst [vmem:[#allocation3 + $0x3b0] sm:$0xff] %v6174
        %6191 = vst [vmem:[#allocation3 + $0x3f8] sm:$0xff] %v6175
        %6192 = vst [vmem:[#allocation3 + $0x440] sm:$0xff] %v6176
        %v6193 = vld [vmem:[#allocation2 + $0x2] sm:$0xff]
        %v6194 = vld [vmem:[#allocation2 + $0xa] sm:$0xff]
        %v6195 = vld [vmem:[#allocation2 + $0x1a] sm:$0xff]
        %v6196 = vld [vmem:[#allocation2 + $0x22] sm:$0xff]
        %v6197 = vld [vmem:[#allocation2 + $0x32] sm:$0xff]
        %v6198 = vld [vmem:[#allocation2 + $0x3a] sm:$0xff]
        %v6199 = vld [vmem:[#allocation2 + $0x4a] sm:$0xff]
        %v6200 = vld [vmem:[#allocation2 + $0x52] sm:$0xff]
        %v6201 = vld [vmem:[#allocation2 + $0x62] sm:$0xff]
        %v6202 = vld [vmem:[#allocation2 + $0x6a] sm:$0xff]
        %v6203 = vld [vmem:[#allocation2 + $0x7a] sm:$0xff]
        %v6204 = vld [vmem:[#allocation2 + $0x82] sm:$0xff]
        %v6205 = vld [vmem:[#allocation2 + $0x92] sm:$0xff]
        %v6206 = vld [vmem:[#allocation2 + $0x9a] sm:$0xff]
        %v6207 = vld [vmem:[#allocation2 + $0xaa] sm:$0xff]
        %v6208 = vld [vmem:[#allocation2 + $0xb2] sm:$0xff]
        %v6209 = vld [vmem:[#allocation2 + $0xc2] sm:$0xff]
        %v6210 = vld [vmem:[#allocation2 + $0xca] sm:$0xff]
        %v6211 = vld [vmem:[#allocation2 + $0xda] sm:$0xff]
        %v6212 = vld [vmem:[#allocation2 + $0xe2] sm:$0xff]
        %v6213 = vld [vmem:[#allocation2 + $0xf2] sm:$0xff]
        %v6214 = vld [vmem:[#allocation2 + $0xfa] sm:$0xff]
        %v6215 = vld [vmem:[#allocation2 + $0x10a] sm:$0xff]
        %v6216 = vld [vmem:[#allocation2 + $0x112] sm:$0xff]
        %v6217 = vld [vmem:[#allocation2 + $0x122] sm:$0xff]
        %v6218 = vld [vmem:[#allocation2 + $0x12a] sm:$0xff]
        %v6219 = vld [vmem:[#allocation2 + $0x13a] sm:$0xff]
        %v6220 = vld [vmem:[#allocation2 + $0x142] sm:$0xff]
        %v6221 = vld [vmem:[#allocation2 + $0x152] sm:$0xff]
        %v6222 = vld [vmem:[#allocation2 + $0x15a] sm:$0xff]
        %v6223 = vld [vmem:[#allocation2 + $0x16a] sm:$0xff]
        %v6224 = vld [vmem:[#allocation2 + $0x172] sm:$0xff]
        %v6225 = vpack.c.bf16 %v6194, %v6193
        %v6226 = vpack.c.bf16 %v6196, %v6195
        %v6227 = vpack.c.bf16 %v6198, %v6197
        %v6228 = vpack.c.bf16 %v6200, %v6199
        %v6229 = vpack.c.bf16 %v6202, %v6201
        %v6230 = vpack.c.bf16 %v6204, %v6203
        %v6231 = vpack.c.bf16 %v6206, %v6205
        %v6232 = vpack.c.bf16 %v6208, %v6207
        %v6233 = vpack.c.bf16 %v6210, %v6209
        %v6234 = vpack.c.bf16 %v6212, %v6211
        %v6235 = vpack.c.bf16 %v6214, %v6213
        %v6236 = vpack.c.bf16 %v6216, %v6215
        %v6237 = vpack.c.bf16 %v6218, %v6217
        %v6238 = vpack.c.bf16 %v6220, %v6219
        %v6239 = vpack.c.bf16 %v6222, %v6221
        %v6240 = vpack.c.bf16 %v6224, %v6223
        %6241 = vst [vmem:[#allocation3 + $0x10] sm:$0xff] %v6225
        %6242 = vst [vmem:[#allocation3 + $0x58] sm:$0xff] %v6226
        %6243 = vst [vmem:[#allocation3 + $0xa0] sm:$0xff] %v6227
        %6244 = vst [vmem:[#allocation3 + $0xe8] sm:$0xff] %v6228
        %6245 = vst [vmem:[#allocation3 + $0x130] sm:$0xff] %v6229
        %6246 = vst [vmem:[#allocation3 + $0x178] sm:$0xff] %v6230
        %6247 = vst [vmem:[#allocation3 + $0x1c0] sm:$0xff] %v6231
        %6248 = vst [vmem:[#allocation3 + $0x208] sm:$0xff] %v6232
        %6249 = vst [vmem:[#allocation3 + $0x250] sm:$0xff] %v6233
        %6250 = vst [vmem:[#allocation3 + $0x298] sm:$0xff] %v6234
        %6251 = vst [vmem:[#allocation3 + $0x2e0] sm:$0xff] %v6235
        %6252 = vst [vmem:[#allocation3 + $0x328] sm:$0xff] %v6236
        %6253 = vst [vmem:[#allocation3 + $0x370] sm:$0xff] %v6237
        %6254 = vst [vmem:[#allocation3 + $0x3b8] sm:$0xff] %v6238
        %6255 = vst [vmem:[#allocation3 + $0x400] sm:$0xff] %v6239
        %6256 = vst [vmem:[#allocation3 + $0x448] sm:$0xff] %v6240
        %v6257 = vld [vmem:[%s546] sm:$0xff]
        %v6258 = vld [vmem:[%s546 + $0x8] sm:$0xff]
        %v6259 = vld [vmem:[%s546 + $0x18] sm:$0xff]
        %v6260 = vld [vmem:[%s546 + $0x20] sm:$0xff]
        %v6261 = vld [vmem:[%s546 + $0x30] sm:$0xff]
        %v6262 = vld [vmem:[%s546 + $0x38] sm:$0xff]
        %v6263 = vld [vmem:[%s546 + $0x48] sm:$0xff]
        %v6264 = vld [vmem:[%s546 + $0x50] sm:$0xff]
        %v6265 = vld [vmem:[%s546 + $0x60] sm:$0xff]
        %v6266 = vld [vmem:[%s546 + $0x68] sm:$0xff]
        %v6267 = vld [vmem:[%s546 + $0x78] sm:$0xff]
        %v6268 = vld [vmem:[%s546 + $0x80] sm:$0xff]
        %v6269 = vld [vmem:[%s546 + $0x90] sm:$0xff]
        %v6270 = vld [vmem:[%s546 + $0x98] sm:$0xff]
        %v6271 = vld [vmem:[%s546 + $0xa8] sm:$0xff]
        %v6272 = vld [vmem:[%s546 + $0xb0] sm:$0xff]
        %v6273 = vld [vmem:[%s546 + $0xc0] sm:$0xff]
        %v6274 = vld [vmem:[%s546 + $0xc8] sm:$0xff]
        %v6275 = vld [vmem:[%s546 + $0xd8] sm:$0xff]
        %v6276 = vld [vmem:[%s546 + $0xe0] sm:$0xff]
        %v6277 = vld [vmem:[%s546 + $0xf0] sm:$0xff]
        %v6278 = vld [vmem:[%s546 + $0xf8] sm:$0xff]
        %v6279 = vld [vmem:[%s546 + $0x108] sm:$0xff]
        %v6280 = vld [vmem:[%s546 + $0x110] sm:$0xff]
        %v6281 = vld [vmem:[%s546 + $0x120] sm:$0xff]
        %v6282 = vld [vmem:[%s546 + $0x128] sm:$0xff]
        %v6283 = vld [vmem:[%s546 + $0x138] sm:$0xff]
        %v6284 = vld [vmem:[%s546 + $0x140] sm:$0xff]
        %v6285 = vld [vmem:[%s546 + $0x150] sm:$0xff]
        %v6286 = vld [vmem:[%s546 + $0x158] sm:$0xff]
        %v6287 = vld [vmem:[%s546 + $0x168] sm:$0xff]
        %v6288 = vld [vmem:[%s546 + $0x170] sm:$0xff]
        %v6289 = vpack.c.bf16 %v6258, %v6257
        %v6290 = vpack.c.bf16 %v6260, %v6259
        %v6291 = vpack.c.bf16 %v6262, %v6261
        %v6292 = vpack.c.bf16 %v6264, %v6263
        %v6293 = vpack.c.bf16 %v6266, %v6265
        %v6294 = vpack.c.bf16 %v6268, %v6267
        %v6295 = vpack.c.bf16 %v6270, %v6269
        %v6296 = vpack.c.bf16 %v6272, %v6271
        %v6297 = vpack.c.bf16 %v6274, %v6273
        %v6298 = vpack.c.bf16 %v6276, %v6275
        %v6299 = vpack.c.bf16 %v6278, %v6277
        %v6300 = vpack.c.bf16 %v6280, %v6279
        %v6301 = vpack.c.bf16 %v6282, %v6281
        %v6302 = vpack.c.bf16 %v6284, %v6283
        %v6303 = vpack.c.bf16 %v6286, %v6285
        %v6304 = vpack.c.bf16 %v6288, %v6287
        %6305 = vst [vmem:[#allocation3 + $0x18] sm:$0xff] %v6289
        %6306 = vst [vmem:[#allocation3 + $0x60] sm:$0xff] %v6290
        %6307 = vst [vmem:[#allocation3 + $0xa8] sm:$0xff] %v6291
        %6308 = vst [vmem:[#allocation3 + $0xf0] sm:$0xff] %v6292
        %6309 = vst [vmem:[#allocation3 + $0x138] sm:$0xff] %v6293
        %6310 = vst [vmem:[#allocation3 + $0x180] sm:$0xff] %v6294
        %6311 = vst [vmem:[#allocation3 + $0x1c8] sm:$0xff] %v6295
        %6312 = vst [vmem:[#allocation3 + $0x210] sm:$0xff] %v6296
        %6313 = vst [vmem:[#allocation3 + $0x258] sm:$0xff] %v6297
        %6314 = vst [vmem:[#allocation3 + $0x2a0] sm:$0xff] %v6298
        %6315 = vst [vmem:[#allocation3 + $0x2e8] sm:$0xff] %v6299
        %6316 = vst [vmem:[#allocation3 + $0x330] sm:$0xff] %v6300
        %6317 = vst [vmem:[#allocation3 + $0x378] sm:$0xff] %v6301
        %6318 = vst [vmem:[#allocation3 + $0x3c0] sm:$0xff] %v6302
        %6319 = vst [vmem:[#allocation3 + $0x408] sm:$0xff] %v6303
        %6320 = vst [vmem:[#allocation3 + $0x450] sm:$0xff] %v6304
        %v6321 = vld [vmem:[%s546 + $0x1] sm:$0xff]
        %v6322 = vld [vmem:[%s546 + $0x9] sm:$0xff]
        %v6323 = vld [vmem:[%s546 + $0x19] sm:$0xff]
        %v6324 = vld [vmem:[%s546 + $0x21] sm:$0xff]
        %v6325 = vld [vmem:[%s546 + $0x31] sm:$0xff]
        %v6326 = vld [vmem:[%s546 + $0x39] sm:$0xff]
        %v6327 = vld [vmem:[%s546 + $0x49] sm:$0xff]
        %v6328 = vld [vmem:[%s546 + $0x51] sm:$0xff]
        %v6329 = vld [vmem:[%s546 + $0x61] sm:$0xff]
        %v6330 = vld [vmem:[%s546 + $0x69] sm:$0xff]
        %v6331 = vld [vmem:[%s546 + $0x79] sm:$0xff]
        %v6332 = vld [vmem:[%s546 + $0x81] sm:$0xff]
        %v6333 = vld [vmem:[%s546 + $0x91] sm:$0xff]
        %v6334 = vld [vmem:[%s546 + $0x99] sm:$0xff]
        %v6335 = vld [vmem:[%s546 + $0xa9] sm:$0xff]
        %v6336 = vld [vmem:[%s546 + $0xb1] sm:$0xff]
        %v6337 = vld [vmem:[%s546 + $0xc1] sm:$0xff]
        %v6338 = vld [vmem:[%s546 + $0xc9] sm:$0xff]
        %v6339 = vld [vmem:[%s546 + $0xd9] sm:$0xff]
        %v6340 = vld [vmem:[%s546 + $0xe1] sm:$0xff]
        %v6341 = vld [vmem:[%s546 + $0xf1] sm:$0xff]
        %v6342 = vld [vmem:[%s546 + $0xf9] sm:$0xff]
        %v6343 = vld [vmem:[%s546 + $0x109] sm:$0xff]
        %v6344 = vld [vmem:[%s546 + $0x111] sm:$0xff]
        %v6345 = vld [vmem:[%s546 + $0x121] sm:$0xff]
        %v6346 = vld [vmem:[%s546 + $0x129] sm:$0xff]
        %v6347 = vld [vmem:[%s546 + $0x139] sm:$0xff]
        %v6348 = vld [vmem:[%s546 + $0x141] sm:$0xff]
        %v6349 = vld [vmem:[%s546 + $0x151] sm:$0xff]
        %v6350 = vld [vmem:[%s546 + $0x159] sm:$0xff]
        %v6351 = vld [vmem:[%s546 + $0x169] sm:$0xff]
        %v6352 = vld [vmem:[%s546 + $0x171] sm:$0xff]
        %v6353 = vpack.c.bf16 %v6322, %v6321
        %v6354 = vpack.c.bf16 %v6324, %v6323
        %v6355 = vpack.c.bf16 %v6326, %v6325
        %v6356 = vpack.c.bf16 %v6328, %v6327
        %v6357 = vpack.c.bf16 %v6330, %v6329
        %v6358 = vpack.c.bf16 %v6332, %v6331
        %v6359 = vpack.c.bf16 %v6334, %v6333
        %v6360 = vpack.c.bf16 %v6336, %v6335
        %v6361 = vpack.c.bf16 %v6338, %v6337
        %v6362 = vpack.c.bf16 %v6340, %v6339
        %v6363 = vpack.c.bf16 %v6342, %v6341
        %v6364 = vpack.c.bf16 %v6344, %v6343
        %v6365 = vpack.c.bf16 %v6346, %v6345
        %v6366 = vpack.c.bf16 %v6348, %v6347
        %v6367 = vpack.c.bf16 %v6350, %v6349
        %v6368 = vpack.c.bf16 %v6352, %v6351
        %6369 = vst [vmem:[#allocation3 + $0x20] sm:$0xff] %v6353
        %6370 = vst [vmem:[#allocation3 + $0x68] sm:$0xff] %v6354
        %6371 = vst [vmem:[#allocation3 + $0xb0] sm:$0xff] %v6355
        %6372 = vst [vmem:[#allocation3 + $0xf8] sm:$0xff] %v6356
        %6373 = vst [vmem:[#allocation3 + $0x140] sm:$0xff] %v6357
        %6374 = vst [vmem:[#allocation3 + $0x188] sm:$0xff] %v6358
        %6375 = vst [vmem:[#allocation3 + $0x1d0] sm:$0xff] %v6359
        %6376 = vst [vmem:[#allocation3 + $0x218] sm:$0xff] %v6360
        %6377 = vst [vmem:[#allocation3 + $0x260] sm:$0xff] %v6361
        %6378 = vst [vmem:[#allocation3 + $0x2a8] sm:$0xff] %v6362
        %6379 = vst [vmem:[#allocation3 + $0x2f0] sm:$0xff] %v6363
        %6380 = vst [vmem:[#allocation3 + $0x338] sm:$0xff] %v6364
        %6381 = vst [vmem:[#allocation3 + $0x380] sm:$0xff] %v6365
        %6382 = vst [vmem:[#allocation3 + $0x3c8] sm:$0xff] %v6366
        %6383 = vst [vmem:[#allocation3 + $0x410] sm:$0xff] %v6367
        %6384 = vst [vmem:[#allocation3 + $0x458] sm:$0xff] %v6368
        %v6385 = vld [vmem:[%s546 + $0x2] sm:$0xff]
        %v6386 = vld [vmem:[%s546 + $0xa] sm:$0xff]
        %v6387 = vld [vmem:[%s546 + $0x1a] sm:$0xff]
        %v6388 = vld [vmem:[%s546 + $0x22] sm:$0xff]
        %v6389 = vld [vmem:[%s546 + $0x32] sm:$0xff]
        %v6390 = vld [vmem:[%s546 + $0x3a] sm:$0xff]
        %v6391 = vld [vmem:[%s546 + $0x4a] sm:$0xff]
        %v6392 = vld [vmem:[%s546 + $0x52] sm:$0xff]
        %v6393 = vld [vmem:[%s546 + $0x62] sm:$0xff]
        %v6394 = vld [vmem:[%s546 + $0x6a] sm:$0xff]
        %v6395 = vld [vmem:[%s546 + $0x7a] sm:$0xff]
        %v6396 = vld [vmem:[%s546 + $0x82] sm:$0xff]
        %v6397 = vld [vmem:[%s546 + $0x92] sm:$0xff]
        %v6398 = vld [vmem:[%s546 + $0x9a] sm:$0xff]
        %v6399 = vld [vmem:[%s546 + $0xaa] sm:$0xff]
        %v6400 = vld [vmem:[%s546 + $0xb2] sm:$0xff]
        %v6401 = vld [vmem:[%s546 + $0xc2] sm:$0xff]
        %v6402 = vld [vmem:[%s546 + $0xca] sm:$0xff]
        %v6403 = vld [vmem:[%s546 + $0xda] sm:$0xff]
        %v6404 = vld [vmem:[%s546 + $0xe2] sm:$0xff]
        %v6405 = vld [vmem:[%s546 + $0xf2] sm:$0xff]
        %v6406 = vld [vmem:[%s546 + $0xfa] sm:$0xff]
        %v6407 = vld [vmem:[%s546 + $0x10a] sm:$0xff]
        %v6408 = vld [vmem:[%s546 + $0x112] sm:$0xff]
        %v6409 = vld [vmem:[%s546 + $0x122] sm:$0xff]
        %v6410 = vld [vmem:[%s546 + $0x12a] sm:$0xff]
        %v6411 = vld [vmem:[%s546 + $0x13a] sm:$0xff]
        %v6412 = vld [vmem:[%s546 + $0x142] sm:$0xff]
        %v6413 = vld [vmem:[%s546 + $0x152] sm:$0xff]
        %v6414 = vld [vmem:[%s546 + $0x15a] sm:$0xff]
        %v6415 = vld [vmem:[%s546 + $0x16a] sm:$0xff]
        %v6416 = vld [vmem:[%s546 + $0x172] sm:$0xff]
        %v6417 = vpack.c.bf16 %v6386, %v6385
        %v6418 = vpack.c.bf16 %v6388, %v6387
        %v6419 = vpack.c.bf16 %v6390, %v6389
        %v6420 = vpack.c.bf16 %v6392, %v6391
        %v6421 = vpack.c.bf16 %v6394, %v6393
        %v6422 = vpack.c.bf16 %v6396, %v6395
        %v6423 = vpack.c.bf16 %v6398, %v6397
        %v6424 = vpack.c.bf16 %v6400, %v6399
        %v6425 = vpack.c.bf16 %v6402, %v6401
        %v6426 = vpack.c.bf16 %v6404, %v6403
        %v6427 = vpack.c.bf16 %v6406, %v6405
        %v6428 = vpack.c.bf16 %v6408, %v6407
        %v6429 = vpack.c.bf16 %v6410, %v6409
        %v6430 = vpack.c.bf16 %v6412, %v6411
        %v6431 = vpack.c.bf16 %v6414, %v6413
        %v6432 = vpack.c.bf16 %v6416, %v6415
        %6433 = vst [vmem:[#allocation3 + $0x28] sm:$0xff] %v6417
        %6434 = vst [vmem:[#allocation3 + $0x70] sm:$0xff] %v6418
        %6435 = vst [vmem:[#allocation3 + $0xb8] sm:$0xff] %v6419
        %6436 = vst [vmem:[#allocation3 + $0x100] sm:$0xff] %v6420
        %6437 = vst [vmem:[#allocation3 + $0x148] sm:$0xff] %v6421
        %6438 = vst [vmem:[#allocation3 + $0x190] sm:$0xff] %v6422
        %6439 = vst [vmem:[#allocation3 + $0x1d8] sm:$0xff] %v6423
        %6440 = vst [vmem:[#allocation3 + $0x220] sm:$0xff] %v6424
        %6441 = vst [vmem:[#allocation3 + $0x268] sm:$0xff] %v6425
        %6442 = vst [vmem:[#allocation3 + $0x2b0] sm:$0xff] %v6426
        %6443 = vst [vmem:[#allocation3 + $0x2f8] sm:$0xff] %v6427
        %6444 = vst [vmem:[#allocation3 + $0x340] sm:$0xff] %v6428
        %6445 = vst [vmem:[#allocation3 + $0x388] sm:$0xff] %v6429
        %6446 = vst [vmem:[#allocation3 + $0x3d0] sm:$0xff] %v6430
        %6447 = vst [vmem:[#allocation3 + $0x418] sm:$0xff] %v6431
        %6448 = vst [vmem:[#allocation3 + $0x460] sm:$0xff] %v6432
        %v6449 = vld [vmem:[%s2669] sm:$0xff]
        %v6450 = vld [vmem:[%s2669 + $0x8] sm:$0xff]
        %v6451 = vld [vmem:[%s2669 + $0x18] sm:$0xff]
        %v6452 = vld [vmem:[%s2669 + $0x20] sm:$0xff]
        %v6453 = vld [vmem:[%s2669 + $0x30] sm:$0xff]
        %v6454 = vld [vmem:[%s2669 + $0x38] sm:$0xff]
        %v6455 = vld [vmem:[%s2669 + $0x48] sm:$0xff]
        %v6456 = vld [vmem:[%s2669 + $0x50] sm:$0xff]
        %v6457 = vld [vmem:[%s2669 + $0x60] sm:$0xff]
        %v6458 = vld [vmem:[%s2669 + $0x68] sm:$0xff]
        %v6459 = vld [vmem:[%s2669 + $0x78] sm:$0xff]
        %v6460 = vld [vmem:[%s2669 + $0x80] sm:$0xff]
        %v6461 = vld [vmem:[%s2669 + $0x90] sm:$0xff]
        %v6462 = vld [vmem:[%s2669 + $0x98] sm:$0xff]
        %v6463 = vld [vmem:[%s2669 + $0xa8] sm:$0xff]
        %v6464 = vld [vmem:[%s2669 + $0xb0] sm:$0xff]
        %v6465 = vld [vmem:[%s2669 + $0xc0] sm:$0xff]
        %v6466 = vld [vmem:[%s2669 + $0xc8] sm:$0xff]
        %v6467 = vld [vmem:[%s2669 + $0xd8] sm:$0xff]
        %v6468 = vld [vmem:[%s2669 + $0xe0] sm:$0xff]
        %v6469 = vld [vmem:[%s2669 + $0xf0] sm:$0xff]
        %v6470 = vld [vmem:[%s2669 + $0xf8] sm:$0xff]
        %v6471 = vld [vmem:[%s2669 + $0x108] sm:$0xff]
        %v6472 = vld [vmem:[%s2669 + $0x110] sm:$0xff]
        %v6473 = vld [vmem:[%s2669 + $0x120] sm:$0xff]
        %v6474 = vld [vmem:[%s2669 + $0x128] sm:$0xff]
        %v6475 = vld [vmem:[%s2669 + $0x138] sm:$0xff]
        %v6476 = vld [vmem:[%s2669 + $0x140] sm:$0xff]
        %v6477 = vld [vmem:[%s2669 + $0x150] sm:$0xff]
        %v6478 = vld [vmem:[%s2669 + $0x158] sm:$0xff]
        %v6479 = vld [vmem:[%s2669 + $0x168] sm:$0xff]
        %v6480 = vld [vmem:[%s2669 + $0x170] sm:$0xff]
        %v6481 = vpack.c.bf16 %v6450, %v6449
        %v6482 = vpack.c.bf16 %v6452, %v6451
        %v6483 = vpack.c.bf16 %v6454, %v6453
        %v6484 = vpack.c.bf16 %v6456, %v6455
        %v6485 = vpack.c.bf16 %v6458, %v6457
        %v6486 = vpack.c.bf16 %v6460, %v6459
        %v6487 = vpack.c.bf16 %v6462, %v6461
        %v6488 = vpack.c.bf16 %v6464, %v6463
        %v6489 = vpack.c.bf16 %v6466, %v6465
        %v6490 = vpack.c.bf16 %v6468, %v6467
        %v6491 = vpack.c.bf16 %v6470, %v6469
        %v6492 = vpack.c.bf16 %v6472, %v6471
        %v6493 = vpack.c.bf16 %v6474, %v6473
        %v6494 = vpack.c.bf16 %v6476, %v6475
        %v6495 = vpack.c.bf16 %v6478, %v6477
        %v6496 = vpack.c.bf16 %v6480, %v6479
        %6497 = vst [vmem:[#allocation3 + $0x30] sm:$0xff] %v6481
        %6498 = vst [vmem:[#allocation3 + $0x78] sm:$0xff] %v6482
        %6499 = vst [vmem:[#allocation3 + $0xc0] sm:$0xff] %v6483
        %6500 = vst [vmem:[#allocation3 + $0x108] sm:$0xff] %v6484
        %6501 = vst [vmem:[#allocation3 + $0x150] sm:$0xff] %v6485
        %6502 = vst [vmem:[#allocation3 + $0x198] sm:$0xff] %v6486
        %6503 = vst [vmem:[#allocation3 + $0x1e0] sm:$0xff] %v6487
        %6504 = vst [vmem:[#allocation3 + $0x228] sm:$0xff] %v6488
        %6505 = vst [vmem:[#allocation3 + $0x270] sm:$0xff] %v6489
        %6506 = vst [vmem:[#allocation3 + $0x2b8] sm:$0xff] %v6490
        %6507 = vst [vmem:[#allocation3 + $0x300] sm:$0xff] %v6491
        %6508 = vst [vmem:[#allocation3 + $0x348] sm:$0xff] %v6492
        %6509 = vst [vmem:[#allocation3 + $0x390] sm:$0xff] %v6493
        %6510 = vst [vmem:[#allocation3 + $0x3d8] sm:$0xff] %v6494
        %6511 = vst [vmem:[#allocation3 + $0x420] sm:$0xff] %v6495
        %6512 = vst [vmem:[#allocation3 + $0x468] sm:$0xff] %v6496
        %v6513 = vld [vmem:[%s2669 + $0x1] sm:$0xff]
        %v6514 = vld [vmem:[%s2669 + $0x9] sm:$0xff]
        %v6515 = vld [vmem:[%s2669 + $0x19] sm:$0xff]
        %v6516 = vld [vmem:[%s2669 + $0x21] sm:$0xff]
        %v6517 = vld [vmem:[%s2669 + $0x31] sm:$0xff]
        %v6518 = vld [vmem:[%s2669 + $0x39] sm:$0xff]
        %v6519 = vld [vmem:[%s2669 + $0x49] sm:$0xff]
        %v6520 = vld [vmem:[%s2669 + $0x51] sm:$0xff]
        %v6521 = vld [vmem:[%s2669 + $0x61] sm:$0xff]
        %v6522 = vld [vmem:[%s2669 + $0x69] sm:$0xff]
        %v6523 = vld [vmem:[%s2669 + $0x79] sm:$0xff]
        %v6524 = vld [vmem:[%s2669 + $0x81] sm:$0xff]
        %v6525 = vld [vmem:[%s2669 + $0x91] sm:$0xff]
        %v6526 = vld [vmem:[%s2669 + $0x99] sm:$0xff]
        %v6527 = vld [vmem:[%s2669 + $0xa9] sm:$0xff]
        %v6528 = vld [vmem:[%s2669 + $0xb1] sm:$0xff]
        %v6529 = vld [vmem:[%s2669 + $0xc1] sm:$0xff]
        %v6530 = vld [vmem:[%s2669 + $0xc9] sm:$0xff]
        %v6531 = vld [vmem:[%s2669 + $0xd9] sm:$0xff]
        %v6532 = vld [vmem:[%s2669 + $0xe1] sm:$0xff]
        %v6533 = vld [vmem:[%s2669 + $0xf1] sm:$0xff]
        %v6534 = vld [vmem:[%s2669 + $0xf9] sm:$0xff]
        %v6535 = vld [vmem:[%s2669 + $0x109] sm:$0xff]
        %v6536 = vld [vmem:[%s2669 + $0x111] sm:$0xff]
        %v6537 = vld [vmem:[%s2669 + $0x121] sm:$0xff]
        %v6538 = vld [vmem:[%s2669 + $0x129] sm:$0xff]
        %v6539 = vld [vmem:[%s2669 + $0x139] sm:$0xff]
        %v6540 = vld [vmem:[%s2669 + $0x141] sm:$0xff]
        %v6541 = vld [vmem:[%s2669 + $0x151] sm:$0xff]
        %v6542 = vld [vmem:[%s2669 + $0x159] sm:$0xff]
        %v6543 = vld [vmem:[%s2669 + $0x169] sm:$0xff]
        %v6544 = vld [vmem:[%s2669 + $0x171] sm:$0xff]
        %v6545 = vpack.c.bf16 %v6514, %v6513
        %v6546 = vpack.c.bf16 %v6516, %v6515
        %v6547 = vpack.c.bf16 %v6518, %v6517
        %v6548 = vpack.c.bf16 %v6520, %v6519
        %v6549 = vpack.c.bf16 %v6522, %v6521
        %v6550 = vpack.c.bf16 %v6524, %v6523
        %v6551 = vpack.c.bf16 %v6526, %v6525
        %v6552 = vpack.c.bf16 %v6528, %v6527
        %v6553 = vpack.c.bf16 %v6530, %v6529
        %v6554 = vpack.c.bf16 %v6532, %v6531
        %v6555 = vpack.c.bf16 %v6534, %v6533
        %v6556 = vpack.c.bf16 %v6536, %v6535
        %v6557 = vpack.c.bf16 %v6538, %v6537
        %v6558 = vpack.c.bf16 %v6540, %v6539
        %v6559 = vpack.c.bf16 %v6542, %v6541
        %v6560 = vpack.c.bf16 %v6544, %v6543
        %6561 = vst [vmem:[#allocation3 + $0x38] sm:$0xff] %v6545
        %6562 = vst [vmem:[#allocation3 + $0x80] sm:$0xff] %v6546
        %6563 = vst [vmem:[#allocation3 + $0xc8] sm:$0xff] %v6547
        %6564 = vst [vmem:[#allocation3 + $0x110] sm:$0xff] %v6548
        %6565 = vst [vmem:[#allocation3 + $0x158] sm:$0xff] %v6549
        %6566 = vst [vmem:[#allocation3 + $0x1a0] sm:$0xff] %v6550
        %6567 = vst [vmem:[#allocation3 + $0x1e8] sm:$0xff] %v6551
        %6568 = vst [vmem:[#allocation3 + $0x230] sm:$0xff] %v6552
        %6569 = vst [vmem:[#allocation3 + $0x278] sm:$0xff] %v6553
        %6570 = vst [vmem:[#allocation3 + $0x2c0] sm:$0xff] %v6554
        %6571 = vst [vmem:[#allocation3 + $0x308] sm:$0xff] %v6555
        %6572 = vst [vmem:[#allocation3 + $0x350] sm:$0xff] %v6556
        %6573 = vst [vmem:[#allocation3 + $0x398] sm:$0xff] %v6557
        %6574 = vst [vmem:[#allocation3 + $0x3e0] sm:$0xff] %v6558
        %6575 = vst [vmem:[#allocation3 + $0x428] sm:$0xff] %v6559
        %6576 = vst [vmem:[#allocation3 + $0x470] sm:$0xff] %v6560
        %v6577 = vld [vmem:[%s2669 + $0x2] sm:$0xff]
        %v6578 = vld [vmem:[%s2669 + $0xa] sm:$0xff]
        %v6579 = vld [vmem:[%s2669 + $0x1a] sm:$0xff]
        %v6580 = vld [vmem:[%s2669 + $0x22] sm:$0xff]
        %v6581 = vld [vmem:[%s2669 + $0x32] sm:$0xff]
        %v6582 = vld [vmem:[%s2669 + $0x3a] sm:$0xff]
        %v6583 = vld [vmem:[%s2669 + $0x4a] sm:$0xff]
        %v6584 = vld [vmem:[%s2669 + $0x52] sm:$0xff]
        %v6585 = vld [vmem:[%s2669 + $0x62] sm:$0xff]
        %v6586 = vld [vmem:[%s2669 + $0x6a] sm:$0xff]
        %v6587 = vld [vmem:[%s2669 + $0x7a] sm:$0xff]
        %v6588 = vld [vmem:[%s2669 + $0x82] sm:$0xff]
        %v6589 = vld [vmem:[%s2669 + $0x92] sm:$0xff]
        %v6590 = vld [vmem:[%s2669 + $0x9a] sm:$0xff]
        %v6591 = vld [vmem:[%s2669 + $0xaa] sm:$0xff]
        %v6592 = vld [vmem:[%s2669 + $0xb2] sm:$0xff]
        %v6593 = vld [vmem:[%s2669 + $0xc2] sm:$0xff]
        %v6594 = vld [vmem:[%s2669 + $0xca] sm:$0xff]
        %v6595 = vld [vmem:[%s2669 + $0xda] sm:$0xff]
        %v6596 = vld [vmem:[%s2669 + $0xe2] sm:$0xff]
        %v6597 = vld [vmem:[%s2669 + $0xf2] sm:$0xff]
        %v6598 = vld [vmem:[%s2669 + $0xfa] sm:$0xff]
        %v6599 = vld [vmem:[%s2669 + $0x10a] sm:$0xff]
        %v6600 = vld [vmem:[%s2669 + $0x112] sm:$0xff]
        %v6601 = vld [vmem:[%s2669 + $0x122] sm:$0xff]
        %v6602 = vld [vmem:[%s2669 + $0x12a] sm:$0xff]
        %v6603 = vld [vmem:[%s2669 + $0x13a] sm:$0xff]
        %v6604 = vld [vmem:[%s2669 + $0x142] sm:$0xff]
        %v6605 = vld [vmem:[%s2669 + $0x152] sm:$0xff]
        %v6606 = vld [vmem:[%s2669 + $0x15a] sm:$0xff]
        %v6607 = vld [vmem:[%s2669 + $0x16a] sm:$0xff]
        %v6608 = vld [vmem:[%s2669 + $0x172] sm:$0xff]
        %v6609 = vpack.c.bf16 %v6578, %v6577
        %v6610 = vpack.c.bf16 %v6580, %v6579
        %v6611 = vpack.c.bf16 %v6582, %v6581
        %v6612 = vpack.c.bf16 %v6584, %v6583
        %v6613 = vpack.c.bf16 %v6586, %v6585
        %v6614 = vpack.c.bf16 %v6588, %v6587
        %v6615 = vpack.c.bf16 %v6590, %v6589
        %v6616 = vpack.c.bf16 %v6592, %v6591
        %v6617 = vpack.c.bf16 %v6594, %v6593
        %v6618 = vpack.c.bf16 %v6596, %v6595
        %v6619 = vpack.c.bf16 %v6598, %v6597
        %v6620 = vpack.c.bf16 %v6600, %v6599
        %v6621 = vpack.c.bf16 %v6602, %v6601
        %v6622 = vpack.c.bf16 %v6604, %v6603
        %v6623 = vpack.c.bf16 %v6606, %v6605
        %v6624 = vpack.c.bf16 %v6608, %v6607
        %6625 = vst [vmem:[#allocation3 + $0x40] sm:$0xff] %v6609
        %6626 = vst [vmem:[#allocation3 + $0x88] sm:$0xff] %v6610
        %6627 = vst [vmem:[#allocation3 + $0xd0] sm:$0xff] %v6611
        %6628 = vst [vmem:[#allocation3 + $0x118] sm:$0xff] %v6612
        %6629 = vst [vmem:[#allocation3 + $0x160] sm:$0xff] %v6613
        %6630 = vst [vmem:[#allocation3 + $0x1a8] sm:$0xff] %v6614
        %6631 = vst [vmem:[#allocation3 + $0x1f0] sm:$0xff] %v6615
        %6632 = vst [vmem:[#allocation3 + $0x238] sm:$0xff] %v6616
        %6633 = vst [vmem:[#allocation3 + $0x280] sm:$0xff] %v6617
        %6634 = vst [vmem:[#allocation3 + $0x2c8] sm:$0xff] %v6618
        %6635 = vst [vmem:[#allocation3 + $0x310] sm:$0xff] %v6619
        %6636 = vst [vmem:[#allocation3 + $0x358] sm:$0xff] %v6620
        %6637 = vst [vmem:[#allocation3 + $0x3a0] sm:$0xff] %v6621
        %6638 = vst [vmem:[#allocation3 + $0x3e8] sm:$0xff] %v6622
        %6639 = vst [vmem:[#allocation3 + $0x430] sm:$0xff] %v6623
        %6640 = vst [vmem:[#allocation3 + $0x478] sm:$0xff] %v6624
        %v6641 = vld [vmem:[#allocation3] sm:$0xff]
        %v6642 = vld [vmem:[#allocation3 + $0x8] sm:$0xff]
        %v6643 = vld [vmem:[#allocation3 + $0x10] sm:$0xff]
        %v6644 = vld [vmem:[#allocation3 + $0x18] sm:$0xff]
        %v6645 = vld [vmem:[#allocation3 + $0x20] sm:$0xff]
        %v6646 = vld [vmem:[#allocation3 + $0x28] sm:$0xff]
        %v6647 = vld [vmem:[#allocation3 + $0x30] sm:$0xff]
        %v6648 = vld [vmem:[#allocation3 + $0x38] sm:$0xff]
        %v6649 = vld [vmem:[#allocation3 + $0x40] sm:$0xff]
        %v6650 = vld [vmem:[#allocation3 + $0x48] sm:$0xff]
        %v6651 = vld [vmem:[#allocation3 + $0x50] sm:$0xff]
        %v6652 = vld [vmem:[#allocation3 + $0x58] sm:$0xff]
        %v6653 = vld [vmem:[#allocation3 + $0x60] sm:$0xff]
        %v6654 = vld [vmem:[#allocation3 + $0x68] sm:$0xff]
        %v6655 = vld [vmem:[#allocation3 + $0x70] sm:$0xff]
        %v6656 = vld [vmem:[#allocation3 + $0x78] sm:$0xff]
        %v6657 = vld [vmem:[#allocation3 + $0x80] sm:$0xff]
        %v6658 = vld [vmem:[#allocation3 + $0x88] sm:$0xff]
        %v6659 = vld [vmem:[#allocation3 + $0x90] sm:$0xff]
        %v6660 = vld [vmem:[#allocation3 + $0x98] sm:$0xff]
        %v6661 = vld [vmem:[#allocation3 + $0xa0] sm:$0xff]
        %v6662 = vld [vmem:[#allocation3 + $0xa8] sm:$0xff]
        %v6663 = vld [vmem:[#allocation3 + $0xb0] sm:$0xff]
        %v6664 = vld [vmem:[#allocation3 + $0xb8] sm:$0xff]
        %v6665 = vld [vmem:[#allocation3 + $0xc0] sm:$0xff]
        %v6666 = vld [vmem:[#allocation3 + $0xc8] sm:$0xff]
        %v6667 = vld [vmem:[#allocation3 + $0xd0] sm:$0xff]
        %v6668 = vld [vmem:[#allocation3 + $0xd8] sm:$0xff]
        %v6669 = vld [vmem:[#allocation3 + $0xe0] sm:$0xff]
        %v6670 = vld [vmem:[#allocation3 + $0xe8] sm:$0xff]
        %v6671 = vld [vmem:[#allocation3 + $0xf0] sm:$0xff]
        %v6672 = vld [vmem:[#allocation3 + $0xf8] sm:$0xff]
        %v6673 = vld [vmem:[#allocation3 + $0x100] sm:$0xff]
        %v6674 = vld [vmem:[#allocation3 + $0x108] sm:$0xff]
        %v6675 = vld [vmem:[#allocation3 + $0x110] sm:$0xff]
        %v6676 = vld [vmem:[#allocation3 + $0x118] sm:$0xff]
        %v6677 = vld [vmem:[#allocation3 + $0x120] sm:$0xff]
        %v6678 = vld [vmem:[#allocation3 + $0x128] sm:$0xff]
        %v6679 = vld [vmem:[#allocation3 + $0x130] sm:$0xff]
        %v6680 = vld [vmem:[#allocation3 + $0x138] sm:$0xff]
        %v6681 = vld [vmem:[#allocation3 + $0x140] sm:$0xff]
        %v6682 = vld [vmem:[#allocation3 + $0x148] sm:$0xff]
        %v6683 = vld [vmem:[#allocation3 + $0x150] sm:$0xff]
        %v6684 = vld [vmem:[#allocation3 + $0x158] sm:$0xff]
        %v6685 = vld [vmem:[#allocation3 + $0x160] sm:$0xff]
        %v6686 = vld [vmem:[#allocation3 + $0x168] sm:$0xff]
        %v6687 = vld [vmem:[#allocation3 + $0x170] sm:$0xff]
        %v6688 = vld [vmem:[#allocation3 + $0x178] sm:$0xff]
        %v6689 = vld [vmem:[#allocation3 + $0x180] sm:$0xff]
        %v6690 = vld [vmem:[#allocation3 + $0x188] sm:$0xff]
        %v6691 = vld [vmem:[#allocation3 + $0x190] sm:$0xff]
        %v6692 = vld [vmem:[#allocation3 + $0x198] sm:$0xff]
        %v6693 = vld [vmem:[#allocation3 + $0x1a0] sm:$0xff]
        %v6694 = vld [vmem:[#allocation3 + $0x1a8] sm:$0xff]
        %v6695 = vld [vmem:[#allocation3 + $0x1b0] sm:$0xff]
        %v6696 = vld [vmem:[#allocation3 + $0x1b8] sm:$0xff]
        %v6697 = vld [vmem:[#allocation3 + $0x1c0] sm:$0xff]
        %v6698 = vld [vmem:[#allocation3 + $0x1c8] sm:$0xff]
        %v6699 = vld [vmem:[#allocation3 + $0x1d0] sm:$0xff]
        %v6700 = vld [vmem:[#allocation3 + $0x1d8] sm:$0xff]
        %v6701 = vld [vmem:[#allocation3 + $0x1e0] sm:$0xff]
        %v6702 = vld [vmem:[#allocation3 + $0x1e8] sm:$0xff]
        %v6703 = vld [vmem:[#allocation3 + $0x1f0] sm:$0xff]
        %v6704 = vld [vmem:[#allocation3 + $0x1f8] sm:$0xff]
        %v6705 = vld [vmem:[#allocation3 + $0x200] sm:$0xff]
        %v6706 = vld [vmem:[#allocation3 + $0x208] sm:$0xff]
        %v6707 = vld [vmem:[#allocation3 + $0x210] sm:$0xff]
        %v6708 = vld [vmem:[#allocation3 + $0x218] sm:$0xff]
        %v6709 = vld [vmem:[#allocation3 + $0x220] sm:$0xff]
        %v6710 = vld [vmem:[#allocation3 + $0x228] sm:$0xff]
        %v6711 = vld [vmem:[#allocation3 + $0x230] sm:$0xff]
        %v6712 = vld [vmem:[#allocation3 + $0x238] sm:$0xff]
        %v6713 = vld [vmem:[#allocation3 + $0x240] sm:$0xff]
        %v6714 = vld [vmem:[#allocation3 + $0x248] sm:$0xff]
        %v6715 = vld [vmem:[#allocation3 + $0x250] sm:$0xff]
        %v6716 = vld [vmem:[#allocation3 + $0x258] sm:$0xff]
        %v6717 = vld [vmem:[#allocation3 + $0x260] sm:$0xff]
        %v6718 = vld [vmem:[#allocation3 + $0x268] sm:$0xff]
        %v6719 = vld [vmem:[#allocation3 + $0x270] sm:$0xff]
        %v6720 = vld [vmem:[#allocation3 + $0x278] sm:$0xff]
        %v6721 = vld [vmem:[#allocation3 + $0x280] sm:$0xff]
        %v6722 = vld [vmem:[#allocation3 + $0x288] sm:$0xff]
        %v6723 = vld [vmem:[#allocation3 + $0x290] sm:$0xff]
        %v6724 = vld [vmem:[#allocation3 + $0x298] sm:$0xff]
        %v6725 = vld [vmem:[#allocation3 + $0x2a0] sm:$0xff]
        %v6726 = vld [vmem:[#allocation3 + $0x2a8] sm:$0xff]
        %v6727 = vld [vmem:[#allocation3 + $0x2b0] sm:$0xff]
        %v6728 = vld [vmem:[#allocation3 + $0x2b8] sm:$0xff]
        %v6729 = vld [vmem:[#allocation3 + $0x2c0] sm:$0xff]
        %v6730 = vld [vmem:[#allocation3 + $0x2c8] sm:$0xff]
        %v6731 = vld [vmem:[#allocation3 + $0x2d0] sm:$0xff]
        %v6732 = vld [vmem:[#allocation3 + $0x2d8] sm:$0xff]
        %v6733 = vld [vmem:[#allocation3 + $0x2e0] sm:$0xff]
        %v6734 = vld [vmem:[#allocation3 + $0x2e8] sm:$0xff]
        %v6735 = vld [vmem:[#allocation3 + $0x2f0] sm:$0xff]
        %v6736 = vld [vmem:[#allocation3 + $0x2f8] sm:$0xff]
        %v6737 = vld [vmem:[#allocation3 + $0x300] sm:$0xff]
        %v6738 = vld [vmem:[#allocation3 + $0x308] sm:$0xff]
        %v6739 = vld [vmem:[#allocation3 + $0x310] sm:$0xff]
        %v6740 = vld [vmem:[#allocation3 + $0x318] sm:$0xff]
        %v6741 = vld [vmem:[#allocation3 + $0x320] sm:$0xff]
        %v6742 = vld [vmem:[#allocation3 + $0x328] sm:$0xff]
        %v6743 = vld [vmem:[#allocation3 + $0x330] sm:$0xff]
        %v6744 = vld [vmem:[#allocation3 + $0x338] sm:$0xff]
        %v6745 = vld [vmem:[#allocation3 + $0x340] sm:$0xff]
        %v6746 = vld [vmem:[#allocation3 + $0x348] sm:$0xff]
        %v6747 = vld [vmem:[#allocation3 + $0x350] sm:$0xff]
        %v6748 = vld [vmem:[#allocation3 + $0x358] sm:$0xff]
        %v6749 = vld [vmem:[#allocation3 + $0x360] sm:$0xff]
        %v6750 = vld [vmem:[#allocation3 + $0x368] sm:$0xff]
        %v6751 = vld [vmem:[#allocation3 + $0x370] sm:$0xff]
        %v6752 = vld [vmem:[#allocation3 + $0x378] sm:$0xff]
        %v6753 = vld [vmem:[#allocation3 + $0x380] sm:$0xff]
        %v6754 = vld [vmem:[#allocation3 + $0x388] sm:$0xff]
        %v6755 = vld [vmem:[#allocation3 + $0x390] sm:$0xff]
        %v6756 = vld [vmem:[#allocation3 + $0x398] sm:$0xff]
        %v6757 = vld [vmem:[#allocation3 + $0x3a0] sm:$0xff]
        %v6758 = vld [vmem:[#allocation3 + $0x3a8] sm:$0xff]
        %v6759 = vld [vmem:[#allocation3 + $0x3b0] sm:$0xff]
        %v6760 = vld [vmem:[#allocation3 + $0x3b8] sm:$0xff]
        %v6761 = vld [vmem:[#allocation3 + $0x3c0] sm:$0xff]
        %v6762 = vld [vmem:[#allocation3 + $0x3c8] sm:$0xff]
        %v6763 = vld [vmem:[#allocation3 + $0x3d0] sm:$0xff]
        %v6764 = vld [vmem:[#allocation3 + $0x3d8] sm:$0xff]
        %v6765 = vld [vmem:[#allocation3 + $0x3e0] sm:$0xff]
        %v6766 = vld [vmem:[#allocation3 + $0x3e8] sm:$0xff]
        %v6767 = vld [vmem:[#allocation3 + $0x3f0] sm:$0xff]
        %v6768 = vld [vmem:[#allocation3 + $0x3f8] sm:$0xff]
        %v6769 = vld [vmem:[#allocation3 + $0x400] sm:$0xff]
        %v6770 = vld [vmem:[#allocation3 + $0x408] sm:$0xff]
        %v6771 = vld [vmem:[#allocation3 + $0x410] sm:$0xff]
        %v6772 = vld [vmem:[#allocation3 + $0x418] sm:$0xff]
        %v6773 = vld [vmem:[#allocation3 + $0x420] sm:$0xff]
        %v6774 = vld [vmem:[#allocation3 + $0x428] sm:$0xff]
        %v6775 = vld [vmem:[#allocation3 + $0x430] sm:$0xff]
        %v6776 = vld [vmem:[#allocation3 + $0x438] sm:$0xff]
        %v6777 = vld [vmem:[#allocation3 + $0x440] sm:$0xff]
        %v6778 = vld [vmem:[#allocation3 + $0x448] sm:$0xff]
        %v6779 = vld [vmem:[#allocation3 + $0x450] sm:$0xff]
        %v6780 = vld [vmem:[#allocation3 + $0x458] sm:$0xff]
        %v6781 = vld [vmem:[#allocation3 + $0x460] sm:$0xff]
        %v6782 = vld [vmem:[#allocation3 + $0x468] sm:$0xff]
        %v6783 = vld [vmem:[#allocation3 + $0x470] sm:$0xff]
        %v6784 = vld [vmem:[#allocation3 + $0x478] sm:$0xff]
        %v6785 = vld [vmem:[#allocation19] sm:$0xf]
        %v6786 = vld [vmem:[#allocation19 + $0x4] sm:$0xf]
        %v6787 = vld [vmem:[#allocation19 + $0x8] sm:$0xf]
        %v6788 = vld [vmem:[#allocation19 + $0xc] sm:$0xf]
        %v6789 = vld [vmem:[#allocation19 + $0x10] sm:$0xf]
        %v6790 = vld [vmem:[#allocation19 + $0x14] sm:$0xf]
        %v6791 = vld [vmem:[#allocation19 + $0x18] sm:$0xf]
        %v6792 = vld [vmem:[#allocation19 + $0x1c] sm:$0xf]
        %v6793 = vld [vmem:[#allocation19 + $0x20] sm:$0xf]
        %v6794 = vld [vmem:[#allocation19 + $0x24] sm:$0xf]
        %v6795 = vld [vmem:[#allocation19 + $0x28] sm:$0xf]
        %v6796 = vld [vmem:[#allocation19 + $0x2c] sm:$0xf]
        %v6797 = vld [vmem:[#allocation19 + $0x30] sm:$0xf]
        %v6798 = vld [vmem:[#allocation19 + $0x34] sm:$0xf]
        %v6799 = vld [vmem:[#allocation19 + $0x38] sm:$0xf]
        %v6800 = vld [vmem:[#allocation19 + $0x3c] sm:$0xf]
        %v6801 = vld [vmem:[#allocation19 + $0x40] sm:$0xf]
        %v6802 = vld [vmem:[#allocation19 + $0x44] sm:$0xf]
        %v6803 = vld [vmem:[#allocation19 + $0x48] sm:$0xf]
        %v6804 = vld [vmem:[#allocation19 + $0x4c] sm:$0xf]
        %v6805 = vld [vmem:[#allocation19 + $0x50] sm:$0xf]
        %v6806 = vld [vmem:[#allocation19 + $0x54] sm:$0xf]
        %v6807 = vld [vmem:[#allocation19 + $0x58] sm:$0xf]
        %v6808 = vld [vmem:[#allocation19 + $0x5c] sm:$0xf]
        %v6809 = vld [vmem:[#allocation19 + $0x60] sm:$0xf]
        %v6810 = vld [vmem:[#allocation19 + $0x64] sm:$0xf]
        %v6811 = vld [vmem:[#allocation19 + $0x68] sm:$0xf]
        %v6812 = vld [vmem:[#allocation19 + $0x6c] sm:$0xf]
        %v6813 = vld [vmem:[#allocation19 + $0x70] sm:$0xf]
        %v6814 = vld [vmem:[#allocation19 + $0x74] sm:$0xf]
        %v6815 = vld [vmem:[#allocation19 + $0x78] sm:$0xf]
        %v6816 = vld [vmem:[#allocation19 + $0x7c] sm:$0xf]
        %v6817 = vld [vmem:[#allocation19 + $0x80] sm:$0xf]
        %v6818 = vld [vmem:[#allocation19 + $0x84] sm:$0xf]
        %v6819 = vld [vmem:[#allocation19 + $0x88] sm:$0xf]
        %v6820 = vld [vmem:[#allocation19 + $0x8c] sm:$0xf]
        %v6821 = vld [vmem:[#allocation19 + $0x90] sm:$0xf]
        %v6822 = vld [vmem:[#allocation19 + $0x94] sm:$0xf]
        %v6823 = vld [vmem:[#allocation19 + $0x98] sm:$0xf]
        %v6824 = vld [vmem:[#allocation19 + $0x9c] sm:$0xf]
        %v6825 = vld [vmem:[#allocation19 + $0xa0] sm:$0xf]
        %v6826 = vld [vmem:[#allocation19 + $0xa4] sm:$0xf]
        %v6827 = vld [vmem:[#allocation19 + $0xa8] sm:$0xf]
        %v6828 = vld [vmem:[#allocation19 + $0xac] sm:$0xf]
        %v6829 = vld [vmem:[#allocation19 + $0xb0] sm:$0xf]
        %v6830 = vld [vmem:[#allocation19 + $0xb4] sm:$0xf]
        %v6831 = vld [vmem:[#allocation19 + $0xb8] sm:$0xf]
        %v6832 = vld [vmem:[#allocation19 + $0xbc] sm:$0xf]
        %v6833 = vld [vmem:[#allocation19 + $0xc0] sm:$0xf]
        %v6834 = vld [vmem:[#allocation19 + $0xc4] sm:$0xf]
        %v6835 = vld [vmem:[#allocation19 + $0xc8] sm:$0xf]
        %v6836 = vld [vmem:[#allocation19 + $0xcc] sm:$0xf]
        %v6837 = vld [vmem:[#allocation19 + $0xd0] sm:$0xf]
        %v6838 = vld [vmem:[#allocation19 + $0xd4] sm:$0xf]
        %v6839 = vld [vmem:[#allocation19 + $0xd8] sm:$0xf]
        %v6840 = vld [vmem:[#allocation19 + $0xdc] sm:$0xf]
        %v6841 = vld [vmem:[#allocation19 + $0xe0] sm:$0xf]
        %v6842 = vld [vmem:[#allocation19 + $0xe4] sm:$0xf]
        %v6843 = vld [vmem:[#allocation19 + $0xe8] sm:$0xf]
        %v6844 = vld [vmem:[#allocation19 + $0xec] sm:$0xf]
        %v6845 = vld [vmem:[#allocation19 + $0xf0] sm:$0xf]
        %v6846 = vld [vmem:[#allocation19 + $0xf4] sm:$0xf]
        %v6847 = vld [vmem:[#allocation19 + $0xf8] sm:$0xf]
        %v6848 = vld [vmem:[#allocation19 + $0xfc] sm:$0xf]
        %v6849 = vld [vmem:[#allocation19 + $0x100] sm:$0xf]
        %v6850 = vld [vmem:[#allocation19 + $0x104] sm:$0xf]
        %v6851 = vld [vmem:[#allocation19 + $0x108] sm:$0xf]
        %v6852 = vld [vmem:[#allocation19 + $0x10c] sm:$0xf]
        %v6853 = vld [vmem:[#allocation19 + $0x110] sm:$0xf]
        %v6854 = vld [vmem:[#allocation19 + $0x114] sm:$0xf]
        %v6855 = vld [vmem:[#allocation19 + $0x118] sm:$0xf]
        %v6856 = vld [vmem:[#allocation19 + $0x11c] sm:$0xf]
        %v6857 = vld [vmem:[#allocation19 + $0x120] sm:$0xf]
        %v6858 = vld [vmem:[#allocation19 + $0x124] sm:$0xf]
        %v6859 = vld [vmem:[#allocation19 + $0x128] sm:$0xf]
        %v6860 = vld [vmem:[#allocation19 + $0x12c] sm:$0xf]
        %v6861 = vld [vmem:[#allocation19 + $0x130] sm:$0xf]
        %v6862 = vld [vmem:[#allocation19 + $0x134] sm:$0xf]
        %v6863 = vld [vmem:[#allocation19 + $0x138] sm:$0xf]
        %v6864 = vld [vmem:[#allocation19 + $0x13c] sm:$0xf]
        %v6865 = vld [vmem:[#allocation19 + $0x140] sm:$0xf]
        %v6866 = vld [vmem:[#allocation19 + $0x144] sm:$0xf]
        %v6867 = vld [vmem:[#allocation19 + $0x148] sm:$0xf]
        %v6868 = vld [vmem:[#allocation19 + $0x14c] sm:$0xf]
        %v6869 = vld [vmem:[#allocation19 + $0x150] sm:$0xf]
        %v6870 = vld [vmem:[#allocation19 + $0x154] sm:$0xf]
        %v6871 = vld [vmem:[#allocation19 + $0x158] sm:$0xf]
        %v6872 = vld [vmem:[#allocation19 + $0x15c] sm:$0xf]
        %v6873 = vld [vmem:[#allocation19 + $0x160] sm:$0xf]
        %v6874 = vld [vmem:[#allocation19 + $0x164] sm:$0xf]
        %v6875 = vld [vmem:[#allocation19 + $0x168] sm:$0xf]
        %v6876 = vld [vmem:[#allocation19 + $0x16c] sm:$0xf]
        %v6877 = vld [vmem:[#allocation19 + $0x170] sm:$0xf]
        %v6878 = vld [vmem:[#allocation19 + $0x174] sm:$0xf]
        %v6879 = vld [vmem:[#allocation19 + $0x178] sm:$0xf]
        %v6880 = vld [vmem:[#allocation19 + $0x17c] sm:$0xf]
        %v6881 = vld [vmem:[#allocation19 + $0x180] sm:$0xf]
        %v6882 = vld [vmem:[#allocation19 + $0x184] sm:$0xf]
        %v6883 = vld [vmem:[#allocation19 + $0x188] sm:$0xf]
        %v6884 = vld [vmem:[#allocation19 + $0x18c] sm:$0xf]
        %v6885 = vld [vmem:[#allocation19 + $0x190] sm:$0xf]
        %v6886 = vld [vmem:[#allocation19 + $0x194] sm:$0xf]
        %v6887 = vld [vmem:[#allocation19 + $0x198] sm:$0xf]
        %v6888 = vld [vmem:[#allocation19 + $0x19c] sm:$0xf]
        %v6889 = vld [vmem:[#allocation19 + $0x1a0] sm:$0xf]
        %v6890 = vld [vmem:[#allocation19 + $0x1a4] sm:$0xf]
        %v6891 = vld [vmem:[#allocation19 + $0x1a8] sm:$0xf]
        %v6892 = vld [vmem:[#allocation19 + $0x1ac] sm:$0xf]
        %v6893 = vld [vmem:[#allocation19 + $0x1b0] sm:$0xf]
        %v6894 = vld [vmem:[#allocation19 + $0x1b4] sm:$0xf]
        %v6895 = vld [vmem:[#allocation19 + $0x1b8] sm:$0xf]
        %v6896 = vld [vmem:[#allocation19 + $0x1bc] sm:$0xf]
        %v6897 = vld [vmem:[#allocation19 + $0x1c0] sm:$0xf]
        %v6898 = vld [vmem:[#allocation19 + $0x1c4] sm:$0xf]
        %v6899 = vld [vmem:[#allocation19 + $0x1c8] sm:$0xf]
        %v6900 = vld [vmem:[#allocation19 + $0x1cc] sm:$0xf]
        %v6901 = vld [vmem:[#allocation19 + $0x1d0] sm:$0xf]
        %v6902 = vld [vmem:[#allocation19 + $0x1d4] sm:$0xf]
        %v6903 = vld [vmem:[#allocation19 + $0x1d8] sm:$0xf]
        %v6904 = vld [vmem:[#allocation19 + $0x1dc] sm:$0xf]
        %v6905 = vld [vmem:[#allocation19 + $0x1e0] sm:$0xf]
        %v6906 = vld [vmem:[#allocation19 + $0x1e4] sm:$0xf]
        %v6907 = vld [vmem:[#allocation19 + $0x1e8] sm:$0xf]
        %v6908 = vld [vmem:[#allocation19 + $0x1ec] sm:$0xf]
        %v6909 = vld [vmem:[#allocation19 + $0x1f0] sm:$0xf]
        %v6910 = vld [vmem:[#allocation19 + $0x1f4] sm:$0xf]
        %v6911 = vld [vmem:[#allocation19 + $0x1f8] sm:$0xf]
        %v6912 = vld [vmem:[#allocation19 + $0x1fc] sm:$0xf]
        %v6913 = vld [vmem:[#allocation19 + $0x200] sm:$0xf]
        %v6914 = vld [vmem:[#allocation19 + $0x204] sm:$0xf]
        %v6915 = vld [vmem:[#allocation19 + $0x208] sm:$0xf]
        %v6916 = vld [vmem:[#allocation19 + $0x20c] sm:$0xf]
        %v6917 = vld [vmem:[#allocation19 + $0x210] sm:$0xf]
        %v6918 = vld [vmem:[#allocation19 + $0x214] sm:$0xf]
        %v6919 = vld [vmem:[#allocation19 + $0x218] sm:$0xf]
        %v6920 = vld [vmem:[#allocation19 + $0x21c] sm:$0xf]
        %v6921 = vld [vmem:[#allocation19 + $0x220] sm:$0xf]
        %v6922 = vld [vmem:[#allocation19 + $0x224] sm:$0xf]
        %v6923 = vld [vmem:[#allocation19 + $0x228] sm:$0xf]
        %v6924 = vld [vmem:[#allocation19 + $0x22c] sm:$0xf]
        %v6925 = vld [vmem:[#allocation19 + $0x230] sm:$0xf]
        %v6926 = vld [vmem:[#allocation19 + $0x234] sm:$0xf]
        %v6927 = vld [vmem:[#allocation19 + $0x238] sm:$0xf]
        %v6928 = vld [vmem:[#allocation19 + $0x23c] sm:$0xf]
        %v6930 = vlaneseq
        %v6931 = vshrl.u32 %v6930, 7
        %v6932 = vsub.s32 0, %v6931
        %v6933 = vrot.slane %v6032, %v6932
        %v7079 = vunpack.c.l.b16 %v6785
        %v7080 = vunpack.c.l.b16 %v6786
        %v7081 = vunpack.c.l.b16 %v6787
        %v7082 = vunpack.c.l.b16 %v6788
        %v7083 = vunpack.c.l.b16 %v6789
        %v7084 = vunpack.c.l.b16 %v6790
        %v7085 = vunpack.c.l.b16 %v6791
        %v7086 = vunpack.c.l.b16 %v6792
        %v7087 = vunpack.c.l.b16 %v6793
        %v7088 = vunpack.c.l.b16 %v6794
        %v7089 = vunpack.c.l.b16 %v6795
        %v7090 = vunpack.c.l.b16 %v6796
        %v7091 = vunpack.c.l.b16 %v6797
        %v7092 = vunpack.c.l.b16 %v6798
        %v7093 = vunpack.c.l.b16 %v6799
        %v7094 = vunpack.c.l.b16 %v6800
        %v7095 = vunpack.c.l.b16 %v6801
        %v7096 = vunpack.c.l.b16 %v6802
        %v7097 = vunpack.c.l.b16 %v6803
        %v7098 = vunpack.c.l.b16 %v6804
        %v7099 = vunpack.c.l.b16 %v6805
        %v7100 = vunpack.c.l.b16 %v6806
        %v7101 = vunpack.c.l.b16 %v6807
        %v7102 = vunpack.c.l.b16 %v6808
        %v7103 = vunpack.c.l.b16 %v6809
        %v7104 = vunpack.c.l.b16 %v6810
        %v7105 = vunpack.c.l.b16 %v6811
        %v7106 = vunpack.c.l.b16 %v6812
        %v7107 = vunpack.c.l.b16 %v6813
        %v7108 = vunpack.c.l.b16 %v6814
        %v7109 = vunpack.c.l.b16 %v6815
        %v7110 = vunpack.c.l.b16 %v6816
        %v7111 = vunpack.c.l.b16 %v6817
        %v7112 = vunpack.c.l.b16 %v6818
        %v7113 = vunpack.c.l.b16 %v6819
        %v7114 = vunpack.c.l.b16 %v6820
        %v7115 = vunpack.c.l.b16 %v6821
        %v7116 = vunpack.c.l.b16 %v6822
        %v7117 = vunpack.c.l.b16 %v6823
        %v7118 = vunpack.c.l.b16 %v6824
        %v7119 = vunpack.c.l.b16 %v6825
        %v7120 = vunpack.c.l.b16 %v6826
        %v7121 = vunpack.c.l.b16 %v6827
        %v7122 = vunpack.c.l.b16 %v6828
        %v7123 = vunpack.c.l.b16 %v6829
        %v7124 = vunpack.c.l.b16 %v6830
        %v7125 = vunpack.c.l.b16 %v6831
        %v7126 = vunpack.c.l.b16 %v6832
        %v7127 = vunpack.c.l.b16 %v6833
        %v7128 = vunpack.c.l.b16 %v6834
        %v7129 = vunpack.c.l.b16 %v6835
        %v7130 = vunpack.c.l.b16 %v6836
        %v7131 = vunpack.c.l.b16 %v6837
        %v7132 = vunpack.c.l.b16 %v6838
        %v7133 = vunpack.c.l.b16 %v6839
        %v7134 = vunpack.c.l.b16 %v6840
        %v7135 = vunpack.c.l.b16 %v6841
        %v7136 = vunpack.c.l.b16 %v6842
        %v7137 = vunpack.c.l.b16 %v6843
        %v7138 = vunpack.c.l.b16 %v6844
        %v7139 = vunpack.c.l.b16 %v6845
        %v7140 = vunpack.c.l.b16 %v6846
        %v7141 = vunpack.c.l.b16 %v6847
        %v7142 = vunpack.c.l.b16 %v6848
        %v7143 = vunpack.c.l.b16 %v6849
        %v7144 = vunpack.c.l.b16 %v6850
        %v7145 = vunpack.c.l.b16 %v6851
        %v7146 = vunpack.c.l.b16 %v6852
        %v7147 = vunpack.c.l.b16 %v6853
        %v7148 = vunpack.c.l.b16 %v6854
        %v7149 = vunpack.c.l.b16 %v6855
        %v7150 = vunpack.c.l.b16 %v6856
        %v7151 = vunpack.c.l.b16 %v6857
        %v7152 = vunpack.c.l.b16 %v6858
        %v7153 = vunpack.c.l.b16 %v6859
        %v7154 = vunpack.c.l.b16 %v6860
        %v7155 = vunpack.c.l.b16 %v6861
        %v7156 = vunpack.c.l.b16 %v6862
        %v7157 = vunpack.c.l.b16 %v6863
        %v7158 = vunpack.c.l.b16 %v6864
        %v7159 = vunpack.c.l.b16 %v6865
        %v7160 = vunpack.c.l.b16 %v6866
        %v7161 = vunpack.c.l.b16 %v6867
        %v7162 = vunpack.c.l.b16 %v6868
        %v7163 = vunpack.c.l.b16 %v6869
        %v7164 = vunpack.c.l.b16 %v6870
        %v7165 = vunpack.c.l.b16 %v6871
        %v7166 = vunpack.c.l.b16 %v6872
        %v7167 = vunpack.c.l.b16 %v6873
        %v7168 = vunpack.c.l.b16 %v6874
        %v7169 = vunpack.c.l.b16 %v6875
        %v7170 = vunpack.c.l.b16 %v6876
        %v7171 = vunpack.c.l.b16 %v6877
        %v7172 = vunpack.c.l.b16 %v6878
        %v7173 = vunpack.c.l.b16 %v6879
        %v7174 = vunpack.c.l.b16 %v6880
        %v7175 = vunpack.c.l.b16 %v6881
        %v7176 = vunpack.c.l.b16 %v6882
        %v7177 = vunpack.c.l.b16 %v6883
        %v7178 = vunpack.c.l.b16 %v6884
        %v7179 = vunpack.c.l.b16 %v6885
        %v7180 = vunpack.c.l.b16 %v6886
        %v7181 = vunpack.c.l.b16 %v6887
        %v7182 = vunpack.c.l.b16 %v6888
        %v7183 = vunpack.c.l.b16 %v6889
        %v7184 = vunpack.c.l.b16 %v6890
        %v7185 = vunpack.c.l.b16 %v6891
        %v7186 = vunpack.c.l.b16 %v6892
        %v7187 = vunpack.c.l.b16 %v6893
        %v7188 = vunpack.c.l.b16 %v6894
        %v7189 = vunpack.c.l.b16 %v6895
        %v7190 = vunpack.c.l.b16 %v6896
        %v7191 = vunpack.c.l.b16 %v6897
        %v7192 = vunpack.c.l.b16 %v6898
        %v7193 = vunpack.c.l.b16 %v6899
        %v7194 = vunpack.c.l.b16 %v6900
        %v7195 = vunpack.c.l.b16 %v6901
        %v7196 = vunpack.c.l.b16 %v6902
        %v7197 = vunpack.c.l.b16 %v6903
        %v7198 = vunpack.c.l.b16 %v6904
        %v7199 = vunpack.c.l.b16 %v6905
        %v7200 = vunpack.c.l.b16 %v6906
        %v7201 = vunpack.c.l.b16 %v6907
        %v7202 = vunpack.c.l.b16 %v6908
        %v7203 = vunpack.c.l.b16 %v6909
        %v7204 = vunpack.c.l.b16 %v6910
        %v7205 = vunpack.c.l.b16 %v6911
        %v7206 = vunpack.c.l.b16 %v6912
        %v7207 = vunpack.c.l.b16 %v6913
        %v7208 = vunpack.c.l.b16 %v6914
        %v7209 = vunpack.c.l.b16 %v6915
        %v7210 = vunpack.c.l.b16 %v6916
        %v7211 = vunpack.c.l.b16 %v6917
        %v7212 = vunpack.c.l.b16 %v6918
        %v7213 = vunpack.c.l.b16 %v6919
        %v7214 = vunpack.c.l.b16 %v6920
        %v7215 = vunpack.c.l.b16 %v6921
        %v7216 = vunpack.c.l.b16 %v6922
        %v7217 = vunpack.c.l.b16 %v6923
        %v7218 = vunpack.c.l.b16 %v6924
        %v7219 = vunpack.c.l.b16 %v6925
        %v7220 = vunpack.c.l.b16 %v6926
        %v7221 = vunpack.c.l.b16 %v6927
        %v7222 = vunpack.c.l.b16 %v6928
        %v7223 = vpack.c.b16 %v7080, %v7079
        %v7224 = vpack.c.b16 %v7082, %v7081
        %v7225 = vpack.c.b16 %v7084, %v7083
        %v7226 = vpack.c.b16 %v7086, %v7085
        %v7227 = vpack.c.b16 %v7088, %v7087
        %v7228 = vpack.c.b16 %v7090, %v7089
        %v7229 = vpack.c.b16 %v7092, %v7091
        %v7230 = vpack.c.b16 %v7094, %v7093
        %v7231 = vpack.c.b16 %v7096, %v7095
        %v7232 = vpack.c.b16 %v7098, %v7097
        %v7233 = vpack.c.b16 %v7100, %v7099
        %v7234 = vpack.c.b16 %v7102, %v7101
        %v7235 = vpack.c.b16 %v7104, %v7103
        %v7236 = vpack.c.b16 %v7106, %v7105
        %v7237 = vpack.c.b16 %v7108, %v7107
        %v7238 = vpack.c.b16 %v7110, %v7109
        %v7239 = vpack.c.b16 %v7112, %v7111
        %v7240 = vpack.c.b16 %v7114, %v7113
        %v7241 = vpack.c.b16 %v7116, %v7115
        %v7242 = vpack.c.b16 %v7118, %v7117
        %v7243 = vpack.c.b16 %v7120, %v7119
        %v7244 = vpack.c.b16 %v7122, %v7121
        %v7245 = vpack.c.b16 %v7124, %v7123
        %v7246 = vpack.c.b16 %v7126, %v7125
        %v7247 = vpack.c.b16 %v7128, %v7127
        %v7248 = vpack.c.b16 %v7130, %v7129
        %v7249 = vpack.c.b16 %v7132, %v7131
        %v7250 = vpack.c.b16 %v7134, %v7133
        %v7251 = vpack.c.b16 %v7136, %v7135
        %v7252 = vpack.c.b16 %v7138, %v7137
        %v7253 = vpack.c.b16 %v7140, %v7139
        %v7254 = vpack.c.b16 %v7142, %v7141
        %v7255 = vpack.c.b16 %v7144, %v7143
        %v7256 = vpack.c.b16 %v7146, %v7145
        %v7257 = vpack.c.b16 %v7148, %v7147
        %v7258 = vpack.c.b16 %v7150, %v7149
        %v7259 = vpack.c.b16 %v7152, %v7151
        %v7260 = vpack.c.b16 %v7154, %v7153
        %v7261 = vpack.c.b16 %v7156, %v7155
        %v7262 = vpack.c.b16 %v7158, %v7157
        %v7263 = vpack.c.b16 %v7160, %v7159
        %v7264 = vpack.c.b16 %v7162, %v7161
        %v7265 = vpack.c.b16 %v7164, %v7163
        %v7266 = vpack.c.b16 %v7166, %v7165
        %v7267 = vpack.c.b16 %v7168, %v7167
        %v7268 = vpack.c.b16 %v7170, %v7169
        %v7269 = vpack.c.b16 %v7172, %v7171
        %v7270 = vpack.c.b16 %v7174, %v7173
        %v7271 = vpack.c.b16 %v7176, %v7175
        %v7272 = vpack.c.b16 %v7178, %v7177
        %v7273 = vpack.c.b16 %v7180, %v7179
        %v7274 = vpack.c.b16 %v7182, %v7181
        %v7275 = vpack.c.b16 %v7184, %v7183
        %v7276 = vpack.c.b16 %v7186, %v7185
        %v7277 = vpack.c.b16 %v7188, %v7187
        %v7278 = vpack.c.b16 %v7190, %v7189
        %v7279 = vpack.c.b16 %v7192, %v7191
        %v7280 = vpack.c.b16 %v7194, %v7193
        %v7281 = vpack.c.b16 %v7196, %v7195
        %v7282 = vpack.c.b16 %v7198, %v7197
        %v7283 = vpack.c.b16 %v7200, %v7199
        %v7284 = vpack.c.b16 %v7202, %v7201
        %v7285 = vpack.c.b16 %v7204, %v7203
        %v7286 = vpack.c.b16 %v7206, %v7205
        %v7287 = vpack.c.b16 %v7208, %v7207
        %v7288 = vpack.c.b16 %v7210, %v7209
        %v7289 = vpack.c.b16 %v7212, %v7211
        %v7290 = vpack.c.b16 %v7214, %v7213
        %v7291 = vpack.c.b16 %v7216, %v7215
        %v7292 = vpack.c.b16 %v7218, %v7217
        %v7293 = vpack.c.b16 %v7220, %v7219
        %v7294 = vpack.c.b16 %v7222, %v7221
        %7367 = vmatprep.subr.bf16.mxu0 0
        %7368 = vmatpush1.bf16.msra.mxu0 %v7223
        %7369 = vmatprep.subr.bf16.mxu0 0
        %7370 = vmatpush1.bf16.msra.mxu0 %v7224
        %7371 = vmatprep.subr.bf16.mxu0 0
        %7372 = vmatpush1.bf16.msra.mxu0 %v7225
        %7373 = vmatprep.subr.bf16.mxu0 0
        %7374 = vmatpush1.bf16.msra.mxu0 %v7226
        %7375 = vmatprep.subr.bf16.mxu0 0
        %7376 = vmatpush1.bf16.msra.mxu0 %v7227
        %7377 = vmatprep.subr.bf16.mxu0 0
        %7378 = vmatpush1.bf16.msra.mxu0 %v7228
        %7379 = vmatprep.subr.bf16.mxu0 0
        %7380 = vmatpush1.bf16.msra.mxu0 %v7229
        %7381 = vmatprep.subr.bf16.mxu0 0
        %7382 = vmatpush1.bf16.msra.mxu0 %v7230
        %7383 = vmatprep.subr.bf16.mxu0 0
        %7384 = vmatpush1.bf16.msra.mxu0 %v7231
        %7385 = vmatprep.subr.bf16.mxu0 0
        %7386 = vmatpush1.bf16.msra.mxu0 %v7232
        %7387 = vmatprep.subr.bf16.mxu0 0
        %7388 = vmatpush1.bf16.msra.mxu0 %v7233
        %7389 = vmatprep.subr.bf16.mxu0 0
        %7390 = vmatpush1.bf16.msra.mxu0 %v7234
        %7391 = vmatprep.subr.bf16.mxu0 0
        %7392 = vmatpush1.bf16.msra.mxu0 %v7235
        %7393 = vmatprep.subr.bf16.mxu0 0
        %7394 = vmatpush1.bf16.msra.mxu0 %v7236
        %7395 = vmatprep.subr.bf16.mxu0 0
        %7396 = vmatpush1.bf16.msra.mxu0 %v7237
        %7397 = vmatprep.subr.bf16.mxu0 0
        %7398 = vmatpush1.bf16.msra.mxu0 %v7238
        %7399 = vmatprep.mubr.bf16.mxu0 %v6642
        %7400 = vmatmul.mubr.bf16.gmra.mrb[0].mxu0 %v6641
        %v7401 = vpop.f32.mrb[0].mxu0
        %v7402 = vadd.f32 %v6933, %v7401
        %v7403 = vpop.f32.mrb[0].mxu0
        %v7404 = vpop.f32.mrb[0].mxu0
        %v7405 = vadd.f32 %v6933, %v7404
        %v7406 = vpop.f32.mrb[0].mxu0
        %7407 = vmatprep.mubr.bf16.mxu0 %v6651
        %7408 = vmatmul.mubr.bf16.gmra.mrb[0].mxu0 %v6650
        %v7409 = vpop.f32.mrb[0].mxu0
        %v7410 = vadd.f32 %v6933, %v7409
        %v7411 = vpop.f32.mrb[0].mxu0
        %v7412 = vpop.f32.mrb[0].mxu0
        %v7413 = vadd.f32 %v6933, %v7412
        %v7414 = vpop.f32.mrb[0].mxu0
        %7415 = vmatprep.mubr.bf16.mxu0 %v6660
        %7416 = vmatmul.mubr.bf16.gmra.mrb[0].mxu0 %v6659
        %v7417 = vpop.f32.mrb[0].mxu0
        %v7418 = vadd.f32 %v6933, %v7417
        %v7419 = vpop.f32.mrb[0].mxu0
        %v7420 = vpop.f32.mrb[0].mxu0
        %v7421 = vadd.f32 %v6933, %v7420
        %v7422 = vpop.f32.mrb[0].mxu0
        %7423 = vmatprep.mubr.bf16.mxu0 %v6669
        %7424 = vmatmul.mubr.bf16.gmra.mrb[0].mxu0 %v6668
        %v7425 = vpop.f32.mrb[0].mxu0
        %v7426 = vadd.f32 %v6933, %v7425
        %v7427 = vpop.f32.mrb[0].mxu0
        %v7428 = vpop.f32.mrb[0].mxu0
        %v7429 = vadd.f32 %v6933, %v7428
        %v7430 = vpop.f32.mrb[0].mxu0
        %7431 = vmatprep.mubr.bf16.mxu0 %v6678
        %7432 = vmatmul.mubr.bf16.gmra.mrb[0].mxu0 %v6677
        %v7433 = vpop.f32.mrb[0].mxu0
        %v7434 = vadd.f32 %v6933, %v7433
        %v7435 = vpop.f32.mrb[0].mxu0
        %v7436 = vpop.f32.mrb[0].mxu0
        %v7437 = vadd.f32 %v6933, %v7436
        %v7438 = vpop.f32.mrb[0].mxu0
        %7439 = vmatprep.mubr.bf16.mxu0 %v6687
        %7440 = vmatmul.mubr.bf16.gmra.mrb[0].mxu0 %v6686
        %v7441 = vpop.f32.mrb[0].mxu0
        %v7442 = vadd.f32 %v6933, %v7441
        %v7443 = vpop.f32.mrb[0].mxu0
        %v7444 = vpop.f32.mrb[0].mxu0
        %v7445 = vadd.f32 %v6933, %v7444
        %v7446 = vpop.f32.mrb[0].mxu0
        %7447 = vmatprep.mubr.bf16.mxu0 %v6696
        %7448 = vmatmul.mubr.bf16.gmra.mrb[0].mxu0 %v6695
        %v7449 = vpop.f32.mrb[0].mxu0
        %v7450 = vadd.f32 %v6933, %v7449
        %v7451 = vpop.f32.mrb[0].mxu0
        %v7452 = vpop.f32.mrb[0].mxu0
        %v7453 = vadd.f32 %v6933, %v7452
        %v7454 = vpop.f32.mrb[0].mxu0
        %7455 = vmatprep.mubr.bf16.mxu0 %v6705
        %7456 = vmatmul.mubr.bf16.gmra.mrb[0].mxu0 %v6704
        %v7457 = vpop.f32.mrb[0].mxu0
        %v7458 = vadd.f32 %v6933, %v7457
        %v7459 = vpop.f32.mrb[0].mxu0
        %v7460 = vpop.f32.mrb[0].mxu0
        %v7461 = vadd.f32 %v6933, %v7460
        %v7462 = vpop.f32.mrb[0].mxu0
        %7463 = vmatprep.mubr.bf16.mxu0 %v6714
        %7464 = vmatmul.mubr.bf16.gmra.mrb[0].mxu0 %v6713
        %v7465 = vpop.f32.mrb[0].mxu0
        %v7466 = vadd.f32 %v6933, %v7465
        %v7467 = vpop.f32.mrb[0].mxu0
        %v7468 = vpop.f32.mrb[0].mxu0
        %v7469 = vadd.f32 %v6933, %v7468
        %v7470 = vpop.f32.mrb[0].mxu0
        %7471 = vmatprep.mubr.bf16.mxu0 %v6723
        %7472 = vmatmul.mubr.bf16.gmra.mrb[0].mxu0 %v6722
        %v7473 = vpop.f32.mrb[0].mxu0
        %v7474 = vadd.f32 %v6933, %v7473
        %v7475 = vpop.f32.mrb[0].mxu0
        %v7476 = vpop.f32.mrb[0].mxu0
        %v7477 = vadd.f32 %v6933, %v7476
        %v7478 = vpop.f32.mrb[0].mxu0
        %7479 = vmatprep.mubr.bf16.mxu0 %v6732
        %7480 = vmatmul.mubr.bf16.gmra.mrb[0].mxu0 %v6731
        %v7481 = vpop.f32.mrb[0].mxu0
        %v7482 = vadd.f32 %v6933, %v7481
        %v7483 = vpop.f32.mrb[0].mxu0
        %v7484 = vpop.f32.mrb[0].mxu0
        %v7485 = vadd.f32 %v6933, %v7484
        %v7486 = vpop.f32.mrb[0].mxu0
        %7487 = vmatprep.mubr.bf16.mxu0 %v6741
        %7488 = vmatmul.mubr.bf16.gmra.mrb[0].mxu0 %v6740
        %v7489 = vpop.f32.mrb[0].mxu0
        %v7490 = vadd.f32 %v6933, %v7489
        %v7491 = vpop.f32.mrb[0].mxu0
        %v7492 = vpop.f32.mrb[0].mxu0
        %v7493 = vadd.f32 %v6933, %v7492
        %v7494 = vpop.f32.mrb[0].mxu0
        %7495 = vmatprep.mubr.bf16.mxu0 %v6750
        %7496 = vmatmul.mubr.bf16.gmra.mrb[0].mxu0 %v6749
        %v7497 = vpop.f32.mrb[0].mxu0
        %v7498 = vadd.f32 %v6933, %v7497
        %v7499 = vpop.f32.mrb[0].mxu0
        %v7500 = vpop.f32.mrb[0].mxu0
        %v7501 = vadd.f32 %v6933, %v7500
        %v7502 = vpop.f32.mrb[0].mxu0
        %7503 = vmatprep.mubr.bf16.mxu0 %v6759
        %7504 = vmatmul.mubr.bf16.gmra.mrb[0].mxu0 %v6758
        %v7505 = vpop.f32.mrb[0].mxu0
        %v7506 = vadd.f32 %v6933, %v7505
        %v7507 = vpop.f32.mrb[0].mxu0
        %v7508 = vpop.f32.mrb[0].mxu0
        %v7509 = vadd.f32 %v6933, %v7508
        %v7510 = vpop.f32.mrb[0].mxu0
        %7511 = vmatprep.mubr.bf16.mxu0 %v6768
        %7512 = vmatmul.mubr.bf16.gmra.mrb[0].mxu0 %v6767
        %v7513 = vpop.f32.mrb[0].mxu0
        %v7514 = vadd.f32 %v6933, %v7513
        %v7515 = vpop.f32.mrb[0].mxu0
        %v7516 = vpop.f32.mrb[0].mxu0
        %v7517 = vadd.f32 %v6933, %v7516
        %v7518 = vpop.f32.mrb[0].mxu0
        %7519 = vmatprep.mubr.bf16.mxu0 %v6777
        %7520 = vmatmul.mubr.bf16.gmra.mrb[0].mxu0 %v6776
        %v7521 = vpop.f32.mrb[0].mxu0
        %v7522 = vadd.f32 %v6933, %v7521
        %v7523 = vpop.f32.mrb[0].mxu0
        %v7524 = vpop.f32.mrb[0].mxu0
        %v7525 = vadd.f32 %v6933, %v7524
        %v7526 = vpop.f32.mrb[0].mxu0
        %7527 = vdwg.mxu0
        %7528 = vmatprep.subr.bf16.mxu0 0
        %7529 = vmatpush1.bf16.msra.mxu0 %v7239
        %7530 = vmatprep.subr.bf16.mxu0 0
        %7531 = vmatpush1.bf16.msra.mxu0 %v7240
        %7532 = vmatprep.subr.bf16.mxu0 0
        %7533 = vmatpush1.bf16.msra.mxu0 %v7241
        %7534 = vmatprep.subr.bf16.mxu0 0
        %7535 = vmatpush1.bf16.msra.mxu0 %v7242
        %7536 = vmatprep.subr.bf16.mxu0 0
        %7537 = vmatpush1.bf16.msra.mxu0 %v7243
        %7538 = vmatprep.subr.bf16.mxu0 0
        %7539 = vmatpush1.bf16.msra.mxu0 %v7244
        %7540 = vmatprep.subr.bf16.mxu0 0
        %7541 = vmatpush1.bf16.msra.mxu0 %v7245
        %7542 = vmatprep.subr.bf16.mxu0 0
        %7543 = vmatpush1.bf16.msra.mxu0 %v7246
        %7544 = vmatprep.subr.bf16.mxu0 0
        %7545 = vmatpush1.bf16.msra.mxu0 %v7247
        %7546 = vmatprep.subr.bf16.mxu0 0
        %7547 = vmatpush1.bf16.msra.mxu0 %v7248
        %7548 = vmatprep.subr.bf16.mxu0 0
        %7549 = vmatpush1.bf16.msra.mxu0 %v7249
        %7550 = vmatprep.subr.bf16.mxu0 0
        %7551 = vmatpush1.bf16.msra.mxu0 %v7250
        %7552 = vmatprep.subr.bf16.mxu0 0
        %7553 = vmatpush1.bf16.msra.mxu0 %v7251
        %7554 = vmatprep.subr.bf16.mxu0 0
        %7555 = vmatpush1.bf16.msra.mxu0 %v7252
        %7556 = vmatprep.subr.bf16.mxu0 0
        %7557 = vmatpush1.bf16.msra.mxu0 %v7253
        %7558 = vmatprep.subr.bf16.mxu0 0
        %7559 = vmatpush1.bf16.msra.mxu0 %v7254
        %7560 = vmatprep.mubr.bf16.mxu0 %v6644
        %7561 = vmatmul.mubr.bf16.gmra.mrb[0].mxu0 %v6643
        %v7562 = vpop.f32.mrb[0].mxu0
        %v7563 = vadd.f32 %v7402, %v7562
        %v7564 = vpop.f32.mrb[0].mxu0
        %v7565 = vpop.f32.mrb[0].mxu0
        %v7566 = vadd.f32 %v7405, %v7565
        %v7567 = vpop.f32.mrb[0].mxu0
        %7568 = vmatprep.mubr.bf16.mxu0 %v6653
        %7569 = vmatmul.mubr.bf16.gmra.mrb[0].mxu0 %v6652
        %v7570 = vpop.f32.mrb[0].mxu0
        %v7571 = vadd.f32 %v7410, %v7570
        %v7572 = vpop.f32.mrb[0].mxu0
        %v7573 = vpop.f32.mrb[0].mxu0
        %v7574 = vadd.f32 %v7413, %v7573
        %v7575 = vpop.f32.mrb[0].mxu0
        %7576 = vmatprep.mubr.bf16.mxu0 %v6662
        %7577 = vmatmul.mubr.bf16.gmra.mrb[0].mxu0 %v6661
        %v7578 = vpop.f32.mrb[0].mxu0
        %v7579 = vadd.f32 %v7418, %v7578
        %v7580 = vpop.f32.mrb[0].mxu0
        %v7581 = vpop.f32.mrb[0].mxu0
        %v7582 = vadd.f32 %v7421, %v7581
        %v7583 = vpop.f32.mrb[0].mxu0
        %7584 = vmatprep.mubr.bf16.mxu0 %v6671
        %7585 = vmatmul.mubr.bf16.gmra.mrb[0].mxu0 %v6670
        %v7586 = vpop.f32.mrb[0].mxu0
        %v7587 = vadd.f32 %v7426, %v7586
        %v7588 = vpop.f32.mrb[0].mxu0
        %v7589 = vpop.f32.mrb[0].mxu0
        %v7590 = vadd.f32 %v7429, %v7589
        %v7591 = vpop.f32.mrb[0].mxu0
        %7592 = vmatprep.mubr.bf16.mxu0 %v6680
        %7593 = vmatmul.mubr.bf16.gmra.mrb[0].mxu0 %v6679
        %v7594 = vpop.f32.mrb[0].mxu0
        %v7595 = vadd.f32 %v7434, %v7594
        %v7596 = vpop.f32.mrb[0].mxu0
        %v7597 = vpop.f32.mrb[0].mxu0
        %v7598 = vadd.f32 %v7437, %v7597
        %v7599 = vpop.f32.mrb[0].mxu0
        %7600 = vmatprep.mubr.bf16.mxu0 %v6689
        %7601 = vmatmul.mubr.bf16.gmra.mrb[0].mxu0 %v6688
        %v7602 = vpop.f32.mrb[0].mxu0
        %v7603 = vadd.f32 %v7442, %v7602
        %v7604 = vpop.f32.mrb[0].mxu0
        %v7605 = vpop.f32.mrb[0].mxu0
        %v7606 = vadd.f32 %v7445, %v7605
        %v7607 = vpop.f32.mrb[0].mxu0
        %7608 = vmatprep.mubr.bf16.mxu0 %v6698
        %7609 = vmatmul.mubr.bf16.gmra.mrb[0].mxu0 %v6697
        %v7610 = vpop.f32.mrb[0].mxu0
        %v7611 = vadd.f32 %v7450, %v7610
        %v7612 = vpop.f32.mrb[0].mxu0
        %v7613 = vpop.f32.mrb[0].mxu0
        %v7614 = vadd.f32 %v7453, %v7613
        %v7615 = vpop.f32.mrb[0].mxu0
        %7616 = vmatprep.mubr.bf16.mxu0 %v6707
        %7617 = vmatmul.mubr.bf16.gmra.mrb[0].mxu0 %v6706
        %v7618 = vpop.f32.mrb[0].mxu0
        %v7619 = vadd.f32 %v7458, %v7618
        %v7620 = vpop.f32.mrb[0].mxu0
        %v7621 = vpop.f32.mrb[0].mxu0
        %v7622 = vadd.f32 %v7461, %v7621
        %v7623 = vpop.f32.mrb[0].mxu0
        %7624 = vmatprep.mubr.bf16.mxu0 %v6716
        %7625 = vmatmul.mubr.bf16.gmra.mrb[0].mxu0 %v6715
        %v7626 = vpop.f32.mrb[0].mxu0
        %v7627 = vadd.f32 %v7466, %v7626
        %v7628 = vpop.f32.mrb[0].mxu0
        %v7629 = vpop.f32.mrb[0].mxu0
        %v7630 = vadd.f32 %v7469, %v7629
        %v7631 = vpop.f32.mrb[0].mxu0
        %7632 = vmatprep.mubr.bf16.mxu0 %v6725
        %7633 = vmatmul.mubr.bf16.gmra.mrb[0].mxu0 %v6724
        %v7634 = vpop.f32.mrb[0].mxu0
        %v7635 = vadd.f32 %v7474, %v7634
        %v7636 = vpop.f32.mrb[0].mxu0
        %v7637 = vpop.f32.mrb[0].mxu0
        %v7638 = vadd.f32 %v7477, %v7637
        %v7639 = vpop.f32.mrb[0].mxu0
        %7640 = vmatprep.mubr.bf16.mxu0 %v6734
        %7641 = vmatmul.mubr.bf16.gmra.mrb[0].mxu0 %v6733
        %v7642 = vpop.f32.mrb[0].mxu0
        %v7643 = vadd.f32 %v7482, %v7642
        %v7644 = vpop.f32.mrb[0].mxu0
        %v7645 = vpop.f32.mrb[0].mxu0
        %v7646 = vadd.f32 %v7485, %v7645
        %v7647 = vpop.f32.mrb[0].mxu0
        %7648 = vmatprep.mubr.bf16.mxu0 %v6743
        %7649 = vmatmul.mubr.bf16.gmra.mrb[0].mxu0 %v6742
        %v7650 = vpop.f32.mrb[0].mxu0
        %v7651 = vadd.f32 %v7490, %v7650
        %v7652 = vpop.f32.mrb[0].mxu0
        %v7653 = vpop.f32.mrb[0].mxu0
        %v7654 = vadd.f32 %v7493, %v7653
        %v7655 = vpop.f32.mrb[0].mxu0
        %7656 = vmatprep.mubr.bf16.mxu0 %v6752
        %7657 = vmatmul.mubr.bf16.gmra.mrb[0].mxu0 %v6751
        %v7658 = vpop.f32.mrb[0].mxu0
        %v7659 = vadd.f32 %v7498, %v7658
        %v7660 = vpop.f32.mrb[0].mxu0
        %v7661 = vpop.f32.mrb[0].mxu0
        %v7662 = vadd.f32 %v7501, %v7661
        %v7663 = vpop.f32.mrb[0].mxu0
        %7664 = vmatprep.mubr.bf16.mxu0 %v6761
        %7665 = vmatmul.mubr.bf16.gmra.mrb[0].mxu0 %v6760
        %v7666 = vpop.f32.mrb[0].mxu0
        %v7667 = vadd.f32 %v7506, %v7666
        %v7668 = vpop.f32.mrb[0].mxu0
        %v7669 = vpop.f32.mrb[0].mxu0
        %v7670 = vadd.f32 %v7509, %v7669
        %v7671 = vpop.f32.mrb[0].mxu0
        %7672 = vmatprep.mubr.bf16.mxu0 %v6770
        %7673 = vmatmul.mubr.bf16.gmra.mrb[0].mxu0 %v6769
        %v7674 = vpop.f32.mrb[0].mxu0
        %v7675 = vadd.f32 %v7514, %v7674
        %v7676 = vpop.f32.mrb[0].mxu0
        %v7677 = vpop.f32.mrb[0].mxu0
        %v7678 = vadd.f32 %v7517, %v7677
        %v7679 = vpop.f32.mrb[0].mxu0
        %7680 = vmatprep.mubr.bf16.mxu0 %v6779
        %7681 = vmatmul.mubr.bf16.gmra.mrb[0].mxu0 %v6778
        %v7682 = vpop.f32.mrb[0].mxu0
        %v7683 = vadd.f32 %v7522, %v7682
        %v7684 = vpop.f32.mrb[0].mxu0
        %v7685 = vpop.f32.mrb[0].mxu0
        %v7686 = vadd.f32 %v7525, %v7685
        %v7687 = vpop.f32.mrb[0].mxu0
        %7688 = vdwg.mxu0
        %7689 = vmatprep.subr.bf16.mxu0 0
        %7690 = vmatpush1.bf16.msra.mxu0 %v7255
        %7691 = vmatprep.subr.bf16.mxu0 0
        %7692 = vmatpush1.bf16.msra.mxu0 %v7256
        %7693 = vmatprep.subr.bf16.mxu0 0
        %7694 = vmatpush1.bf16.msra.mxu0 %v7257
        %7695 = vmatprep.subr.bf16.mxu0 0
        %7696 = vmatpush1.bf16.msra.mxu0 %v7258
        %7697 = vmatprep.subr.bf16.mxu0 0
        %7698 = vmatpush1.bf16.msra.mxu0 %v7259
        %7699 = vmatprep.subr.bf16.mxu0 0
        %7700 = vmatpush1.bf16.msra.mxu0 %v7260
        %7701 = vmatprep.subr.bf16.mxu0 0
        %7702 = vmatpush1.bf16.msra.mxu0 %v7261
        %7703 = vmatprep.subr.bf16.mxu0 0
        %7704 = vmatpush1.bf16.msra.mxu0 %v7262
        %7705 = vmatprep.subr.bf16.mxu0 0
        %7706 = vmatpush1.bf16.msra.mxu0 %v7263
        %7707 = vmatprep.subr.bf16.mxu0 0
        %7708 = vmatpush1.bf16.msra.mxu0 %v7264
        %7709 = vmatprep.subr.bf16.mxu0 0
        %7710 = vmatpush1.bf16.msra.mxu0 %v7265
        %7711 = vmatprep.subr.bf16.mxu0 0
        %7712 = vmatpush1.bf16.msra.mxu0 %v7266
        %7713 = vmatprep.subr.bf16.mxu0 0
        %7714 = vmatpush1.bf16.msra.mxu0 %v7267
        %7715 = vmatprep.subr.bf16.mxu0 0
        %7716 = vmatpush1.bf16.msra.mxu0 %v7268
        %7717 = vmatprep.subr.bf16.mxu0 0
        %7718 = vmatpush1.bf16.msra.mxu0 %v7269
        %7719 = vmatprep.subr.bf16.mxu0 0
        %7720 = vmatpush1.bf16.msra.mxu0 %v7270
        %7721 = vmatprep.mubr.bf16.mxu0 %v6646
        %7722 = vmatmul.mubr.bf16.gmra.mrb[0].mxu0 %v6645
        %v7723 = vpop.f32.mrb[0].mxu0
        %v7724 = vadd.f32 %v7563, %v7723
        %v7725 = vpop.f32.mrb[0].mxu0
        %v7726 = vpop.f32.mrb[0].mxu0
        %v7727 = vadd.f32 %v7566, %v7726
        %v7728 = vpop.f32.mrb[0].mxu0
        %7729 = vmatprep.mubr.bf16.mxu0 %v6655
        %7730 = vmatmul.mubr.bf16.gmra.mrb[0].mxu0 %v6654
        %v7731 = vpop.f32.mrb[0].mxu0
        %v7732 = vadd.f32 %v7571, %v7731
        %v7733 = vpop.f32.mrb[0].mxu0
        %v7734 = vpop.f32.mrb[0].mxu0
        %v7735 = vadd.f32 %v7574, %v7734
        %v7736 = vpop.f32.mrb[0].mxu0
        %7737 = vmatprep.mubr.bf16.mxu0 %v6664
        %7738 = vmatmul.mubr.bf16.gmra.mrb[0].mxu0 %v6663
        %v7739 = vpop.f32.mrb[0].mxu0
        %v7740 = vadd.f32 %v7579, %v7739
        %v7741 = vpop.f32.mrb[0].mxu0
        %v7742 = vpop.f32.mrb[0].mxu0
        %v7743 = vadd.f32 %v7582, %v7742
        %v7744 = vpop.f32.mrb[0].mxu0
        %7745 = vmatprep.mubr.bf16.mxu0 %v6673
        %7746 = vmatmul.mubr.bf16.gmra.mrb[0].mxu0 %v6672
        %v7747 = vpop.f32.mrb[0].mxu0
        %v7748 = vadd.f32 %v7587, %v7747
        %v7749 = vpop.f32.mrb[0].mxu0
        %v7750 = vpop.f32.mrb[0].mxu0
        %v7751 = vadd.f32 %v7590, %v7750
        %v7752 = vpop.f32.mrb[0].mxu0
        %7753 = vmatprep.mubr.bf16.mxu0 %v6682
        %7754 = vmatmul.mubr.bf16.gmra.mrb[0].mxu0 %v6681
        %v7755 = vpop.f32.mrb[0].mxu0
        %v7756 = vadd.f32 %v7595, %v7755
        %v7757 = vpop.f32.mrb[0].mxu0
        %v7758 = vpop.f32.mrb[0].mxu0
        %v7759 = vadd.f32 %v7598, %v7758
        %v7760 = vpop.f32.mrb[0].mxu0
        %7761 = vmatprep.mubr.bf16.mxu0 %v6691
        %7762 = vmatmul.mubr.bf16.gmra.mrb[0].mxu0 %v6690
        %v7763 = vpop.f32.mrb[0].mxu0
        %v7764 = vadd.f32 %v7603, %v7763
        %v7765 = vpop.f32.mrb[0].mxu0
        %v7766 = vpop.f32.mrb[0].mxu0
        %v7767 = vadd.f32 %v7606, %v7766
        %v7768 = vpop.f32.mrb[0].mxu0
        %7769 = vmatprep.mubr.bf16.mxu0 %v6700
        %7770 = vmatmul.mubr.bf16.gmra.mrb[0].mxu0 %v6699
        %v7771 = vpop.f32.mrb[0].mxu0
        %v7772 = vadd.f32 %v7611, %v7771
        %v7773 = vpop.f32.mrb[0].mxu0
        %v7774 = vpop.f32.mrb[0].mxu0
        %v7775 = vadd.f32 %v7614, %v7774
        %v7776 = vpop.f32.mrb[0].mxu0
        %7777 = vmatprep.mubr.bf16.mxu0 %v6709
        %7778 = vmatmul.mubr.bf16.gmra.mrb[0].mxu0 %v6708
        %v7779 = vpop.f32.mrb[0].mxu0
        %v7780 = vadd.f32 %v7619, %v7779
        %v7781 = vpop.f32.mrb[0].mxu0
        %v7782 = vpop.f32.mrb[0].mxu0
        %v7783 = vadd.f32 %v7622, %v7782
        %v7784 = vpop.f32.mrb[0].mxu0
        %7785 = vmatprep.mubr.bf16.mxu0 %v6718
        %7786 = vmatmul.mubr.bf16.gmra.mrb[0].mxu0 %v6717
        %v7787 = vpop.f32.mrb[0].mxu0
        %v7788 = vadd.f32 %v7627, %v7787
        %v7789 = vpop.f32.mrb[0].mxu0
        %v7790 = vpop.f32.mrb[0].mxu0
        %v7791 = vadd.f32 %v7630, %v7790
        %v7792 = vpop.f32.mrb[0].mxu0
        %7793 = vmatprep.mubr.bf16.mxu0 %v6727
        %7794 = vmatmul.mubr.bf16.gmra.mrb[0].mxu0 %v6726
        %v7795 = vpop.f32.mrb[0].mxu0
        %v7796 = vadd.f32 %v7635, %v7795
        %v7797 = vpop.f32.mrb[0].mxu0
        %v7798 = vpop.f32.mrb[0].mxu0
        %v7799 = vadd.f32 %v7638, %v7798
        %v7800 = vpop.f32.mrb[0].mxu0
        %7801 = vmatprep.mubr.bf16.mxu0 %v6736
        %7802 = vmatmul.mubr.bf16.gmra.mrb[0].mxu0 %v6735
        %v7803 = vpop.f32.mrb[0].mxu0
        %v7804 = vadd.f32 %v7643, %v7803
        %v7805 = vpop.f32.mrb[0].mxu0
        %v7806 = vpop.f32.mrb[0].mxu0
        %v7807 = vadd.f32 %v7646, %v7806
        %v7808 = vpop.f32.mrb[0].mxu0
        %7809 = vmatprep.mubr.bf16.mxu0 %v6745
        %7810 = vmatmul.mubr.bf16.gmra.mrb[0].mxu0 %v6744
        %v7811 = vpop.f32.mrb[0].mxu0
        %v7812 = vadd.f32 %v7651, %v7811
        %v7813 = vpop.f32.mrb[0].mxu0
        %v7814 = vpop.f32.mrb[0].mxu0
        %v7815 = vadd.f32 %v7654, %v7814
        %v7816 = vpop.f32.mrb[0].mxu0
        %7817 = vmatprep.mubr.bf16.mxu0 %v6754
        %7818 = vmatmul.mubr.bf16.gmra.mrb[0].mxu0 %v6753
        %v7819 = vpop.f32.mrb[0].mxu0
        %v7820 = vadd.f32 %v7659, %v7819
        %v7821 = vpop.f32.mrb[0].mxu0
        %v7822 = vpop.f32.mrb[0].mxu0
        %v7823 = vadd.f32 %v7662, %v7822
        %v7824 = vpop.f32.mrb[0].mxu0
        %7825 = vmatprep.mubr.bf16.mxu0 %v6763
        %7826 = vmatmul.mubr.bf16.gmra.mrb[0].mxu0 %v6762
        %v7827 = vpop.f32.mrb[0].mxu0
        %v7828 = vadd.f32 %v7667, %v7827
        %v7829 = vpop.f32.mrb[0].mxu0
        %v7830 = vpop.f32.mrb[0].mxu0
        %v7831 = vadd.f32 %v7670, %v7830
        %v7832 = vpop.f32.mrb[0].mxu0
        %7833 = vmatprep.mubr.bf16.mxu0 %v6772
        %7834 = vmatmul.mubr.bf16.gmra.mrb[0].mxu0 %v6771
        %v7835 = vpop.f32.mrb[0].mxu0
        %v7836 = vadd.f32 %v7675, %v7835
        %v7837 = vpop.f32.mrb[0].mxu0
        %v7838 = vpop.f32.mrb[0].mxu0
        %v7839 = vadd.f32 %v7678, %v7838
        %v7840 = vpop.f32.mrb[0].mxu0
        %7841 = vmatprep.mubr.bf16.mxu0 %v6781
        %7842 = vmatmul.mubr.bf16.gmra.mrb[0].mxu0 %v6780
        %v7843 = vpop.f32.mrb[0].mxu0
        %v7844 = vadd.f32 %v7683, %v7843
        %v7845 = vpop.f32.mrb[0].mxu0
        %v7846 = vpop.f32.mrb[0].mxu0
        %v7847 = vadd.f32 %v7686, %v7846
        %v7848 = vpop.f32.mrb[0].mxu0
        %7849 = vdwg.mxu0
        %7850 = vmatprep.subr.bf16.mxu0 0
        %7851 = vmatpush1.bf16.msra.mxu0 %v7271
        %7852 = vmatprep.subr.bf16.mxu0 0
        %7853 = vmatpush1.bf16.msra.mxu0 %v7272
        %7854 = vmatprep.subr.bf16.mxu0 0
        %7855 = vmatpush1.bf16.msra.mxu0 %v7273
        %7856 = vmatprep.subr.bf16.mxu0 0
        %7857 = vmatpush1.bf16.msra.mxu0 %v7274
        %7858 = vmatprep.subr.bf16.mxu0 0
        %7859 = vmatpush1.bf16.msra.mxu0 %v7275
        %7860 = vmatprep.subr.bf16.mxu0 0
        %7861 = vmatpush1.bf16.msra.mxu0 %v7276
        %7862 = vmatprep.subr.bf16.mxu0 0
        %7863 = vmatpush1.bf16.msra.mxu0 %v7277
        %7864 = vmatprep.subr.bf16.mxu0 0
        %7865 = vmatpush1.bf16.msra.mxu0 %v7278
        %7866 = vmatprep.subr.bf16.mxu0 0
        %7867 = vmatpush1.bf16.msra.mxu0 %v7279
        %7868 = vmatprep.subr.bf16.mxu0 0
        %7869 = vmatpush1.bf16.msra.mxu0 %v7280
        %7870 = vmatprep.subr.bf16.mxu0 0
        %7871 = vmatpush1.bf16.msra.mxu0 %v7281
        %7872 = vmatprep.subr.bf16.mxu0 0
        %7873 = vmatpush1.bf16.msra.mxu0 %v7282
        %7874 = vmatprep.subr.bf16.mxu0 0
        %7875 = vmatpush1.bf16.msra.mxu0 %v7283
        %7876 = vmatprep.subr.bf16.mxu0 0
        %7877 = vmatpush1.bf16.msra.mxu0 %v7284
        %7878 = vmatprep.subr.bf16.mxu0 0
        %7879 = vmatpush1.bf16.msra.mxu0 %v7285
        %7880 = vmatprep.subr.bf16.mxu0 0
        %7881 = vmatpush1.bf16.msra.mxu0 %v7286
        %7882 = vmatprep.mubr.bf16.mxu0 %v6648
        %7883 = vmatmul.mubr.bf16.gmra.mrb[0].mxu0 %v6647
        %v7884 = vpop.f32.mrb[0].mxu0
        %v7885 = vadd.f32 %v7724, %v7884
        %v7886 = vpop.f32.mrb[0].mxu0
        %v7887 = vpop.f32.mrb[0].mxu0
        %v7888 = vadd.f32 %v7727, %v7887
        %v7889 = vpop.f32.mrb[0].mxu0
        %7890 = vmatprep.mubr.bf16.mxu0 %v6657
        %7891 = vmatmul.mubr.bf16.gmra.mrb[0].mxu0 %v6656
        %v7892 = vpop.f32.mrb[0].mxu0
        %v7893 = vadd.f32 %v7732, %v7892
        %v7894 = vpop.f32.mrb[0].mxu0
        %v7895 = vpop.f32.mrb[0].mxu0
        %v7896 = vadd.f32 %v7735, %v7895
        %v7897 = vpop.f32.mrb[0].mxu0
        %7898 = vmatprep.mubr.bf16.mxu0 %v6666
        %7899 = vmatmul.mubr.bf16.gmra.mrb[0].mxu0 %v6665
        %v7900 = vpop.f32.mrb[0].mxu0
        %v7901 = vadd.f32 %v7740, %v7900
        %v7902 = vpop.f32.mrb[0].mxu0
        %v7903 = vpop.f32.mrb[0].mxu0
        %v7904 = vadd.f32 %v7743, %v7903
        %v7905 = vpop.f32.mrb[0].mxu0
        %7906 = vmatprep.mubr.bf16.mxu0 %v6675
        %7907 = vmatmul.mubr.bf16.gmra.mrb[0].mxu0 %v6674
        %v7908 = vpop.f32.mrb[0].mxu0
        %v7909 = vadd.f32 %v7748, %v7908
        %v7910 = vpop.f32.mrb[0].mxu0
        %v7911 = vpop.f32.mrb[0].mxu0
        %v7912 = vadd.f32 %v7751, %v7911
        %v7913 = vpop.f32.mrb[0].mxu0
        %7914 = vmatprep.mubr.bf16.mxu0 %v6684
        %7915 = vmatmul.mubr.bf16.gmra.mrb[0].mxu0 %v6683
        %v7916 = vpop.f32.mrb[0].mxu0
        %v7917 = vadd.f32 %v7756, %v7916
        %v7918 = vpop.f32.mrb[0].mxu0
        %v7919 = vpop.f32.mrb[0].mxu0
        %v7920 = vadd.f32 %v7759, %v7919
        %v7921 = vpop.f32.mrb[0].mxu0
        %7922 = vmatprep.mubr.bf16.mxu0 %v6693
        %7923 = vmatmul.mubr.bf16.gmra.mrb[0].mxu0 %v6692
        %v7924 = vpop.f32.mrb[0].mxu0
        %v7925 = vadd.f32 %v7764, %v7924
        %v7926 = vpop.f32.mrb[0].mxu0
        %v7927 = vpop.f32.mrb[0].mxu0
        %v7928 = vadd.f32 %v7767, %v7927
        %v7929 = vpop.f32.mrb[0].mxu0
        %7930 = vmatprep.mubr.bf16.mxu0 %v6702
        %7931 = vmatmul.mubr.bf16.gmra.mrb[0].mxu0 %v6701
        %v7932 = vpop.f32.mrb[0].mxu0
        %v7933 = vadd.f32 %v7772, %v7932
        %v7934 = vpop.f32.mrb[0].mxu0
        %v7935 = vpop.f32.mrb[0].mxu0
        %v7936 = vadd.f32 %v7775, %v7935
        %v7937 = vpop.f32.mrb[0].mxu0
        %7938 = vmatprep.mubr.bf16.mxu0 %v6711
        %7939 = vmatmul.mubr.bf16.gmra.mrb[0].mxu0 %v6710
        %v7940 = vpop.f32.mrb[0].mxu0
        %v7941 = vadd.f32 %v7780, %v7940
        %v7942 = vpop.f32.mrb[0].mxu0
        %v7943 = vpop.f32.mrb[0].mxu0
        %v7944 = vadd.f32 %v7783, %v7943
        %v7945 = vpop.f32.mrb[0].mxu0
        %7946 = vmatprep.mubr.bf16.mxu0 %v6720
        %7947 = vmatmul.mubr.bf16.gmra.mrb[0].mxu0 %v6719
        %v7948 = vpop.f32.mrb[0].mxu0
        %v7949 = vadd.f32 %v7788, %v7948
        %v7950 = vpop.f32.mrb[0].mxu0
        %v7951 = vpop.f32.mrb[0].mxu0
        %v7952 = vadd.f32 %v7791, %v7951
        %v7953 = vpop.f32.mrb[0].mxu0
        %7954 = vmatprep.mubr.bf16.mxu0 %v6729
        %7955 = vmatmul.mubr.bf16.gmra.mrb[0].mxu0 %v6728
        %v7956 = vpop.f32.mrb[0].mxu0
        %v7957 = vadd.f32 %v7796, %v7956
        %v7958 = vpop.f32.mrb[0].mxu0
        %v7959 = vpop.f32.mrb[0].mxu0
        %v7960 = vadd.f32 %v7799, %v7959
        %v7961 = vpop.f32.mrb[0].mxu0
        %7962 = vmatprep.mubr.bf16.mxu0 %v6738
        %7963 = vmatmul.mubr.bf16.gmra.mrb[0].mxu0 %v6737
        %v7964 = vpop.f32.mrb[0].mxu0
        %v7965 = vadd.f32 %v7804, %v7964
        %v7966 = vpop.f32.mrb[0].mxu0
        %v7967 = vpop.f32.mrb[0].mxu0
        %v7968 = vadd.f32 %v7807, %v7967
        %v7969 = vpop.f32.mrb[0].mxu0
        %7970 = vmatprep.mubr.bf16.mxu0 %v6747
        %7971 = vmatmul.mubr.bf16.gmra.mrb[0].mxu0 %v6746
        %v7972 = vpop.f32.mrb[0].mxu0
        %v7973 = vadd.f32 %v7812, %v7972
        %v7974 = vpop.f32.mrb[0].mxu0
        %v7975 = vpop.f32.mrb[0].mxu0
        %v7976 = vadd.f32 %v7815, %v7975
        %v7977 = vpop.f32.mrb[0].mxu0
        %7978 = vmatprep.mubr.bf16.mxu0 %v6756
        %7979 = vmatmul.mubr.bf16.gmra.mrb[0].mxu0 %v6755
        %v7980 = vpop.f32.mrb[0].mxu0
        %v7981 = vadd.f32 %v7820, %v7980
        %v7982 = vpop.f32.mrb[0].mxu0
        %v7983 = vpop.f32.mrb[0].mxu0
        %v7984 = vadd.f32 %v7823, %v7983
        %v7985 = vpop.f32.mrb[0].mxu0
        %7986 = vmatprep.mubr.bf16.mxu0 %v6765
        %7987 = vmatmul.mubr.bf16.gmra.mrb[0].mxu0 %v6764
        %v7988 = vpop.f32.mrb[0].mxu0
        %v7989 = vadd.f32 %v7828, %v7988
        %v7990 = vpop.f32.mrb[0].mxu0
        %v7991 = vpop.f32.mrb[0].mxu0
        %v7992 = vadd.f32 %v7831, %v7991
        %v7993 = vpop.f32.mrb[0].mxu0
        %7994 = vmatprep.mubr.bf16.mxu0 %v6774
        %7995 = vmatmul.mubr.bf16.gmra.mrb[0].mxu0 %v6773
        %v7996 = vpop.f32.mrb[0].mxu0
        %v7997 = vadd.f32 %v7836, %v7996
        %v7998 = vpop.f32.mrb[0].mxu0
        %v7999 = vpop.f32.mrb[0].mxu0
        %v8000 = vadd.f32 %v7839, %v7999
        %v8001 = vpop.f32.mrb[0].mxu0
        %8002 = vmatprep.mubr.bf16.mxu0 %v6783
        %8003 = vmatmul.mubr.bf16.gmra.mrb[0].mxu0 %v6782
        %v8004 = vpop.f32.mrb[0].mxu0
        %v8005 = vadd.f32 %v7844, %v8004
        %v8006 = vpop.f32.mrb[0].mxu0
        %v8007 = vpop.f32.mrb[0].mxu0
        %v8008 = vadd.f32 %v7847, %v8007
        %v8009 = vpop.f32.mrb[0].mxu0
        %8010 = vdwg.mxu0
        %8011 = vmatprep.subr.bf16.mxu0 0
        %8012 = vmatpush1.bf16.msra.mxu0 %v7287
        %8013 = vmatprep.subr.bf16.mxu0 0
        %8014 = vmatpush1.bf16.msra.mxu0 %v7288
        %8015 = vmatprep.subr.bf16.mxu0 0
        %8016 = vmatpush1.bf16.msra.mxu0 %v7289
        %8017 = vmatprep.subr.bf16.mxu0 0
        %8018 = vmatpush1.bf16.msra.mxu0 %v7290
        %8019 = vmatprep.subr.bf16.mxu0 0
        %8020 = vmatpush1.bf16.msra.mxu0 %v7291
        %8021 = vmatprep.subr.bf16.mxu0 0
        %8022 = vmatpush1.bf16.msra.mxu0 %v7292
        %8023 = vmatprep.subr.bf16.mxu0 0
        %8024 = vmatpush1.bf16.msra.mxu0 %v7293
        %8025 = vmatprep.subr.bf16.mxu0 0
        %8026 = vmatpush1.bf16.msra.mxu0 %v7294
        %8027 = vmatprep.subr.bf16.mxu0 0
        %8028 = vmatpush1.bf16.msra.mxu0 0
        %8029 = vmatprep.subr.bf16.mxu0 0
        %8030 = vmatpush1.bf16.msra.mxu0 0
        %8031 = vmatprep.subr.bf16.mxu0 0
        %8032 = vmatpush1.bf16.msra.mxu0 0
        %8033 = vmatprep.subr.bf16.mxu0 0
        %8034 = vmatpush1.bf16.msra.mxu0 0
        %8035 = vmatprep.subr.bf16.mxu0 0
        %8036 = vmatpush1.bf16.msra.mxu0 0
        %8037 = vmatprep.subr.bf16.mxu0 0
        %8038 = vmatpush1.bf16.msra.mxu0 0
        %8039 = vmatprep.subr.bf16.mxu0 0
        %8040 = vmatpush1.bf16.msra.mxu0 0
        %8041 = vmatprep.subr.bf16.mxu0 0
        %8042 = vmatpush1.bf16.msra.mxu0 0
        %8043 = vmatprep.mubr.bf16.mxu0 0
        %8044 = vmatmul.mubr.bf16.gmra.mrb[0].mxu0 %v6649
        %v8045 = vpop.f32.mrb[0].mxu0
        %v8046 = vadd.f32 %v7885, %v8045
        %v8047 = vpop.f32.mrb[0].mxu0
        %v8048 = vpop.f32.mrb[0].mxu0
        %v8049 = vadd.f32 %v7888, %v8048
        %v8050 = vpop.f32.mrb[0].mxu0
        %8051 = vmatprep.mubr.bf16.mxu0 0
        %8052 = vmatmul.mubr.bf16.gmra.mrb[0].mxu0 %v6658
        %v8053 = vpop.f32.mrb[0].mxu0
        %v8054 = vadd.f32 %v7893, %v8053
        %v8055 = vpop.f32.mrb[0].mxu0
        %v8056 = vpop.f32.mrb[0].mxu0
        %v8057 = vadd.f32 %v7896, %v8056
        %v8058 = vpop.f32.mrb[0].mxu0
        %8059 = vmatprep.mubr.bf16.mxu0 0
        %8060 = vmatmul.mubr.bf16.gmra.mrb[0].mxu0 %v6667
        %v8061 = vpop.f32.mrb[0].mxu0
        %v8062 = vadd.f32 %v7901, %v8061
        %v8063 = vpop.f32.mrb[0].mxu0
        %v8064 = vpop.f32.mrb[0].mxu0
        %v8065 = vadd.f32 %v7904, %v8064
        %v8066 = vpop.f32.mrb[0].mxu0
        %8067 = vmatprep.mubr.bf16.mxu0 0
        %8068 = vmatmul.mubr.bf16.gmra.mrb[0].mxu0 %v6676
        %v8069 = vpop.f32.mrb[0].mxu0
        %v8070 = vadd.f32 %v7909, %v8069
        %v8071 = vpop.f32.mrb[0].mxu0
        %v8072 = vpop.f32.mrb[0].mxu0
        %v8073 = vadd.f32 %v7912, %v8072
        %v8074 = vpop.f32.mrb[0].mxu0
        %8075 = vmatprep.mubr.bf16.mxu0 0
        %8076 = vmatmul.mubr.bf16.gmra.mrb[0].mxu0 %v6685
        %v8077 = vpop.f32.mrb[0].mxu0
        %v8078 = vadd.f32 %v7917, %v8077
        %v8079 = vpop.f32.mrb[0].mxu0
        %v8080 = vpop.f32.mrb[0].mxu0
        %v8081 = vadd.f32 %v7920, %v8080
        %v8082 = vpop.f32.mrb[0].mxu0
        %8083 = vmatprep.mubr.bf16.mxu0 0
        %8084 = vmatmul.mubr.bf16.gmra.mrb[0].mxu0 %v6694
        %v8085 = vpop.f32.mrb[0].mxu0
        %v8086 = vadd.f32 %v7925, %v8085
        %v8087 = vpop.f32.mrb[0].mxu0
        %v8088 = vpop.f32.mrb[0].mxu0
        %v8089 = vadd.f32 %v7928, %v8088
        %v8090 = vpop.f32.mrb[0].mxu0
        %8091 = vmatprep.mubr.bf16.mxu0 0
        %8092 = vmatmul.mubr.bf16.gmra.mrb[0].mxu0 %v6703
        %v8093 = vpop.f32.mrb[0].mxu0
        %v8094 = vadd.f32 %v7933, %v8093
        %v8095 = vpop.f32.mrb[0].mxu0
        %v8096 = vpop.f32.mrb[0].mxu0
        %v8097 = vadd.f32 %v7936, %v8096
        %v8098 = vpop.f32.mrb[0].mxu0
        %8099 = vmatprep.mubr.bf16.mxu0 0
        %8100 = vmatmul.mubr.bf16.gmra.mrb[0].mxu0 %v6712
        %v8101 = vpop.f32.mrb[0].mxu0
        %v8102 = vadd.f32 %v7941, %v8101
        %v8103 = vpop.f32.mrb[0].mxu0
        %v8104 = vpop.f32.mrb[0].mxu0
        %v8105 = vadd.f32 %v7944, %v8104
        %v8106 = vpop.f32.mrb[0].mxu0
        %8107 = vmatprep.mubr.bf16.mxu0 0
        %8108 = vmatmul.mubr.bf16.gmra.mrb[0].mxu0 %v6721
        %v8109 = vpop.f32.mrb[0].mxu0
        %v8110 = vadd.f32 %v7949, %v8109
        %v8111 = vpop.f32.mrb[0].mxu0
        %v8112 = vpop.f32.mrb[0].mxu0
        %v8113 = vadd.f32 %v7952, %v8112
        %v8114 = vpop.f32.mrb[0].mxu0
        %8115 = vmatprep.mubr.bf16.mxu0 0
        %8116 = vmatmul.mubr.bf16.gmra.mrb[0].mxu0 %v6730
        %v8117 = vpop.f32.mrb[0].mxu0
        %v8118 = vadd.f32 %v7957, %v8117
        %v8119 = vpop.f32.mrb[0].mxu0
        %v8120 = vpop.f32.mrb[0].mxu0
        %v8121 = vadd.f32 %v7960, %v8120
        %v8122 = vpop.f32.mrb[0].mxu0
        %8123 = vmatprep.mubr.bf16.mxu0 0
        %8124 = vmatmul.mubr.bf16.gmra.mrb[0].mxu0 %v6739
        %v8125 = vpop.f32.mrb[0].mxu0
        %v8126 = vadd.f32 %v7965, %v8125
        %v8127 = vpop.f32.mrb[0].mxu0
        %v8128 = vpop.f32.mrb[0].mxu0
        %v8129 = vadd.f32 %v7968, %v8128
        %v8130 = vpop.f32.mrb[0].mxu0
        %8131 = vmatprep.mubr.bf16.mxu0 0
        %8132 = vmatmul.mubr.bf16.gmra.mrb[0].mxu0 %v6748
        %v8133 = vpop.f32.mrb[0].mxu0
        %v8134 = vadd.f32 %v7973, %v8133
        %v8135 = vpop.f32.mrb[0].mxu0
        %v8136 = vpop.f32.mrb[0].mxu0
        %v8137 = vadd.f32 %v7976, %v8136
        %v8138 = vpop.f32.mrb[0].mxu0
        %8139 = vmatprep.mubr.bf16.mxu0 0
        %8140 = vmatmul.mubr.bf16.gmra.mrb[0].mxu0 %v6757
        %v8141 = vpop.f32.mrb[0].mxu0
        %v8142 = vadd.f32 %v7981, %v8141
        %v8143 = vpop.f32.mrb[0].mxu0
        %v8144 = vpop.f32.mrb[0].mxu0
        %v8145 = vadd.f32 %v7984, %v8144
        %v8146 = vpop.f32.mrb[0].mxu0
        %8147 = vmatprep.mubr.bf16.mxu0 0
        %8148 = vmatmul.mubr.bf16.gmra.mrb[0].mxu0 %v6766
        %v8149 = vpop.f32.mrb[0].mxu0
        %v8150 = vadd.f32 %v7989, %v8149
        %v8151 = vpop.f32.mrb[0].mxu0
        %v8152 = vpop.f32.mrb[0].mxu0
        %v8153 = vadd.f32 %v7992, %v8152
        %v8154 = vpop.f32.mrb[0].mxu0
        %8155 = vmatprep.mubr.bf16.mxu0 0
        %8156 = vmatmul.mubr.bf16.gmra.mrb[0].mxu0 %v6775
        %v8157 = vpop.f32.mrb[0].mxu0
        %v8158 = vadd.f32 %v7997, %v8157
        %v8159 = vpop.f32.mrb[0].mxu0
        %v8160 = vpop.f32.mrb[0].mxu0
        %v8161 = vadd.f32 %v8000, %v8160
        %v8162 = vpop.f32.mrb[0].mxu0
        %8163 = vmatprep.mubr.bf16.mxu0 0
        %8164 = vmatmul.mubr.bf16.gmra.mrb[0].mxu0 %v6784
        %v8165 = vpop.f32.mrb[0].mxu0
        %v8166 = vadd.f32 %v8005, %v8165
        %v8167 = vpop.f32.mrb[0].mxu0
        %v8168 = vpop.f32.mrb[0].mxu0
        %v8169 = vadd.f32 %v8008, %v8168
        %v8170 = vpop.f32.mrb[0].mxu0
        %8171 = vdwg.mxu0
        %v8172 = vld [vmem:[%s459] sm:$0xff]
        %v8173 = vld [vmem:[%s459 + $0x8] sm:$0xff]
        %v8174 = vld [vmem:[%s459 + $0x10] sm:$0xff]
        %v8175 = vld [vmem:[%s459 + $0x18] sm:$0xff]
        %v8176 = vld [vmem:[%s459 + $0x20] sm:$0xff]
        %v8177 = vld [vmem:[%s459 + $0x28] sm:$0xff]
        %v8178 = vld [vmem:[%s459 + $0x30] sm:$0xff]
        %v8179 = vld [vmem:[%s459 + $0x38] sm:$0xff]
        %v8180 = vld [vmem:[%s459 + $0x40] sm:$0xff]
        %v8181 = vld [vmem:[%s459 + $0x48] sm:$0xff]
        %v8182 = vld [vmem:[%s459 + $0x50] sm:$0xff]
        %v8183 = vld [vmem:[%s459 + $0x58] sm:$0xff]
        %v8184 = vld [vmem:[%s459 + $0x60] sm:$0xff]
        %v8185 = vld [vmem:[%s459 + $0x68] sm:$0xff]
        %v8186 = vld [vmem:[%s459 + $0x70] sm:$0xff]
        %v8187 = vld [vmem:[%s459 + $0x78] sm:$0xff]
        %v8188 = vld [vmem:[%s459 + $0x80] sm:$0xff]
        %v8189 = vld [vmem:[%s459 + $0x88] sm:$0xff]
        %v8190 = vld [vmem:[%s459 + $0x90] sm:$0xff]
        %v8191 = vld [vmem:[%s459 + $0x98] sm:$0xff]
        %v8192 = vld [vmem:[%s459 + $0xa0] sm:$0xff]
        %v8193 = vld [vmem:[%s459 + $0xa8] sm:$0xff]
        %v8194 = vld [vmem:[%s459 + $0xb0] sm:$0xff]
        %v8195 = vld [vmem:[%s459 + $0xb8] sm:$0xff]
        %v8196 = vld [vmem:[%s459 + $0xc0] sm:$0xff]
        %v8197 = vld [vmem:[%s459 + $0xc8] sm:$0xff]
        %v8198 = vld [vmem:[%s459 + $0xd0] sm:$0xff]
        %v8199 = vld [vmem:[%s459 + $0xd8] sm:$0xff]
        %v8200 = vld [vmem:[%s459 + $0xe0] sm:$0xff]
        %v8201 = vld [vmem:[%s459 + $0xe8] sm:$0xff]
        %v8202 = vld [vmem:[%s459 + $0xf0] sm:$0xff]
        %v8203 = vld [vmem:[%s459 + $0xf8] sm:$0xff]
        %v8204 = vadd.f32 %v8046, %v8172
        %v8205 = vadd.f32 %v8049, %v8173
        %v8206 = vadd.f32 %v8054, %v8174
        %v8207 = vadd.f32 %v8057, %v8175
        %v8208 = vadd.f32 %v8062, %v8176
        %v8209 = vadd.f32 %v8065, %v8177
        %v8210 = vadd.f32 %v8070, %v8178
        %v8211 = vadd.f32 %v8073, %v8179
        %v8212 = vadd.f32 %v8078, %v8180
        %v8213 = vadd.f32 %v8081, %v8181
        %v8214 = vadd.f32 %v8086, %v8182
        %v8215 = vadd.f32 %v8089, %v8183
        %v8216 = vadd.f32 %v8094, %v8184
        %v8217 = vadd.f32 %v8097, %v8185
        %v8218 = vadd.f32 %v8102, %v8186
        %v8219 = vadd.f32 %v8105, %v8187
        %v8220 = vadd.f32 %v8110, %v8188
        %v8221 = vadd.f32 %v8113, %v8189
        %v8222 = vadd.f32 %v8118, %v8190
        %v8223 = vadd.f32 %v8121, %v8191
        %v8224 = vadd.f32 %v8126, %v8192
        %v8225 = vadd.f32 %v8129, %v8193
        %v8226 = vadd.f32 %v8134, %v8194
        %v8227 = vadd.f32 %v8137, %v8195
        %v8228 = vadd.f32 %v8142, %v8196
        %v8229 = vadd.f32 %v8145, %v8197
        %v8230 = vadd.f32 %v8150, %v8198
        %v8231 = vadd.f32 %v8153, %v8199
        %v8232 = vadd.f32 %v8158, %v8200
        %v8233 = vadd.f32 %v8161, %v8201
        %v8234 = vadd.f32 %v8166, %v8202
        %v8235 = vadd.f32 %v8169, %v8203
        %8236 = vst [vmem:[%s537] sm:$0xff] %v8204
        %8237 = vst [vmem:[%s537 + $0x8] sm:$0xff] %v8205
        %8238 = vst [vmem:[%s537 + $0x10] sm:$0xff] %v8206
        %8239 = vst [vmem:[%s537 + $0x18] sm:$0xff] %v8207
        %8240 = vst [vmem:[%s537 + $0x20] sm:$0xff] %v8208
        %8241 = vst [vmem:[%s537 + $0x28] sm:$0xff] %v8209
        %8242 = vst [vmem:[%s537 + $0x30] sm:$0xff] %v8210
        %8243 = vst [vmem:[%s537 + $0x38] sm:$0xff] %v8211
        %8244 = vst [vmem:[%s537 + $0x40] sm:$0xff] %v8212
        %8245 = vst [vmem:[%s537 + $0x48] sm:$0xff] %v8213
        %8246 = vst [vmem:[%s537 + $0x50] sm:$0xff] %v8214
        %8247 = vst [vmem:[%s537 + $0x58] sm:$0xff] %v8215
        %8248 = vst [vmem:[%s537 + $0x60] sm:$0xff] %v8216
        %8249 = vst [vmem:[%s537 + $0x68] sm:$0xff] %v8217
        %8250 = vst [vmem:[%s537 + $0x70] sm:$0xff] %v8218
        %8251 = vst [vmem:[%s537 + $0x78] sm:$0xff] %v8219
        %8252 = vst [vmem:[%s537 + $0x80] sm:$0xff] %v8220
        %8253 = vst [vmem:[%s537 + $0x88] sm:$0xff] %v8221
        %8254 = vst [vmem:[%s537 + $0x90] sm:$0xff] %v8222
        %8255 = vst [vmem:[%s537 + $0x98] sm:$0xff] %v8223
        %8256 = vst [vmem:[%s537 + $0xa0] sm:$0xff] %v8224
        %8257 = vst [vmem:[%s537 + $0xa8] sm:$0xff] %v8225
        %8258 = vst [vmem:[%s537 + $0xb0] sm:$0xff] %v8226
        %8259 = vst [vmem:[%s537 + $0xb8] sm:$0xff] %v8227
        %8260 = vst [vmem:[%s537 + $0xc0] sm:$0xff] %v8228
        %8261 = vst [vmem:[%s537 + $0xc8] sm:$0xff] %v8229
        %8262 = vst [vmem:[%s537 + $0xd0] sm:$0xff] %v8230
        %8263 = vst [vmem:[%s537 + $0xd8] sm:$0xff] %v8231
        %8264 = vst [vmem:[%s537 + $0xe0] sm:$0xff] %v8232
        %8265 = vst [vmem:[%s537 + $0xe8] sm:$0xff] %v8233
        %8266 = vst [vmem:[%s537 + $0xf0] sm:$0xff] %v8234
        %8267 = vst [vmem:[%s537 + $0xf8] sm:$0xff] %v8235
        %s8268 = sand.u32 %s277, 1
        %s8269 = scalar_lea.sflag [#allocation6], %s8268
        %s8270 = sand.u32 %s277, 1
        %s8271 = smul.addr %s8270, 256
        %s8272 = scalar_lea.vmem [#allocation22], %s8271
        // Predicated region
        $region109: #{tpu_custom_call.1} parent=63 // pred_check
          %p8273 = pneg %p287
        $region110: #{tpu_custom_call.1} parent=63 // pred_check_branch
          %8275 = sbr.rel (%p8273) target = $region112
        $region111: #{tpu_custom_call.1} parent=63 // pred_region
          %s8277 = ssub.s32 4096, 4096
          %8278 = vsyncadd %s8269, %s8277
          %s8279 = smul.addr %s33, 32
          %s8280 = smul.addr %s8279, 128
          %s8281 = scalar_lea.hbm %s11, %s8280
          %s8282 = sshll.u32 %s8272, 4
          %s8283 = int_to_ptr.vmem [resolvable:$true] %s8282
          %8288 = dma.vmem_to_hbm [thread:$0]  %s8283, 4096, %s8281, %s8269, 128, 128, 8
        $region112: #{tpu_custom_call.1} parent=63 // pred_fallthru
          _
      $region64: #{tpu_custom_call.1} parent=5 // pred_fallthru
        _
      %p8289 = scmp.le.s32.totalorder 2, %s28
      // Predicated region
      $region113: #{tpu_custom_call.1} parent=5 // pred_check
        %p8290 = pneg %p8289
      $region114: #{tpu_custom_call.1} parent=5 // pred_check_branch
        %8292 = sbr.rel (%p8290) target = $region116
      $region115: #{tpu_custom_call.1} parent=5 // pred_region
        %s8293 = ssub.s32 %s28, 2
        // Predicated region
        $region117: #{tpu_custom_call.1} parent=115 // pred_check
          %p8294 = pneg %p293
        $region118: #{tpu_custom_call.1} parent=115 // pred_check_branch
          %8296 = sbr.rel (%p8294) target = $region120
        $region119: #{tpu_custom_call.1} parent=115 // pred_region
          %s8297 = sand.u32 %s278, 1
          %s8298 = scalar_lea.sflag [#allocation6], %s8297
          %s8299 = sand.u32 %s278, 1
          %s8300 = smul.addr %s8299, 256
          %s8301 = scalar_lea.vmem [#allocation22], %s8300
          %8302 = dma.done %s8298, 4096
        $region120: #{tpu_custom_call.1} parent=115 // pred_fallthru
          _
      $region116: #{tpu_custom_call.1} parent=5 // pred_fallthru
        _
    $region6: #{tpu_custom_call.1} parent=1 // loop_footer
      %s32 = sadd.s32 1, %s28
    $region7: #{tpu_custom_call.1} parent=1 // loop_footer_branch
      %27 = sbr.rel target = $region3
    $region8: #{tpu_custom_call.1} parent=1 // loop_exit
      _
    %8303 = vsyncpa [#allocation5], 1
    %s8304 = scalar_lea.sflag [#allocation5], 1
    %8305 = vsyncpa %s8304, 1
    %8306 = vsyncpa [#allocation8], 1
    %8307 = vsyncpa [#allocation11], 1
    %8308 = vsyncpa [#allocation14], 1
    %8309 = vsyncpa [#allocation17], 1
    %8310 = vsyncpa [#allocation20], 1
    %8311 = vsyncpa [#allocation6], 1
    %s8312 = scalar_lea.sflag [#allocation6], 1
    %8313 = vsyncpa %s8312, 1

</llo_original>
